<compile_context>
chip_gen: v7x
topology: tpu7x:2x2x1
jax: 0.10.0
libtpu: 0.0.40
codegen_flags: <defaults>
</compile_context>

<pallas_src>
import functools

import jax
import jax.numpy as jnp
import numpy as np
from jax.experimental import pallas as pl
from jax.experimental.pallas import tpu as pltpu

ENC_DIMS = [28 * 28, 128, 64, 12, 3]
DEC_DIMS = [3, 12, 64, 128, 28 * 28]

F_IN = 28 * 28        # 784 real feature width
F_PAD = 896           # 7 * 128 lane-aligned feature width
ENC_OUT = 3           # real bottleneck width
ENC_PAD = 128         # lane-aligned bottleneck width


# --------------------------------------------------------------------------
# Kernel
# --------------------------------------------------------------------------
def ae_kernel(x_ref,
              we0, be0, we1, be1, we2, be2, we3, be3,
              wd0, bd0, wd1, bd1, wd2, bd2, wd3, bd3,
              enc_ref, dec_ref):
    def sigmoid(v):
        # exp -> EUP, approximate reciprocal -> EUP; no VPU divide.
        return pl.reciprocal(1.0 + jnp.exp(-v), approx=True)

    def dense(a, w_ref, b_ref):
        # bf16 x bf16 matmul with f32 accumulation on the MXU, f32 bias add.
        return jnp.dot(a.astype(jnp.bfloat16), w_ref[...],
                       preferred_element_type=jnp.float32) + b_ref[...]

    x = x_ref[...]                                     # (tb, 896) bf16

    # ---- encoder: Linear+Sigmoid x3, then Linear (no activation) ----
    h = sigmoid(dense(x, we0, be0))                    # (tb, 128)
    h = sigmoid(dense(h, we1, be1))                    # (tb, 64)
    h = sigmoid(dense(h, we2, be2))                    # (tb, 12)
    enc = dense(h, we3, be3)                           # (tb, 128); cols 3.. are 0
    enc_ref[...] = enc.astype(enc_ref.dtype)           # lane-dense 128-wide store

    # ---- decoder: Linear+ReLU x3, then Linear+Sigmoid ----
    d = jnp.maximum(dense(enc, wd0, bd0), 0.0)         # (tb, 12)
    d = jnp.maximum(dense(d, wd1, bd1), 0.0)           # (tb, 64)
    d = jnp.maximum(dense(d, wd2, bd2), 0.0)           # (tb, 128)
    d = sigmoid(dense(d, wd3, bd3))                    # (tb, 896); cols 784.. sliced off
    dec_ref[...] = d.astype(dec_ref.dtype)


# --------------------------------------------------------------------------
# Parameter helpers
# --------------------------------------------------------------------------
def init_params(key):
    """Deterministic init mimicking PyTorch's default U(-1/sqrt(fan_in), +...).

    Weights are stored pre-transposed as (in_features, out_features) so the
    kernel computes y = x @ W + b; biases are (1, out_features).
    """
    params = []
    layer_dims = list(zip(ENC_DIMS[:-1], ENC_DIMS[1:])) + \
                 list(zip(DEC_DIMS[:-1], DEC_DIMS[1:]))
    for fan_in, fan_out in layer_dims:
        key, kw, kb = jax.random.split(key, 3)
        bound = 1.0 / float(np.sqrt(fan_in))
        w = jax.random.uniform(kw, (fan_in, fan_out), jnp.float32, -bound, bound)
        b = jax.random.uniform(kb, (1, fan_out), jnp.float32, -bound, bound)
        params.append((w, b))
    return params


def prepare_params(params):
    """One-time pad to lane-aligned shapes and cast weights to bf16.

    Zero-padding keeps the math identical:
      enc0 W: (784,128)->(896,128)   enc3 W: (64,3)->(64,128), b: (1,3)->(1,128)
      dec0 W: (3,12)->(128,12)       dec3 W: (128,784)->(128,896), b -> (1,896)
    Biases stay f32 (tiny); weights become bf16 (halves DMA bytes & VMEM).
    """
    (we0, be0), (we1, be1), (we2, be2), (we3, be3) = params[:4]
    (wd0, bd0), (wd1, bd1), (wd2, bd2), (wd3, bd3) = params[4:]

    bf = lambda w: w.astype(jnp.bfloat16)
    return [
        (bf(jnp.pad(we0, ((0, F_PAD - F_IN), (0, 0)))), be0),
        (bf(we1), be1),
        (bf(we2), be2),
        (bf(jnp.pad(we3, ((0, 0), (0, ENC_PAD - ENC_OUT)))),
         jnp.pad(be3, ((0, 0), (0, ENC_PAD - ENC_OUT)))),
        (bf(jnp.pad(wd0, ((0, ENC_PAD - ENC_OUT), (0, 0)))), bd0),
        (bf(wd1), bd1),
        (bf(wd2), bd2),
        (bf(jnp.pad(wd3, ((0, 0), (0, F_PAD - F_IN)))),
         jnp.pad(bd3, ((0, 0), (0, F_PAD - F_IN)))),
    ]


# --------------------------------------------------------------------------
# Wrapper
# --------------------------------------------------------------------------
@functools.partial(jax.jit, static_argnames=("tb",))
def encoder_decoder(x, prep_params, *, tb=256):
    """Forward pass.  x: (B, 784) f32.  Returns (enc (B,3) f32, dec (B,784) f32)."""
    B, F = x.shape
    assert F == F_IN

    # Pad batch to a multiple of tb and the feature axis to 896; stream x as bf16.
    B_pad = ((B + tb - 1) // tb) * tb
    xp = jnp.pad(x, ((0, B_pad - B), (0, F_PAD - F))).astype(jnp.bfloat16)

    flat = [xp]
    in_specs = [pl.BlockSpec((tb, F_PAD), lambda i: (i, 0))]
    for w, b in prep_params:
        # Constant index_map: weights/biases are DMA'd once, not per grid step.
        in_specs.append(pl.BlockSpec(w.shape, lambda i: (0, 0)))
        in_specs.append(pl.BlockSpec(b.shape, lambda i: (0, 0)))
        flat += [w, b]

    out_specs = [pl.BlockSpec((tb, ENC_PAD), lambda i: (i, 0)),
                 pl.BlockSpec((tb, F_PAD), lambda i: (i, 0))]
    out_shape = [jax.ShapeDtypeStruct((B_pad, ENC_PAD), jnp.float32),
                 jax.ShapeDtypeStruct((B_pad, F_PAD), jnp.float32)]

    enc_p, dec_p = pl.pallas_call(
        ae_kernel,
        grid=(B_pad // tb,),
        in_specs=in_specs,
        out_specs=out_specs,
        out_shape=out_shape,
        compiler_params=pltpu.CompilerParams(
            dimension_semantics=("parallel",),      # megacore sharding on v7x
            vmem_limit_bytes=32 * 1024 * 1024),     # safe on v5e/v6e/v7x
    )(*flat)

    # Strip the lane/batch padding.
    return enc_p[:B, :ENC_OUT], dec_p[:B, :F_IN]


def reference_forward(x, params):
    """Pure-JAX f32 reference matching the PyTorch module semantics."""
    enc_p, dec_p = params[:4], params[4:]
    h = x
    for i, (w, b) in enumerate(enc_p):
        h = h @ w + b
        if i < 3:
            h = jax.nn.sigmoid(h)
    enc = h
    d = enc
    for i, (w, b) in enumerate(dec_p):
        d = d @ w + b
        d = jax.nn.relu(d) if i < 3 else jax.nn.sigmoid(d)
    return enc, d


if __name__ == "__main__":
    key = jax.random.PRNGKey(0)
    kx, kp = jax.random.split(key)

    B = 512                                    # 2 grid steps of tb=256
    x = jax.random.uniform(kx, (B, F_IN), jnp.float32)   # flattened MNIST-like input
    params = init_params(kp)
    prep = prepare_params(params)

    enc, dec = encoder_decoder(x, prep, tb=256)
    jax.block_until_ready((enc, dec))

    # bf16 matmul inputs with f32 accumulation -> loosened tolerance vs f32 reference.
    enc_ref, dec_ref = reference_forward(x, params)
    np.testing.assert_allclose(np.asarray(enc), np.asarray(enc_ref), rtol=2e-2, atol=2e-2)
    np.testing.assert_allclose(np.asarray(dec), np.asarray(dec_ref), rtol=2e-2, atol=2e-2)

    assert enc.shape == (B, ENC_OUT) and dec.shape == (B, F_IN)
    print("KERNEL_OK")
</pallas_src>

<mosaic_0001>
module attributes {stable_mosaic.version = 11 : i64} {
  func.func @ae_kernel(%arg0: i32, %arg1: memref<256x896xbf16, #tpu.memory_space<vmem>>, %arg2: memref<896x128xbf16, #tpu.memory_space<vmem>>, %arg3: memref<1x128xf32, #tpu.memory_space<vmem>>, %arg4: memref<128x64xbf16, #tpu.memory_space<vmem>>, %arg5: memref<1x64xf32, #tpu.memory_space<vmem>>, %arg6: memref<64x12xbf16, #tpu.memory_space<vmem>>, %arg7: memref<1x12xf32, #tpu.memory_space<vmem>>, %arg8: memref<12x128xbf16, #tpu.memory_space<vmem>>, %arg9: memref<1x128xf32, #tpu.memory_space<vmem>>, %arg10: memref<128x12xbf16, #tpu.memory_space<vmem>>, %arg11: memref<1x12xf32, #tpu.memory_space<vmem>>, %arg12: memref<12x64xbf16, #tpu.memory_space<vmem>>, %arg13: memref<1x64xf32, #tpu.memory_space<vmem>>, %arg14: memref<64x128xbf16, #tpu.memory_space<vmem>>, %arg15: memref<1x128xf32, #tpu.memory_space<vmem>>, %arg16: memref<128x896xbf16, #tpu.memory_space<vmem>>, %arg17: memref<1x896xf32, #tpu.memory_space<vmem>>, %arg18: memref<256x128xf32, #tpu.memory_space<vmem>>, %arg19: memref<256x896xf32, #tpu.memory_space<vmem>>) attributes {dimension_semantics = [#tpu.dimension_semantics<parallel>], iteration_bounds = array<i64: 2>, scalar_prefetch = 0 : i64, scratch_operands = 0 : i64, tpu.core_type = #tpu.core_type<tc>, window_params = [{transform_indices = @transform_0, window_bounds = array<i64: 256, 896>}, {pipeline_mode = #tpu.pipeline_mode<synchronous>, transform_indices = @transform_1, window_bounds = array<i64: 896, 128>}, {pipeline_mode = #tpu.pipeline_mode<synchronous>, transform_indices = @transform_2, window_bounds = array<i64: 1, 128>}, {pipeline_mode = #tpu.pipeline_mode<synchronous>, transform_indices = @transform_3, window_bounds = array<i64: 128, 64>}, {pipeline_mode = #tpu.pipeline_mode<synchronous>, transform_indices = @transform_4, window_bounds = array<i64: 1, 64>}, {pipeline_mode = #tpu.pipeline_mode<synchronous>, transform_indices = @transform_5, window_bounds = array<i64: 64, 12>}, {pipeline_mode = #tpu.pipeline_mode<synchronous>, transform_indices = @transform_6, window_bounds = array<i64: 1, 12>}, {pipeline_mode = #tpu.pipeline_mode<synchronous>, transform_indices = @transform_7, window_bounds = array<i64: 12, 128>}, {pipeline_mode = #tpu.pipeline_mode<synchronous>, transform_indices = @transform_8, window_bounds = array<i64: 1, 128>}, {pipeline_mode = #tpu.pipeline_mode<synchronous>, transform_indices = @transform_9, window_bounds = array<i64: 128, 12>}, {pipeline_mode = #tpu.pipeline_mode<synchronous>, transform_indices = @transform_10, window_bounds = array<i64: 1, 12>}, {pipeline_mode = #tpu.pipeline_mode<synchronous>, transform_indices = @transform_11, window_bounds = array<i64: 12, 64>}, {pipeline_mode = #tpu.pipeline_mode<synchronous>, transform_indices = @transform_12, window_bounds = array<i64: 1, 64>}, {pipeline_mode = #tpu.pipeline_mode<synchronous>, transform_indices = @transform_13, window_bounds = array<i64: 64, 128>}, {pipeline_mode = #tpu.pipeline_mode<synchronous>, transform_indices = @transform_14, window_bounds = array<i64: 1, 128>}, {pipeline_mode = #tpu.pipeline_mode<synchronous>, transform_indices = @transform_15, window_bounds = array<i64: 128, 896>}, {pipeline_mode = #tpu.pipeline_mode<synchronous>, transform_indices = @transform_16, window_bounds = array<i64: 1, 896>}, {transform_indices = @transform_17, window_bounds = array<i64: 256, 128>}, {transform_indices = @transform_18, window_bounds = array<i64: 256, 896>}]} {
    %c0 = arith.constant 0 : index
    %c0_0 = arith.constant 0 : index
    %0 = vector.load %arg1[%c0, %c0_0] : memref<256x896xbf16, #tpu.memory_space<vmem>>, vector<256x896xbf16>
    %c0_1 = arith.constant 0 : index
    %c0_2 = arith.constant 0 : index
    %1 = vector.load %arg2[%c0_1, %c0_2] : memref<896x128xbf16, #tpu.memory_space<vmem>>, vector<896x128xbf16>
    %cst = arith.constant dense<0.000000e+00> : vector<256x128xf32>
    %2 = tpu.matmul %0, %1, %cst {dimension_numbers = #tpu.dot_dimension_numbers<[1], [0], [0], [1], [0, 0, 1, 1], [], []>} : vector<256x896xbf16>, vector<896x128xbf16>, vector<256x128xf32> -> vector<256x128xf32>
    %c0_3 = arith.constant 0 : index
    %c0_4 = arith.constant 0 : index
    %3 = vector.load %arg3[%c0_3, %c0_4] : memref<1x128xf32, #tpu.memory_space<vmem>>, vector<1x128xf32>
    %4 = vector.broadcast %3 : vector<1x128xf32> to vector<256x128xf32>
    %5 = arith.addf %2, %4 : vector<256x128xf32>
    %cst_5 = arith.constant 0.000000e+00 : f32
    %6 = vector.broadcast %cst_5 : f32 to vector<256x128xf32>
    %7 = arith.subf %6, %5 : vector<256x128xf32>
    %8 = math.exp %7 : vector<256x128xf32>
    %cst_6 = arith.constant 1.000000e+00 : f32
    %9 = vector.broadcast %cst_6 : f32 to vector<256x128xf32>
    %10 = arith.addf %9, %8 : vector<256x128xf32>
    %11 = tpu.reciprocal %10 {approx = true} : vector<256x128xf32> -> vector<256x128xf32>
    %12 = arith.truncf %11 : vector<256x128xf32> to vector<256x128xbf16>
    %c0_7 = arith.constant 0 : index
    %c0_8 = arith.constant 0 : index
    %13 = vector.load %arg4[%c0_7, %c0_8] : memref<128x64xbf16, #tpu.memory_space<vmem>>, vector<128x64xbf16>
    %cst_9 = arith.constant dense<0.000000e+00> : vector<256x64xf32>
    %14 = tpu.matmul %12, %13, %cst_9 {dimension_numbers = #tpu.dot_dimension_numbers<[1], [0], [0], [1], [0, 0, 1, 1], [], []>} : vector<256x128xbf16>, vector<128x64xbf16>, vector<256x64xf32> -> vector<256x64xf32>
    %c0_10 = arith.constant 0 : index
    %c0_11 = arith.constant 0 : index
    %15 = vector.load %arg5[%c0_10, %c0_11] : memref<1x64xf32, #tpu.memory_space<vmem>>, vector<1x64xf32>
    %16 = vector.broadcast %15 : vector<1x64xf32> to vector<256x64xf32>
    %17 = arith.addf %14, %16 : vector<256x64xf32>
    %cst_12 = arith.constant 0.000000e+00 : f32
    %18 = vector.broadcast %cst_12 : f32 to vector<256x64xf32>
    %19 = arith.subf %18, %17 : vector<256x64xf32>
    %20 = math.exp %19 : vector<256x64xf32>
    %cst_13 = arith.constant 1.000000e+00 : f32
    %21 = vector.broadcast %cst_13 : f32 to vector<256x64xf32>
    %22 = arith.addf %21, %20 : vector<256x64xf32>
    %23 = tpu.reciprocal %22 {approx = true} : vector<256x64xf32> -> vector<256x64xf32>
    %24 = arith.truncf %23 : vector<256x64xf32> to vector<256x64xbf16>
    %c0_14 = arith.constant 0 : index
    %c0_15 = arith.constant 0 : index
    %25 = vector.load %arg6[%c0_14, %c0_15] : memref<64x12xbf16, #tpu.memory_space<vmem>>, vector<64x12xbf16>
    %cst_16 = arith.constant dense<0.000000e+00> : vector<256x12xf32>
    %26 = tpu.matmul %24, %25, %cst_16 {dimension_numbers = #tpu.dot_dimension_numbers<[1], [0], [0], [1], [0, 0, 1, 1], [], []>} : vector<256x64xbf16>, vector<64x12xbf16>, vector<256x12xf32> -> vector<256x12xf32>
    %c0_17 = arith.constant 0 : index
    %c0_18 = arith.constant 0 : index
    %27 = vector.load %arg7[%c0_17, %c0_18] : memref<1x12xf32, #tpu.memory_space<vmem>>, vector<1x12xf32>
    %28 = vector.broadcast %27 : vector<1x12xf32> to vector<256x12xf32>
    %29 = arith.addf %26, %28 : vector<256x12xf32>
    %cst_19 = arith.constant 0.000000e+00 : f32
    %30 = vector.broadcast %cst_19 : f32 to vector<256x12xf32>
    %31 = arith.subf %30, %29 : vector<256x12xf32>
    %32 = math.exp %31 : vector<256x12xf32>
    %cst_20 = arith.constant 1.000000e+00 : f32
    %33 = vector.broadcast %cst_20 : f32 to vector<256x12xf32>
    %34 = arith.addf %33, %32 : vector<256x12xf32>
    %35 = tpu.reciprocal %34 {approx = true} : vector<256x12xf32> -> vector<256x12xf32>
    %36 = arith.truncf %35 : vector<256x12xf32> to vector<256x12xbf16>
    %c0_21 = arith.constant 0 : index
    %c0_22 = arith.constant 0 : index
    %37 = vector.load %arg8[%c0_21, %c0_22] : memref<12x128xbf16, #tpu.memory_space<vmem>>, vector<12x128xbf16>
    %cst_23 = arith.constant dense<0.000000e+00> : vector<256x128xf32>
    %38 = tpu.matmul %36, %37, %cst_23 {dimension_numbers = #tpu.dot_dimension_numbers<[1], [0], [0], [1], [0, 0, 1, 1], [], []>} : vector<256x12xbf16>, vector<12x128xbf16>, vector<256x128xf32> -> vector<256x128xf32>
    %c0_24 = arith.constant 0 : index
    %c0_25 = arith.constant 0 : index
    %39 = vector.load %arg9[%c0_24, %c0_25] : memref<1x128xf32, #tpu.memory_space<vmem>>, vector<1x128xf32>
    %40 = vector.broadcast %39 : vector<1x128xf32> to vector<256x128xf32>
    %41 = arith.addf %38, %40 : vector<256x128xf32>
    %c0_26 = arith.constant 0 : index
    %c0_27 = arith.constant 0 : index
    %42 = vector.load %arg18[%c0_26, %c0_27] : memref<256x128xf32, #tpu.memory_space<vmem>>, vector<256x128xf32>
    tpu.vector_store %arg18[%c0_26, %c0_27], %41 {strides = array<i32>} : memref<256x128xf32, #tpu.memory_space<vmem>>, vector<256x128xf32>,
    %43 = arith.truncf %41 : vector<256x128xf32> to vector<256x128xbf16>
    %c0_28 = arith.constant 0 : index
    %c0_29 = arith.constant 0 : index
    %44 = vector.load %arg10[%c0_28, %c0_29] : memref<128x12xbf16, #tpu.memory_space<vmem>>, vector<128x12xbf16>
    %cst_30 = arith.constant dense<0.000000e+00> : vector<256x12xf32>
    %45 = tpu.matmul %43, %44, %cst_30 {dimension_numbers = #tpu.dot_dimension_numbers<[1], [0], [0], [1], [0, 0, 1, 1], [], []>} : vector<256x128xbf16>, vector<128x12xbf16>, vector<256x12xf32> -> vector<256x12xf32>
    %c0_31 = arith.constant 0 : index
    %c0_32 = arith.constant 0 : index
    %46 = vector.load %arg11[%c0_31, %c0_32] : memref<1x12xf32, #tpu.memory_space<vmem>>, vector<1x12xf32>
    %47 = vector.broadcast %46 : vector<1x12xf32> to vector<256x12xf32>
    %48 = arith.addf %45, %47 : vector<256x12xf32>
    %cst_33 = arith.constant 0.000000e+00 : f32
    %49 = vector.broadcast %cst_33 : f32 to vector<256x12xf32>
    %50 = arith.maximumf %48, %49 : vector<256x12xf32>
    %51 = arith.truncf %50 : vector<256x12xf32> to vector<256x12xbf16>
    %c0_34 = arith.constant 0 : index
    %c0_35 = arith.constant 0 : index
    %52 = vector.load %arg12[%c0_34, %c0_35] : memref<12x64xbf16, #tpu.memory_space<vmem>>, vector<12x64xbf16>
    %cst_36 = arith.constant dense<0.000000e+00> : vector<256x64xf32>
    %53 = tpu.matmul %51, %52, %cst_36 {dimension_numbers = #tpu.dot_dimension_numbers<[1], [0], [0], [1], [0, 0, 1, 1], [], []>} : vector<256x12xbf16>, vector<12x64xbf16>, vector<256x64xf32> -> vector<256x64xf32>
    %c0_37 = arith.constant 0 : index
    %c0_38 = arith.constant 0 : index
    %54 = vector.load %arg13[%c0_37, %c0_38] : memref<1x64xf32, #tpu.memory_space<vmem>>, vector<1x64xf32>
    %55 = vector.broadcast %54 : vector<1x64xf32> to vector<256x64xf32>
    %56 = arith.addf %53, %55 : vector<256x64xf32>
    %cst_39 = arith.constant 0.000000e+00 : f32
    %57 = vector.broadcast %cst_39 : f32 to vector<256x64xf32>
    %58 = arith.maximumf %56, %57 : vector<256x64xf32>
    %59 = arith.truncf %58 : vector<256x64xf32> to vector<256x64xbf16>
    %c0_40 = arith.constant 0 : index
    %c0_41 = arith.constant 0 : index
    %60 = vector.load %arg14[%c0_40, %c0_41] : memref<64x128xbf16, #tpu.memory_space<vmem>>, vector<64x128xbf16>
    %cst_42 = arith.constant dense<0.000000e+00> : vector<256x128xf32>
    %61 = tpu.matmul %59, %60, %cst_42 {dimension_numbers = #tpu.dot_dimension_numbers<[1], [0], [0], [1], [0, 0, 1, 1], [], []>} : vector<256x64xbf16>, vector<64x128xbf16>, vector<256x128xf32> -> vector<256x128xf32>
    %c0_43 = arith.constant 0 : index
    %c0_44 = arith.constant 0 : index
    %62 = vector.load %arg15[%c0_43, %c0_44] : memref<1x128xf32, #tpu.memory_space<vmem>>, vector<1x128xf32>
    %63 = vector.broadcast %62 : vector<1x128xf32> to vector<256x128xf32>
    %64 = arith.addf %61, %63 : vector<256x128xf32>
    %cst_45 = arith.constant 0.000000e+00 : f32
    %65 = vector.broadcast %cst_45 : f32 to vector<256x128xf32>
    %66 = arith.maximumf %64, %65 : vector<256x128xf32>
    %67 = arith.truncf %66 : vector<256x128xf32> to vector<256x128xbf16>
    %c0_46 = arith.constant 0 : index
    %c0_47 = arith.constant 0 : index
    %68 = vector.load %arg16[%c0_46, %c0_47] : memref<128x896xbf16, #tpu.memory_space<vmem>>, vector<128x896xbf16>
    %cst_48 = arith.constant dense<0.000000e+00> : vector<256x896xf32>
    %69 = tpu.matmul %67, %68, %cst_48 {dimension_numbers = #tpu.dot_dimension_numbers<[1], [0], [0], [1], [0, 0, 1, 1], [], []>} : vector<256x128xbf16>, vector<128x896xbf16>, vector<256x896xf32> -> vector<256x896xf32>
    %c0_49 = arith.constant 0 : index
    %c0_50 = arith.constant 0 : index
    %70 = vector.load %arg17[%c0_49, %c0_50] : memref<1x896xf32, #tpu.memory_space<vmem>>, vector<1x896xf32>
    %71 = vector.broadcast %70 : vector<1x896xf32> to vector<256x896xf32>
    %72 = arith.addf %69, %71 : vector<256x896xf32>
    %cst_51 = arith.constant 0.000000e+00 : f32
    %73 = vector.broadcast %cst_51 : f32 to vector<256x896xf32>
    %74 = arith.subf %73, %72 : vector<256x896xf32>
    %75 = math.exp %74 : vector<256x896xf32>
    %cst_52 = arith.constant 1.000000e+00 : f32
    %76 = vector.broadcast %cst_52 : f32 to vector<256x896xf32>
    %77 = arith.addf %76, %75 : vector<256x896xf32>
    %78 = tpu.reciprocal %77 {approx = true} : vector<256x896xf32> -> vector<256x896xf32>
    %c0_53 = arith.constant 0 : index
    %c0_54 = arith.constant 0 : index
    %79 = vector.load %arg19[%c0_53, %c0_54] : memref<256x896xf32, #tpu.memory_space<vmem>>, vector<256x896xf32>
    tpu.vector_store %arg19[%c0_53, %c0_54], %78 {strides = array<i32>} : memref<256x896xf32, #tpu.memory_space<vmem>>, vector<256x896xf32>,
    return
  }
  func.func @transform_0(%arg0: i32) -> (i32, i32) {
    %c0_i32 = arith.constant 0 : i32
    %c0_i32_0 = arith.constant 0 : i32
    return %arg0, %c0_i32 : i32, i32
  }
  func.func @transform_1(%arg0: i32) -> (i32, i32) {
    %c0_i32 = arith.constant 0 : i32
    %c0_i32_0 = arith.constant 0 : i32
    %c0_i32_1 = arith.constant 0 : i32
    return %c0_i32, %c0_i32_0 : i32, i32
  }
  func.func @transform_2(%arg0: i32) -> (i32, i32) {
    %c0_i32 = arith.constant 0 : i32
    %c0_i32_0 = arith.constant 0 : i32
    %c0_i32_1 = arith.constant 0 : i32
    return %c0_i32, %c0_i32_0 : i32, i32
  }
  func.func @transform_3(%arg0: i32) -> (i32, i32) {
    %c0_i32 = arith.constant 0 : i32
    %c0_i32_0 = arith.constant 0 : i32
    %c0_i32_1 = arith.constant 0 : i32
    return %c0_i32, %c0_i32_0 : i32, i32
  }
  func.func @transform_4(%arg0: i32) -> (i32, i32) {
    %c0_i32 = arith.constant 0 : i32
    %c0_i32_0 = arith.constant 0 : i32
    %c0_i32_1 = arith.constant 0 : i32
    return %c0_i32, %c0_i32_0 : i32, i32
  }
  func.func @transform_5(%arg0: i32) -> (i32, i32) {
    %c0_i32 = arith.constant 0 : i32
    %c0_i32_0 = arith.constant 0 : i32
    %c0_i32_1 = arith.constant 0 : i32
    return %c0_i32, %c0_i32_0 : i32, i32
  }
  func.func @transform_6(%arg0: i32) -> (i32, i32) {
    %c0_i32 = arith.constant 0 : i32
    %c0_i32_0 = arith.constant 0 : i32
    %c0_i32_1 = arith.constant 0 : i32
    return %c0_i32, %c0_i32_0 : i32, i32
  }
  func.func @transform_7(%arg0: i32) -> (i32, i32) {
    %c0_i32 = arith.constant 0 : i32
    %c0_i32_0 = arith.constant 0 : i32
    %c0_i32_1 = arith.constant 0 : i32
    return %c0_i32, %c0_i32_0 : i32, i32
  }
  func.func @transform_8(%arg0: i32) -> (i32, i32) {
    %c0_i32 = arith.constant 0 : i32
    %c0_i32_0 = arith.constant 0 : i32
    %c0_i32_1 = arith.constant 0 : i32
    return %c0_i32, %c0_i32_0 : i32, i32
  }
  func.func @transform_9(%arg0: i32) -> (i32, i32) {
    %c0_i32 = arith.constant 0 : i32
    %c0_i32_0 = arith.constant 0 : i32
    %c0_i32_1 = arith.constant 0 : i32
    return %c0_i32, %c0_i32_0 : i32, i32
  }
  func.func @transform_10(%arg0: i32) -> (i32, i32) {
    %c0_i32 = arith.constant 0 : i32
    %c0_i32_0 = arith.constant 0 : i32
    %c0_i32_1 = arith.constant 0 : i32
    return %c0_i32, %c0_i32_0 : i32, i32
  }
  func.func @transform_11(%arg0: i32) -> (i32, i32) {
    %c0_i32 = arith.constant 0 : i32
    %c0_i32_0 = arith.constant 0 : i32
    %c0_i32_1 = arith.constant 0 : i32
    return %c0_i32, %c0_i32_0 : i32, i32
  }
  func.func @transform_12(%arg0: i32) -> (i32, i32) {
    %c0_i32 = arith.constant 0 : i32
    %c0_i32_0 = arith.constant 0 : i32
    %c0_i32_1 = arith.constant 0 : i32
    return %c0_i32, %c0_i32_0 : i32, i32
  }
  func.func @transform_13(%arg0: i32) -> (i32, i32) {
    %c0_i32 = arith.constant 0 : i32
    %c0_i32_0 = arith.constant 0 : i32
    %c0_i32_1 = arith.constant 0 : i32
    return %c0_i32, %c0_i32_0 : i32, i32
  }
  func.func @transform_14(%arg0: i32) -> (i32, i32) {
    %c0_i32 = arith.constant 0 : i32
    %c0_i32_0 = arith.constant 0 : i32
    %c0_i32_1 = arith.constant 0 : i32
    return %c0_i32, %c0_i32_0 : i32, i32
  }
  func.func @transform_15(%arg0: i32) -> (i32, i32) {
    %c0_i32 = arith.constant 0 : i32
    %c0_i32_0 = arith.constant 0 : i32
    %c0_i32_1 = arith.constant 0 : i32
    return %c0_i32, %c0_i32_0 : i32, i32
  }
  func.func @transform_16(%arg0: i32) -> (i32, i32) {
    %c0_i32 = arith.constant 0 : i32
    %c0_i32_0 = arith.constant 0 : i32
    %c0_i32_1 = arith.constant 0 : i32
    return %c0_i32, %c0_i32_0 : i32, i32
  }
  func.func @transform_17(%arg0: i32) -> (i32, i32) {
    %c0_i32 = arith.constant 0 : i32
    %c0_i32_0 = arith.constant 0 : i32
    return %arg0, %c0_i32 : i32, i32
  }
  func.func @transform_18(%arg0: i32) -> (i32, i32) {
    %c0_i32 = arith.constant 0 : i32
    %c0_i32_0 = arith.constant 0 : i32
    return %arg0, %c0_i32 : i32, i32
  }
}

</mosaic_0001>

<llo_original>
// kernel: encoder_decoder.1
$region0: #{encoder_decoder.1}
  #allocation0 [shape = 'u32[]', space=smem, size = 0x4, offset = 0x4, fixed_abs, tag = 'smem constant byte address 0x4 - core index']
  #allocation1 [shape = 'u32[144,128]{1,0:T(1,128)}', space=vmem, size = 0x12000, scoped, tag = 'internal scratch']
  %s0 = inlined_call_operand.vmem [shape: bf16[512,896], index: 0, kind: input, shape index: {}]
  %s1 = inlined_call_operand.vmem [shape: bf16[896,128], index: 1, kind: input, shape index: {}]
  %s2 = inlined_call_operand.vmem [shape: f32[1,128], index: 2, kind: input, shape index: {}]
  %s3 = inlined_call_operand.vmem [shape: bf16[128,64], index: 3, kind: input, shape index: {}]
  %s4 = inlined_call_operand.vmem [shape: f32[1,64], index: 4, kind: input, shape index: {}]
  %s5 = inlined_call_operand.vmem [shape: bf16[64,12], index: 5, kind: input, shape index: {}]
  %s6 = inlined_call_operand.vmem [shape: f32[1,12], index: 6, kind: input, shape index: {}]
  %s7 = inlined_call_operand.vmem [shape: bf16[12,128], index: 7, kind: input, shape index: {}]
  %s8 = inlined_call_operand.vmem [shape: f32[1,128], index: 8, kind: input, shape index: {}]
  %s9 = inlined_call_operand.vmem [shape: bf16[128,12], index: 9, kind: input, shape index: {}]
  %s10 = inlined_call_operand.vmem [shape: f32[1,12], index: 10, kind: input, shape index: {}]
  %s11 = inlined_call_operand.vmem [shape: bf16[12,64], index: 11, kind: input, shape index: {}]
  %s12 = inlined_call_operand.vmem [shape: f32[1,64], index: 12, kind: input, shape index: {}]
  %s13 = inlined_call_operand.vmem [shape: bf16[64,128], index: 13, kind: input, shape index: {}]
  %s14 = inlined_call_operand.vmem [shape: f32[1,128], index: 14, kind: input, shape index: {}]
  %s15 = inlined_call_operand.vmem [shape: bf16[128,896], index: 15, kind: input, shape index: {}]
  %s16 = inlined_call_operand.vmem [shape: f32[1,896], index: 16, kind: input, shape index: {}]
  %s17 = inlined_call_operand.vmem [shape: f32[512,128], index: 17, kind: output, shape index: {0}]
  %s18 = inlined_call_operand.vmem [shape: f32[512,896], index: 18, kind: output, shape index: {1}]
  %19 = xla_tuple %s17, %s18
  %s20 = sld [smem:[#allocation0]]
  $region109: #{encoder_decoder.1} parent=0
    _
  %s22 = ssub.s32 1, %s20
  %s23 = scalar_select 0, %s22, %s20
  loop: start=0, step=1, limit=4
  $region2: #{encoder_decoder.1} parent=0 // loop_pre_header
    _
  $region3: #{encoder_decoder.1} parent=0 // loop_header
    %s25 = sphi 0, %s29
    %p26 = scmp.ge.s32.totalorder %s25, 4
    %s35 = sphi 0, %s37
    %s38 = sphi 0, %s35
    %s39 = sphi 0, %s38
    %s55 = sphi 0, %s39
    %s59 = sphi 0, %s59
    %s61 = sphi 0, %s59
    %s62 = sphi 0, %s61
    %s76 = sphi 0, %s62
    %s80 = sphi 0, %s80
    %s82 = sphi 0, %s80
    %s83 = sphi 0, %s82
    %s97 = sphi 0, %s83
    %s101 = sphi 0, %s101
    %s103 = sphi 0, %s101
    %s104 = sphi 0, %s103
    %s118 = sphi 0, %s104
    %s122 = sphi 0, %s122
    %s124 = sphi 0, %s122
    %s125 = sphi 0, %s124
    %s139 = sphi 0, %s125
    %s143 = sphi 0, %s143
    %s145 = sphi 0, %s143
    %s146 = sphi 0, %s145
    %s160 = sphi 0, %s146
    %s164 = sphi 0, %s164
    %s166 = sphi 0, %s164
    %s167 = sphi 0, %s166
    %s181 = sphi 0, %s167
    %s185 = sphi 0, %s185
    %s187 = sphi 0, %s185
    %s188 = sphi 0, %s187
    %s202 = sphi 0, %s188
    %s206 = sphi 0, %s206
    %s208 = sphi 0, %s206
    %s209 = sphi 0, %s208
    %s223 = sphi 0, %s209
    %s227 = sphi 0, %s227
    %s229 = sphi 0, %s227
    %s230 = sphi 0, %s229
    %s244 = sphi 0, %s230
    %s248 = sphi 0, %s248
    %s250 = sphi 0, %s248
    %s251 = sphi 0, %s250
    %s265 = sphi 0, %s251
    %s269 = sphi 0, %s269
    %s271 = sphi 0, %s269
    %s272 = sphi 0, %s271
    %s286 = sphi 0, %s272
    %s290 = sphi 0, %s290
    %s292 = sphi 0, %s290
    %s293 = sphi 0, %s292
    %s307 = sphi 0, %s293
    %s311 = sphi 0, %s311
    %s313 = sphi 0, %s311
    %s314 = sphi 0, %s313
    %s328 = sphi 0, %s314
    %s332 = sphi 0, %s332
    %s334 = sphi 0, %s332
    %s335 = sphi 0, %s334
    %s349 = sphi 0, %s335
    %s353 = sphi 0, %s353
    %s355 = sphi 0, %s353
    %s356 = sphi 0, %s355
    %s370 = sphi 0, %s356
    %s374 = sphi 0, %s374
    %s376 = sphi 0, %s374
    %s377 = sphi 0, %s376
    %s391 = sphi 0, %s377
    %s397 = sphi 0, %s399
    %s400 = sphi 0, %s397
    %s401 = sphi 0, %s400
    %s417 = sphi 0, %s401
    %s423 = sphi 0, %s425
    %s426 = sphi 0, %s423
    %s427 = sphi 0, %s426
    %s443 = sphi 0, %s427
  $region4: #{encoder_decoder.1} parent=0 // loop_header_branch
    %28 = sbr.rel (%p26) target = $region8
  $region5: #{encoder_decoder.1} parent=0 // loop_body
    %s30 = ssub.s32 %s25, 1
    %s31 = ssub.s32 %s25, 2
    %s32 = sadd.s32 %s25, 1
    %s33 = ssub.s32 %s25, %s32
    %p34 = scmp.eq.s32.totalorder %s33, 0
    %s36 = sadd.s32 %s35, 1
    %s37 = scalar_select %p34, %s35, %s36
    %p40 = pneg %p34
    %p41 = scmp.eq.s32.totalorder %s25, 1
    %p42 = por %p40, %p41
    %p43 = scmp.ne.s32.totalorder %s35, %s38
    %p44 = scmp.eq.s32.totalorder %s25, 0
    %p45 = por %p43, %p44
    %p46 = scmp.ne.s32.totalorder %s35, %s38
    %p47 = scmp.eq.s32.totalorder %s30, 1
    %p48 = por %p46, %p47
    %p49 = scmp.ne.s32.totalorder %s38, %s39
    %p50 = scmp.eq.s32.totalorder %s30, 0
    %p51 = por %p49, %p50
    %p52 = scmp.ne.s32.totalorder %s38, %s39
    %p53 = scmp.eq.s32.totalorder %s31, 1
    %p54 = por %p52, %p53
    %p56 = scmp.ne.s32.totalorder %s39, %s55
    %p57 = scmp.eq.s32.totalorder %s31, 0
    %p58 = por %p56, %p57
    %s60 = sadd.s32 %s59, 1
    %p63 = scmp.eq.s32.totalorder %s25, 1
    %p64 = scmp.ne.s32.totalorder %s59, %s61
    %p65 = scmp.eq.s32.totalorder %s25, 0
    %p66 = por %p64, %p65
    %p67 = scmp.ne.s32.totalorder %s59, %s61
    %p68 = scmp.eq.s32.totalorder %s30, 1
    %p69 = por %p67, %p68
    %p70 = scmp.ne.s32.totalorder %s61, %s62
    %p71 = scmp.eq.s32.totalorder %s30, 0
    %p72 = por %p70, %p71
    %p73 = scmp.ne.s32.totalorder %s61, %s62
    %p74 = scmp.eq.s32.totalorder %s31, 1
    %p75 = por %p73, %p74
    %p77 = scmp.ne.s32.totalorder %s62, %s76
    %p78 = scmp.eq.s32.totalorder %s31, 0
    %p79 = por %p77, %p78
    %s81 = sadd.s32 %s80, 1
    %p84 = scmp.eq.s32.totalorder %s25, 1
    %p85 = scmp.ne.s32.totalorder %s80, %s82
    %p86 = scmp.eq.s32.totalorder %s25, 0
    %p87 = por %p85, %p86
    %p88 = scmp.ne.s32.totalorder %s80, %s82
    %p89 = scmp.eq.s32.totalorder %s30, 1
    %p90 = por %p88, %p89
    %p91 = scmp.ne.s32.totalorder %s82, %s83
    %p92 = scmp.eq.s32.totalorder %s30, 0
    %p93 = por %p91, %p92
    %p94 = scmp.ne.s32.totalorder %s82, %s83
    %p95 = scmp.eq.s32.totalorder %s31, 1
    %p96 = por %p94, %p95
    %p98 = scmp.ne.s32.totalorder %s83, %s97
    %p99 = scmp.eq.s32.totalorder %s31, 0
    %p100 = por %p98, %p99
    %s102 = sadd.s32 %s101, 1
    %p105 = scmp.eq.s32.totalorder %s25, 1
    %p106 = scmp.ne.s32.totalorder %s101, %s103
    %p107 = scmp.eq.s32.totalorder %s25, 0
    %p108 = por %p106, %p107
    %p109 = scmp.ne.s32.totalorder %s101, %s103
    %p110 = scmp.eq.s32.totalorder %s30, 1
    %p111 = por %p109, %p110
    %p112 = scmp.ne.s32.totalorder %s103, %s104
    %p113 = scmp.eq.s32.totalorder %s30, 0
    %p114 = por %p112, %p113
    %p115 = scmp.ne.s32.totalorder %s103, %s104
    %p116 = scmp.eq.s32.totalorder %s31, 1
    %p117 = por %p115, %p116
    %p119 = scmp.ne.s32.totalorder %s104, %s118
    %p120 = scmp.eq.s32.totalorder %s31, 0
    %p121 = por %p119, %p120
    %s123 = sadd.s32 %s122, 1
    %p126 = scmp.eq.s32.totalorder %s25, 1
    %p127 = scmp.ne.s32.totalorder %s122, %s124
    %p128 = scmp.eq.s32.totalorder %s25, 0
    %p129 = por %p127, %p128
    %p130 = scmp.ne.s32.totalorder %s122, %s124
    %p131 = scmp.eq.s32.totalorder %s30, 1
    %p132 = por %p130, %p131
    %p133 = scmp.ne.s32.totalorder %s124, %s125
    %p134 = scmp.eq.s32.totalorder %s30, 0
    %p135 = por %p133, %p134
    %p136 = scmp.ne.s32.totalorder %s124, %s125
    %p137 = scmp.eq.s32.totalorder %s31, 1
    %p138 = por %p136, %p137
    %p140 = scmp.ne.s32.totalorder %s125, %s139
    %p141 = scmp.eq.s32.totalorder %s31, 0
    %p142 = por %p140, %p141
    %s144 = sadd.s32 %s143, 1
    %p147 = scmp.eq.s32.totalorder %s25, 1
    %p148 = scmp.ne.s32.totalorder %s143, %s145
    %p149 = scmp.eq.s32.totalorder %s25, 0
    %p150 = por %p148, %p149
    %p151 = scmp.ne.s32.totalorder %s143, %s145
    %p152 = scmp.eq.s32.totalorder %s30, 1
    %p153 = por %p151, %p152
    %p154 = scmp.ne.s32.totalorder %s145, %s146
    %p155 = scmp.eq.s32.totalorder %s30, 0
    %p156 = por %p154, %p155
    %p157 = scmp.ne.s32.totalorder %s145, %s146
    %p158 = scmp.eq.s32.totalorder %s31, 1
    %p159 = por %p157, %p158
    %p161 = scmp.ne.s32.totalorder %s146, %s160
    %p162 = scmp.eq.s32.totalorder %s31, 0
    %p163 = por %p161, %p162
    %s165 = sadd.s32 %s164, 1
    %p168 = scmp.eq.s32.totalorder %s25, 1
    %p169 = scmp.ne.s32.totalorder %s164, %s166
    %p170 = scmp.eq.s32.totalorder %s25, 0
    %p171 = por %p169, %p170
    %p172 = scmp.ne.s32.totalorder %s164, %s166
    %p173 = scmp.eq.s32.totalorder %s30, 1
    %p174 = por %p172, %p173
    %p175 = scmp.ne.s32.totalorder %s166, %s167
    %p176 = scmp.eq.s32.totalorder %s30, 0
    %p177 = por %p175, %p176
    %p178 = scmp.ne.s32.totalorder %s166, %s167
    %p179 = scmp.eq.s32.totalorder %s31, 1
    %p180 = por %p178, %p179
    %p182 = scmp.ne.s32.totalorder %s167, %s181
    %p183 = scmp.eq.s32.totalorder %s31, 0
    %p184 = por %p182, %p183
    %s186 = sadd.s32 %s185, 1
    %p189 = scmp.eq.s32.totalorder %s25, 1
    %p190 = scmp.ne.s32.totalorder %s185, %s187
    %p191 = scmp.eq.s32.totalorder %s25, 0
    %p192 = por %p190, %p191
    %p193 = scmp.ne.s32.totalorder %s185, %s187
    %p194 = scmp.eq.s32.totalorder %s30, 1
    %p195 = por %p193, %p194
    %p196 = scmp.ne.s32.totalorder %s187, %s188
    %p197 = scmp.eq.s32.totalorder %s30, 0
    %p198 = por %p196, %p197
    %p199 = scmp.ne.s32.totalorder %s187, %s188
    %p200 = scmp.eq.s32.totalorder %s31, 1
    %p201 = por %p199, %p200
    %p203 = scmp.ne.s32.totalorder %s188, %s202
    %p204 = scmp.eq.s32.totalorder %s31, 0
    %p205 = por %p203, %p204
    %s207 = sadd.s32 %s206, 1
    %p210 = scmp.eq.s32.totalorder %s25, 1
    %p211 = scmp.ne.s32.totalorder %s206, %s208
    %p212 = scmp.eq.s32.totalorder %s25, 0
    %p213 = por %p211, %p212
    %p214 = scmp.ne.s32.totalorder %s206, %s208
    %p215 = scmp.eq.s32.totalorder %s30, 1
    %p216 = por %p214, %p215
    %p217 = scmp.ne.s32.totalorder %s208, %s209
    %p218 = scmp.eq.s32.totalorder %s30, 0
    %p219 = por %p217, %p218
    %p220 = scmp.ne.s32.totalorder %s208, %s209
    %p221 = scmp.eq.s32.totalorder %s31, 1
    %p222 = por %p220, %p221
    %p224 = scmp.ne.s32.totalorder %s209, %s223
    %p225 = scmp.eq.s32.totalorder %s31, 0
    %p226 = por %p224, %p225
    %s228 = sadd.s32 %s227, 1
    %p231 = scmp.eq.s32.totalorder %s25, 1
    %p232 = scmp.ne.s32.totalorder %s227, %s229
    %p233 = scmp.eq.s32.totalorder %s25, 0
    %p234 = por %p232, %p233
    %p235 = scmp.ne.s32.totalorder %s227, %s229
    %p236 = scmp.eq.s32.totalorder %s30, 1
    %p237 = por %p235, %p236
    %p238 = scmp.ne.s32.totalorder %s229, %s230
    %p239 = scmp.eq.s32.totalorder %s30, 0
    %p240 = por %p238, %p239
    %p241 = scmp.ne.s32.totalorder %s229, %s230
    %p242 = scmp.eq.s32.totalorder %s31, 1
    %p243 = por %p241, %p242
    %p245 = scmp.ne.s32.totalorder %s230, %s244
    %p246 = scmp.eq.s32.totalorder %s31, 0
    %p247 = por %p245, %p246
    %s249 = sadd.s32 %s248, 1
    %p252 = scmp.eq.s32.totalorder %s25, 1
    %p253 = scmp.ne.s32.totalorder %s248, %s250
    %p254 = scmp.eq.s32.totalorder %s25, 0
    %p255 = por %p253, %p254
    %p256 = scmp.ne.s32.totalorder %s248, %s250
    %p257 = scmp.eq.s32.totalorder %s30, 1
    %p258 = por %p256, %p257
    %p259 = scmp.ne.s32.totalorder %s250, %s251
    %p260 = scmp.eq.s32.totalorder %s30, 0
    %p261 = por %p259, %p260
    %p262 = scmp.ne.s32.totalorder %s250, %s251
    %p263 = scmp.eq.s32.totalorder %s31, 1
    %p264 = por %p262, %p263
    %p266 = scmp.ne.s32.totalorder %s251, %s265
    %p267 = scmp.eq.s32.totalorder %s31, 0
    %p268 = por %p266, %p267
    %s270 = sadd.s32 %s269, 1
    %p273 = scmp.eq.s32.totalorder %s25, 1
    %p274 = scmp.ne.s32.totalorder %s269, %s271
    %p275 = scmp.eq.s32.totalorder %s25, 0
    %p276 = por %p274, %p275
    %p277 = scmp.ne.s32.totalorder %s269, %s271
    %p278 = scmp.eq.s32.totalorder %s30, 1
    %p279 = por %p277, %p278
    %p280 = scmp.ne.s32.totalorder %s271, %s272
    %p281 = scmp.eq.s32.totalorder %s30, 0
    %p282 = por %p280, %p281
    %p283 = scmp.ne.s32.totalorder %s271, %s272
    %p284 = scmp.eq.s32.totalorder %s31, 1
    %p285 = por %p283, %p284
    %p287 = scmp.ne.s32.totalorder %s272, %s286
    %p288 = scmp.eq.s32.totalorder %s31, 0
    %p289 = por %p287, %p288
    %s291 = sadd.s32 %s290, 1
    %p294 = scmp.eq.s32.totalorder %s25, 1
    %p295 = scmp.ne.s32.totalorder %s290, %s292
    %p296 = scmp.eq.s32.totalorder %s25, 0
    %p297 = por %p295, %p296
    %p298 = scmp.ne.s32.totalorder %s290, %s292
    %p299 = scmp.eq.s32.totalorder %s30, 1
    %p300 = por %p298, %p299
    %p301 = scmp.ne.s32.totalorder %s292, %s293
    %p302 = scmp.eq.s32.totalorder %s30, 0
    %p303 = por %p301, %p302
    %p304 = scmp.ne.s32.totalorder %s292, %s293
    %p305 = scmp.eq.s32.totalorder %s31, 1
    %p306 = por %p304, %p305
    %p308 = scmp.ne.s32.totalorder %s293, %s307
    %p309 = scmp.eq.s32.totalorder %s31, 0
    %p310 = por %p308, %p309
    %s312 = sadd.s32 %s311, 1
    %p315 = scmp.eq.s32.totalorder %s25, 1
    %p316 = scmp.ne.s32.totalorder %s311, %s313
    %p317 = scmp.eq.s32.totalorder %s25, 0
    %p318 = por %p316, %p317
    %p319 = scmp.ne.s32.totalorder %s311, %s313
    %p320 = scmp.eq.s32.totalorder %s30, 1
    %p321 = por %p319, %p320
    %p322 = scmp.ne.s32.totalorder %s313, %s314
    %p323 = scmp.eq.s32.totalorder %s30, 0
    %p324 = por %p322, %p323
    %p325 = scmp.ne.s32.totalorder %s313, %s314
    %p326 = scmp.eq.s32.totalorder %s31, 1
    %p327 = por %p325, %p326
    %p329 = scmp.ne.s32.totalorder %s314, %s328
    %p330 = scmp.eq.s32.totalorder %s31, 0
    %p331 = por %p329, %p330
    %s333 = sadd.s32 %s332, 1
    %p336 = scmp.eq.s32.totalorder %s25, 1
    %p337 = scmp.ne.s32.totalorder %s332, %s334
    %p338 = scmp.eq.s32.totalorder %s25, 0
    %p339 = por %p337, %p338
    %p340 = scmp.ne.s32.totalorder %s332, %s334
    %p341 = scmp.eq.s32.totalorder %s30, 1
    %p342 = por %p340, %p341
    %p343 = scmp.ne.s32.totalorder %s334, %s335
    %p344 = scmp.eq.s32.totalorder %s30, 0
    %p345 = por %p343, %p344
    %p346 = scmp.ne.s32.totalorder %s334, %s335
    %p347 = scmp.eq.s32.totalorder %s31, 1
    %p348 = por %p346, %p347
    %p350 = scmp.ne.s32.totalorder %s335, %s349
    %p351 = scmp.eq.s32.totalorder %s31, 0
    %p352 = por %p350, %p351
    %s354 = sadd.s32 %s353, 1
    %p357 = scmp.eq.s32.totalorder %s25, 1
    %p358 = scmp.ne.s32.totalorder %s353, %s355
    %p359 = scmp.eq.s32.totalorder %s25, 0
    %p360 = por %p358, %p359
    %p361 = scmp.ne.s32.totalorder %s353, %s355
    %p362 = scmp.eq.s32.totalorder %s30, 1
    %p363 = por %p361, %p362
    %p364 = scmp.ne.s32.totalorder %s355, %s356
    %p365 = scmp.eq.s32.totalorder %s30, 0
    %p366 = por %p364, %p365
    %p367 = scmp.ne.s32.totalorder %s355, %s356
    %p368 = scmp.eq.s32.totalorder %s31, 1
    %p369 = por %p367, %p368
    %p371 = scmp.ne.s32.totalorder %s356, %s370
    %p372 = scmp.eq.s32.totalorder %s31, 0
    %p373 = por %p371, %p372
    %s375 = sadd.s32 %s374, 1
    %p378 = scmp.eq.s32.totalorder %s25, 1
    %p379 = scmp.ne.s32.totalorder %s374, %s376
    %p380 = scmp.eq.s32.totalorder %s25, 0
    %p381 = por %p379, %p380
    %p382 = scmp.ne.s32.totalorder %s374, %s376
    %p383 = scmp.eq.s32.totalorder %s30, 1
    %p384 = por %p382, %p383
    %p385 = scmp.ne.s32.totalorder %s376, %s377
    %p386 = scmp.eq.s32.totalorder %s30, 0
    %p387 = por %p385, %p386
    %p388 = scmp.ne.s32.totalorder %s376, %s377
    %p389 = scmp.eq.s32.totalorder %s31, 1
    %p390 = por %p388, %p389
    %p392 = scmp.ne.s32.totalorder %s377, %s391
    %p393 = scmp.eq.s32.totalorder %s31, 0
    %p394 = por %p392, %p393
    %s395 = ssub.s32 %s25, %s32
    %p396 = scmp.eq.s32.totalorder %s395, 0
    %s398 = sadd.s32 %s397, 1
    %s399 = scalar_select %p396, %s397, %s398
    %p402 = pneg %p396
    %p403 = scmp.eq.s32.totalorder %s25, 1
    %p404 = por %p402, %p403
    %p405 = scmp.ne.s32.totalorder %s397, %s400
    %p406 = scmp.eq.s32.totalorder %s25, 0
    %p407 = por %p405, %p406
    %p408 = scmp.ne.s32.totalorder %s397, %s400
    %p409 = scmp.eq.s32.totalorder %s30, 1
    %p410 = por %p408, %p409
    %p411 = scmp.ne.s32.totalorder %s400, %s401
    %p412 = scmp.eq.s32.totalorder %s30, 0
    %p413 = por %p411, %p412
    %p414 = scmp.ne.s32.totalorder %s400, %s401
    %p415 = scmp.eq.s32.totalorder %s31, 1
    %p416 = por %p414, %p415
    %p418 = scmp.ne.s32.totalorder %s401, %s417
    %p419 = scmp.eq.s32.totalorder %s31, 0
    %p420 = por %p418, %p419
    %s421 = ssub.s32 %s25, %s32
    %p422 = scmp.eq.s32.totalorder %s421, 0
    %s424 = sadd.s32 %s423, 1
    %s425 = scalar_select %p422, %s423, %s424
    %p428 = pneg %p422
    %p429 = scmp.eq.s32.totalorder %s25, 1
    %p430 = por %p428, %p429
    %p431 = scmp.ne.s32.totalorder %s423, %s426
    %p432 = scmp.eq.s32.totalorder %s25, 0
    %p433 = por %p431, %p432
    %p434 = scmp.ne.s32.totalorder %s423, %s426
    %p435 = scmp.eq.s32.totalorder %s30, 1
    %p436 = por %p434, %p435
    %p437 = scmp.ne.s32.totalorder %s426, %s427
    %p438 = scmp.eq.s32.totalorder %s30, 0
    %p439 = por %p437, %p438
    %p440 = scmp.ne.s32.totalorder %s426, %s427
    %p441 = scmp.eq.s32.totalorder %s31, 1
    %p442 = por %p440, %p441
    %p444 = scmp.ne.s32.totalorder %s427, %s443
    %p445 = scmp.eq.s32.totalorder %s31, 0
    %p446 = por %p444, %p445
    %p447 = scmp.le.s32.totalorder 1, %s25
    %p448 = scmp.lt.s32.totalorder %s25, 3
    %p449 = pnand %p447, %p448
    %p450 = pneg %p449
    // Predicated region
    $region9: #{encoder_decoder.1} parent=5 // pred_check
      _
    $region10: #{encoder_decoder.1} parent=5 // pred_check_branch
      %452 = sbr.rel (%p449) target = $region12
    $region11: #{encoder_decoder.1} parent=5 // pred_region
      %s453 = ssub.s32 %s25, 1
      // Predicated region
      $region13: #{encoder_decoder.1} parent=11 // pred_check
        %p454 = pneg %p72
      $region14: #{encoder_decoder.1} parent=11 // pred_check_branch
        %456 = sbr.rel (%p454) target = $region16
      $region15: #{encoder_decoder.1} parent=11 // pred_region
        _
      $region16: #{encoder_decoder.1} parent=11 // pred_fallthru
        _
      // Predicated region
      $region17: #{encoder_decoder.1} parent=11 // pred_check
        %p457 = pneg %p93
      $region18: #{encoder_decoder.1} parent=11 // pred_check_branch
        %459 = sbr.rel (%p457) target = $region20
      $region19: #{encoder_decoder.1} parent=11 // pred_region
        _
      $region20: #{encoder_decoder.1} parent=11 // pred_fallthru
        _
      // Predicated region
      $region21: #{encoder_decoder.1} parent=11 // pred_check
        %p460 = pneg %p114
      $region22: #{encoder_decoder.1} parent=11 // pred_check_branch
        %462 = sbr.rel (%p460) target = $region24
      $region23: #{encoder_decoder.1} parent=11 // pred_region
        _
      $region24: #{encoder_decoder.1} parent=11 // pred_fallthru
        _
      // Predicated region
      $region25: #{encoder_decoder.1} parent=11 // pred_check
        %p463 = pneg %p135
      $region26: #{encoder_decoder.1} parent=11 // pred_check_branch
        %465 = sbr.rel (%p463) target = $region28
      $region27: #{encoder_decoder.1} parent=11 // pred_region
        _
      $region28: #{encoder_decoder.1} parent=11 // pred_fallthru
        _
      // Predicated region
      $region29: #{encoder_decoder.1} parent=11 // pred_check
        %p466 = pneg %p156
      $region30: #{encoder_decoder.1} parent=11 // pred_check_branch
        %468 = sbr.rel (%p466) target = $region32
      $region31: #{encoder_decoder.1} parent=11 // pred_region
        _
      $region32: #{encoder_decoder.1} parent=11 // pred_fallthru
        _
      // Predicated region
      $region33: #{encoder_decoder.1} parent=11 // pred_check
        %p469 = pneg %p177
      $region34: #{encoder_decoder.1} parent=11 // pred_check_branch
        %471 = sbr.rel (%p469) target = $region36
      $region35: #{encoder_decoder.1} parent=11 // pred_region
        _
      $region36: #{encoder_decoder.1} parent=11 // pred_fallthru
        _
      // Predicated region
      $region37: #{encoder_decoder.1} parent=11 // pred_check
        %p472 = pneg %p198
      $region38: #{encoder_decoder.1} parent=11 // pred_check_branch
        %474 = sbr.rel (%p472) target = $region40
      $region39: #{encoder_decoder.1} parent=11 // pred_region
        _
      $region40: #{encoder_decoder.1} parent=11 // pred_fallthru
        _
      // Predicated region
      $region41: #{encoder_decoder.1} parent=11 // pred_check
        %p475 = pneg %p219
      $region42: #{encoder_decoder.1} parent=11 // pred_check_branch
        %477 = sbr.rel (%p475) target = $region44
      $region43: #{encoder_decoder.1} parent=11 // pred_region
        _
      $region44: #{encoder_decoder.1} parent=11 // pred_fallthru
        _
      // Predicated region
      $region45: #{encoder_decoder.1} parent=11 // pred_check
        %p478 = pneg %p240
      $region46: #{encoder_decoder.1} parent=11 // pred_check_branch
        %480 = sbr.rel (%p478) target = $region48
      $region47: #{encoder_decoder.1} parent=11 // pred_region
        _
      $region48: #{encoder_decoder.1} parent=11 // pred_fallthru
        _
      // Predicated region
      $region49: #{encoder_decoder.1} parent=11 // pred_check
        %p481 = pneg %p261
      $region50: #{encoder_decoder.1} parent=11 // pred_check_branch
        %483 = sbr.rel (%p481) target = $region52
      $region51: #{encoder_decoder.1} parent=11 // pred_region
        _
      $region52: #{encoder_decoder.1} parent=11 // pred_fallthru
        _
      // Predicated region
      $region53: #{encoder_decoder.1} parent=11 // pred_check
        %p484 = pneg %p282
      $region54: #{encoder_decoder.1} parent=11 // pred_check_branch
        %486 = sbr.rel (%p484) target = $region56
      $region55: #{encoder_decoder.1} parent=11 // pred_region
        _
      $region56: #{encoder_decoder.1} parent=11 // pred_fallthru
        _
      // Predicated region
      $region57: #{encoder_decoder.1} parent=11 // pred_check
        %p487 = pneg %p303
      $region58: #{encoder_decoder.1} parent=11 // pred_check_branch
        %489 = sbr.rel (%p487) target = $region60
      $region59: #{encoder_decoder.1} parent=11 // pred_region
        _
      $region60: #{encoder_decoder.1} parent=11 // pred_fallthru
        _
      // Predicated region
      $region61: #{encoder_decoder.1} parent=11 // pred_check
        %p490 = pneg %p324
      $region62: #{encoder_decoder.1} parent=11 // pred_check_branch
        %492 = sbr.rel (%p490) target = $region64
      $region63: #{encoder_decoder.1} parent=11 // pred_region
        _
      $region64: #{encoder_decoder.1} parent=11 // pred_fallthru
        _
      // Predicated region
      $region65: #{encoder_decoder.1} parent=11 // pred_check
        %p493 = pneg %p345
      $region66: #{encoder_decoder.1} parent=11 // pred_check_branch
        %495 = sbr.rel (%p493) target = $region68
      $region67: #{encoder_decoder.1} parent=11 // pred_region
        _
      $region68: #{encoder_decoder.1} parent=11 // pred_fallthru
        _
      // Predicated region
      $region69: #{encoder_decoder.1} parent=11 // pred_check
        %p496 = pneg %p366
      $region70: #{encoder_decoder.1} parent=11 // pred_check_branch
        %498 = sbr.rel (%p496) target = $region72
      $region71: #{encoder_decoder.1} parent=11 // pred_region
        _
      $region72: #{encoder_decoder.1} parent=11 // pred_fallthru
        _
      // Predicated region
      $region73: #{encoder_decoder.1} parent=11 // pred_check
        %p499 = pneg %p387
      $region74: #{encoder_decoder.1} parent=11 // pred_check_branch
        %501 = sbr.rel (%p499) target = $region76
      $region75: #{encoder_decoder.1} parent=11 // pred_region
        _
      $region76: #{encoder_decoder.1} parent=11 // pred_fallthru
        _
    $region12: #{encoder_decoder.1} parent=5 // pred_fallthru
      _
    %p502 = scmp.lt.s32.totalorder %s25, 2
    // Predicated region
    $region77: #{encoder_decoder.1} parent=5 // pred_check
      %p503 = pneg %p502
    $region78: #{encoder_decoder.1} parent=5 // pred_check_branch
      %505 = sbr.rel (%p503) target = $region80
    $region79: #{encoder_decoder.1} parent=5 // pred_region
      // Predicated region
      $region81: #{encoder_decoder.1} parent=79 // pred_check
        %p506 = pneg %p45
      $region82: #{encoder_decoder.1} parent=79 // pred_check_branch
        %508 = sbr.rel (%p506) target = $region84
      $region83: #{encoder_decoder.1} parent=79 // pred_region
        %s509 = smul.u32 32, %s25
        %p510 = scmp.lt.s32.totalorder %s509, 63
        %s511 = scalar_select %p510, %s509, 63
        %s512 = smul.addr %s511, 7
        %s513 = smul.addr %s512, 4
        %s514 = scalar_lea.vmem %s0, %s513
        %s515 = smul.u32 32, %s25
      $region84: #{encoder_decoder.1} parent=79 // pred_fallthru
        _
    $region80: #{encoder_decoder.1} parent=5 // pred_fallthru
      _
    %p516 = scmp.le.s32.totalorder 1, %s25
    %p517 = scmp.lt.s32.totalorder %s25, 3
    %p518 = pnand %p516, %p517
    %p519 = pneg %p518
    // Predicated region
    $region85: #{encoder_decoder.1} parent=5 // pred_check
      _
    $region86: #{encoder_decoder.1} parent=5 // pred_check_branch
      %521 = sbr.rel (%p518) target = $region88
    $region87: #{encoder_decoder.1} parent=5 // pred_region
      %s522 = ssub.s32 %s25, 1
      %s523 = smul.u32 32, %s30
      %p524 = scmp.lt.s32.totalorder %s523, 63
      %s525 = scalar_select %p524, %s523, 63
      %s526 = smul.addr %s525, 7
      %s527 = smul.addr %s526, 4
      %s528 = scalar_lea.vmem %s0, %s527
      %p529 = pneg %p51
      %p530 = pneg %p48
      %p531 = pneg %p72
      %p532 = pneg %p69
      %p533 = pneg %p93
      %p534 = pneg %p90
      %p535 = pneg %p114
      %p536 = pneg %p111
      %p537 = pneg %p135
      %p538 = pneg %p132
      %p539 = pneg %p156
      %p540 = pneg %p153
      %p541 = pneg %p177
      %p542 = pneg %p174
      %p543 = pneg %p198
      %p544 = pneg %p195
      %p545 = pneg %p219
      %p546 = pneg %p216
      %p547 = pneg %p240
      %p548 = pneg %p237
      %p549 = pneg %p261
      %p550 = pneg %p258
      %p551 = pneg %p282
      %p552 = pneg %p279
      %p553 = pneg %p303
      %p554 = pneg %p300
      %p555 = pneg %p324
      %p556 = pneg %p321
      %p557 = pneg %p345
      %p558 = pneg %p342
      %p559 = pneg %p366
      %p560 = pneg %p363
      %p561 = pneg %p387
      %p562 = pneg %p384
      %p563 = pneg %p413
      %p564 = pneg %p410
      %s565 = smul.u32 32, %s30
      %p566 = scmp.lt.s32.totalorder %s565, 63
      %s567 = scalar_select %p566, %s565, 63
      %s568 = smul.addr %s567, 8
      %s569 = scalar_lea.vmem %s17, %s568
      %p570 = pneg %p439
      %p571 = pneg %p436
      %s572 = smul.u32 32, %s30
      %p573 = scmp.lt.s32.totalorder %s572, 63
      %s574 = scalar_select %p573, %s572, 63
      %s575 = smul.addr %s574, 7
      %s576 = smul.addr %s575, 8
      %s577 = scalar_lea.vmem %s18, %s576
      %s578 = smul.u32 32, %s30
      %p579 = scmp.lt.s32.totalorder %s578, 63
      %s580 = scalar_select %p579, %s578, 63
      %s581 = smul.addr %s580, 7
      %s582 = smul.addr %s581, 4
      %s583 = scalar_lea.vmem %s0, %s582
      %s584 = smul.u32 32, %s30
      %s585 = smul.u32 32, %s30
      %p586 = scmp.lt.s32.totalorder %s585, 63
      %s587 = scalar_select %p586, %s585, 63
      %s588 = smul.addr %s587, 8
      %s589 = scalar_lea.vmem %s17, %s588
      %s590 = smul.u32 32, %s30
      %s591 = smul.u32 32, %s30
      %p592 = scmp.lt.s32.totalorder %s591, 63
      %s593 = scalar_select %p592, %s591, 63
      %s594 = smul.addr %s593, 7
      %s595 = smul.addr %s594, 8
      %s596 = scalar_lea.vmem %s18, %s595
      %s597 = smul.u32 32, %s30
      %v599 = vld [vmem:[%s583] sm:$0xff]
      %v600 = vld [vmem:[%s583 + $0x8] sm:$0xff]
      %v601 = vld [vmem:[%s583 + $0x10] sm:$0xff]
      %v602 = vld [vmem:[%s583 + $0x18] sm:$0xf]
      %v603 = vld [vmem:[%s583 + $0x1c] sm:$0xff]
      %v604 = vld [vmem:[%s583 + $0x24] sm:$0xff]
      %v605 = vld [vmem:[%s583 + $0x2c] sm:$0xff]
      %v606 = vld [vmem:[%s583 + $0x34] sm:$0xf]
      %v607 = vld [vmem:[%s583 + $0x38] sm:$0xff]
      %v608 = vld [vmem:[%s583 + $0x40] sm:$0xff]
      %v609 = vld [vmem:[%s583 + $0x48] sm:$0xff]
      %v610 = vld [vmem:[%s583 + $0x50] sm:$0xf]
      %v611 = vld [vmem:[%s583 + $0x54] sm:$0xff]
      %v612 = vld [vmem:[%s583 + $0x5c] sm:$0xff]
      %v613 = vld [vmem:[%s583 + $0x64] sm:$0xff]
      %v614 = vld [vmem:[%s583 + $0x6c] sm:$0xf]
      %v615 = vld [vmem:[%s583 + $0x70] sm:$0xff]
      %v616 = vld [vmem:[%s583 + $0x78] sm:$0xff]
      %v617 = vld [vmem:[%s583 + $0x80] sm:$0xff]
      %v618 = vld [vmem:[%s583 + $0x88] sm:$0xf]
      %v619 = vld [vmem:[%s583 + $0x8c] sm:$0xff]
      %v620 = vld [vmem:[%s583 + $0x94] sm:$0xff]
      %v621 = vld [vmem:[%s583 + $0x9c] sm:$0xff]
      %v622 = vld [vmem:[%s583 + $0xa4] sm:$0xf]
      %v623 = vld [vmem:[%s583 + $0xa8] sm:$0xff]
      %v624 = vld [vmem:[%s583 + $0xb0] sm:$0xff]
      %v625 = vld [vmem:[%s583 + $0xb8] sm:$0xff]
      %v626 = vld [vmem:[%s583 + $0xc0] sm:$0xf]
      %v627 = vld [vmem:[%s583 + $0xc4] sm:$0xff]
      %v628 = vld [vmem:[%s583 + $0xcc] sm:$0xff]
      %v629 = vld [vmem:[%s583 + $0xd4] sm:$0xff]
      %v630 = vld [vmem:[%s583 + $0xdc] sm:$0xf]
      %v631 = vld [vmem:[%s583 + $0xe0] sm:$0xff]
      %v632 = vld [vmem:[%s583 + $0xe8] sm:$0xff]
      %v633 = vld [vmem:[%s583 + $0xf0] sm:$0xff]
      %v634 = vld [vmem:[%s583 + $0xf8] sm:$0xf]
      %v635 = vld [vmem:[%s583 + $0xfc] sm:$0xff]
      %v636 = vld [vmem:[%s583 + $0x104] sm:$0xff]
      %v637 = vld [vmem:[%s583 + $0x10c] sm:$0xff]
      %v638 = vld [vmem:[%s583 + $0x114] sm:$0xf]
      %v639 = vld [vmem:[%s583 + $0x118] sm:$0xff]
      %v640 = vld [vmem:[%s583 + $0x120] sm:$0xff]
      %v641 = vld [vmem:[%s583 + $0x128] sm:$0xff]
      %v642 = vld [vmem:[%s583 + $0x130] sm:$0xf]
      %v643 = vld [vmem:[%s583 + $0x134] sm:$0xff]
      %v644 = vld [vmem:[%s583 + $0x13c] sm:$0xff]
      %v645 = vld [vmem:[%s583 + $0x144] sm:$0xff]
      %v646 = vld [vmem:[%s583 + $0x14c] sm:$0xf]
      %v647 = vld [vmem:[%s583 + $0x150] sm:$0xff]
      %v648 = vld [vmem:[%s583 + $0x158] sm:$0xff]
      %v649 = vld [vmem:[%s583 + $0x160] sm:$0xff]
      %v650 = vld [vmem:[%s583 + $0x168] sm:$0xf]
      %v651 = vld [vmem:[%s583 + $0x16c] sm:$0xff]
      %v652 = vld [vmem:[%s583 + $0x174] sm:$0xff]
      %v653 = vld [vmem:[%s583 + $0x17c] sm:$0xff]
      %v654 = vld [vmem:[%s583 + $0x184] sm:$0xf]
      %v655 = vld [vmem:[%s583 + $0x188] sm:$0xff]
      %v656 = vld [vmem:[%s583 + $0x190] sm:$0xff]
      %v657 = vld [vmem:[%s583 + $0x198] sm:$0xff]
      %v658 = vld [vmem:[%s583 + $0x1a0] sm:$0xf]
      %v659 = vld [vmem:[%s583 + $0x1a4] sm:$0xff]
      %v660 = vld [vmem:[%s583 + $0x1ac] sm:$0xff]
      %v661 = vld [vmem:[%s583 + $0x1b4] sm:$0xff]
      %v662 = vld [vmem:[%s583 + $0x1bc] sm:$0xf]
      %v663 = vld [vmem:[%s583 + $0x1c0] sm:$0xff]
      %v664 = vld [vmem:[%s583 + $0x1c8] sm:$0xff]
      %v665 = vld [vmem:[%s583 + $0x1d0] sm:$0xff]
      %v666 = vld [vmem:[%s583 + $0x1d8] sm:$0xf]
      %v667 = vld [vmem:[%s583 + $0x1dc] sm:$0xff]
      %v668 = vld [vmem:[%s583 + $0x1e4] sm:$0xff]
      %v669 = vld [vmem:[%s583 + $0x1ec] sm:$0xff]
      %v670 = vld [vmem:[%s583 + $0x1f4] sm:$0xf]
      %v671 = vld [vmem:[%s583 + $0x1f8] sm:$0xff]
      %v672 = vld [vmem:[%s583 + $0x200] sm:$0xff]
      %v673 = vld [vmem:[%s583 + $0x208] sm:$0xff]
      %v674 = vld [vmem:[%s583 + $0x210] sm:$0xf]
      %v675 = vld [vmem:[%s583 + $0x214] sm:$0xff]
      %v676 = vld [vmem:[%s583 + $0x21c] sm:$0xff]
      %v677 = vld [vmem:[%s583 + $0x224] sm:$0xff]
      %v678 = vld [vmem:[%s583 + $0x22c] sm:$0xf]
      %v679 = vld [vmem:[%s583 + $0x230] sm:$0xff]
      %v680 = vld [vmem:[%s583 + $0x238] sm:$0xff]
      %v681 = vld [vmem:[%s583 + $0x240] sm:$0xff]
      %v682 = vld [vmem:[%s583 + $0x248] sm:$0xf]
      %v683 = vld [vmem:[%s583 + $0x24c] sm:$0xff]
      %v684 = vld [vmem:[%s583 + $0x254] sm:$0xff]
      %v685 = vld [vmem:[%s583 + $0x25c] sm:$0xff]
      %v686 = vld [vmem:[%s583 + $0x264] sm:$0xf]
      %v687 = vld [vmem:[%s583 + $0x268] sm:$0xff]
      %v688 = vld [vmem:[%s583 + $0x270] sm:$0xff]
      %v689 = vld [vmem:[%s583 + $0x278] sm:$0xff]
      %v690 = vld [vmem:[%s583 + $0x280] sm:$0xf]
      %v691 = vld [vmem:[%s583 + $0x284] sm:$0xff]
      %v692 = vld [vmem:[%s583 + $0x28c] sm:$0xff]
      %v693 = vld [vmem:[%s583 + $0x294] sm:$0xff]
      %v694 = vld [vmem:[%s583 + $0x29c] sm:$0xf]
      %v695 = vld [vmem:[%s583 + $0x2a0] sm:$0xff]
      %v696 = vld [vmem:[%s583 + $0x2a8] sm:$0xff]
      %v697 = vld [vmem:[%s583 + $0x2b0] sm:$0xff]
      %v698 = vld [vmem:[%s583 + $0x2b8] sm:$0xf]
      %v699 = vld [vmem:[%s583 + $0x2bc] sm:$0xff]
      %v700 = vld [vmem:[%s583 + $0x2c4] sm:$0xff]
      %v701 = vld [vmem:[%s583 + $0x2cc] sm:$0xff]
      %v702 = vld [vmem:[%s583 + $0x2d4] sm:$0xf]
      %v703 = vld [vmem:[%s583 + $0x2d8] sm:$0xff]
      %v704 = vld [vmem:[%s583 + $0x2e0] sm:$0xff]
      %v705 = vld [vmem:[%s583 + $0x2e8] sm:$0xff]
      %v706 = vld [vmem:[%s583 + $0x2f0] sm:$0xf]
      %v707 = vld [vmem:[%s583 + $0x2f4] sm:$0xff]
      %v708 = vld [vmem:[%s583 + $0x2fc] sm:$0xff]
      %v709 = vld [vmem:[%s583 + $0x304] sm:$0xff]
      %v710 = vld [vmem:[%s583 + $0x30c] sm:$0xf]
      %v711 = vld [vmem:[%s583 + $0x310] sm:$0xff]
      %v712 = vld [vmem:[%s583 + $0x318] sm:$0xff]
      %v713 = vld [vmem:[%s583 + $0x320] sm:$0xff]
      %v714 = vld [vmem:[%s583 + $0x328] sm:$0xf]
      %v715 = vld [vmem:[%s583 + $0x32c] sm:$0xff]
      %v716 = vld [vmem:[%s583 + $0x334] sm:$0xff]
      %v717 = vld [vmem:[%s583 + $0x33c] sm:$0xff]
      %v718 = vld [vmem:[%s583 + $0x344] sm:$0xf]
      %v719 = vld [vmem:[%s583 + $0x348] sm:$0xff]
      %v720 = vld [vmem:[%s583 + $0x350] sm:$0xff]
      %v721 = vld [vmem:[%s583 + $0x358] sm:$0xff]
      %v722 = vld [vmem:[%s583 + $0x360] sm:$0xf]
      %v723 = vld [vmem:[%s583 + $0x364] sm:$0xff]
      %v724 = vld [vmem:[%s583 + $0x36c] sm:$0xff]
      %v725 = vld [vmem:[%s583 + $0x374] sm:$0xff]
      %v726 = vld [vmem:[%s583 + $0x37c] sm:$0xf]
      %v727 = vld [vmem:[%s1] sm:$0xf]
      %v728 = vld [vmem:[%s1 + $0x4] sm:$0xf]
      %v729 = vld [vmem:[%s1 + $0x8] sm:$0xf]
      %v730 = vld [vmem:[%s1 + $0xc] sm:$0xf]
      %v731 = vld [vmem:[%s1 + $0x10] sm:$0xf]
      %v732 = vld [vmem:[%s1 + $0x14] sm:$0xf]
      %v733 = vld [vmem:[%s1 + $0x18] sm:$0xf]
      %v734 = vld [vmem:[%s1 + $0x1c] sm:$0xf]
      %v735 = vld [vmem:[%s1 + $0x20] sm:$0xf]
      %v736 = vld [vmem:[%s1 + $0x24] sm:$0xf]
      %v737 = vld [vmem:[%s1 + $0x28] sm:$0xf]
      %v738 = vld [vmem:[%s1 + $0x2c] sm:$0xf]
      %v739 = vld [vmem:[%s1 + $0x30] sm:$0xf]
      %v740 = vld [vmem:[%s1 + $0x34] sm:$0xf]
      %v741 = vld [vmem:[%s1 + $0x38] sm:$0xf]
      %v742 = vld [vmem:[%s1 + $0x3c] sm:$0xf]
      %v743 = vld [vmem:[%s1 + $0x40] sm:$0xf]
      %v744 = vld [vmem:[%s1 + $0x44] sm:$0xf]
      %v745 = vld [vmem:[%s1 + $0x48] sm:$0xf]
      %v746 = vld [vmem:[%s1 + $0x4c] sm:$0xf]
      %v747 = vld [vmem:[%s1 + $0x50] sm:$0xf]
      %v748 = vld [vmem:[%s1 + $0x54] sm:$0xf]
      %v749 = vld [vmem:[%s1 + $0x58] sm:$0xf]
      %v750 = vld [vmem:[%s1 + $0x5c] sm:$0xf]
      %v751 = vld [vmem:[%s1 + $0x60] sm:$0xf]
      %v752 = vld [vmem:[%s1 + $0x64] sm:$0xf]
      %v753 = vld [vmem:[%s1 + $0x68] sm:$0xf]
      %v754 = vld [vmem:[%s1 + $0x6c] sm:$0xf]
      %v755 = vld [vmem:[%s1 + $0x70] sm:$0xf]
      %v756 = vld [vmem:[%s1 + $0x74] sm:$0xf]
      %v757 = vld [vmem:[%s1 + $0x78] sm:$0xf]
      %v758 = vld [vmem:[%s1 + $0x7c] sm:$0xf]
      %v759 = vld [vmem:[%s1 + $0x80] sm:$0xf]
      %v760 = vld [vmem:[%s1 + $0x84] sm:$0xf]
      %v761 = vld [vmem:[%s1 + $0x88] sm:$0xf]
      %v762 = vld [vmem:[%s1 + $0x8c] sm:$0xf]
      %v763 = vld [vmem:[%s1 + $0x90] sm:$0xf]
      %v764 = vld [vmem:[%s1 + $0x94] sm:$0xf]
      %v765 = vld [vmem:[%s1 + $0x98] sm:$0xf]
      %v766 = vld [vmem:[%s1 + $0x9c] sm:$0xf]
      %v767 = vld [vmem:[%s1 + $0xa0] sm:$0xf]
      %v768 = vld [vmem:[%s1 + $0xa4] sm:$0xf]
      %v769 = vld [vmem:[%s1 + $0xa8] sm:$0xf]
      %v770 = vld [vmem:[%s1 + $0xac] sm:$0xf]
      %v771 = vld [vmem:[%s1 + $0xb0] sm:$0xf]
      %v772 = vld [vmem:[%s1 + $0xb4] sm:$0xf]
      %v773 = vld [vmem:[%s1 + $0xb8] sm:$0xf]
      %v774 = vld [vmem:[%s1 + $0xbc] sm:$0xf]
      %v775 = vld [vmem:[%s1 + $0xc0] sm:$0xf]
      %v776 = vld [vmem:[%s1 + $0xc4] sm:$0xf]
      %v777 = vld [vmem:[%s1 + $0xc8] sm:$0xf]
      %v778 = vld [vmem:[%s1 + $0xcc] sm:$0xf]
      %v779 = vld [vmem:[%s1 + $0xd0] sm:$0xf]
      %v780 = vld [vmem:[%s1 + $0xd4] sm:$0xf]
      %v781 = vld [vmem:[%s1 + $0xd8] sm:$0xf]
      %v782 = vld [vmem:[%s1 + $0xdc] sm:$0xf]
      %v783 = vld [vmem:[%s1 + $0xe0] sm:$0xf]
      %v784 = vld [vmem:[%s1 + $0xe4] sm:$0xf]
      %v785 = vld [vmem:[%s1 + $0xe8] sm:$0xf]
      %v786 = vld [vmem:[%s1 + $0xec] sm:$0xf]
      %v787 = vld [vmem:[%s1 + $0xf0] sm:$0xf]
      %v788 = vld [vmem:[%s1 + $0xf4] sm:$0xf]
      %v789 = vld [vmem:[%s1 + $0xf8] sm:$0xf]
      %v790 = vld [vmem:[%s1 + $0xfc] sm:$0xf]
      %v791 = vld [vmem:[%s1 + $0x100] sm:$0xf]
      %v792 = vld [vmem:[%s1 + $0x104] sm:$0xf]
      %v793 = vld [vmem:[%s1 + $0x108] sm:$0xf]
      %v794 = vld [vmem:[%s1 + $0x10c] sm:$0xf]
      %v795 = vld [vmem:[%s1 + $0x110] sm:$0xf]
      %v796 = vld [vmem:[%s1 + $0x114] sm:$0xf]
      %v797 = vld [vmem:[%s1 + $0x118] sm:$0xf]
      %v798 = vld [vmem:[%s1 + $0x11c] sm:$0xf]
      %v799 = vld [vmem:[%s1 + $0x120] sm:$0xf]
      %v800 = vld [vmem:[%s1 + $0x124] sm:$0xf]
      %v801 = vld [vmem:[%s1 + $0x128] sm:$0xf]
      %v802 = vld [vmem:[%s1 + $0x12c] sm:$0xf]
      %v803 = vld [vmem:[%s1 + $0x130] sm:$0xf]
      %v804 = vld [vmem:[%s1 + $0x134] sm:$0xf]
      %v805 = vld [vmem:[%s1 + $0x138] sm:$0xf]
      %v806 = vld [vmem:[%s1 + $0x13c] sm:$0xf]
      %v807 = vld [vmem:[%s1 + $0x140] sm:$0xf]
      %v808 = vld [vmem:[%s1 + $0x144] sm:$0xf]
      %v809 = vld [vmem:[%s1 + $0x148] sm:$0xf]
      %v810 = vld [vmem:[%s1 + $0x14c] sm:$0xf]
      %v811 = vld [vmem:[%s1 + $0x150] sm:$0xf]
      %v812 = vld [vmem:[%s1 + $0x154] sm:$0xf]
      %v813 = vld [vmem:[%s1 + $0x158] sm:$0xf]
      %v814 = vld [vmem:[%s1 + $0x15c] sm:$0xf]
      %v815 = vld [vmem:[%s1 + $0x160] sm:$0xf]
      %v816 = vld [vmem:[%s1 + $0x164] sm:$0xf]
      %v817 = vld [vmem:[%s1 + $0x168] sm:$0xf]
      %v818 = vld [vmem:[%s1 + $0x16c] sm:$0xf]
      %v819 = vld [vmem:[%s1 + $0x170] sm:$0xf]
      %v820 = vld [vmem:[%s1 + $0x174] sm:$0xf]
      %v821 = vld [vmem:[%s1 + $0x178] sm:$0xf]
      %v822 = vld [vmem:[%s1 + $0x17c] sm:$0xf]
      %v823 = vld [vmem:[%s1 + $0x180] sm:$0xf]
      %v824 = vld [vmem:[%s1 + $0x184] sm:$0xf]
      %v825 = vld [vmem:[%s1 + $0x188] sm:$0xf]
      %v826 = vld [vmem:[%s1 + $0x18c] sm:$0xf]
      %v827 = vld [vmem:[%s1 + $0x190] sm:$0xf]
      %v828 = vld [vmem:[%s1 + $0x194] sm:$0xf]
      %v829 = vld [vmem:[%s1 + $0x198] sm:$0xf]
      %v830 = vld [vmem:[%s1 + $0x19c] sm:$0xf]
      %v831 = vld [vmem:[%s1 + $0x1a0] sm:$0xf]
      %v832 = vld [vmem:[%s1 + $0x1a4] sm:$0xf]
      %v833 = vld [vmem:[%s1 + $0x1a8] sm:$0xf]
      %v834 = vld [vmem:[%s1 + $0x1ac] sm:$0xf]
      %v835 = vld [vmem:[%s1 + $0x1b0] sm:$0xf]
      %v836 = vld [vmem:[%s1 + $0x1b4] sm:$0xf]
      %v837 = vld [vmem:[%s1 + $0x1b8] sm:$0xf]
      %v838 = vld [vmem:[%s1 + $0x1bc] sm:$0xf]
      %v839 = vld [vmem:[%s2] sm:$0x1]
      %v841 = vlaneseq
      %v842 = vshrl.u32 %v841, 7
      %v843 = vsub.s32 0, %v842
      %v844 = vrot.slane %v839, %v843
      %v974 = vunpack.c.l.b16 %v599
      %v975 = vunpack.c.h.b16 %v599
      %v976 = vunpack.c.l.b16 %v600
      %v977 = vunpack.c.h.b16 %v600
      %v978 = vunpack.c.l.b16 %v601
      %v979 = vunpack.c.h.b16 %v601
      %v980 = vunpack.c.l.b16 %v602
      %v981 = vunpack.c.l.b16 %v603
      %v982 = vunpack.c.h.b16 %v603
      %v983 = vunpack.c.l.b16 %v604
      %v984 = vunpack.c.h.b16 %v604
      %v985 = vunpack.c.l.b16 %v605
      %v986 = vunpack.c.h.b16 %v605
      %v987 = vunpack.c.l.b16 %v606
      %v988 = vunpack.c.l.b16 %v607
      %v989 = vunpack.c.h.b16 %v607
      %v990 = vunpack.c.l.b16 %v608
      %v991 = vunpack.c.h.b16 %v608
      %v992 = vunpack.c.l.b16 %v609
      %v993 = vunpack.c.h.b16 %v609
      %v994 = vunpack.c.l.b16 %v610
      %v995 = vunpack.c.l.b16 %v611
      %v996 = vunpack.c.h.b16 %v611
      %v997 = vunpack.c.l.b16 %v612
      %v998 = vunpack.c.h.b16 %v612
      %v999 = vunpack.c.l.b16 %v613
      %v1000 = vunpack.c.h.b16 %v613
      %v1001 = vunpack.c.l.b16 %v614
      %v1002 = vunpack.c.l.b16 %v615
      %v1003 = vunpack.c.h.b16 %v615
      %v1004 = vunpack.c.l.b16 %v616
      %v1005 = vunpack.c.h.b16 %v616
      %v1006 = vunpack.c.l.b16 %v617
      %v1007 = vunpack.c.h.b16 %v617
      %v1008 = vunpack.c.l.b16 %v618
      %v1009 = vunpack.c.l.b16 %v619
      %v1010 = vunpack.c.h.b16 %v619
      %v1011 = vunpack.c.l.b16 %v620
      %v1012 = vunpack.c.h.b16 %v620
      %v1013 = vunpack.c.l.b16 %v621
      %v1014 = vunpack.c.h.b16 %v621
      %v1015 = vunpack.c.l.b16 %v622
      %v1016 = vunpack.c.l.b16 %v623
      %v1017 = vunpack.c.h.b16 %v623
      %v1018 = vunpack.c.l.b16 %v624
      %v1019 = vunpack.c.h.b16 %v624
      %v1020 = vunpack.c.l.b16 %v625
      %v1021 = vunpack.c.h.b16 %v625
      %v1022 = vunpack.c.l.b16 %v626
      %v1023 = vunpack.c.l.b16 %v627
      %v1024 = vunpack.c.h.b16 %v627
      %v1025 = vunpack.c.l.b16 %v628
      %v1026 = vunpack.c.h.b16 %v628
      %v1027 = vunpack.c.l.b16 %v629
      %v1028 = vunpack.c.h.b16 %v629
      %v1029 = vunpack.c.l.b16 %v630
      %v1030 = vunpack.c.l.b16 %v631
      %v1031 = vunpack.c.h.b16 %v631
      %v1032 = vunpack.c.l.b16 %v632
      %v1033 = vunpack.c.h.b16 %v632
      %v1034 = vunpack.c.l.b16 %v633
      %v1035 = vunpack.c.h.b16 %v633
      %v1036 = vunpack.c.l.b16 %v634
      %v1037 = vunpack.c.l.b16 %v635
      %v1038 = vunpack.c.h.b16 %v635
      %v1039 = vunpack.c.l.b16 %v636
      %v1040 = vunpack.c.h.b16 %v636
      %v1041 = vunpack.c.l.b16 %v637
      %v1042 = vunpack.c.h.b16 %v637
      %v1043 = vunpack.c.l.b16 %v638
      %v1044 = vunpack.c.l.b16 %v639
      %v1045 = vunpack.c.h.b16 %v639
      %v1046 = vunpack.c.l.b16 %v640
      %v1047 = vunpack.c.h.b16 %v640
      %v1048 = vunpack.c.l.b16 %v641
      %v1049 = vunpack.c.h.b16 %v641
      %v1050 = vunpack.c.l.b16 %v642
      %v1051 = vunpack.c.l.b16 %v643
      %v1052 = vunpack.c.h.b16 %v643
      %v1053 = vunpack.c.l.b16 %v644
      %v1054 = vunpack.c.h.b16 %v644
      %v1055 = vunpack.c.l.b16 %v645
      %v1056 = vunpack.c.h.b16 %v645
      %v1057 = vunpack.c.l.b16 %v646
      %v1058 = vunpack.c.l.b16 %v647
      %v1059 = vunpack.c.h.b16 %v647
      %v1060 = vunpack.c.l.b16 %v648
      %v1061 = vunpack.c.h.b16 %v648
      %v1062 = vunpack.c.l.b16 %v649
      %v1063 = vunpack.c.h.b16 %v649
      %v1064 = vunpack.c.l.b16 %v650
      %v1065 = vunpack.c.l.b16 %v651
      %v1066 = vunpack.c.h.b16 %v651
      %v1067 = vunpack.c.l.b16 %v652
      %v1068 = vunpack.c.h.b16 %v652
      %v1069 = vunpack.c.l.b16 %v653
      %v1070 = vunpack.c.h.b16 %v653
      %v1071 = vunpack.c.l.b16 %v654
      %v1072 = vunpack.c.l.b16 %v655
      %v1073 = vunpack.c.h.b16 %v655
      %v1074 = vunpack.c.l.b16 %v656
      %v1075 = vunpack.c.h.b16 %v656
      %v1076 = vunpack.c.l.b16 %v657
      %v1077 = vunpack.c.h.b16 %v657
      %v1078 = vunpack.c.l.b16 %v658
      %v1079 = vunpack.c.l.b16 %v659
      %v1080 = vunpack.c.h.b16 %v659
      %v1081 = vunpack.c.l.b16 %v660
      %v1082 = vunpack.c.h.b16 %v660
      %v1083 = vunpack.c.l.b16 %v661
      %v1084 = vunpack.c.h.b16 %v661
      %v1085 = vunpack.c.l.b16 %v662
      %v1086 = vunpack.c.l.b16 %v663
      %v1087 = vunpack.c.h.b16 %v663
      %v1088 = vunpack.c.l.b16 %v664
      %v1089 = vunpack.c.h.b16 %v664
      %v1090 = vunpack.c.l.b16 %v665
      %v1091 = vunpack.c.h.b16 %v665
      %v1092 = vunpack.c.l.b16 %v666
      %v1093 = vunpack.c.l.b16 %v667
      %v1094 = vunpack.c.h.b16 %v667
      %v1095 = vunpack.c.l.b16 %v668
      %v1096 = vunpack.c.h.b16 %v668
      %v1097 = vunpack.c.l.b16 %v669
      %v1098 = vunpack.c.h.b16 %v669
      %v1099 = vunpack.c.l.b16 %v670
      %v1100 = vunpack.c.l.b16 %v671
      %v1101 = vunpack.c.h.b16 %v671
      %v1102 = vunpack.c.l.b16 %v672
      %v1103 = vunpack.c.h.b16 %v672
      %v1104 = vunpack.c.l.b16 %v673
      %v1105 = vunpack.c.h.b16 %v673
      %v1106 = vunpack.c.l.b16 %v674
      %v1107 = vunpack.c.l.b16 %v675
      %v1108 = vunpack.c.h.b16 %v675
      %v1109 = vunpack.c.l.b16 %v676
      %v1110 = vunpack.c.h.b16 %v676
      %v1111 = vunpack.c.l.b16 %v677
      %v1112 = vunpack.c.h.b16 %v677
      %v1113 = vunpack.c.l.b16 %v678
      %v1114 = vunpack.c.l.b16 %v679
      %v1115 = vunpack.c.h.b16 %v679
      %v1116 = vunpack.c.l.b16 %v680
      %v1117 = vunpack.c.h.b16 %v680
      %v1118 = vunpack.c.l.b16 %v681
      %v1119 = vunpack.c.h.b16 %v681
      %v1120 = vunpack.c.l.b16 %v682
      %v1121 = vunpack.c.l.b16 %v683
      %v1122 = vunpack.c.h.b16 %v683
      %v1123 = vunpack.c.l.b16 %v684
      %v1124 = vunpack.c.h.b16 %v684
      %v1125 = vunpack.c.l.b16 %v685
      %v1126 = vunpack.c.h.b16 %v685
      %v1127 = vunpack.c.l.b16 %v686
      %v1128 = vunpack.c.l.b16 %v687
      %v1129 = vunpack.c.h.b16 %v687
      %v1130 = vunpack.c.l.b16 %v688
      %v1131 = vunpack.c.h.b16 %v688
      %v1132 = vunpack.c.l.b16 %v689
      %v1133 = vunpack.c.h.b16 %v689
      %v1134 = vunpack.c.l.b16 %v690
      %v1135 = vunpack.c.l.b16 %v691
      %v1136 = vunpack.c.h.b16 %v691
      %v1137 = vunpack.c.l.b16 %v692
      %v1138 = vunpack.c.h.b16 %v692
      %v1139 = vunpack.c.l.b16 %v693
      %v1140 = vunpack.c.h.b16 %v693
      %v1141 = vunpack.c.l.b16 %v694
      %v1142 = vunpack.c.l.b16 %v695
      %v1143 = vunpack.c.h.b16 %v695
      %v1144 = vunpack.c.l.b16 %v696
      %v1145 = vunpack.c.h.b16 %v696
      %v1146 = vunpack.c.l.b16 %v697
      %v1147 = vunpack.c.h.b16 %v697
      %v1148 = vunpack.c.l.b16 %v698
      %v1149 = vunpack.c.l.b16 %v699
      %v1150 = vunpack.c.h.b16 %v699
      %v1151 = vunpack.c.l.b16 %v700
      %v1152 = vunpack.c.h.b16 %v700
      %v1153 = vunpack.c.l.b16 %v701
      %v1154 = vunpack.c.h.b16 %v701
      %v1155 = vunpack.c.l.b16 %v702
      %v1156 = vunpack.c.l.b16 %v703
      %v1157 = vunpack.c.h.b16 %v703
      %v1158 = vunpack.c.l.b16 %v704
      %v1159 = vunpack.c.h.b16 %v704
      %v1160 = vunpack.c.l.b16 %v705
      %v1161 = vunpack.c.h.b16 %v705
      %v1162 = vunpack.c.l.b16 %v706
      %v1163 = vunpack.c.l.b16 %v707
      %v1164 = vunpack.c.h.b16 %v707
      %v1165 = vunpack.c.l.b16 %v708
      %v1166 = vunpack.c.h.b16 %v708
      %v1167 = vunpack.c.l.b16 %v709
      %v1168 = vunpack.c.h.b16 %v709
      %v1169 = vunpack.c.l.b16 %v710
      %v1170 = vunpack.c.l.b16 %v711
      %v1171 = vunpack.c.h.b16 %v711
      %v1172 = vunpack.c.l.b16 %v712
      %v1173 = vunpack.c.h.b16 %v712
      %v1174 = vunpack.c.l.b16 %v713
      %v1175 = vunpack.c.h.b16 %v713
      %v1176 = vunpack.c.l.b16 %v714
      %v1177 = vunpack.c.l.b16 %v715
      %v1178 = vunpack.c.h.b16 %v715
      %v1179 = vunpack.c.l.b16 %v716
      %v1180 = vunpack.c.h.b16 %v716
      %v1181 = vunpack.c.l.b16 %v717
      %v1182 = vunpack.c.h.b16 %v717
      %v1183 = vunpack.c.l.b16 %v718
      %v1184 = vunpack.c.l.b16 %v719
      %v1185 = vunpack.c.h.b16 %v719
      %v1186 = vunpack.c.l.b16 %v720
      %v1187 = vunpack.c.h.b16 %v720
      %v1188 = vunpack.c.l.b16 %v721
      %v1189 = vunpack.c.h.b16 %v721
      %v1190 = vunpack.c.l.b16 %v722
      %v1191 = vunpack.c.l.b16 %v723
      %v1192 = vunpack.c.h.b16 %v723
      %v1193 = vunpack.c.l.b16 %v724
      %v1194 = vunpack.c.h.b16 %v724
      %v1195 = vunpack.c.l.b16 %v725
      %v1196 = vunpack.c.h.b16 %v725
      %v1197 = vunpack.c.l.b16 %v726
      %v1198 = vpack.c.b16 %v981, %v974
      %v1199 = vpack.c.b16 %v982, %v975
      %v1200 = vpack.c.b16 %v983, %v976
      %v1201 = vpack.c.b16 %v984, %v977
      %v1202 = vpack.c.b16 %v985, %v978
      %v1203 = vpack.c.b16 %v986, %v979
      %v1204 = vpack.c.b16 %v987, %v980
      %v1205 = vpack.c.b16 %v995, %v988
      %v1206 = vpack.c.b16 %v996, %v989
      %v1207 = vpack.c.b16 %v997, %v990
      %v1208 = vpack.c.b16 %v998, %v991
      %v1209 = vpack.c.b16 %v999, %v992
      %v1210 = vpack.c.b16 %v1000, %v993
      %v1211 = vpack.c.b16 %v1001, %v994
      %v1212 = vpack.c.b16 %v1009, %v1002
      %v1213 = vpack.c.b16 %v1010, %v1003
      %v1214 = vpack.c.b16 %v1011, %v1004
      %v1215 = vpack.c.b16 %v1012, %v1005
      %v1216 = vpack.c.b16 %v1013, %v1006
      %v1217 = vpack.c.b16 %v1014, %v1007
      %v1218 = vpack.c.b16 %v1015, %v1008
      %v1219 = vpack.c.b16 %v1023, %v1016
      %v1220 = vpack.c.b16 %v1024, %v1017
      %v1221 = vpack.c.b16 %v1025, %v1018
      %v1222 = vpack.c.b16 %v1026, %v1019
      %v1223 = vpack.c.b16 %v1027, %v1020
      %v1224 = vpack.c.b16 %v1028, %v1021
      %v1225 = vpack.c.b16 %v1029, %v1022
      %v1226 = vpack.c.b16 %v1037, %v1030
      %v1227 = vpack.c.b16 %v1038, %v1031
      %v1228 = vpack.c.b16 %v1039, %v1032
      %v1229 = vpack.c.b16 %v1040, %v1033
      %v1230 = vpack.c.b16 %v1041, %v1034
      %v1231 = vpack.c.b16 %v1042, %v1035
      %v1232 = vpack.c.b16 %v1043, %v1036
      %v1233 = vpack.c.b16 %v1051, %v1044
      %v1234 = vpack.c.b16 %v1052, %v1045
      %v1235 = vpack.c.b16 %v1053, %v1046
      %v1236 = vpack.c.b16 %v1054, %v1047
      %v1237 = vpack.c.b16 %v1055, %v1048
      %v1238 = vpack.c.b16 %v1056, %v1049
      %v1239 = vpack.c.b16 %v1057, %v1050
      %v1240 = vpack.c.b16 %v1065, %v1058
      %v1241 = vpack.c.b16 %v1066, %v1059
      %v1242 = vpack.c.b16 %v1067, %v1060
      %v1243 = vpack.c.b16 %v1068, %v1061
      %v1244 = vpack.c.b16 %v1069, %v1062
      %v1245 = vpack.c.b16 %v1070, %v1063
      %v1246 = vpack.c.b16 %v1071, %v1064
      %v1247 = vpack.c.b16 %v1079, %v1072
      %v1248 = vpack.c.b16 %v1080, %v1073
      %v1249 = vpack.c.b16 %v1081, %v1074
      %v1250 = vpack.c.b16 %v1082, %v1075
      %v1251 = vpack.c.b16 %v1083, %v1076
      %v1252 = vpack.c.b16 %v1084, %v1077
      %v1253 = vpack.c.b16 %v1085, %v1078
      %v1254 = vpack.c.b16 %v1093, %v1086
      %v1255 = vpack.c.b16 %v1094, %v1087
      %v1256 = vpack.c.b16 %v1095, %v1088
      %v1257 = vpack.c.b16 %v1096, %v1089
      %v1258 = vpack.c.b16 %v1097, %v1090
      %v1259 = vpack.c.b16 %v1098, %v1091
      %v1260 = vpack.c.b16 %v1099, %v1092
      %v1261 = vpack.c.b16 %v1107, %v1100
      %v1262 = vpack.c.b16 %v1108, %v1101
      %v1263 = vpack.c.b16 %v1109, %v1102
      %v1264 = vpack.c.b16 %v1110, %v1103
      %v1265 = vpack.c.b16 %v1111, %v1104
      %v1266 = vpack.c.b16 %v1112, %v1105
      %v1267 = vpack.c.b16 %v1113, %v1106
      %v1268 = vpack.c.b16 %v1121, %v1114
      %v1269 = vpack.c.b16 %v1122, %v1115
      %v1270 = vpack.c.b16 %v1123, %v1116
      %v1271 = vpack.c.b16 %v1124, %v1117
      %v1272 = vpack.c.b16 %v1125, %v1118
      %v1273 = vpack.c.b16 %v1126, %v1119
      %v1274 = vpack.c.b16 %v1127, %v1120
      %v1275 = vpack.c.b16 %v1135, %v1128
      %v1276 = vpack.c.b16 %v1136, %v1129
      %v1277 = vpack.c.b16 %v1137, %v1130
      %v1278 = vpack.c.b16 %v1138, %v1131
      %v1279 = vpack.c.b16 %v1139, %v1132
      %v1280 = vpack.c.b16 %v1140, %v1133
      %v1281 = vpack.c.b16 %v1141, %v1134
      %v1282 = vpack.c.b16 %v1149, %v1142
      %v1283 = vpack.c.b16 %v1150, %v1143
      %v1284 = vpack.c.b16 %v1151, %v1144
      %v1285 = vpack.c.b16 %v1152, %v1145
      %v1286 = vpack.c.b16 %v1153, %v1146
      %v1287 = vpack.c.b16 %v1154, %v1147
      %v1288 = vpack.c.b16 %v1155, %v1148
      %v1289 = vpack.c.b16 %v1163, %v1156
      %v1290 = vpack.c.b16 %v1164, %v1157
      %v1291 = vpack.c.b16 %v1165, %v1158
      %v1292 = vpack.c.b16 %v1166, %v1159
      %v1293 = vpack.c.b16 %v1167, %v1160
      %v1294 = vpack.c.b16 %v1168, %v1161
      %v1295 = vpack.c.b16 %v1169, %v1162
      %v1296 = vpack.c.b16 %v1177, %v1170
      %v1297 = vpack.c.b16 %v1178, %v1171
      %v1298 = vpack.c.b16 %v1179, %v1172
      %v1299 = vpack.c.b16 %v1180, %v1173
      %v1300 = vpack.c.b16 %v1181, %v1174
      %v1301 = vpack.c.b16 %v1182, %v1175
      %v1302 = vpack.c.b16 %v1183, %v1176
      %v1303 = vpack.c.b16 %v1191, %v1184
      %v1304 = vpack.c.b16 %v1192, %v1185
      %v1305 = vpack.c.b16 %v1193, %v1186
      %v1306 = vpack.c.b16 %v1194, %v1187
      %v1307 = vpack.c.b16 %v1195, %v1188
      %v1308 = vpack.c.b16 %v1196, %v1189
      %v1309 = vpack.c.b16 %v1197, %v1190
      %v1534 = vunpack.c.l.b16 %v727
      %v1535 = vunpack.c.l.b16 %v728
      %v1536 = vunpack.c.l.b16 %v729
      %v1537 = vunpack.c.l.b16 %v730
      %v1538 = vunpack.c.l.b16 %v731
      %v1539 = vunpack.c.l.b16 %v732
      %v1540 = vunpack.c.l.b16 %v733
      %v1541 = vunpack.c.l.b16 %v734
      %v1542 = vunpack.c.l.b16 %v735
      %v1543 = vunpack.c.l.b16 %v736
      %v1544 = vunpack.c.l.b16 %v737
      %v1545 = vunpack.c.l.b16 %v738
      %v1546 = vunpack.c.l.b16 %v739
      %v1547 = vunpack.c.l.b16 %v740
      %v1548 = vunpack.c.l.b16 %v741
      %v1549 = vunpack.c.l.b16 %v742
      %v1550 = vunpack.c.l.b16 %v743
      %v1551 = vunpack.c.l.b16 %v744
      %v1552 = vunpack.c.l.b16 %v745
      %v1553 = vunpack.c.l.b16 %v746
      %v1554 = vunpack.c.l.b16 %v747
      %v1555 = vunpack.c.l.b16 %v748
      %v1556 = vunpack.c.l.b16 %v749
      %v1557 = vunpack.c.l.b16 %v750
      %v1558 = vunpack.c.l.b16 %v751
      %v1559 = vunpack.c.l.b16 %v752
      %v1560 = vunpack.c.l.b16 %v753
      %v1561 = vunpack.c.l.b16 %v754
      %v1562 = vunpack.c.l.b16 %v755
      %v1563 = vunpack.c.l.b16 %v756
      %v1564 = vunpack.c.l.b16 %v757
      %v1565 = vunpack.c.l.b16 %v758
      %v1566 = vunpack.c.l.b16 %v759
      %v1567 = vunpack.c.l.b16 %v760
      %v1568 = vunpack.c.l.b16 %v761
      %v1569 = vunpack.c.l.b16 %v762
      %v1570 = vunpack.c.l.b16 %v763
      %v1571 = vunpack.c.l.b16 %v764
      %v1572 = vunpack.c.l.b16 %v765
      %v1573 = vunpack.c.l.b16 %v766
      %v1574 = vunpack.c.l.b16 %v767
      %v1575 = vunpack.c.l.b16 %v768
      %v1576 = vunpack.c.l.b16 %v769
      %v1577 = vunpack.c.l.b16 %v770
      %v1578 = vunpack.c.l.b16 %v771
      %v1579 = vunpack.c.l.b16 %v772
      %v1580 = vunpack.c.l.b16 %v773
      %v1581 = vunpack.c.l.b16 %v774
      %v1582 = vunpack.c.l.b16 %v775
      %v1583 = vunpack.c.l.b16 %v776
      %v1584 = vunpack.c.l.b16 %v777
      %v1585 = vunpack.c.l.b16 %v778
      %v1586 = vunpack.c.l.b16 %v779
      %v1587 = vunpack.c.l.b16 %v780
      %v1588 = vunpack.c.l.b16 %v781
      %v1589 = vunpack.c.l.b16 %v782
      %v1590 = vunpack.c.l.b16 %v783
      %v1591 = vunpack.c.l.b16 %v784
      %v1592 = vunpack.c.l.b16 %v785
      %v1593 = vunpack.c.l.b16 %v786
      %v1594 = vunpack.c.l.b16 %v787
      %v1595 = vunpack.c.l.b16 %v788
      %v1596 = vunpack.c.l.b16 %v789
      %v1597 = vunpack.c.l.b16 %v790
      %v1598 = vunpack.c.l.b16 %v791
      %v1599 = vunpack.c.l.b16 %v792
      %v1600 = vunpack.c.l.b16 %v793
      %v1601 = vunpack.c.l.b16 %v794
      %v1602 = vunpack.c.l.b16 %v795
      %v1603 = vunpack.c.l.b16 %v796
      %v1604 = vunpack.c.l.b16 %v797
      %v1605 = vunpack.c.l.b16 %v798
      %v1606 = vunpack.c.l.b16 %v799
      %v1607 = vunpack.c.l.b16 %v800
      %v1608 = vunpack.c.l.b16 %v801
      %v1609 = vunpack.c.l.b16 %v802
      %v1610 = vunpack.c.l.b16 %v803
      %v1611 = vunpack.c.l.b16 %v804
      %v1612 = vunpack.c.l.b16 %v805
      %v1613 = vunpack.c.l.b16 %v806
      %v1614 = vunpack.c.l.b16 %v807
      %v1615 = vunpack.c.l.b16 %v808
      %v1616 = vunpack.c.l.b16 %v809
      %v1617 = vunpack.c.l.b16 %v810
      %v1618 = vunpack.c.l.b16 %v811
      %v1619 = vunpack.c.l.b16 %v812
      %v1620 = vunpack.c.l.b16 %v813
      %v1621 = vunpack.c.l.b16 %v814
      %v1622 = vunpack.c.l.b16 %v815
      %v1623 = vunpack.c.l.b16 %v816
      %v1624 = vunpack.c.l.b16 %v817
      %v1625 = vunpack.c.l.b16 %v818
      %v1626 = vunpack.c.l.b16 %v819
      %v1627 = vunpack.c.l.b16 %v820
      %v1628 = vunpack.c.l.b16 %v821
      %v1629 = vunpack.c.l.b16 %v822
      %v1630 = vunpack.c.l.b16 %v823
      %v1631 = vunpack.c.l.b16 %v824
      %v1632 = vunpack.c.l.b16 %v825
      %v1633 = vunpack.c.l.b16 %v826
      %v1634 = vunpack.c.l.b16 %v827
      %v1635 = vunpack.c.l.b16 %v828
      %v1636 = vunpack.c.l.b16 %v829
      %v1637 = vunpack.c.l.b16 %v830
      %v1638 = vunpack.c.l.b16 %v831
      %v1639 = vunpack.c.l.b16 %v832
      %v1640 = vunpack.c.l.b16 %v833
      %v1641 = vunpack.c.l.b16 %v834
      %v1642 = vunpack.c.l.b16 %v835
      %v1643 = vunpack.c.l.b16 %v836
      %v1644 = vunpack.c.l.b16 %v837
      %v1645 = vunpack.c.l.b16 %v838
      %v1646 = vpack.c.b16 %v1535, %v1534
      %v1647 = vpack.c.b16 %v1537, %v1536
      %v1648 = vpack.c.b16 %v1539, %v1538
      %v1649 = vpack.c.b16 %v1541, %v1540
      %v1650 = vpack.c.b16 %v1543, %v1542
      %v1651 = vpack.c.b16 %v1545, %v1544
      %v1652 = vpack.c.b16 %v1547, %v1546
      %v1653 = vpack.c.b16 %v1549, %v1548
      %v1654 = vpack.c.b16 %v1551, %v1550
      %v1655 = vpack.c.b16 %v1553, %v1552
      %v1656 = vpack.c.b16 %v1555, %v1554
      %v1657 = vpack.c.b16 %v1557, %v1556
      %v1658 = vpack.c.b16 %v1559, %v1558
      %v1659 = vpack.c.b16 %v1561, %v1560
      %v1660 = vpack.c.b16 %v1563, %v1562
      %v1661 = vpack.c.b16 %v1565, %v1564
      %v1662 = vpack.c.b16 %v1567, %v1566
      %v1663 = vpack.c.b16 %v1569, %v1568
      %v1664 = vpack.c.b16 %v1571, %v1570
      %v1665 = vpack.c.b16 %v1573, %v1572
      %v1666 = vpack.c.b16 %v1575, %v1574
      %v1667 = vpack.c.b16 %v1577, %v1576
      %v1668 = vpack.c.b16 %v1579, %v1578
      %v1669 = vpack.c.b16 %v1581, %v1580
      %v1670 = vpack.c.b16 %v1583, %v1582
      %v1671 = vpack.c.b16 %v1585, %v1584
      %v1672 = vpack.c.b16 %v1587, %v1586
      %v1673 = vpack.c.b16 %v1589, %v1588
      %v1674 = vpack.c.b16 %v1591, %v1590
      %v1675 = vpack.c.b16 %v1593, %v1592
      %v1676 = vpack.c.b16 %v1595, %v1594
      %v1677 = vpack.c.b16 %v1597, %v1596
      %v1678 = vpack.c.b16 %v1599, %v1598
      %v1679 = vpack.c.b16 %v1601, %v1600
      %v1680 = vpack.c.b16 %v1603, %v1602
      %v1681 = vpack.c.b16 %v1605, %v1604
      %v1682 = vpack.c.b16 %v1607, %v1606
      %v1683 = vpack.c.b16 %v1609, %v1608
      %v1684 = vpack.c.b16 %v1611, %v1610
      %v1685 = vpack.c.b16 %v1613, %v1612
      %v1686 = vpack.c.b16 %v1615, %v1614
      %v1687 = vpack.c.b16 %v1617, %v1616
      %v1688 = vpack.c.b16 %v1619, %v1618
      %v1689 = vpack.c.b16 %v1621, %v1620
      %v1690 = vpack.c.b16 %v1623, %v1622
      %v1691 = vpack.c.b16 %v1625, %v1624
      %v1692 = vpack.c.b16 %v1627, %v1626
      %v1693 = vpack.c.b16 %v1629, %v1628
      %v1694 = vpack.c.b16 %v1631, %v1630
      %v1695 = vpack.c.b16 %v1633, %v1632
      %v1696 = vpack.c.b16 %v1635, %v1634
      %v1697 = vpack.c.b16 %v1637, %v1636
      %v1698 = vpack.c.b16 %v1639, %v1638
      %v1699 = vpack.c.b16 %v1641, %v1640
      %v1700 = vpack.c.b16 %v1643, %v1642
      %v1701 = vpack.c.b16 %v1645, %v1644
      %1758 = vmatprep.subr.bf16.mxu0 0
      %1759 = vmatpush1.bf16.msra.mxu0 %v1646
      %1760 = vmatprep.subr.bf16.mxu0 0
      %1761 = vmatpush1.bf16.msra.mxu0 %v1647
      %1762 = vmatprep.subr.bf16.mxu0 0
      %1763 = vmatpush1.bf16.msra.mxu0 %v1648
      %1764 = vmatprep.subr.bf16.mxu0 0
      %1765 = vmatpush1.bf16.msra.mxu0 %v1649
      %1766 = vmatprep.subr.bf16.mxu0 0
      %1767 = vmatpush1.bf16.msra.mxu0 %v1650
      %1768 = vmatprep.subr.bf16.mxu0 0
      %1769 = vmatpush1.bf16.msra.mxu0 %v1651
      %1770 = vmatprep.subr.bf16.mxu0 0
      %1771 = vmatpush1.bf16.msra.mxu0 %v1652
      %1772 = vmatprep.subr.bf16.mxu0 0
      %1773 = vmatpush1.bf16.msra.mxu0 %v1653
      %1774 = vmatprep.subr.bf16.mxu0 0
      %1775 = vmatpush1.bf16.msra.mxu0 %v1654
      %1776 = vmatprep.subr.bf16.mxu0 0
      %1777 = vmatpush1.bf16.msra.mxu0 %v1655
      %1778 = vmatprep.subr.bf16.mxu0 0
      %1779 = vmatpush1.bf16.msra.mxu0 %v1656
      %1780 = vmatprep.subr.bf16.mxu0 0
      %1781 = vmatpush1.bf16.msra.mxu0 %v1657
      %1782 = vmatprep.subr.bf16.mxu0 0
      %1783 = vmatpush1.bf16.msra.mxu0 %v1658
      %1784 = vmatprep.subr.bf16.mxu0 0
      %1785 = vmatpush1.bf16.msra.mxu0 %v1659
      %1786 = vmatprep.subr.bf16.mxu0 0
      %1787 = vmatpush1.bf16.msra.mxu0 %v1660
      %1788 = vmatprep.subr.bf16.mxu0 0
      %1789 = vmatpush1.bf16.msra.mxu0 %v1661
      %1790 = vmatprep.mubr.bf16.mxu0 %v1199
      %1791 = vmatmul.mubr.bf16.gmra.mrb[0].mxu0 %v1198
      %v1792 = vpop.f32.mrb[0].mxu0
      %v1793 = vadd.f32 %v844, %v1792
      %v1794 = vpop.f32.mrb[0].mxu0
      %v1795 = vpop.f32.mrb[0].mxu0
      %v1796 = vadd.f32 %v844, %v1795
      %v1797 = vpop.f32.mrb[0].mxu0
      %1798 = vmatprep.mubr.bf16.mxu0 %v1206
      %1799 = vmatmul.mubr.bf16.gmra.mrb[0].mxu0 %v1205
      %v1800 = vpop.f32.mrb[0].mxu0
      %v1801 = vadd.f32 %v844, %v1800
      %v1802 = vpop.f32.mrb[0].mxu0
      %v1803 = vpop.f32.mrb[0].mxu0
      %v1804 = vadd.f32 %v844, %v1803
      %v1805 = vpop.f32.mrb[0].mxu0
      %1806 = vmatprep.mubr.bf16.mxu0 %v1213
      %1807 = vmatmul.mubr.bf16.gmra.mrb[0].mxu0 %v1212
      %v1808 = vpop.f32.mrb[0].mxu0
      %v1809 = vadd.f32 %v844, %v1808
      %v1810 = vpop.f32.mrb[0].mxu0
      %v1811 = vpop.f32.mrb[0].mxu0
      %v1812 = vadd.f32 %v844, %v1811
      %v1813 = vpop.f32.mrb[0].mxu0
      %1814 = vmatprep.mubr.bf16.mxu0 %v1220
      %1815 = vmatmul.mubr.bf16.gmra.mrb[0].mxu0 %v1219
      %v1816 = vpop.f32.mrb[0].mxu0
      %v1817 = vadd.f32 %v844, %v1816
      %v1818 = vpop.f32.mrb[0].mxu0
      %v1819 = vpop.f32.mrb[0].mxu0
      %v1820 = vadd.f32 %v844, %v1819
      %v1821 = vpop.f32.mrb[0].mxu0
      %1822 = vmatprep.mubr.bf16.mxu0 %v1227
      %1823 = vmatmul.mubr.bf16.gmra.mrb[0].mxu0 %v1226
      %v1824 = vpop.f32.mrb[0].mxu0
      %v1825 = vadd.f32 %v844, %v1824
      %v1826 = vpop.f32.mrb[0].mxu0
      %v1827 = vpop.f32.mrb[0].mxu0
      %v1828 = vadd.f32 %v844, %v1827
      %v1829 = vpop.f32.mrb[0].mxu0
      %1830 = vmatprep.mubr.bf16.mxu0 %v1234
      %1831 = vmatmul.mubr.bf16.gmra.mrb[0].mxu0 %v1233
      %v1832 = vpop.f32.mrb[0].mxu0
      %v1833 = vadd.f32 %v844, %v1832
      %v1834 = vpop.f32.mrb[0].mxu0
      %v1835 = vpop.f32.mrb[0].mxu0
      %v1836 = vadd.f32 %v844, %v1835
      %v1837 = vpop.f32.mrb[0].mxu0
      %1838 = vmatprep.mubr.bf16.mxu0 %v1241
      %1839 = vmatmul.mubr.bf16.gmra.mrb[0].mxu0 %v1240
      %v1840 = vpop.f32.mrb[0].mxu0
      %v1841 = vadd.f32 %v844, %v1840
      %v1842 = vpop.f32.mrb[0].mxu0
      %v1843 = vpop.f32.mrb[0].mxu0
      %v1844 = vadd.f32 %v844, %v1843
      %v1845 = vpop.f32.mrb[0].mxu0
      %1846 = vmatprep.mubr.bf16.mxu0 %v1248
      %1847 = vmatmul.mubr.bf16.gmra.mrb[0].mxu0 %v1247
      %v1848 = vpop.f32.mrb[0].mxu0
      %v1849 = vadd.f32 %v844, %v1848
      %v1850 = vpop.f32.mrb[0].mxu0
      %v1851 = vpop.f32.mrb[0].mxu0
      %v1852 = vadd.f32 %v844, %v1851
      %v1853 = vpop.f32.mrb[0].mxu0
      %1854 = vmatprep.mubr.bf16.mxu0 %v1255
      %1855 = vmatmul.mubr.bf16.gmra.mrb[0].mxu0 %v1254
      %v1856 = vpop.f32.mrb[0].mxu0
      %v1857 = vadd.f32 %v844, %v1856
      %v1858 = vpop.f32.mrb[0].mxu0
      %v1859 = vpop.f32.mrb[0].mxu0
      %v1860 = vadd.f32 %v844, %v1859
      %v1861 = vpop.f32.mrb[0].mxu0
      %1862 = vmatprep.mubr.bf16.mxu0 %v1262
      %1863 = vmatmul.mubr.bf16.gmra.mrb[0].mxu0 %v1261
      %v1864 = vpop.f32.mrb[0].mxu0
      %v1865 = vadd.f32 %v844, %v1864
      %v1866 = vpop.f32.mrb[0].mxu0
      %v1867 = vpop.f32.mrb[0].mxu0
      %v1868 = vadd.f32 %v844, %v1867
      %v1869 = vpop.f32.mrb[0].mxu0
      %1870 = vmatprep.mubr.bf16.mxu0 %v1269
      %1871 = vmatmul.mubr.bf16.gmra.mrb[0].mxu0 %v1268
      %v1872 = vpop.f32.mrb[0].mxu0
      %v1873 = vadd.f32 %v844, %v1872
      %v1874 = vpop.f32.mrb[0].mxu0
      %v1875 = vpop.f32.mrb[0].mxu0
      %v1876 = vadd.f32 %v844, %v1875
      %v1877 = vpop.f32.mrb[0].mxu0
      %1878 = vmatprep.mubr.bf16.mxu0 %v1276
      %1879 = vmatmul.mubr.bf16.gmra.mrb[0].mxu0 %v1275
      %v1880 = vpop.f32.mrb[0].mxu0
      %v1881 = vadd.f32 %v844, %v1880
      %v1882 = vpop.f32.mrb[0].mxu0
      %v1883 = vpop.f32.mrb[0].mxu0
      %v1884 = vadd.f32 %v844, %v1883
      %v1885 = vpop.f32.mrb[0].mxu0
      %1886 = vmatprep.mubr.bf16.mxu0 %v1283
      %1887 = vmatmul.mubr.bf16.gmra.mrb[0].mxu0 %v1282
      %v1888 = vpop.f32.mrb[0].mxu0
      %v1889 = vadd.f32 %v844, %v1888
      %v1890 = vpop.f32.mrb[0].mxu0
      %v1891 = vpop.f32.mrb[0].mxu0
      %v1892 = vadd.f32 %v844, %v1891
      %v1893 = vpop.f32.mrb[0].mxu0
      %1894 = vmatprep.mubr.bf16.mxu0 %v1290
      %1895 = vmatmul.mubr.bf16.gmra.mrb[0].mxu0 %v1289
      %v1896 = vpop.f32.mrb[0].mxu0
      %v1897 = vadd.f32 %v844, %v1896
      %v1898 = vpop.f32.mrb[0].mxu0
      %v1899 = vpop.f32.mrb[0].mxu0
      %v1900 = vadd.f32 %v844, %v1899
      %v1901 = vpop.f32.mrb[0].mxu0
      %1902 = vmatprep.mubr.bf16.mxu0 %v1297
      %1903 = vmatmul.mubr.bf16.gmra.mrb[0].mxu0 %v1296
      %v1904 = vpop.f32.mrb[0].mxu0
      %v1905 = vadd.f32 %v844, %v1904
      %v1906 = vpop.f32.mrb[0].mxu0
      %v1907 = vpop.f32.mrb[0].mxu0
      %v1908 = vadd.f32 %v844, %v1907
      %v1909 = vpop.f32.mrb[0].mxu0
      %1910 = vmatprep.mubr.bf16.mxu0 %v1304
      %1911 = vmatmul.mubr.bf16.gmra.mrb[0].mxu0 %v1303
      %v1912 = vpop.f32.mrb[0].mxu0
      %v1913 = vadd.f32 %v844, %v1912
      %v1914 = vpop.f32.mrb[0].mxu0
      %v1915 = vpop.f32.mrb[0].mxu0
      %v1916 = vadd.f32 %v844, %v1915
      %v1917 = vpop.f32.mrb[0].mxu0
      %1918 = vdwg.mxu0
      %1919 = vmatprep.subr.bf16.mxu0 0
      %1920 = vmatpush1.bf16.msra.mxu0 %v1662
      %1921 = vmatprep.subr.bf16.mxu0 0
      %1922 = vmatpush1.bf16.msra.mxu0 %v1663
      %1923 = vmatprep.subr.bf16.mxu0 0
      %1924 = vmatpush1.bf16.msra.mxu0 %v1664
      %1925 = vmatprep.subr.bf16.mxu0 0
      %1926 = vmatpush1.bf16.msra.mxu0 %v1665
      %1927 = vmatprep.subr.bf16.mxu0 0
      %1928 = vmatpush1.bf16.msra.mxu0 %v1666
      %1929 = vmatprep.subr.bf16.mxu0 0
      %1930 = vmatpush1.bf16.msra.mxu0 %v1667
      %1931 = vmatprep.subr.bf16.mxu0 0
      %1932 = vmatpush1.bf16.msra.mxu0 %v1668
      %1933 = vmatprep.subr.bf16.mxu0 0
      %1934 = vmatpush1.bf16.msra.mxu0 %v1669
      %1935 = vmatprep.subr.bf16.mxu0 0
      %1936 = vmatpush1.bf16.msra.mxu0 %v1670
      %1937 = vmatprep.subr.bf16.mxu0 0
      %1938 = vmatpush1.bf16.msra.mxu0 %v1671
      %1939 = vmatprep.subr.bf16.mxu0 0
      %1940 = vmatpush1.bf16.msra.mxu0 %v1672
      %1941 = vmatprep.subr.bf16.mxu0 0
      %1942 = vmatpush1.bf16.msra.mxu0 %v1673
      %1943 = vmatprep.subr.bf16.mxu0 0
      %1944 = vmatpush1.bf16.msra.mxu0 %v1674
      %1945 = vmatprep.subr.bf16.mxu0 0
      %1946 = vmatpush1.bf16.msra.mxu0 %v1675
      %1947 = vmatprep.subr.bf16.mxu0 0
      %1948 = vmatpush1.bf16.msra.mxu0 %v1676
      %1949 = vmatprep.subr.bf16.mxu0 0
      %1950 = vmatpush1.bf16.msra.mxu0 %v1677
      %1951 = vmatprep.mubr.bf16.mxu0 %v1201
      %1952 = vmatmul.mubr.bf16.gmra.mrb[0].mxu0 %v1200
      %v1953 = vpop.f32.mrb[0].mxu0
      %v1954 = vadd.f32 %v1793, %v1953
      %v1955 = vpop.f32.mrb[0].mxu0
      %v1956 = vpop.f32.mrb[0].mxu0
      %v1957 = vadd.f32 %v1796, %v1956
      %v1958 = vpop.f32.mrb[0].mxu0
      %1959 = vmatprep.mubr.bf16.mxu0 %v1208
      %1960 = vmatmul.mubr.bf16.gmra.mrb[0].mxu0 %v1207
      %v1961 = vpop.f32.mrb[0].mxu0
      %v1962 = vadd.f32 %v1801, %v1961
      %v1963 = vpop.f32.mrb[0].mxu0
      %v1964 = vpop.f32.mrb[0].mxu0
      %v1965 = vadd.f32 %v1804, %v1964
      %v1966 = vpop.f32.mrb[0].mxu0
      %1967 = vmatprep.mubr.bf16.mxu0 %v1215
      %1968 = vmatmul.mubr.bf16.gmra.mrb[0].mxu0 %v1214
      %v1969 = vpop.f32.mrb[0].mxu0
      %v1970 = vadd.f32 %v1809, %v1969
      %v1971 = vpop.f32.mrb[0].mxu0
      %v1972 = vpop.f32.mrb[0].mxu0
      %v1973 = vadd.f32 %v1812, %v1972
      %v1974 = vpop.f32.mrb[0].mxu0
      %1975 = vmatprep.mubr.bf16.mxu0 %v1222
      %1976 = vmatmul.mubr.bf16.gmra.mrb[0].mxu0 %v1221
      %v1977 = vpop.f32.mrb[0].mxu0
      %v1978 = vadd.f32 %v1817, %v1977
      %v1979 = vpop.f32.mrb[0].mxu0
      %v1980 = vpop.f32.mrb[0].mxu0
      %v1981 = vadd.f32 %v1820, %v1980
      %v1982 = vpop.f32.mrb[0].mxu0
      %1983 = vmatprep.mubr.bf16.mxu0 %v1229
      %1984 = vmatmul.mubr.bf16.gmra.mrb[0].mxu0 %v1228
      %v1985 = vpop.f32.mrb[0].mxu0
      %v1986 = vadd.f32 %v1825, %v1985
      %v1987 = vpop.f32.mrb[0].mxu0
      %v1988 = vpop.f32.mrb[0].mxu0
      %v1989 = vadd.f32 %v1828, %v1988
      %v1990 = vpop.f32.mrb[0].mxu0
      %1991 = vmatprep.mubr.bf16.mxu0 %v1236
      %1992 = vmatmul.mubr.bf16.gmra.mrb[0].mxu0 %v1235
      %v1993 = vpop.f32.mrb[0].mxu0
      %v1994 = vadd.f32 %v1833, %v1993
      %v1995 = vpop.f32.mrb[0].mxu0
      %v1996 = vpop.f32.mrb[0].mxu0
      %v1997 = vadd.f32 %v1836, %v1996
      %v1998 = vpop.f32.mrb[0].mxu0
      %1999 = vmatprep.mubr.bf16.mxu0 %v1243
      %2000 = vmatmul.mubr.bf16.gmra.mrb[0].mxu0 %v1242
      %v2001 = vpop.f32.mrb[0].mxu0
      %v2002 = vadd.f32 %v1841, %v2001
      %v2003 = vpop.f32.mrb[0].mxu0
      %v2004 = vpop.f32.mrb[0].mxu0
      %v2005 = vadd.f32 %v1844, %v2004
      %v2006 = vpop.f32.mrb[0].mxu0
      %2007 = vmatprep.mubr.bf16.mxu0 %v1250
      %2008 = vmatmul.mubr.bf16.gmra.mrb[0].mxu0 %v1249
      %v2009 = vpop.f32.mrb[0].mxu0
      %v2010 = vadd.f32 %v1849, %v2009
      %v2011 = vpop.f32.mrb[0].mxu0
      %v2012 = vpop.f32.mrb[0].mxu0
      %v2013 = vadd.f32 %v1852, %v2012
      %v2014 = vpop.f32.mrb[0].mxu0
      %2015 = vmatprep.mubr.bf16.mxu0 %v1257
      %2016 = vmatmul.mubr.bf16.gmra.mrb[0].mxu0 %v1256
      %v2017 = vpop.f32.mrb[0].mxu0
      %v2018 = vadd.f32 %v1857, %v2017
      %v2019 = vpop.f32.mrb[0].mxu0
      %v2020 = vpop.f32.mrb[0].mxu0
      %v2021 = vadd.f32 %v1860, %v2020
      %v2022 = vpop.f32.mrb[0].mxu0
      %2023 = vmatprep.mubr.bf16.mxu0 %v1264
      %2024 = vmatmul.mubr.bf16.gmra.mrb[0].mxu0 %v1263
      %v2025 = vpop.f32.mrb[0].mxu0
      %v2026 = vadd.f32 %v1865, %v2025
      %v2027 = vpop.f32.mrb[0].mxu0
      %v2028 = vpop.f32.mrb[0].mxu0
      %v2029 = vadd.f32 %v1868, %v2028
      %v2030 = vpop.f32.mrb[0].mxu0
      %2031 = vmatprep.mubr.bf16.mxu0 %v1271
      %2032 = vmatmul.mubr.bf16.gmra.mrb[0].mxu0 %v1270
      %v2033 = vpop.f32.mrb[0].mxu0
      %v2034 = vadd.f32 %v1873, %v2033
      %v2035 = vpop.f32.mrb[0].mxu0
      %v2036 = vpop.f32.mrb[0].mxu0
      %v2037 = vadd.f32 %v1876, %v2036
      %v2038 = vpop.f32.mrb[0].mxu0
      %2039 = vmatprep.mubr.bf16.mxu0 %v1278
      %2040 = vmatmul.mubr.bf16.gmra.mrb[0].mxu0 %v1277
      %v2041 = vpop.f32.mrb[0].mxu0
      %v2042 = vadd.f32 %v1881, %v2041
      %v2043 = vpop.f32.mrb[0].mxu0
      %v2044 = vpop.f32.mrb[0].mxu0
      %v2045 = vadd.f32 %v1884, %v2044
      %v2046 = vpop.f32.mrb[0].mxu0
      %2047 = vmatprep.mubr.bf16.mxu0 %v1285
      %2048 = vmatmul.mubr.bf16.gmra.mrb[0].mxu0 %v1284
      %v2049 = vpop.f32.mrb[0].mxu0
      %v2050 = vadd.f32 %v1889, %v2049
      %v2051 = vpop.f32.mrb[0].mxu0
      %v2052 = vpop.f32.mrb[0].mxu0
      %v2053 = vadd.f32 %v1892, %v2052
      %v2054 = vpop.f32.mrb[0].mxu0
      %2055 = vmatprep.mubr.bf16.mxu0 %v1292
      %2056 = vmatmul.mubr.bf16.gmra.mrb[0].mxu0 %v1291
      %v2057 = vpop.f32.mrb[0].mxu0
      %v2058 = vadd.f32 %v1897, %v2057
      %v2059 = vpop.f32.mrb[0].mxu0
      %v2060 = vpop.f32.mrb[0].mxu0
      %v2061 = vadd.f32 %v1900, %v2060
      %v2062 = vpop.f32.mrb[0].mxu0
      %2063 = vmatprep.mubr.bf16.mxu0 %v1299
      %2064 = vmatmul.mubr.bf16.gmra.mrb[0].mxu0 %v1298
      %v2065 = vpop.f32.mrb[0].mxu0
      %v2066 = vadd.f32 %v1905, %v2065
      %v2067 = vpop.f32.mrb[0].mxu0
      %v2068 = vpop.f32.mrb[0].mxu0
      %v2069 = vadd.f32 %v1908, %v2068
      %v2070 = vpop.f32.mrb[0].mxu0
      %2071 = vmatprep.mubr.bf16.mxu0 %v1306
      %2072 = vmatmul.mubr.bf16.gmra.mrb[0].mxu0 %v1305
      %v2073 = vpop.f32.mrb[0].mxu0
      %v2074 = vadd.f32 %v1913, %v2073
      %v2075 = vpop.f32.mrb[0].mxu0
      %v2076 = vpop.f32.mrb[0].mxu0
      %v2077 = vadd.f32 %v1916, %v2076
      %v2078 = vpop.f32.mrb[0].mxu0
      %2079 = vdwg.mxu0
      %2080 = vmatprep.subr.bf16.mxu0 0
      %2081 = vmatpush1.bf16.msra.mxu0 %v1678
      %2082 = vmatprep.subr.bf16.mxu0 0
      %2083 = vmatpush1.bf16.msra.mxu0 %v1679
      %2084 = vmatprep.subr.bf16.mxu0 0
      %2085 = vmatpush1.bf16.msra.mxu0 %v1680
      %2086 = vmatprep.subr.bf16.mxu0 0
      %2087 = vmatpush1.bf16.msra.mxu0 %v1681
      %2088 = vmatprep.subr.bf16.mxu0 0
      %2089 = vmatpush1.bf16.msra.mxu0 %v1682
      %2090 = vmatprep.subr.bf16.mxu0 0
      %2091 = vmatpush1.bf16.msra.mxu0 %v1683
      %2092 = vmatprep.subr.bf16.mxu0 0
      %2093 = vmatpush1.bf16.msra.mxu0 %v1684
      %2094 = vmatprep.subr.bf16.mxu0 0
      %2095 = vmatpush1.bf16.msra.mxu0 %v1685
      %2096 = vmatprep.subr.bf16.mxu0 0
      %2097 = vmatpush1.bf16.msra.mxu0 %v1686
      %2098 = vmatprep.subr.bf16.mxu0 0
      %2099 = vmatpush1.bf16.msra.mxu0 %v1687
      %2100 = vmatprep.subr.bf16.mxu0 0
      %2101 = vmatpush1.bf16.msra.mxu0 %v1688
      %2102 = vmatprep.subr.bf16.mxu0 0
      %2103 = vmatpush1.bf16.msra.mxu0 %v1689
      %2104 = vmatprep.subr.bf16.mxu0 0
      %2105 = vmatpush1.bf16.msra.mxu0 %v1690
      %2106 = vmatprep.subr.bf16.mxu0 0
      %2107 = vmatpush1.bf16.msra.mxu0 %v1691
      %2108 = vmatprep.subr.bf16.mxu0 0
      %2109 = vmatpush1.bf16.msra.mxu0 %v1692
      %2110 = vmatprep.subr.bf16.mxu0 0
      %2111 = vmatpush1.bf16.msra.mxu0 %v1693
      %2112 = vmatprep.mubr.bf16.mxu0 %v1203
      %2113 = vmatmul.mubr.bf16.gmra.mrb[0].mxu0 %v1202
      %v2114 = vpop.f32.mrb[0].mxu0
      %v2115 = vadd.f32 %v1954, %v2114
      %v2116 = vpop.f32.mrb[0].mxu0
      %v2117 = vpop.f32.mrb[0].mxu0
      %v2118 = vadd.f32 %v1957, %v2117
      %v2119 = vpop.f32.mrb[0].mxu0
      %2120 = vmatprep.mubr.bf16.mxu0 %v1210
      %2121 = vmatmul.mubr.bf16.gmra.mrb[0].mxu0 %v1209
      %v2122 = vpop.f32.mrb[0].mxu0
      %v2123 = vadd.f32 %v1962, %v2122
      %v2124 = vpop.f32.mrb[0].mxu0
      %v2125 = vpop.f32.mrb[0].mxu0
      %v2126 = vadd.f32 %v1965, %v2125
      %v2127 = vpop.f32.mrb[0].mxu0
      %2128 = vmatprep.mubr.bf16.mxu0 %v1217
      %2129 = vmatmul.mubr.bf16.gmra.mrb[0].mxu0 %v1216
      %v2130 = vpop.f32.mrb[0].mxu0
      %v2131 = vadd.f32 %v1970, %v2130
      %v2132 = vpop.f32.mrb[0].mxu0
      %v2133 = vpop.f32.mrb[0].mxu0
      %v2134 = vadd.f32 %v1973, %v2133
      %v2135 = vpop.f32.mrb[0].mxu0
      %2136 = vmatprep.mubr.bf16.mxu0 %v1224
      %2137 = vmatmul.mubr.bf16.gmra.mrb[0].mxu0 %v1223
      %v2138 = vpop.f32.mrb[0].mxu0
      %v2139 = vadd.f32 %v1978, %v2138
      %v2140 = vpop.f32.mrb[0].mxu0
      %v2141 = vpop.f32.mrb[0].mxu0
      %v2142 = vadd.f32 %v1981, %v2141
      %v2143 = vpop.f32.mrb[0].mxu0
      %2144 = vmatprep.mubr.bf16.mxu0 %v1231
      %2145 = vmatmul.mubr.bf16.gmra.mrb[0].mxu0 %v1230
      %v2146 = vpop.f32.mrb[0].mxu0
      %v2147 = vadd.f32 %v1986, %v2146
      %v2148 = vpop.f32.mrb[0].mxu0
      %v2149 = vpop.f32.mrb[0].mxu0
      %v2150 = vadd.f32 %v1989, %v2149
      %v2151 = vpop.f32.mrb[0].mxu0
      %2152 = vmatprep.mubr.bf16.mxu0 %v1238
      %2153 = vmatmul.mubr.bf16.gmra.mrb[0].mxu0 %v1237
      %v2154 = vpop.f32.mrb[0].mxu0
      %v2155 = vadd.f32 %v1994, %v2154
      %v2156 = vpop.f32.mrb[0].mxu0
      %v2157 = vpop.f32.mrb[0].mxu0
      %v2158 = vadd.f32 %v1997, %v2157
      %v2159 = vpop.f32.mrb[0].mxu0
      %2160 = vmatprep.mubr.bf16.mxu0 %v1245
      %2161 = vmatmul.mubr.bf16.gmra.mrb[0].mxu0 %v1244
      %v2162 = vpop.f32.mrb[0].mxu0
      %v2163 = vadd.f32 %v2002, %v2162
      %v2164 = vpop.f32.mrb[0].mxu0
      %v2165 = vpop.f32.mrb[0].mxu0
      %v2166 = vadd.f32 %v2005, %v2165
      %v2167 = vpop.f32.mrb[0].mxu0
      %2168 = vmatprep.mubr.bf16.mxu0 %v1252
      %2169 = vmatmul.mubr.bf16.gmra.mrb[0].mxu0 %v1251
      %v2170 = vpop.f32.mrb[0].mxu0
      %v2171 = vadd.f32 %v2010, %v2170
      %v2172 = vpop.f32.mrb[0].mxu0
      %v2173 = vpop.f32.mrb[0].mxu0
      %v2174 = vadd.f32 %v2013, %v2173
      %v2175 = vpop.f32.mrb[0].mxu0
      %2176 = vmatprep.mubr.bf16.mxu0 %v1259
      %2177 = vmatmul.mubr.bf16.gmra.mrb[0].mxu0 %v1258
      %v2178 = vpop.f32.mrb[0].mxu0
      %v2179 = vadd.f32 %v2018, %v2178
      %v2180 = vpop.f32.mrb[0].mxu0
      %v2181 = vpop.f32.mrb[0].mxu0
      %v2182 = vadd.f32 %v2021, %v2181
      %v2183 = vpop.f32.mrb[0].mxu0
      %2184 = vmatprep.mubr.bf16.mxu0 %v1266
      %2185 = vmatmul.mubr.bf16.gmra.mrb[0].mxu0 %v1265
      %v2186 = vpop.f32.mrb[0].mxu0
      %v2187 = vadd.f32 %v2026, %v2186
      %v2188 = vpop.f32.mrb[0].mxu0
      %v2189 = vpop.f32.mrb[0].mxu0
      %v2190 = vadd.f32 %v2029, %v2189
      %v2191 = vpop.f32.mrb[0].mxu0
      %2192 = vmatprep.mubr.bf16.mxu0 %v1273
      %2193 = vmatmul.mubr.bf16.gmra.mrb[0].mxu0 %v1272
      %v2194 = vpop.f32.mrb[0].mxu0
      %v2195 = vadd.f32 %v2034, %v2194
      %v2196 = vpop.f32.mrb[0].mxu0
      %v2197 = vpop.f32.mrb[0].mxu0
      %v2198 = vadd.f32 %v2037, %v2197
      %v2199 = vpop.f32.mrb[0].mxu0
      %2200 = vmatprep.mubr.bf16.mxu0 %v1280
      %2201 = vmatmul.mubr.bf16.gmra.mrb[0].mxu0 %v1279
      %v2202 = vpop.f32.mrb[0].mxu0
      %v2203 = vadd.f32 %v2042, %v2202
      %v2204 = vpop.f32.mrb[0].mxu0
      %v2205 = vpop.f32.mrb[0].mxu0
      %v2206 = vadd.f32 %v2045, %v2205
      %v2207 = vpop.f32.mrb[0].mxu0
      %2208 = vmatprep.mubr.bf16.mxu0 %v1287
      %2209 = vmatmul.mubr.bf16.gmra.mrb[0].mxu0 %v1286
      %v2210 = vpop.f32.mrb[0].mxu0
      %v2211 = vadd.f32 %v2050, %v2210
      %v2212 = vpop.f32.mrb[0].mxu0
      %v2213 = vpop.f32.mrb[0].mxu0
      %v2214 = vadd.f32 %v2053, %v2213
      %v2215 = vpop.f32.mrb[0].mxu0
      %2216 = vmatprep.mubr.bf16.mxu0 %v1294
      %2217 = vmatmul.mubr.bf16.gmra.mrb[0].mxu0 %v1293
      %v2218 = vpop.f32.mrb[0].mxu0
      %v2219 = vadd.f32 %v2058, %v2218
      %v2220 = vpop.f32.mrb[0].mxu0
      %v2221 = vpop.f32.mrb[0].mxu0
      %v2222 = vadd.f32 %v2061, %v2221
      %v2223 = vpop.f32.mrb[0].mxu0
      %2224 = vmatprep.mubr.bf16.mxu0 %v1301
      %2225 = vmatmul.mubr.bf16.gmra.mrb[0].mxu0 %v1300
      %v2226 = vpop.f32.mrb[0].mxu0
      %v2227 = vadd.f32 %v2066, %v2226
      %v2228 = vpop.f32.mrb[0].mxu0
      %v2229 = vpop.f32.mrb[0].mxu0
      %v2230 = vadd.f32 %v2069, %v2229
      %v2231 = vpop.f32.mrb[0].mxu0
      %2232 = vmatprep.mubr.bf16.mxu0 %v1308
      %2233 = vmatmul.mubr.bf16.gmra.mrb[0].mxu0 %v1307
      %v2234 = vpop.f32.mrb[0].mxu0
      %v2235 = vadd.f32 %v2074, %v2234
      %v2236 = vpop.f32.mrb[0].mxu0
      %v2237 = vpop.f32.mrb[0].mxu0
      %v2238 = vadd.f32 %v2077, %v2237
      %v2239 = vpop.f32.mrb[0].mxu0
      %2240 = vdwg.mxu0
      %2241 = vmatprep.subr.bf16.mxu0 0
      %2242 = vmatpush1.bf16.msra.mxu0 %v1694
      %2243 = vmatprep.subr.bf16.mxu0 0
      %2244 = vmatpush1.bf16.msra.mxu0 %v1695
      %2245 = vmatprep.subr.bf16.mxu0 0
      %2246 = vmatpush1.bf16.msra.mxu0 %v1696
      %2247 = vmatprep.subr.bf16.mxu0 0
      %2248 = vmatpush1.bf16.msra.mxu0 %v1697
      %2249 = vmatprep.subr.bf16.mxu0 0
      %2250 = vmatpush1.bf16.msra.mxu0 %v1698
      %2251 = vmatprep.subr.bf16.mxu0 0
      %2252 = vmatpush1.bf16.msra.mxu0 %v1699
      %2253 = vmatprep.subr.bf16.mxu0 0
      %2254 = vmatpush1.bf16.msra.mxu0 %v1700
      %2255 = vmatprep.subr.bf16.mxu0 0
      %2256 = vmatpush1.bf16.msra.mxu0 %v1701
      %2257 = vmatprep.subr.bf16.mxu0 0
      %2258 = vmatpush1.bf16.msra.mxu0 0
      %2259 = vmatprep.subr.bf16.mxu0 0
      %2260 = vmatpush1.bf16.msra.mxu0 0
      %2261 = vmatprep.subr.bf16.mxu0 0
      %2262 = vmatpush1.bf16.msra.mxu0 0
      %2263 = vmatprep.subr.bf16.mxu0 0
      %2264 = vmatpush1.bf16.msra.mxu0 0
      %2265 = vmatprep.subr.bf16.mxu0 0
      %2266 = vmatpush1.bf16.msra.mxu0 0
      %2267 = vmatprep.subr.bf16.mxu0 0
      %2268 = vmatpush1.bf16.msra.mxu0 0
      %2269 = vmatprep.subr.bf16.mxu0 0
      %2270 = vmatpush1.bf16.msra.mxu0 0
      %2271 = vmatprep.subr.bf16.mxu0 0
      %2272 = vmatpush1.bf16.msra.mxu0 0
      %2273 = vmatprep.mubr.bf16.mxu0 0
      %2274 = vmatmul.mubr.bf16.gmra.mrb[0].mxu0 %v1204
      %v2275 = vpop.f32.mrb[0].mxu0
      %v2276 = vadd.f32 %v2115, %v2275
      %v2277 = vpop.f32.mrb[0].mxu0
      %v2278 = vpop.f32.mrb[0].mxu0
      %v2279 = vadd.f32 %v2118, %v2278
      %v2280 = vpop.f32.mrb[0].mxu0
      %2281 = vmatprep.mubr.bf16.mxu0 0
      %2282 = vmatmul.mubr.bf16.gmra.mrb[0].mxu0 %v1211
      %v2283 = vpop.f32.mrb[0].mxu0
      %v2284 = vadd.f32 %v2123, %v2283
      %v2285 = vpop.f32.mrb[0].mxu0
      %v2286 = vpop.f32.mrb[0].mxu0
      %v2287 = vadd.f32 %v2126, %v2286
      %v2288 = vpop.f32.mrb[0].mxu0
      %2289 = vmatprep.mubr.bf16.mxu0 0
      %2290 = vmatmul.mubr.bf16.gmra.mrb[0].mxu0 %v1218
      %v2291 = vpop.f32.mrb[0].mxu0
      %v2292 = vadd.f32 %v2131, %v2291
      %v2293 = vpop.f32.mrb[0].mxu0
      %v2294 = vpop.f32.mrb[0].mxu0
      %v2295 = vadd.f32 %v2134, %v2294
      %v2296 = vpop.f32.mrb[0].mxu0
      %2297 = vmatprep.mubr.bf16.mxu0 0
      %2298 = vmatmul.mubr.bf16.gmra.mrb[0].mxu0 %v1225
      %v2299 = vpop.f32.mrb[0].mxu0
      %v2300 = vadd.f32 %v2139, %v2299
      %v2301 = vpop.f32.mrb[0].mxu0
      %v2302 = vpop.f32.mrb[0].mxu0
      %v2303 = vadd.f32 %v2142, %v2302
      %v2304 = vpop.f32.mrb[0].mxu0
      %2305 = vmatprep.mubr.bf16.mxu0 0
      %2306 = vmatmul.mubr.bf16.gmra.mrb[0].mxu0 %v1232
      %v2307 = vpop.f32.mrb[0].mxu0
      %v2308 = vadd.f32 %v2147, %v2307
      %v2309 = vpop.f32.mrb[0].mxu0
      %v2310 = vpop.f32.mrb[0].mxu0
      %v2311 = vadd.f32 %v2150, %v2310
      %v2312 = vpop.f32.mrb[0].mxu0
      %2313 = vmatprep.mubr.bf16.mxu0 0
      %2314 = vmatmul.mubr.bf16.gmra.mrb[0].mxu0 %v1239
      %v2315 = vpop.f32.mrb[0].mxu0
      %v2316 = vadd.f32 %v2155, %v2315
      %v2317 = vpop.f32.mrb[0].mxu0
      %v2318 = vpop.f32.mrb[0].mxu0
      %v2319 = vadd.f32 %v2158, %v2318
      %v2320 = vpop.f32.mrb[0].mxu0
      %2321 = vmatprep.mubr.bf16.mxu0 0
      %2322 = vmatmul.mubr.bf16.gmra.mrb[0].mxu0 %v1246
      %v2323 = vpop.f32.mrb[0].mxu0
      %v2324 = vadd.f32 %v2163, %v2323
      %v2325 = vpop.f32.mrb[0].mxu0
      %v2326 = vpop.f32.mrb[0].mxu0
      %v2327 = vadd.f32 %v2166, %v2326
      %v2328 = vpop.f32.mrb[0].mxu0
      %2329 = vmatprep.mubr.bf16.mxu0 0
      %2330 = vmatmul.mubr.bf16.gmra.mrb[0].mxu0 %v1253
      %v2331 = vpop.f32.mrb[0].mxu0
      %v2332 = vadd.f32 %v2171, %v2331
      %v2333 = vpop.f32.mrb[0].mxu0
      %v2334 = vpop.f32.mrb[0].mxu0
      %v2335 = vadd.f32 %v2174, %v2334
      %v2336 = vpop.f32.mrb[0].mxu0
      %2337 = vmatprep.mubr.bf16.mxu0 0
      %2338 = vmatmul.mubr.bf16.gmra.mrb[0].mxu0 %v1260
      %v2339 = vpop.f32.mrb[0].mxu0
      %v2340 = vadd.f32 %v2179, %v2339
      %v2341 = vpop.f32.mrb[0].mxu0
      %v2342 = vpop.f32.mrb[0].mxu0
      %v2343 = vadd.f32 %v2182, %v2342
      %v2344 = vpop.f32.mrb[0].mxu0
      %2345 = vmatprep.mubr.bf16.mxu0 0
      %2346 = vmatmul.mubr.bf16.gmra.mrb[0].mxu0 %v1267
      %v2347 = vpop.f32.mrb[0].mxu0
      %v2348 = vadd.f32 %v2187, %v2347
      %v2349 = vpop.f32.mrb[0].mxu0
      %v2350 = vpop.f32.mrb[0].mxu0
      %v2351 = vadd.f32 %v2190, %v2350
      %v2352 = vpop.f32.mrb[0].mxu0
      %2353 = vmatprep.mubr.bf16.mxu0 0
      %2354 = vmatmul.mubr.bf16.gmra.mrb[0].mxu0 %v1274
      %v2355 = vpop.f32.mrb[0].mxu0
      %v2356 = vadd.f32 %v2195, %v2355
      %v2357 = vpop.f32.mrb[0].mxu0
      %v2358 = vpop.f32.mrb[0].mxu0
      %v2359 = vadd.f32 %v2198, %v2358
      %v2360 = vpop.f32.mrb[0].mxu0
      %2361 = vmatprep.mubr.bf16.mxu0 0
      %2362 = vmatmul.mubr.bf16.gmra.mrb[0].mxu0 %v1281
      %v2363 = vpop.f32.mrb[0].mxu0
      %v2364 = vadd.f32 %v2203, %v2363
      %v2365 = vpop.f32.mrb[0].mxu0
      %v2366 = vpop.f32.mrb[0].mxu0
      %v2367 = vadd.f32 %v2206, %v2366
      %v2368 = vpop.f32.mrb[0].mxu0
      %2369 = vmatprep.mubr.bf16.mxu0 0
      %2370 = vmatmul.mubr.bf16.gmra.mrb[0].mxu0 %v1288
      %v2371 = vpop.f32.mrb[0].mxu0
      %v2372 = vadd.f32 %v2211, %v2371
      %v2373 = vpop.f32.mrb[0].mxu0
      %v2374 = vpop.f32.mrb[0].mxu0
      %v2375 = vadd.f32 %v2214, %v2374
      %v2376 = vpop.f32.mrb[0].mxu0
      %2377 = vmatprep.mubr.bf16.mxu0 0
      %2378 = vmatmul.mubr.bf16.gmra.mrb[0].mxu0 %v1295
      %v2379 = vpop.f32.mrb[0].mxu0
      %v2380 = vadd.f32 %v2219, %v2379
      %v2381 = vpop.f32.mrb[0].mxu0
      %v2382 = vpop.f32.mrb[0].mxu0
      %v2383 = vadd.f32 %v2222, %v2382
      %v2384 = vpop.f32.mrb[0].mxu0
      %2385 = vmatprep.mubr.bf16.mxu0 0
      %2386 = vmatmul.mubr.bf16.gmra.mrb[0].mxu0 %v1302
      %v2387 = vpop.f32.mrb[0].mxu0
      %v2388 = vadd.f32 %v2227, %v2387
      %v2389 = vpop.f32.mrb[0].mxu0
      %v2390 = vpop.f32.mrb[0].mxu0
      %v2391 = vadd.f32 %v2230, %v2390
      %v2392 = vpop.f32.mrb[0].mxu0
      %2393 = vmatprep.mubr.bf16.mxu0 0
      %2394 = vmatmul.mubr.bf16.gmra.mrb[0].mxu0 %v1309
      %v2395 = vpop.f32.mrb[0].mxu0
      %v2396 = vadd.f32 %v2235, %v2395
      %v2397 = vpop.f32.mrb[0].mxu0
      %v2398 = vpop.f32.mrb[0].mxu0
      %v2399 = vadd.f32 %v2238, %v2398
      %v2400 = vpop.f32.mrb[0].mxu0
      %2401 = vdwg.mxu0
      %v2402 = vsub.f32 0.0, %v2276
      %v2403 = vsub.f32 0.0, %v2279
      %v2404 = vsub.f32 0.0, %v2284
      %v2405 = vsub.f32 0.0, %v2287
      %v2406 = vsub.f32 0.0, %v2292
      %v2407 = vsub.f32 0.0, %v2295
      %v2408 = vsub.f32 0.0, %v2300
      %v2409 = vsub.f32 0.0, %v2303
      %v2410 = vsub.f32 0.0, %v2308
      %v2411 = vsub.f32 0.0, %v2311
      %v2412 = vsub.f32 0.0, %v2316
      %v2413 = vsub.f32 0.0, %v2319
      %v2414 = vsub.f32 0.0, %v2324
      %v2415 = vsub.f32 0.0, %v2327
      %v2416 = vsub.f32 0.0, %v2332
      %v2417 = vsub.f32 0.0, %v2335
      %v2418 = vsub.f32 0.0, %v2340
      %v2419 = vsub.f32 0.0, %v2343
      %v2420 = vsub.f32 0.0, %v2348
      %v2421 = vsub.f32 0.0, %v2351
      %v2422 = vsub.f32 0.0, %v2356
      %v2423 = vsub.f32 0.0, %v2359
      %v2424 = vsub.f32 0.0, %v2364
      %v2425 = vsub.f32 0.0, %v2367
      %v2426 = vsub.f32 0.0, %v2372
      %v2427 = vsub.f32 0.0, %v2375
      %v2428 = vsub.f32 0.0, %v2380
      %v2429 = vsub.f32 0.0, %v2383
      %v2430 = vsub.f32 0.0, %v2388
      %v2431 = vsub.f32 0.0, %v2391
      %v2432 = vsub.f32 0.0, %v2396
      %v2433 = vsub.f32 0.0, %v2399
      %v2434 = vmul.f32 %v2402, 1.442695
      %v2435 = vpow.pop %v2434
      %v2436 = vmul.f32 %v2403, 1.442695
      %v2437 = vpow.pop %v2436
      %v2438 = vmul.f32 %v2404, 1.442695
      %v2439 = vpow.pop %v2438
      %v2440 = vmul.f32 %v2405, 1.442695
      %v2441 = vpow.pop %v2440
      %v2442 = vmul.f32 %v2406, 1.442695
      %v2443 = vpow.pop %v2442
      %v2444 = vmul.f32 %v2407, 1.442695
      %v2445 = vpow.pop %v2444
      %v2446 = vmul.f32 %v2408, 1.442695
      %v2447 = vpow.pop %v2446
      %v2448 = vmul.f32 %v2409, 1.442695
      %v2449 = vpow.pop %v2448
      %v2450 = vmul.f32 %v2410, 1.442695
      %v2451 = vpow.pop %v2450
      %v2452 = vmul.f32 %v2411, 1.442695
      %v2453 = vpow.pop %v2452
      %v2454 = vmul.f32 %v2412, 1.442695
      %v2455 = vpow.pop %v2454
      %v2456 = vmul.f32 %v2413, 1.442695
      %v2457 = vpow.pop %v2456
      %v2458 = vmul.f32 %v2414, 1.442695
      %v2459 = vpow.pop %v2458
      %v2460 = vmul.f32 %v2415, 1.442695
      %v2461 = vpow.pop %v2460
      %v2462 = vmul.f32 %v2416, 1.442695
      %v2463 = vpow.pop %v2462
      %v2464 = vmul.f32 %v2417, 1.442695
      %v2465 = vpow.pop %v2464
      %v2466 = vmul.f32 %v2418, 1.442695
      %v2467 = vpow.pop %v2466
      %v2468 = vmul.f32 %v2419, 1.442695
      %v2469 = vpow.pop %v2468
      %v2470 = vmul.f32 %v2420, 1.442695
      %v2471 = vpow.pop %v2470
      %v2472 = vmul.f32 %v2421, 1.442695
      %v2473 = vpow.pop %v2472
      %v2474 = vmul.f32 %v2422, 1.442695
      %v2475 = vpow.pop %v2474
      %v2476 = vmul.f32 %v2423, 1.442695
      %v2477 = vpow.pop %v2476
      %v2478 = vmul.f32 %v2424, 1.442695
      %v2479 = vpow.pop %v2478
      %v2480 = vmul.f32 %v2425, 1.442695
      %v2481 = vpow.pop %v2480
      %v2482 = vmul.f32 %v2426, 1.442695
      %v2483 = vpow.pop %v2482
      %v2484 = vmul.f32 %v2427, 1.442695
      %v2485 = vpow.pop %v2484
      %v2486 = vmul.f32 %v2428, 1.442695
      %v2487 = vpow.pop %v2486
      %v2488 = vmul.f32 %v2429, 1.442695
      %v2489 = vpow.pop %v2488
      %v2490 = vmul.f32 %v2430, 1.442695
      %v2491 = vpow.pop %v2490
      %v2492 = vmul.f32 %v2431, 1.442695
      %v2493 = vpow.pop %v2492
      %v2494 = vmul.f32 %v2432, 1.442695
      %v2495 = vpow.pop %v2494
      %v2496 = vmul.f32 %v2433, 1.442695
      %v2497 = vpow.pop %v2496
      %v2498 = vadd.f32 %v2435, 1.0
      %v2499 = vadd.f32 %v2437, 1.0
      %v2500 = vadd.f32 %v2439, 1.0
      %v2501 = vadd.f32 %v2441, 1.0
      %v2502 = vadd.f32 %v2443, 1.0
      %v2503 = vadd.f32 %v2445, 1.0
      %v2504 = vadd.f32 %v2447, 1.0
      %v2505 = vadd.f32 %v2449, 1.0
      %v2506 = vadd.f32 %v2451, 1.0
      %v2507 = vadd.f32 %v2453, 1.0
      %v2508 = vadd.f32 %v2455, 1.0
      %v2509 = vadd.f32 %v2457, 1.0
      %v2510 = vadd.f32 %v2459, 1.0
      %v2511 = vadd.f32 %v2461, 1.0
      %v2512 = vadd.f32 %v2463, 1.0
      %v2513 = vadd.f32 %v2465, 1.0
      %v2514 = vadd.f32 %v2467, 1.0
      %v2515 = vadd.f32 %v2469, 1.0
      %v2516 = vadd.f32 %v2471, 1.0
      %v2517 = vadd.f32 %v2473, 1.0
      %v2518 = vadd.f32 %v2475, 1.0
      %v2519 = vadd.f32 %v2477, 1.0
      %v2520 = vadd.f32 %v2479, 1.0
      %v2521 = vadd.f32 %v2481, 1.0
      %v2522 = vadd.f32 %v2483, 1.0
      %v2523 = vadd.f32 %v2485, 1.0
      %v2524 = vadd.f32 %v2487, 1.0
      %v2525 = vadd.f32 %v2489, 1.0
      %v2526 = vadd.f32 %v2491, 1.0
      %v2527 = vadd.f32 %v2493, 1.0
      %v2528 = vadd.f32 %v2495, 1.0
      %v2529 = vadd.f32 %v2497, 1.0
      %v2530 = vrcp.pop %v2498
      %v2531 = vrcp.pop %v2499
      %v2532 = vrcp.pop %v2500
      %v2533 = vrcp.pop %v2501
      %v2534 = vrcp.pop %v2502
      %v2535 = vrcp.pop %v2503
      %v2536 = vrcp.pop %v2504
      %v2537 = vrcp.pop %v2505
      %v2538 = vrcp.pop %v2506
      %v2539 = vrcp.pop %v2507
      %v2540 = vrcp.pop %v2508
      %v2541 = vrcp.pop %v2509
      %v2542 = vrcp.pop %v2510
      %v2543 = vrcp.pop %v2511
      %v2544 = vrcp.pop %v2512
      %v2545 = vrcp.pop %v2513
      %v2546 = vrcp.pop %v2514
      %v2547 = vrcp.pop %v2515
      %v2548 = vrcp.pop %v2516
      %v2549 = vrcp.pop %v2517
      %v2550 = vrcp.pop %v2518
      %v2551 = vrcp.pop %v2519
      %v2552 = vrcp.pop %v2520
      %v2553 = vrcp.pop %v2521
      %v2554 = vrcp.pop %v2522
      %v2555 = vrcp.pop %v2523
      %v2556 = vrcp.pop %v2524
      %v2557 = vrcp.pop %v2525
      %v2558 = vrcp.pop %v2526
      %v2559 = vrcp.pop %v2527
      %v2560 = vrcp.pop %v2528
      %v2561 = vrcp.pop %v2529
      %v2562 = vpack.c.bf16 %v2531, %v2530
      %v2563 = vpack.c.bf16 %v2533, %v2532
      %v2564 = vpack.c.bf16 %v2535, %v2534
      %v2565 = vpack.c.bf16 %v2537, %v2536
      %v2566 = vpack.c.bf16 %v2539, %v2538
      %v2567 = vpack.c.bf16 %v2541, %v2540
      %v2568 = vpack.c.bf16 %v2543, %v2542
      %v2569 = vpack.c.bf16 %v2545, %v2544
      %v2570 = vpack.c.bf16 %v2547, %v2546
      %v2571 = vpack.c.bf16 %v2549, %v2548
      %v2572 = vpack.c.bf16 %v2551, %v2550
      %v2573 = vpack.c.bf16 %v2553, %v2552
      %v2574 = vpack.c.bf16 %v2555, %v2554
      %v2575 = vpack.c.bf16 %v2557, %v2556
      %v2576 = vpack.c.bf16 %v2559, %v2558
      %v2577 = vpack.c.bf16 %v2561, %v2560
      %v2578 = vld [vmem:[%s3] sm:$0xf]
      %v2579 = vld [vmem:[%s3 + $0x4] sm:$0xf]
      %v2580 = vld [vmem:[%s3 + $0x8] sm:$0xf]
      %v2581 = vld [vmem:[%s3 + $0xc] sm:$0xf]
      %v2582 = vld [vmem:[%s3 + $0x10] sm:$0xf]
      %v2583 = vld [vmem:[%s3 + $0x14] sm:$0xf]
      %v2584 = vld [vmem:[%s3 + $0x18] sm:$0xf]
      %v2585 = vld [vmem:[%s3 + $0x1c] sm:$0xf]
      %v2586 = vld [vmem:[%s3 + $0x20] sm:$0xf]
      %v2587 = vld [vmem:[%s3 + $0x24] sm:$0xf]
      %v2588 = vld [vmem:[%s3 + $0x28] sm:$0xf]
      %v2589 = vld [vmem:[%s3 + $0x2c] sm:$0xf]
      %v2590 = vld [vmem:[%s3 + $0x30] sm:$0xf]
      %v2591 = vld [vmem:[%s3 + $0x34] sm:$0xf]
      %v2592 = vld [vmem:[%s3 + $0x38] sm:$0xf]
      %v2593 = vld [vmem:[%s3 + $0x3c] sm:$0xf]
      %v2594 = vld [vmem:[%s4] sm:$0x1]
      %v2596 = vlaneseq
      %v2597 = vshrl.u32 %v2596, 7
      %v2598 = vsub.s32 0, %v2597
      %v2599 = vrot.slane %v2594, %v2598
      %v2617 = vunpack.c.l.b16 %v2578
      %v2618 = vunpack.c.l.b16 %v2579
      %v2619 = vunpack.c.l.b16 %v2580
      %v2620 = vunpack.c.l.b16 %v2581
      %v2621 = vunpack.c.l.b16 %v2582
      %v2622 = vunpack.c.l.b16 %v2583
      %v2623 = vunpack.c.l.b16 %v2584
      %v2624 = vunpack.c.l.b16 %v2585
      %v2625 = vunpack.c.l.b16 %v2586
      %v2626 = vunpack.c.l.b16 %v2587
      %v2627 = vunpack.c.l.b16 %v2588
      %v2628 = vunpack.c.l.b16 %v2589
      %v2629 = vunpack.c.l.b16 %v2590
      %v2630 = vunpack.c.l.b16 %v2591
      %v2631 = vunpack.c.l.b16 %v2592
      %v2632 = vunpack.c.l.b16 %v2593
      %v2633 = vpack.c.b16 %v2618, %v2617
      %v2634 = vpack.c.b16 %v2620, %v2619
      %v2635 = vpack.c.b16 %v2622, %v2621
      %v2636 = vpack.c.b16 %v2624, %v2623
      %v2637 = vpack.c.b16 %v2626, %v2625
      %v2638 = vpack.c.b16 %v2628, %v2627
      %v2639 = vpack.c.b16 %v2630, %v2629
      %v2640 = vpack.c.b16 %v2632, %v2631
      %2649 = vmatprep.subr.bf16.mxu0 0
      %2650 = vmatpush1.bf16.msra.mxu0 %v2633
      %2651 = vmatprep.subr.bf16.mxu0 0
      %2652 = vmatpush1.bf16.msra.mxu0 %v2634
      %2653 = vmatprep.subr.bf16.mxu0 0
      %2654 = vmatpush1.bf16.msra.mxu0 %v2635
      %2655 = vmatprep.subr.bf16.mxu0 0
      %2656 = vmatpush1.bf16.msra.mxu0 %v2636
      %2657 = vmatprep.subr.bf16.mxu0 0
      %2658 = vmatpush1.bf16.msra.mxu0 %v2637
      %2659 = vmatprep.subr.bf16.mxu0 0
      %2660 = vmatpush1.bf16.msra.mxu0 %v2638
      %2661 = vmatprep.subr.bf16.mxu0 0
      %2662 = vmatpush1.bf16.msra.mxu0 %v2639
      %2663 = vmatprep.subr.bf16.mxu0 0
      %2664 = vmatpush1.bf16.msra.mxu0 %v2640
      %2665 = vmatprep.subr.bf16.mxu0 0
      %2666 = vmatpush1.bf16.msra.mxu0 0
      %2667 = vmatprep.subr.bf16.mxu0 0
      %2668 = vmatpush1.bf16.msra.mxu0 0
      %2669 = vmatprep.subr.bf16.mxu0 0
      %2670 = vmatpush1.bf16.msra.mxu0 0
      %2671 = vmatprep.subr.bf16.mxu0 0
      %2672 = vmatpush1.bf16.msra.mxu0 0
      %2673 = vmatprep.subr.bf16.mxu0 0
      %2674 = vmatpush1.bf16.msra.mxu0 0
      %2675 = vmatprep.subr.bf16.mxu0 0
      %2676 = vmatpush1.bf16.msra.mxu0 0
      %2677 = vmatprep.subr.bf16.mxu0 0
      %2678 = vmatpush1.bf16.msra.mxu0 0
      %2679 = vmatprep.subr.bf16.mxu0 0
      %2680 = vmatpush1.bf16.msra.mxu0 0
      %2681 = vmatprep.mubr.bf16.mxu0 0
      %2682 = vmatmul.mubr.bf16.gmra.mrb[0].mxu0 %v2562
      %v2683 = vpop.f32.mrb[0].mxu0
      %v2684 = vadd.f32 %v2599, %v2683
      %v2685 = vpop.f32.mrb[0].mxu0
      %v2686 = vpop.f32.mrb[0].mxu0
      %v2687 = vadd.f32 %v2599, %v2686
      %v2688 = vpop.f32.mrb[0].mxu0
      %2689 = vmatprep.mubr.bf16.mxu0 0
      %2690 = vmatmul.mubr.bf16.gmra.mrb[0].mxu0 %v2563
      %v2691 = vpop.f32.mrb[0].mxu0
      %v2692 = vadd.f32 %v2599, %v2691
      %v2693 = vpop.f32.mrb[0].mxu0
      %v2694 = vpop.f32.mrb[0].mxu0
      %v2695 = vadd.f32 %v2599, %v2694
      %v2696 = vpop.f32.mrb[0].mxu0
      %2697 = vmatprep.mubr.bf16.mxu0 0
      %2698 = vmatmul.mubr.bf16.gmra.mrb[0].mxu0 %v2564
      %v2699 = vpop.f32.mrb[0].mxu0
      %v2700 = vadd.f32 %v2599, %v2699
      %v2701 = vpop.f32.mrb[0].mxu0
      %v2702 = vpop.f32.mrb[0].mxu0
      %v2703 = vadd.f32 %v2599, %v2702
      %v2704 = vpop.f32.mrb[0].mxu0
      %2705 = vmatprep.mubr.bf16.mxu0 0
      %2706 = vmatmul.mubr.bf16.gmra.mrb[0].mxu0 %v2565
      %v2707 = vpop.f32.mrb[0].mxu0
      %v2708 = vadd.f32 %v2599, %v2707
      %v2709 = vpop.f32.mrb[0].mxu0
      %v2710 = vpop.f32.mrb[0].mxu0
      %v2711 = vadd.f32 %v2599, %v2710
      %v2712 = vpop.f32.mrb[0].mxu0
      %2713 = vmatprep.mubr.bf16.mxu0 0
      %2714 = vmatmul.mubr.bf16.gmra.mrb[0].mxu0 %v2566
      %v2715 = vpop.f32.mrb[0].mxu0
      %v2716 = vadd.f32 %v2599, %v2715
      %v2717 = vpop.f32.mrb[0].mxu0
      %v2718 = vpop.f32.mrb[0].mxu0
      %v2719 = vadd.f32 %v2599, %v2718
      %v2720 = vpop.f32.mrb[0].mxu0
      %2721 = vmatprep.mubr.bf16.mxu0 0
      %2722 = vmatmul.mubr.bf16.gmra.mrb[0].mxu0 %v2567
      %v2723 = vpop.f32.mrb[0].mxu0
      %v2724 = vadd.f32 %v2599, %v2723
      %v2725 = vpop.f32.mrb[0].mxu0
      %v2726 = vpop.f32.mrb[0].mxu0
      %v2727 = vadd.f32 %v2599, %v2726
      %v2728 = vpop.f32.mrb[0].mxu0
      %2729 = vmatprep.mubr.bf16.mxu0 0
      %2730 = vmatmul.mubr.bf16.gmra.mrb[0].mxu0 %v2568
      %v2731 = vpop.f32.mrb[0].mxu0
      %v2732 = vadd.f32 %v2599, %v2731
      %v2733 = vpop.f32.mrb[0].mxu0
      %v2734 = vpop.f32.mrb[0].mxu0
      %v2735 = vadd.f32 %v2599, %v2734
      %v2736 = vpop.f32.mrb[0].mxu0
      %2737 = vmatprep.mubr.bf16.mxu0 0
      %2738 = vmatmul.mubr.bf16.gmra.mrb[0].mxu0 %v2569
      %v2739 = vpop.f32.mrb[0].mxu0
      %v2740 = vadd.f32 %v2599, %v2739
      %v2741 = vpop.f32.mrb[0].mxu0
      %v2742 = vpop.f32.mrb[0].mxu0
      %v2743 = vadd.f32 %v2599, %v2742
      %v2744 = vpop.f32.mrb[0].mxu0
      %2745 = vmatprep.mubr.bf16.mxu0 0
      %2746 = vmatmul.mubr.bf16.gmra.mrb[0].mxu0 %v2570
      %v2747 = vpop.f32.mrb[0].mxu0
      %v2748 = vadd.f32 %v2599, %v2747
      %v2749 = vpop.f32.mrb[0].mxu0
      %v2750 = vpop.f32.mrb[0].mxu0
      %v2751 = vadd.f32 %v2599, %v2750
      %v2752 = vpop.f32.mrb[0].mxu0
      %2753 = vmatprep.mubr.bf16.mxu0 0
      %2754 = vmatmul.mubr.bf16.gmra.mrb[0].mxu0 %v2571
      %v2755 = vpop.f32.mrb[0].mxu0
      %v2756 = vadd.f32 %v2599, %v2755
      %v2757 = vpop.f32.mrb[0].mxu0
      %v2758 = vpop.f32.mrb[0].mxu0
      %v2759 = vadd.f32 %v2599, %v2758
      %v2760 = vpop.f32.mrb[0].mxu0
      %2761 = vmatprep.mubr.bf16.mxu0 0
      %2762 = vmatmul.mubr.bf16.gmra.mrb[0].mxu0 %v2572
      %v2763 = vpop.f32.mrb[0].mxu0
      %v2764 = vadd.f32 %v2599, %v2763
      %v2765 = vpop.f32.mrb[0].mxu0
      %v2766 = vpop.f32.mrb[0].mxu0
      %v2767 = vadd.f32 %v2599, %v2766
      %v2768 = vpop.f32.mrb[0].mxu0
      %2769 = vmatprep.mubr.bf16.mxu0 0
      %2770 = vmatmul.mubr.bf16.gmra.mrb[0].mxu0 %v2573
      %v2771 = vpop.f32.mrb[0].mxu0
      %v2772 = vadd.f32 %v2599, %v2771
      %v2773 = vpop.f32.mrb[0].mxu0
      %v2774 = vpop.f32.mrb[0].mxu0
      %v2775 = vadd.f32 %v2599, %v2774
      %v2776 = vpop.f32.mrb[0].mxu0
      %2777 = vmatprep.mubr.bf16.mxu0 0
      %2778 = vmatmul.mubr.bf16.gmra.mrb[0].mxu0 %v2574
      %v2779 = vpop.f32.mrb[0].mxu0
      %v2780 = vadd.f32 %v2599, %v2779
      %v2781 = vpop.f32.mrb[0].mxu0
      %v2782 = vpop.f32.mrb[0].mxu0
      %v2783 = vadd.f32 %v2599, %v2782
      %v2784 = vpop.f32.mrb[0].mxu0
      %2785 = vmatprep.mubr.bf16.mxu0 0
      %2786 = vmatmul.mubr.bf16.gmra.mrb[0].mxu0 %v2575
      %v2787 = vpop.f32.mrb[0].mxu0
      %v2788 = vadd.f32 %v2599, %v2787
      %v2789 = vpop.f32.mrb[0].mxu0
      %v2790 = vpop.f32.mrb[0].mxu0
      %v2791 = vadd.f32 %v2599, %v2790
      %v2792 = vpop.f32.mrb[0].mxu0
      %2793 = vmatprep.mubr.bf16.mxu0 0
      %2794 = vmatmul.mubr.bf16.gmra.mrb[0].mxu0 %v2576
      %v2795 = vpop.f32.mrb[0].mxu0
      %v2796 = vadd.f32 %v2599, %v2795
      %v2797 = vpop.f32.mrb[0].mxu0
      %v2798 = vpop.f32.mrb[0].mxu0
      %v2799 = vadd.f32 %v2599, %v2798
      %v2800 = vpop.f32.mrb[0].mxu0
      %2801 = vmatprep.mubr.bf16.mxu0 0
      %2802 = vmatmul.mubr.bf16.gmra.mrb[0].mxu0 %v2577
      %v2803 = vpop.f32.mrb[0].mxu0
      %v2804 = vadd.f32 %v2599, %v2803
      %v2805 = vpop.f32.mrb[0].mxu0
      %v2806 = vpop.f32.mrb[0].mxu0
      %v2807 = vadd.f32 %v2599, %v2806
      %v2808 = vpop.f32.mrb[0].mxu0
      %2809 = vdwg.mxu0
      %v2810 = vsub.f32 0.0, %v2684
      %v2811 = vsub.f32 0.0, %v2687
      %v2812 = vsub.f32 0.0, %v2692
      %v2813 = vsub.f32 0.0, %v2695
      %v2814 = vsub.f32 0.0, %v2700
      %v2815 = vsub.f32 0.0, %v2703
      %v2816 = vsub.f32 0.0, %v2708
      %v2817 = vsub.f32 0.0, %v2711
      %v2818 = vsub.f32 0.0, %v2716
      %v2819 = vsub.f32 0.0, %v2719
      %v2820 = vsub.f32 0.0, %v2724
      %v2821 = vsub.f32 0.0, %v2727
      %v2822 = vsub.f32 0.0, %v2732
      %v2823 = vsub.f32 0.0, %v2735
      %v2824 = vsub.f32 0.0, %v2740
      %v2825 = vsub.f32 0.0, %v2743
      %v2826 = vsub.f32 0.0, %v2748
      %v2827 = vsub.f32 0.0, %v2751
      %v2828 = vsub.f32 0.0, %v2756
      %v2829 = vsub.f32 0.0, %v2759
      %v2830 = vsub.f32 0.0, %v2764
      %v2831 = vsub.f32 0.0, %v2767
      %v2832 = vsub.f32 0.0, %v2772
      %v2833 = vsub.f32 0.0, %v2775
      %v2834 = vsub.f32 0.0, %v2780
      %v2835 = vsub.f32 0.0, %v2783
      %v2836 = vsub.f32 0.0, %v2788
      %v2837 = vsub.f32 0.0, %v2791
      %v2838 = vsub.f32 0.0, %v2796
      %v2839 = vsub.f32 0.0, %v2799
      %v2840 = vsub.f32 0.0, %v2804
      %v2841 = vsub.f32 0.0, %v2807
      %v2842 = vmul.f32 %v2810, 1.442695
      %v2843 = vpow.pop %v2842
      %v2844 = vmul.f32 %v2811, 1.442695
      %v2845 = vpow.pop %v2844
      %v2846 = vmul.f32 %v2812, 1.442695
      %v2847 = vpow.pop %v2846
      %v2848 = vmul.f32 %v2813, 1.442695
      %v2849 = vpow.pop %v2848
      %v2850 = vmul.f32 %v2814, 1.442695
      %v2851 = vpow.pop %v2850
      %v2852 = vmul.f32 %v2815, 1.442695
      %v2853 = vpow.pop %v2852
      %v2854 = vmul.f32 %v2816, 1.442695
      %v2855 = vpow.pop %v2854
      %v2856 = vmul.f32 %v2817, 1.442695
      %v2857 = vpow.pop %v2856
      %v2858 = vmul.f32 %v2818, 1.442695
      %v2859 = vpow.pop %v2858
      %v2860 = vmul.f32 %v2819, 1.442695
      %v2861 = vpow.pop %v2860
      %v2862 = vmul.f32 %v2820, 1.442695
      %v2863 = vpow.pop %v2862
      %v2864 = vmul.f32 %v2821, 1.442695
      %v2865 = vpow.pop %v2864
      %v2866 = vmul.f32 %v2822, 1.442695
      %v2867 = vpow.pop %v2866
      %v2868 = vmul.f32 %v2823, 1.442695
      %v2869 = vpow.pop %v2868
      %v2870 = vmul.f32 %v2824, 1.442695
      %v2871 = vpow.pop %v2870
      %v2872 = vmul.f32 %v2825, 1.442695
      %v2873 = vpow.pop %v2872
      %v2874 = vmul.f32 %v2826, 1.442695
      %v2875 = vpow.pop %v2874
      %v2876 = vmul.f32 %v2827, 1.442695
      %v2877 = vpow.pop %v2876
      %v2878 = vmul.f32 %v2828, 1.442695
      %v2879 = vpow.pop %v2878
      %v2880 = vmul.f32 %v2829, 1.442695
      %v2881 = vpow.pop %v2880
      %v2882 = vmul.f32 %v2830, 1.442695
      %v2883 = vpow.pop %v2882
      %v2884 = vmul.f32 %v2831, 1.442695
      %v2885 = vpow.pop %v2884
      %v2886 = vmul.f32 %v2832, 1.442695
      %v2887 = vpow.pop %v2886
      %v2888 = vmul.f32 %v2833, 1.442695
      %v2889 = vpow.pop %v2888
      %v2890 = vmul.f32 %v2834, 1.442695
      %v2891 = vpow.pop %v2890
      %v2892 = vmul.f32 %v2835, 1.442695
      %v2893 = vpow.pop %v2892
      %v2894 = vmul.f32 %v2836, 1.442695
      %v2895 = vpow.pop %v2894
      %v2896 = vmul.f32 %v2837, 1.442695
      %v2897 = vpow.pop %v2896
      %v2898 = vmul.f32 %v2838, 1.442695
      %v2899 = vpow.pop %v2898
      %v2900 = vmul.f32 %v2839, 1.442695
      %v2901 = vpow.pop %v2900
      %v2902 = vmul.f32 %v2840, 1.442695
      %v2903 = vpow.pop %v2902
      %v2904 = vmul.f32 %v2841, 1.442695
      %v2905 = vpow.pop %v2904
      %v2906 = vadd.f32 %v2843, 1.0
      %v2907 = vadd.f32 %v2845, 1.0
      %v2908 = vadd.f32 %v2847, 1.0
      %v2909 = vadd.f32 %v2849, 1.0
      %v2910 = vadd.f32 %v2851, 1.0
      %v2911 = vadd.f32 %v2853, 1.0
      %v2912 = vadd.f32 %v2855, 1.0
      %v2913 = vadd.f32 %v2857, 1.0
      %v2914 = vadd.f32 %v2859, 1.0
      %v2915 = vadd.f32 %v2861, 1.0
      %v2916 = vadd.f32 %v2863, 1.0
      %v2917 = vadd.f32 %v2865, 1.0
      %v2918 = vadd.f32 %v2867, 1.0
      %v2919 = vadd.f32 %v2869, 1.0
      %v2920 = vadd.f32 %v2871, 1.0
      %v2921 = vadd.f32 %v2873, 1.0
      %v2922 = vadd.f32 %v2875, 1.0
      %v2923 = vadd.f32 %v2877, 1.0
      %v2924 = vadd.f32 %v2879, 1.0
      %v2925 = vadd.f32 %v2881, 1.0
      %v2926 = vadd.f32 %v2883, 1.0
      %v2927 = vadd.f32 %v2885, 1.0
      %v2928 = vadd.f32 %v2887, 1.0
      %v2929 = vadd.f32 %v2889, 1.0
      %v2930 = vadd.f32 %v2891, 1.0
      %v2931 = vadd.f32 %v2893, 1.0
      %v2932 = vadd.f32 %v2895, 1.0
      %v2933 = vadd.f32 %v2897, 1.0
      %v2934 = vadd.f32 %v2899, 1.0
      %v2935 = vadd.f32 %v2901, 1.0
      %v2936 = vadd.f32 %v2903, 1.0
      %v2937 = vadd.f32 %v2905, 1.0
      %v2938 = vrcp.pop %v2906
      %v2939 = vrcp.pop %v2907
      %v2940 = vrcp.pop %v2908
      %v2941 = vrcp.pop %v2909
      %v2942 = vrcp.pop %v2910
      %v2943 = vrcp.pop %v2911
      %v2944 = vrcp.pop %v2912
      %v2945 = vrcp.pop %v2913
      %v2946 = vrcp.pop %v2914
      %v2947 = vrcp.pop %v2915
      %v2948 = vrcp.pop %v2916
      %v2949 = vrcp.pop %v2917
      %v2950 = vrcp.pop %v2918
      %v2951 = vrcp.pop %v2919
      %v2952 = vrcp.pop %v2920
      %v2953 = vrcp.pop %v2921
      %v2954 = vrcp.pop %v2922
      %v2955 = vrcp.pop %v2923
      %v2956 = vrcp.pop %v2924
      %v2957 = vrcp.pop %v2925
      %v2958 = vrcp.pop %v2926
      %v2959 = vrcp.pop %v2927
      %v2960 = vrcp.pop %v2928
      %v2961 = vrcp.pop %v2929
      %v2962 = vrcp.pop %v2930
      %v2963 = vrcp.pop %v2931
      %v2964 = vrcp.pop %v2932
      %v2965 = vrcp.pop %v2933
      %v2966 = vrcp.pop %v2934
      %v2967 = vrcp.pop %v2935
      %v2968 = vrcp.pop %v2936
      %v2969 = vrcp.pop %v2937
      %v2970 = vpack.c.bf16 %v2939, %v2938
      %v2971 = vpack.c.bf16 %v2941, %v2940
      %v2972 = vpack.c.bf16 %v2943, %v2942
      %v2973 = vpack.c.bf16 %v2945, %v2944
      %v2974 = vpack.c.bf16 %v2947, %v2946
      %v2975 = vpack.c.bf16 %v2949, %v2948
      %v2976 = vpack.c.bf16 %v2951, %v2950
      %v2977 = vpack.c.bf16 %v2953, %v2952
      %v2978 = vpack.c.bf16 %v2955, %v2954
      %v2979 = vpack.c.bf16 %v2957, %v2956
      %v2980 = vpack.c.bf16 %v2959, %v2958
      %v2981 = vpack.c.bf16 %v2961, %v2960
      %v2982 = vpack.c.bf16 %v2963, %v2962
      %v2983 = vpack.c.bf16 %v2965, %v2964
      %v2984 = vpack.c.bf16 %v2967, %v2966
      %v2985 = vpack.c.bf16 %v2969, %v2968
      %v2986 = vld [vmem:[%s5] sm:$0xf]
      %v2987 = vld [vmem:[%s5 + $0x4] sm:$0xf]
      %v2988 = vld [vmem:[%s5 + $0x8] sm:$0xf]
      %v2989 = vld [vmem:[%s5 + $0xc] sm:$0xf]
      %v2990 = vld [vmem:[%s5 + $0x10] sm:$0xf]
      %v2991 = vld [vmem:[%s5 + $0x14] sm:$0xf]
      %v2992 = vld [vmem:[%s5 + $0x18] sm:$0xf]
      %v2993 = vld [vmem:[%s5 + $0x1c] sm:$0xf]
      %v2994 = vld [vmem:[%s6] sm:$0x1]
      %v2996 = vlaneseq
      %v2997 = vshrl.u32 %v2996, 7
      %v2998 = vsub.s32 0, %v2997
      %v2999 = vrot.slane %v2994, %v2998
      %v3009 = vunpack.c.l.b16 %v2986
      %v3010 = vunpack.c.l.b16 %v2987
      %v3011 = vunpack.c.l.b16 %v2988
      %v3012 = vunpack.c.l.b16 %v2989
      %v3013 = vunpack.c.l.b16 %v2990
      %v3014 = vunpack.c.l.b16 %v2991
      %v3015 = vunpack.c.l.b16 %v2992
      %v3016 = vunpack.c.l.b16 %v2993
      %v3017 = vpack.c.b16 %v3010, %v3009
      %v3018 = vpack.c.b16 %v3012, %v3011
      %v3019 = vpack.c.b16 %v3014, %v3013
      %v3020 = vpack.c.b16 %v3016, %v3015
      %vm3025 = vcmask 523264
      %v3027 = vsel %vm3025, %v2970, 0
      %v3030 = vsel %vm3025, %v2971, 0
      %v3033 = vsel %vm3025, %v2972, 0
      %v3036 = vsel %vm3025, %v2973, 0
      %v3039 = vsel %vm3025, %v2974, 0
      %v3042 = vsel %vm3025, %v2975, 0
      %v3045 = vsel %vm3025, %v2976, 0
      %v3048 = vsel %vm3025, %v2977, 0
      %v3051 = vsel %vm3025, %v2978, 0
      %v3054 = vsel %vm3025, %v2979, 0
      %v3057 = vsel %vm3025, %v2980, 0
      %v3060 = vsel %vm3025, %v2981, 0
      %v3063 = vsel %vm3025, %v2982, 0
      %v3066 = vsel %vm3025, %v2983, 0
      %v3069 = vsel %vm3025, %v2984, 0
      %v3072 = vsel %vm3025, %v2985, 0
      %3074 = vmatprep.subr.bf16.mxu0 0
      %3075 = vmatpush1.bf16.msra.mxu0 %v3017
      %3076 = vmatprep.subr.bf16.mxu0 0
      %3077 = vmatpush1.bf16.msra.mxu0 %v3018
      %3078 = vmatprep.subr.bf16.mxu0 0
      %3079 = vmatpush1.bf16.msra.mxu0 %v3019
      %3080 = vmatprep.subr.bf16.mxu0 0
      %3081 = vmatpush1.bf16.msra.mxu0 %v3020
      %3082 = vmatprep.subr.bf16.mxu0 0
      %3083 = vmatpush1.bf16.msra.mxu0 0
      %3084 = vmatprep.subr.bf16.mxu0 0
      %3085 = vmatpush1.bf16.msra.mxu0 0
      %3086 = vmatprep.subr.bf16.mxu0 0
      %3087 = vmatpush1.bf16.msra.mxu0 0
      %3088 = vmatprep.subr.bf16.mxu0 0
      %3089 = vmatpush1.bf16.msra.mxu0 0
      %3090 = vmatprep.subr.bf16.mxu0 0
      %3091 = vmatpush1.bf16.msra.mxu0 0
      %3092 = vmatprep.subr.bf16.mxu0 0
      %3093 = vmatpush1.bf16.msra.mxu0 0
      %3094 = vmatprep.subr.bf16.mxu0 0
      %3095 = vmatpush1.bf16.msra.mxu0 0
      %3096 = vmatprep.subr.bf16.mxu0 0
      %3097 = vmatpush1.bf16.msra.mxu0 0
      %3098 = vmatprep.subr.bf16.mxu0 0
      %3099 = vmatpush1.bf16.msra.mxu0 0
      %3100 = vmatprep.subr.bf16.mxu0 0
      %3101 = vmatpush1.bf16.msra.mxu0 0
      %3102 = vmatprep.subr.bf16.mxu0 0
      %3103 = vmatpush1.bf16.msra.mxu0 0
      %3104 = vmatprep.subr.bf16.mxu0 0
      %3105 = vmatpush1.bf16.msra.mxu0 0
      %3106 = vmatprep.mubr.bf16.mxu0 0
      %3107 = vmatmul.mubr.bf16.gmra.mrb[0].mxu0 %v3027
      %v3108 = vpop.f32.mrb[0].mxu0
      %v3109 = vadd.f32 %v2999, %v3108
      %v3110 = vpop.f32.mrb[0].mxu0
      %v3111 = vpop.f32.mrb[0].mxu0
      %v3112 = vadd.f32 %v2999, %v3111
      %v3113 = vpop.f32.mrb[0].mxu0
      %3114 = vmatprep.mubr.bf16.mxu0 0
      %3115 = vmatmul.mubr.bf16.gmra.mrb[0].mxu0 %v3030
      %v3116 = vpop.f32.mrb[0].mxu0
      %v3117 = vadd.f32 %v2999, %v3116
      %v3118 = vpop.f32.mrb[0].mxu0
      %v3119 = vpop.f32.mrb[0].mxu0
      %v3120 = vadd.f32 %v2999, %v3119
      %v3121 = vpop.f32.mrb[0].mxu0
      %3122 = vmatprep.mubr.bf16.mxu0 0
      %3123 = vmatmul.mubr.bf16.gmra.mrb[0].mxu0 %v3033
      %v3124 = vpop.f32.mrb[0].mxu0
      %v3125 = vadd.f32 %v2999, %v3124
      %v3126 = vpop.f32.mrb[0].mxu0
      %v3127 = vpop.f32.mrb[0].mxu0
      %v3128 = vadd.f32 %v2999, %v3127
      %v3129 = vpop.f32.mrb[0].mxu0
      %3130 = vmatprep.mubr.bf16.mxu0 0
      %3131 = vmatmul.mubr.bf16.gmra.mrb[0].mxu0 %v3036
      %v3132 = vpop.f32.mrb[0].mxu0
      %v3133 = vadd.f32 %v2999, %v3132
      %v3134 = vpop.f32.mrb[0].mxu0
      %v3135 = vpop.f32.mrb[0].mxu0
      %v3136 = vadd.f32 %v2999, %v3135
      %v3137 = vpop.f32.mrb[0].mxu0
      %3138 = vmatprep.mubr.bf16.mxu0 0
      %3139 = vmatmul.mubr.bf16.gmra.mrb[0].mxu0 %v3039
      %v3140 = vpop.f32.mrb[0].mxu0
      %v3141 = vadd.f32 %v2999, %v3140
      %v3142 = vpop.f32.mrb[0].mxu0
      %v3143 = vpop.f32.mrb[0].mxu0
      %v3144 = vadd.f32 %v2999, %v3143
      %v3145 = vpop.f32.mrb[0].mxu0
      %3146 = vmatprep.mubr.bf16.mxu0 0
      %3147 = vmatmul.mubr.bf16.gmra.mrb[0].mxu0 %v3042
      %v3148 = vpop.f32.mrb[0].mxu0
      %v3149 = vadd.f32 %v2999, %v3148
      %v3150 = vpop.f32.mrb[0].mxu0
      %v3151 = vpop.f32.mrb[0].mxu0
      %v3152 = vadd.f32 %v2999, %v3151
      %v3153 = vpop.f32.mrb[0].mxu0
      %3154 = vmatprep.mubr.bf16.mxu0 0
      %3155 = vmatmul.mubr.bf16.gmra.mrb[0].mxu0 %v3045
      %v3156 = vpop.f32.mrb[0].mxu0
      %v3157 = vadd.f32 %v2999, %v3156
      %v3158 = vpop.f32.mrb[0].mxu0
      %v3159 = vpop.f32.mrb[0].mxu0
      %v3160 = vadd.f32 %v2999, %v3159
      %v3161 = vpop.f32.mrb[0].mxu0
      %3162 = vmatprep.mubr.bf16.mxu0 0
      %3163 = vmatmul.mubr.bf16.gmra.mrb[0].mxu0 %v3048
      %v3164 = vpop.f32.mrb[0].mxu0
      %v3165 = vadd.f32 %v2999, %v3164
      %v3166 = vpop.f32.mrb[0].mxu0
      %v3167 = vpop.f32.mrb[0].mxu0
      %v3168 = vadd.f32 %v2999, %v3167
      %v3169 = vpop.f32.mrb[0].mxu0
      %3170 = vmatprep.mubr.bf16.mxu0 0
      %3171 = vmatmul.mubr.bf16.gmra.mrb[0].mxu0 %v3051
      %v3172 = vpop.f32.mrb[0].mxu0
      %v3173 = vadd.f32 %v2999, %v3172
      %v3174 = vpop.f32.mrb[0].mxu0
      %v3175 = vpop.f32.mrb[0].mxu0
      %v3176 = vadd.f32 %v2999, %v3175
      %v3177 = vpop.f32.mrb[0].mxu0
      %3178 = vmatprep.mubr.bf16.mxu0 0
      %3179 = vmatmul.mubr.bf16.gmra.mrb[0].mxu0 %v3054
      %v3180 = vpop.f32.mrb[0].mxu0
      %v3181 = vadd.f32 %v2999, %v3180
      %v3182 = vpop.f32.mrb[0].mxu0
      %v3183 = vpop.f32.mrb[0].mxu0
      %v3184 = vadd.f32 %v2999, %v3183
      %v3185 = vpop.f32.mrb[0].mxu0
      %3186 = vmatprep.mubr.bf16.mxu0 0
      %3187 = vmatmul.mubr.bf16.gmra.mrb[0].mxu0 %v3057
      %v3188 = vpop.f32.mrb[0].mxu0
      %v3189 = vadd.f32 %v2999, %v3188
      %v3190 = vpop.f32.mrb[0].mxu0
      %v3191 = vpop.f32.mrb[0].mxu0
      %v3192 = vadd.f32 %v2999, %v3191
      %v3193 = vpop.f32.mrb[0].mxu0
      %3194 = vmatprep.mubr.bf16.mxu0 0
      %3195 = vmatmul.mubr.bf16.gmra.mrb[0].mxu0 %v3060
      %v3196 = vpop.f32.mrb[0].mxu0
      %v3197 = vadd.f32 %v2999, %v3196
      %v3198 = vpop.f32.mrb[0].mxu0
      %v3199 = vpop.f32.mrb[0].mxu0
      %v3200 = vadd.f32 %v2999, %v3199
      %v3201 = vpop.f32.mrb[0].mxu0
      %3202 = vmatprep.mubr.bf16.mxu0 0
      %3203 = vmatmul.mubr.bf16.gmra.mrb[0].mxu0 %v3063
      %v3204 = vpop.f32.mrb[0].mxu0
      %v3205 = vadd.f32 %v2999, %v3204
      %v3206 = vpop.f32.mrb[0].mxu0
      %v3207 = vpop.f32.mrb[0].mxu0
      %v3208 = vadd.f32 %v2999, %v3207
      %v3209 = vpop.f32.mrb[0].mxu0
      %3210 = vmatprep.mubr.bf16.mxu0 0
      %3211 = vmatmul.mubr.bf16.gmra.mrb[0].mxu0 %v3066
      %v3212 = vpop.f32.mrb[0].mxu0
      %v3213 = vadd.f32 %v2999, %v3212
      %v3214 = vpop.f32.mrb[0].mxu0
      %v3215 = vpop.f32.mrb[0].mxu0
      %v3216 = vadd.f32 %v2999, %v3215
      %v3217 = vpop.f32.mrb[0].mxu0
      %3218 = vmatprep.mubr.bf16.mxu0 0
      %3219 = vmatmul.mubr.bf16.gmra.mrb[0].mxu0 %v3069
      %v3220 = vpop.f32.mrb[0].mxu0
      %v3221 = vadd.f32 %v2999, %v3220
      %v3222 = vpop.f32.mrb[0].mxu0
      %v3223 = vpop.f32.mrb[0].mxu0
      %v3224 = vadd.f32 %v2999, %v3223
      %v3225 = vpop.f32.mrb[0].mxu0
      %3226 = vmatprep.mubr.bf16.mxu0 0
      %3227 = vmatmul.mubr.bf16.gmra.mrb[0].mxu0 %v3072
      %v3228 = vpop.f32.mrb[0].mxu0
      %v3229 = vadd.f32 %v2999, %v3228
      %v3230 = vpop.f32.mrb[0].mxu0
      %v3231 = vpop.f32.mrb[0].mxu0
      %v3232 = vadd.f32 %v2999, %v3231
      %v3233 = vpop.f32.mrb[0].mxu0
      %3234 = vdwg.mxu0
      %v3235 = vsub.f32 0.0, %v3109
      %v3236 = vsub.f32 0.0, %v3112
      %v3237 = vsub.f32 0.0, %v3117
      %v3238 = vsub.f32 0.0, %v3120
      %v3239 = vsub.f32 0.0, %v3125
      %v3240 = vsub.f32 0.0, %v3128
      %v3241 = vsub.f32 0.0, %v3133
      %v3242 = vsub.f32 0.0, %v3136
      %v3243 = vsub.f32 0.0, %v3141
      %v3244 = vsub.f32 0.0, %v3144
      %v3245 = vsub.f32 0.0, %v3149
      %v3246 = vsub.f32 0.0, %v3152
      %v3247 = vsub.f32 0.0, %v3157
      %v3248 = vsub.f32 0.0, %v3160
      %v3249 = vsub.f32 0.0, %v3165
      %v3250 = vsub.f32 0.0, %v3168
      %v3251 = vsub.f32 0.0, %v3173
      %v3252 = vsub.f32 0.0, %v3176
      %v3253 = vsub.f32 0.0, %v3181
      %v3254 = vsub.f32 0.0, %v3184
      %v3255 = vsub.f32 0.0, %v3189
      %v3256 = vsub.f32 0.0, %v3192
      %v3257 = vsub.f32 0.0, %v3197
      %v3258 = vsub.f32 0.0, %v3200
      %v3259 = vsub.f32 0.0, %v3205
      %v3260 = vsub.f32 0.0, %v3208
      %v3261 = vsub.f32 0.0, %v3213
      %v3262 = vsub.f32 0.0, %v3216
      %v3263 = vsub.f32 0.0, %v3221
      %v3264 = vsub.f32 0.0, %v3224
      %v3265 = vsub.f32 0.0, %v3229
      %v3266 = vsub.f32 0.0, %v3232
      %v3267 = vmul.f32 %v3235, 1.442695
      %v3268 = vpow.pop %v3267
      %v3269 = vmul.f32 %v3236, 1.442695
      %v3270 = vpow.pop %v3269
      %v3271 = vmul.f32 %v3237, 1.442695
      %v3272 = vpow.pop %v3271
      %v3273 = vmul.f32 %v3238, 1.442695
      %v3274 = vpow.pop %v3273
      %v3275 = vmul.f32 %v3239, 1.442695
      %v3276 = vpow.pop %v3275
      %v3277 = vmul.f32 %v3240, 1.442695
      %v3278 = vpow.pop %v3277
      %v3279 = vmul.f32 %v3241, 1.442695
      %v3280 = vpow.pop %v3279
      %v3281 = vmul.f32 %v3242, 1.442695
      %v3282 = vpow.pop %v3281
      %v3283 = vmul.f32 %v3243, 1.442695
      %v3284 = vpow.pop %v3283
      %v3285 = vmul.f32 %v3244, 1.442695
      %v3286 = vpow.pop %v3285
      %v3287 = vmul.f32 %v3245, 1.442695
      %v3288 = vpow.pop %v3287
      %v3289 = vmul.f32 %v3246, 1.442695
      %v3290 = vpow.pop %v3289
      %v3291 = vmul.f32 %v3247, 1.442695
      %v3292 = vpow.pop %v3291
      %v3293 = vmul.f32 %v3248, 1.442695
      %v3294 = vpow.pop %v3293
      %v3295 = vmul.f32 %v3249, 1.442695
      %v3296 = vpow.pop %v3295
      %v3297 = vmul.f32 %v3250, 1.442695
      %v3298 = vpow.pop %v3297
      %v3299 = vmul.f32 %v3251, 1.442695
      %v3300 = vpow.pop %v3299
      %v3301 = vmul.f32 %v3252, 1.442695
      %v3302 = vpow.pop %v3301
      %v3303 = vmul.f32 %v3253, 1.442695
      %v3304 = vpow.pop %v3303
      %v3305 = vmul.f32 %v3254, 1.442695
      %v3306 = vpow.pop %v3305
      %v3307 = vmul.f32 %v3255, 1.442695
      %v3308 = vpow.pop %v3307
      %v3309 = vmul.f32 %v3256, 1.442695
      %v3310 = vpow.pop %v3309
      %v3311 = vmul.f32 %v3257, 1.442695
      %v3312 = vpow.pop %v3311
      %v3313 = vmul.f32 %v3258, 1.442695
      %v3314 = vpow.pop %v3313
      %v3315 = vmul.f32 %v3259, 1.442695
      %v3316 = vpow.pop %v3315
      %v3317 = vmul.f32 %v3260, 1.442695
      %v3318 = vpow.pop %v3317
      %v3319 = vmul.f32 %v3261, 1.442695
      %v3320 = vpow.pop %v3319
      %v3321 = vmul.f32 %v3262, 1.442695
      %v3322 = vpow.pop %v3321
      %v3323 = vmul.f32 %v3263, 1.442695
      %v3324 = vpow.pop %v3323
      %v3325 = vmul.f32 %v3264, 1.442695
      %v3326 = vpow.pop %v3325
      %v3327 = vmul.f32 %v3265, 1.442695
      %v3328 = vpow.pop %v3327
      %v3329 = vmul.f32 %v3266, 1.442695
      %v3330 = vpow.pop %v3329
      %v3331 = vadd.f32 %v3268, 1.0
      %v3332 = vadd.f32 %v3270, 1.0
      %v3333 = vadd.f32 %v3272, 1.0
      %v3334 = vadd.f32 %v3274, 1.0
      %v3335 = vadd.f32 %v3276, 1.0
      %v3336 = vadd.f32 %v3278, 1.0
      %v3337 = vadd.f32 %v3280, 1.0
      %v3338 = vadd.f32 %v3282, 1.0
      %v3339 = vadd.f32 %v3284, 1.0
      %v3340 = vadd.f32 %v3286, 1.0
      %v3341 = vadd.f32 %v3288, 1.0
      %v3342 = vadd.f32 %v3290, 1.0
      %v3343 = vadd.f32 %v3292, 1.0
      %v3344 = vadd.f32 %v3294, 1.0
      %v3345 = vadd.f32 %v3296, 1.0
      %v3346 = vadd.f32 %v3298, 1.0
      %v3347 = vadd.f32 %v3300, 1.0
      %v3348 = vadd.f32 %v3302, 1.0
      %v3349 = vadd.f32 %v3304, 1.0
      %v3350 = vadd.f32 %v3306, 1.0
      %v3351 = vadd.f32 %v3308, 1.0
      %v3352 = vadd.f32 %v3310, 1.0
      %v3353 = vadd.f32 %v3312, 1.0
      %v3354 = vadd.f32 %v3314, 1.0
      %v3355 = vadd.f32 %v3316, 1.0
      %v3356 = vadd.f32 %v3318, 1.0
      %v3357 = vadd.f32 %v3320, 1.0
      %v3358 = vadd.f32 %v3322, 1.0
      %v3359 = vadd.f32 %v3324, 1.0
      %v3360 = vadd.f32 %v3326, 1.0
      %v3361 = vadd.f32 %v3328, 1.0
      %v3362 = vadd.f32 %v3330, 1.0
      %v3363 = vrcp.pop %v3331
      %v3364 = vrcp.pop %v3332
      %v3365 = vrcp.pop %v3333
      %v3366 = vrcp.pop %v3334
      %v3367 = vrcp.pop %v3335
      %v3368 = vrcp.pop %v3336
      %v3369 = vrcp.pop %v3337
      %v3370 = vrcp.pop %v3338
      %v3371 = vrcp.pop %v3339
      %v3372 = vrcp.pop %v3340
      %v3373 = vrcp.pop %v3341
      %v3374 = vrcp.pop %v3342
      %v3375 = vrcp.pop %v3343
      %v3376 = vrcp.pop %v3344
      %v3377 = vrcp.pop %v3345
      %v3378 = vrcp.pop %v3346
      %v3379 = vrcp.pop %v3347
      %v3380 = vrcp.pop %v3348
      %v3381 = vrcp.pop %v3349
      %v3382 = vrcp.pop %v3350
      %v3383 = vrcp.pop %v3351
      %v3384 = vrcp.pop %v3352
      %v3385 = vrcp.pop %v3353
      %v3386 = vrcp.pop %v3354
      %v3387 = vrcp.pop %v3355
      %v3388 = vrcp.pop %v3356
      %v3389 = vrcp.pop %v3357
      %v3390 = vrcp.pop %v3358
      %v3391 = vrcp.pop %v3359
      %v3392 = vrcp.pop %v3360
      %v3393 = vrcp.pop %v3361
      %v3394 = vrcp.pop %v3362
      %v3395 = vpack.c.bf16 %v3364, %v3363
      %v3396 = vpack.c.bf16 %v3366, %v3365
      %v3397 = vpack.c.bf16 %v3368, %v3367
      %v3398 = vpack.c.bf16 %v3370, %v3369
      %v3399 = vpack.c.bf16 %v3372, %v3371
      %v3400 = vpack.c.bf16 %v3374, %v3373
      %v3401 = vpack.c.bf16 %v3376, %v3375
      %v3402 = vpack.c.bf16 %v3378, %v3377
      %v3403 = vpack.c.bf16 %v3380, %v3379
      %v3404 = vpack.c.bf16 %v3382, %v3381
      %v3405 = vpack.c.bf16 %v3384, %v3383
      %v3406 = vpack.c.bf16 %v3386, %v3385
      %v3407 = vpack.c.bf16 %v3388, %v3387
      %v3408 = vpack.c.bf16 %v3390, %v3389
      %v3409 = vpack.c.bf16 %v3392, %v3391
      %v3410 = vpack.c.bf16 %v3394, %v3393
      %v3411 = vld [vmem:[%s7] sm:$0xf]
      %v3412 = vld [vmem:[%s7 + $0x4] sm:$0x3]
      %v3413 = vld [vmem:[%s8] sm:$0x1]
      %v3415 = vlaneseq
      %v3416 = vshrl.u32 %v3415, 7
      %v3417 = vsub.s32 0, %v3416
      %v3418 = vrot.slane %v3413, %v3417
      %v3422 = vunpack.c.l.b16 %v3411
      %v3423 = vunpack.c.l.b16 %v3412
      %v3424 = vpack.c.b16 %v3423, %v3422
      %vm3425 = vcmask 97280
      %v3427 = vsel %vm3425, %v3395, 0
      %v3430 = vsel %vm3425, %v3396, 0
      %v3433 = vsel %vm3425, %v3397, 0
      %v3436 = vsel %vm3425, %v3398, 0
      %v3439 = vsel %vm3425, %v3399, 0
      %v3442 = vsel %vm3425, %v3400, 0
      %v3445 = vsel %vm3425, %v3401, 0
      %v3448 = vsel %vm3425, %v3402, 0
      %v3451 = vsel %vm3425, %v3403, 0
      %v3454 = vsel %vm3425, %v3404, 0
      %v3457 = vsel %vm3425, %v3405, 0
      %v3460 = vsel %vm3425, %v3406, 0
      %v3463 = vsel %vm3425, %v3407, 0
      %v3466 = vsel %vm3425, %v3408, 0
      %v3469 = vsel %vm3425, %v3409, 0
      %v3472 = vsel %vm3425, %v3410, 0
      %vm3474 = vcmask 1045504
      %v3476 = vsel %vm3474, %v3424, 0
      %3478 = vmatprep.subr.bf16.mxu0 0
      %3479 = vmatpush1.bf16.msra.mxu0 %v3476
      %3480 = vmatprep.subr.bf16.mxu0 0
      %3481 = vmatpush1.bf16.msra.mxu0 0
      %3482 = vmatprep.subr.bf16.mxu0 0
      %3483 = vmatpush1.bf16.msra.mxu0 0
      %3484 = vmatprep.subr.bf16.mxu0 0
      %3485 = vmatpush1.bf16.msra.mxu0 0
      %3486 = vmatprep.subr.bf16.mxu0 0
      %3487 = vmatpush1.bf16.msra.mxu0 0
      %3488 = vmatprep.subr.bf16.mxu0 0
      %3489 = vmatpush1.bf16.msra.mxu0 0
      %3490 = vmatprep.subr.bf16.mxu0 0
      %3491 = vmatpush1.bf16.msra.mxu0 0
      %3492 = vmatprep.subr.bf16.mxu0 0
      %3493 = vmatpush1.bf16.msra.mxu0 0
      %3494 = vmatprep.subr.bf16.mxu0 0
      %3495 = vmatpush1.bf16.msra.mxu0 0
      %3496 = vmatprep.subr.bf16.mxu0 0
      %3497 = vmatpush1.bf16.msra.mxu0 0
      %3498 = vmatprep.subr.bf16.mxu0 0
      %3499 = vmatpush1.bf16.msra.mxu0 0
      %3500 = vmatprep.subr.bf16.mxu0 0
      %3501 = vmatpush1.bf16.msra.mxu0 0
      %3502 = vmatprep.subr.bf16.mxu0 0
      %3503 = vmatpush1.bf16.msra.mxu0 0
      %3504 = vmatprep.subr.bf16.mxu0 0
      %3505 = vmatpush1.bf16.msra.mxu0 0
      %3506 = vmatprep.subr.bf16.mxu0 0
      %3507 = vmatpush1.bf16.msra.mxu0 0
      %3508 = vmatprep.subr.bf16.mxu0 0
      %3509 = vmatpush1.bf16.msra.mxu0 0
      %3510 = vmatprep.mubr.bf16.mxu0 0
      %3511 = vmatmul.mubr.bf16.gmra.mrb[0].mxu0 %v3427
      %v3512 = vpop.f32.mrb[0].mxu0
      %v3513 = vadd.f32 %v3418, %v3512
      %v3514 = vpop.f32.mrb[0].mxu0
      %v3515 = vpop.f32.mrb[0].mxu0
      %v3516 = vadd.f32 %v3418, %v3515
      %v3517 = vpop.f32.mrb[0].mxu0
      %3518 = vmatprep.mubr.bf16.mxu0 0
      %3519 = vmatmul.mubr.bf16.gmra.mrb[0].mxu0 %v3430
      %v3520 = vpop.f32.mrb[0].mxu0
      %v3521 = vadd.f32 %v3418, %v3520
      %v3522 = vpop.f32.mrb[0].mxu0
      %v3523 = vpop.f32.mrb[0].mxu0
      %v3524 = vadd.f32 %v3418, %v3523
      %v3525 = vpop.f32.mrb[0].mxu0
      %3526 = vmatprep.mubr.bf16.mxu0 0
      %3527 = vmatmul.mubr.bf16.gmra.mrb[0].mxu0 %v3433
      %v3528 = vpop.f32.mrb[0].mxu0
      %v3529 = vadd.f32 %v3418, %v3528
      %v3530 = vpop.f32.mrb[0].mxu0
      %v3531 = vpop.f32.mrb[0].mxu0
      %v3532 = vadd.f32 %v3418, %v3531
      %v3533 = vpop.f32.mrb[0].mxu0
      %3534 = vmatprep.mubr.bf16.mxu0 0
      %3535 = vmatmul.mubr.bf16.gmra.mrb[0].mxu0 %v3436
      %v3536 = vpop.f32.mrb[0].mxu0
      %v3537 = vadd.f32 %v3418, %v3536
      %v3538 = vpop.f32.mrb[0].mxu0
      %v3539 = vpop.f32.mrb[0].mxu0
      %v3540 = vadd.f32 %v3418, %v3539
      %v3541 = vpop.f32.mrb[0].mxu0
      %3542 = vmatprep.mubr.bf16.mxu0 0
      %3543 = vmatmul.mubr.bf16.gmra.mrb[0].mxu0 %v3439
      %v3544 = vpop.f32.mrb[0].mxu0
      %v3545 = vadd.f32 %v3418, %v3544
      %v3546 = vpop.f32.mrb[0].mxu0
      %v3547 = vpop.f32.mrb[0].mxu0
      %v3548 = vadd.f32 %v3418, %v3547
      %v3549 = vpop.f32.mrb[0].mxu0
      %3550 = vmatprep.mubr.bf16.mxu0 0
      %3551 = vmatmul.mubr.bf16.gmra.mrb[0].mxu0 %v3442
      %v3552 = vpop.f32.mrb[0].mxu0
      %v3553 = vadd.f32 %v3418, %v3552
      %v3554 = vpop.f32.mrb[0].mxu0
      %v3555 = vpop.f32.mrb[0].mxu0
      %v3556 = vadd.f32 %v3418, %v3555
      %v3557 = vpop.f32.mrb[0].mxu0
      %3558 = vmatprep.mubr.bf16.mxu0 0
      %3559 = vmatmul.mubr.bf16.gmra.mrb[0].mxu0 %v3445
      %v3560 = vpop.f32.mrb[0].mxu0
      %v3561 = vadd.f32 %v3418, %v3560
      %v3562 = vpop.f32.mrb[0].mxu0
      %v3563 = vpop.f32.mrb[0].mxu0
      %v3564 = vadd.f32 %v3418, %v3563
      %v3565 = vpop.f32.mrb[0].mxu0
      %3566 = vmatprep.mubr.bf16.mxu0 0
      %3567 = vmatmul.mubr.bf16.gmra.mrb[0].mxu0 %v3448
      %v3568 = vpop.f32.mrb[0].mxu0
      %v3569 = vadd.f32 %v3418, %v3568
      %v3570 = vpop.f32.mrb[0].mxu0
      %v3571 = vpop.f32.mrb[0].mxu0
      %v3572 = vadd.f32 %v3418, %v3571
      %v3573 = vpop.f32.mrb[0].mxu0
      %3574 = vmatprep.mubr.bf16.mxu0 0
      %3575 = vmatmul.mubr.bf16.gmra.mrb[0].mxu0 %v3451
      %v3576 = vpop.f32.mrb[0].mxu0
      %v3577 = vadd.f32 %v3418, %v3576
      %v3578 = vpop.f32.mrb[0].mxu0
      %v3579 = vpop.f32.mrb[0].mxu0
      %v3580 = vadd.f32 %v3418, %v3579
      %v3581 = vpop.f32.mrb[0].mxu0
      %3582 = vmatprep.mubr.bf16.mxu0 0
      %3583 = vmatmul.mubr.bf16.gmra.mrb[0].mxu0 %v3454
      %v3584 = vpop.f32.mrb[0].mxu0
      %v3585 = vadd.f32 %v3418, %v3584
      %v3586 = vpop.f32.mrb[0].mxu0
      %v3587 = vpop.f32.mrb[0].mxu0
      %v3588 = vadd.f32 %v3418, %v3587
      %v3589 = vpop.f32.mrb[0].mxu0
      %3590 = vmatprep.mubr.bf16.mxu0 0
      %3591 = vmatmul.mubr.bf16.gmra.mrb[0].mxu0 %v3457
      %v3592 = vpop.f32.mrb[0].mxu0
      %v3593 = vadd.f32 %v3418, %v3592
      %v3594 = vpop.f32.mrb[0].mxu0
      %v3595 = vpop.f32.mrb[0].mxu0
      %v3596 = vadd.f32 %v3418, %v3595
      %v3597 = vpop.f32.mrb[0].mxu0
      %3598 = vmatprep.mubr.bf16.mxu0 0
      %3599 = vmatmul.mubr.bf16.gmra.mrb[0].mxu0 %v3460
      %v3600 = vpop.f32.mrb[0].mxu0
      %v3601 = vadd.f32 %v3418, %v3600
      %v3602 = vpop.f32.mrb[0].mxu0
      %v3603 = vpop.f32.mrb[0].mxu0
      %v3604 = vadd.f32 %v3418, %v3603
      %v3605 = vpop.f32.mrb[0].mxu0
      %3606 = vmatprep.mubr.bf16.mxu0 0
      %3607 = vmatmul.mubr.bf16.gmra.mrb[0].mxu0 %v3463
      %v3608 = vpop.f32.mrb[0].mxu0
      %v3609 = vadd.f32 %v3418, %v3608
      %v3610 = vpop.f32.mrb[0].mxu0
      %v3611 = vpop.f32.mrb[0].mxu0
      %v3612 = vadd.f32 %v3418, %v3611
      %v3613 = vpop.f32.mrb[0].mxu0
      %3614 = vmatprep.mubr.bf16.mxu0 0
      %3615 = vmatmul.mubr.bf16.gmra.mrb[0].mxu0 %v3466
      %v3616 = vpop.f32.mrb[0].mxu0
      %v3617 = vadd.f32 %v3418, %v3616
      %v3618 = vpop.f32.mrb[0].mxu0
      %v3619 = vpop.f32.mrb[0].mxu0
      %v3620 = vadd.f32 %v3418, %v3619
      %v3621 = vpop.f32.mrb[0].mxu0
      %3622 = vmatprep.mubr.bf16.mxu0 0
      %3623 = vmatmul.mubr.bf16.gmra.mrb[0].mxu0 %v3469
      %v3624 = vpop.f32.mrb[0].mxu0
      %v3625 = vadd.f32 %v3418, %v3624
      %v3626 = vpop.f32.mrb[0].mxu0
      %v3627 = vpop.f32.mrb[0].mxu0
      %v3628 = vadd.f32 %v3418, %v3627
      %v3629 = vpop.f32.mrb[0].mxu0
      %3630 = vmatprep.mubr.bf16.mxu0 0
      %3631 = vmatmul.mubr.bf16.gmra.mrb[0].mxu0 %v3472
      %v3632 = vpop.f32.mrb[0].mxu0
      %v3633 = vadd.f32 %v3418, %v3632
      %v3634 = vpop.f32.mrb[0].mxu0
      %v3635 = vpop.f32.mrb[0].mxu0
      %v3636 = vadd.f32 %v3418, %v3635
      %v3637 = vpop.f32.mrb[0].mxu0
      %3638 = vdwg.mxu0
      %3639 = vst [vmem:[%s589] sm:$0xff] %v3513
      %3640 = vst [vmem:[%s589 + $0x8] sm:$0xff] %v3516
      %3641 = vst [vmem:[%s589 + $0x10] sm:$0xff] %v3521
      %3642 = vst [vmem:[%s589 + $0x18] sm:$0xff] %v3524
      %3643 = vst [vmem:[%s589 + $0x20] sm:$0xff] %v3529
      %3644 = vst [vmem:[%s589 + $0x28] sm:$0xff] %v3532
      %3645 = vst [vmem:[%s589 + $0x30] sm:$0xff] %v3537
      %3646 = vst [vmem:[%s589 + $0x38] sm:$0xff] %v3540
      %3647 = vst [vmem:[%s589 + $0x40] sm:$0xff] %v3545
      %3648 = vst [vmem:[%s589 + $0x48] sm:$0xff] %v3548
      %3649 = vst [vmem:[%s589 + $0x50] sm:$0xff] %v3553
      %3650 = vst [vmem:[%s589 + $0x58] sm:$0xff] %v3556
      %3651 = vst [vmem:[%s589 + $0x60] sm:$0xff] %v3561
      %3652 = vst [vmem:[%s589 + $0x68] sm:$0xff] %v3564
      %3653 = vst [vmem:[%s589 + $0x70] sm:$0xff] %v3569
      %3654 = vst [vmem:[%s589 + $0x78] sm:$0xff] %v3572
      %3655 = vst [vmem:[%s589 + $0x80] sm:$0xff] %v3577
      %3656 = vst [vmem:[%s589 + $0x88] sm:$0xff] %v3580
      %3657 = vst [vmem:[%s589 + $0x90] sm:$0xff] %v3585
      %3658 = vst [vmem:[%s589 + $0x98] sm:$0xff] %v3588
      %3659 = vst [vmem:[%s589 + $0xa0] sm:$0xff] %v3593
      %3660 = vst [vmem:[%s589 + $0xa8] sm:$0xff] %v3596
      %3661 = vst [vmem:[%s589 + $0xb0] sm:$0xff] %v3601
      %3662 = vst [vmem:[%s589 + $0xb8] sm:$0xff] %v3604
      %3663 = vst [vmem:[%s589 + $0xc0] sm:$0xff] %v3609
      %3664 = vst [vmem:[%s589 + $0xc8] sm:$0xff] %v3612
      %3665 = vst [vmem:[%s589 + $0xd0] sm:$0xff] %v3617
      %3666 = vst [vmem:[%s589 + $0xd8] sm:$0xff] %v3620
      %3667 = vst [vmem:[%s589 + $0xe0] sm:$0xff] %v3625
      %3668 = vst [vmem:[%s589 + $0xe8] sm:$0xff] %v3628
      %3669 = vst [vmem:[%s589 + $0xf0] sm:$0xff] %v3633
      %3670 = vst [vmem:[%s589 + $0xf8] sm:$0xff] %v3636
      %v3671 = vpack.c.bf16 %v3516, %v3513
      %v3672 = vpack.c.bf16 %v3524, %v3521
      %v3673 = vpack.c.bf16 %v3532, %v3529
      %v3674 = vpack.c.bf16 %v3540, %v3537
      %v3675 = vpack.c.bf16 %v3548, %v3545
      %v3676 = vpack.c.bf16 %v3556, %v3553
      %v3677 = vpack.c.bf16 %v3564, %v3561
      %v3678 = vpack.c.bf16 %v3572, %v3569
      %v3679 = vpack.c.bf16 %v3580, %v3577
      %v3680 = vpack.c.bf16 %v3588, %v3585
      %v3681 = vpack.c.bf16 %v3596, %v3593
      %v3682 = vpack.c.bf16 %v3604, %v3601
      %v3683 = vpack.c.bf16 %v3612, %v3609
      %v3684 = vpack.c.bf16 %v3620, %v3617
      %v3685 = vpack.c.bf16 %v3628, %v3625
      %v3686 = vpack.c.bf16 %v3636, %v3633
      %v3687 = vld [vmem:[%s9] sm:$0xf]
      %v3688 = vld [vmem:[%s9 + $0x4] sm:$0xf]
      %v3689 = vld [vmem:[%s9 + $0x8] sm:$0xf]
      %v3690 = vld [vmem:[%s9 + $0xc] sm:$0xf]
      %v3691 = vld [vmem:[%s9 + $0x10] sm:$0xf]
      %v3692 = vld [vmem:[%s9 + $0x14] sm:$0xf]
      %v3693 = vld [vmem:[%s9 + $0x18] sm:$0xf]
      %v3694 = vld [vmem:[%s9 + $0x1c] sm:$0xf]
      %v3695 = vld [vmem:[%s9 + $0x20] sm:$0xf]
      %v3696 = vld [vmem:[%s9 + $0x24] sm:$0xf]
      %v3697 = vld [vmem:[%s9 + $0x28] sm:$0xf]
      %v3698 = vld [vmem:[%s9 + $0x2c] sm:$0xf]
      %v3699 = vld [vmem:[%s9 + $0x30] sm:$0xf]
      %v3700 = vld [vmem:[%s9 + $0x34] sm:$0xf]
      %v3701 = vld [vmem:[%s9 + $0x38] sm:$0xf]
      %v3702 = vld [vmem:[%s9 + $0x3c] sm:$0xf]
      %v3703 = vld [vmem:[%s10] sm:$0x1]
      %v3705 = vlaneseq
      %v3706 = vshrl.u32 %v3705, 7
      %v3707 = vsub.s32 0, %v3706
      %v3708 = vrot.slane %v3703, %v3707
      %v3726 = vunpack.c.l.b16 %v3687
      %v3727 = vunpack.c.l.b16 %v3688
      %v3728 = vunpack.c.l.b16 %v3689
      %v3729 = vunpack.c.l.b16 %v3690
      %v3730 = vunpack.c.l.b16 %v3691
      %v3731 = vunpack.c.l.b16 %v3692
      %v3732 = vunpack.c.l.b16 %v3693
      %v3733 = vunpack.c.l.b16 %v3694
      %v3734 = vunpack.c.l.b16 %v3695
      %v3735 = vunpack.c.l.b16 %v3696
      %v3736 = vunpack.c.l.b16 %v3697
      %v3737 = vunpack.c.l.b16 %v3698
      %v3738 = vunpack.c.l.b16 %v3699
      %v3739 = vunpack.c.l.b16 %v3700
      %v3740 = vunpack.c.l.b16 %v3701
      %v3741 = vunpack.c.l.b16 %v3702
      %v3742 = vpack.c.b16 %v3727, %v3726
      %v3743 = vpack.c.b16 %v3729, %v3728
      %v3744 = vpack.c.b16 %v3731, %v3730
      %v3745 = vpack.c.b16 %v3733, %v3732
      %v3746 = vpack.c.b16 %v3735, %v3734
      %v3747 = vpack.c.b16 %v3737, %v3736
      %v3748 = vpack.c.b16 %v3739, %v3738
      %v3749 = vpack.c.b16 %v3741, %v3740
      %3758 = vmatprep.subr.bf16.mxu0 0
      %3759 = vmatpush1.bf16.msra.mxu0 %v3742
      %3760 = vmatprep.subr.bf16.mxu0 0
      %3761 = vmatpush1.bf16.msra.mxu0 %v3743
      %3762 = vmatprep.subr.bf16.mxu0 0
      %3763 = vmatpush1.bf16.msra.mxu0 %v3744
      %3764 = vmatprep.subr.bf16.mxu0 0
      %3765 = vmatpush1.bf16.msra.mxu0 %v3745
      %3766 = vmatprep.subr.bf16.mxu0 0
      %3767 = vmatpush1.bf16.msra.mxu0 %v3746
      %3768 = vmatprep.subr.bf16.mxu0 0
      %3769 = vmatpush1.bf16.msra.mxu0 %v3747
      %3770 = vmatprep.subr.bf16.mxu0 0
      %3771 = vmatpush1.bf16.msra.mxu0 %v3748
      %3772 = vmatprep.subr.bf16.mxu0 0
      %3773 = vmatpush1.bf16.msra.mxu0 %v3749
      %3774 = vmatprep.subr.bf16.mxu0 0
      %3775 = vmatpush1.bf16.msra.mxu0 0
      %3776 = vmatprep.subr.bf16.mxu0 0
      %3777 = vmatpush1.bf16.msra.mxu0 0
      %3778 = vmatprep.subr.bf16.mxu0 0
      %3779 = vmatpush1.bf16.msra.mxu0 0
      %3780 = vmatprep.subr.bf16.mxu0 0
      %3781 = vmatpush1.bf16.msra.mxu0 0
      %3782 = vmatprep.subr.bf16.mxu0 0
      %3783 = vmatpush1.bf16.msra.mxu0 0
      %3784 = vmatprep.subr.bf16.mxu0 0
      %3785 = vmatpush1.bf16.msra.mxu0 0
      %3786 = vmatprep.subr.bf16.mxu0 0
      %3787 = vmatpush1.bf16.msra.mxu0 0
      %3788 = vmatprep.subr.bf16.mxu0 0
      %3789 = vmatpush1.bf16.msra.mxu0 0
      %3790 = vmatprep.mubr.bf16.mxu0 0
      %3791 = vmatmul.mubr.bf16.gmra.mrb[0].mxu0 %v3671
      %v3792 = vpop.f32.mrb[0].mxu0
      %v3793 = vadd.f32 %v3708, %v3792
      %v3794 = vpop.f32.mrb[0].mxu0
      %v3795 = vpop.f32.mrb[0].mxu0
      %v3796 = vadd.f32 %v3708, %v3795
      %v3797 = vpop.f32.mrb[0].mxu0
      %3798 = vmatprep.mubr.bf16.mxu0 0
      %3799 = vmatmul.mubr.bf16.gmra.mrb[0].mxu0 %v3672
      %v3800 = vpop.f32.mrb[0].mxu0
      %v3801 = vadd.f32 %v3708, %v3800
      %v3802 = vpop.f32.mrb[0].mxu0
      %v3803 = vpop.f32.mrb[0].mxu0
      %v3804 = vadd.f32 %v3708, %v3803
      %v3805 = vpop.f32.mrb[0].mxu0
      %3806 = vmatprep.mubr.bf16.mxu0 0
      %3807 = vmatmul.mubr.bf16.gmra.mrb[0].mxu0 %v3673
      %v3808 = vpop.f32.mrb[0].mxu0
      %v3809 = vadd.f32 %v3708, %v3808
      %v3810 = vpop.f32.mrb[0].mxu0
      %v3811 = vpop.f32.mrb[0].mxu0
      %v3812 = vadd.f32 %v3708, %v3811
      %v3813 = vpop.f32.mrb[0].mxu0
      %3814 = vmatprep.mubr.bf16.mxu0 0
      %3815 = vmatmul.mubr.bf16.gmra.mrb[0].mxu0 %v3674
      %v3816 = vpop.f32.mrb[0].mxu0
      %v3817 = vadd.f32 %v3708, %v3816
      %v3818 = vpop.f32.mrb[0].mxu0
      %v3819 = vpop.f32.mrb[0].mxu0
      %v3820 = vadd.f32 %v3708, %v3819
      %v3821 = vpop.f32.mrb[0].mxu0
      %3822 = vmatprep.mubr.bf16.mxu0 0
      %3823 = vmatmul.mubr.bf16.gmra.mrb[0].mxu0 %v3675
      %v3824 = vpop.f32.mrb[0].mxu0
      %v3825 = vadd.f32 %v3708, %v3824
      %v3826 = vpop.f32.mrb[0].mxu0
      %v3827 = vpop.f32.mrb[0].mxu0
      %v3828 = vadd.f32 %v3708, %v3827
      %v3829 = vpop.f32.mrb[0].mxu0
      %3830 = vmatprep.mubr.bf16.mxu0 0
      %3831 = vmatmul.mubr.bf16.gmra.mrb[0].mxu0 %v3676
      %v3832 = vpop.f32.mrb[0].mxu0
      %v3833 = vadd.f32 %v3708, %v3832
      %v3834 = vpop.f32.mrb[0].mxu0
      %v3835 = vpop.f32.mrb[0].mxu0
      %v3836 = vadd.f32 %v3708, %v3835
      %v3837 = vpop.f32.mrb[0].mxu0
      %3838 = vmatprep.mubr.bf16.mxu0 0
      %3839 = vmatmul.mubr.bf16.gmra.mrb[0].mxu0 %v3677
      %v3840 = vpop.f32.mrb[0].mxu0
      %v3841 = vadd.f32 %v3708, %v3840
      %v3842 = vpop.f32.mrb[0].mxu0
      %v3843 = vpop.f32.mrb[0].mxu0
      %v3844 = vadd.f32 %v3708, %v3843
      %v3845 = vpop.f32.mrb[0].mxu0
      %3846 = vmatprep.mubr.bf16.mxu0 0
      %3847 = vmatmul.mubr.bf16.gmra.mrb[0].mxu0 %v3678
      %v3848 = vpop.f32.mrb[0].mxu0
      %v3849 = vadd.f32 %v3708, %v3848
      %v3850 = vpop.f32.mrb[0].mxu0
      %v3851 = vpop.f32.mrb[0].mxu0
      %v3852 = vadd.f32 %v3708, %v3851
      %v3853 = vpop.f32.mrb[0].mxu0
      %3854 = vmatprep.mubr.bf16.mxu0 0
      %3855 = vmatmul.mubr.bf16.gmra.mrb[0].mxu0 %v3679
      %v3856 = vpop.f32.mrb[0].mxu0
      %v3857 = vadd.f32 %v3708, %v3856
      %v3858 = vpop.f32.mrb[0].mxu0
      %v3859 = vpop.f32.mrb[0].mxu0
      %v3860 = vadd.f32 %v3708, %v3859
      %v3861 = vpop.f32.mrb[0].mxu0
      %3862 = vmatprep.mubr.bf16.mxu0 0
      %3863 = vmatmul.mubr.bf16.gmra.mrb[0].mxu0 %v3680
      %v3864 = vpop.f32.mrb[0].mxu0
      %v3865 = vadd.f32 %v3708, %v3864
      %v3866 = vpop.f32.mrb[0].mxu0
      %v3867 = vpop.f32.mrb[0].mxu0
      %v3868 = vadd.f32 %v3708, %v3867
      %v3869 = vpop.f32.mrb[0].mxu0
      %3870 = vmatprep.mubr.bf16.mxu0 0
      %3871 = vmatmul.mubr.bf16.gmra.mrb[0].mxu0 %v3681
      %v3872 = vpop.f32.mrb[0].mxu0
      %v3873 = vadd.f32 %v3708, %v3872
      %v3874 = vpop.f32.mrb[0].mxu0
      %v3875 = vpop.f32.mrb[0].mxu0
      %v3876 = vadd.f32 %v3708, %v3875
      %v3877 = vpop.f32.mrb[0].mxu0
      %3878 = vmatprep.mubr.bf16.mxu0 0
      %3879 = vmatmul.mubr.bf16.gmra.mrb[0].mxu0 %v3682
      %v3880 = vpop.f32.mrb[0].mxu0
      %v3881 = vadd.f32 %v3708, %v3880
      %v3882 = vpop.f32.mrb[0].mxu0
      %v3883 = vpop.f32.mrb[0].mxu0
      %v3884 = vadd.f32 %v3708, %v3883
      %v3885 = vpop.f32.mrb[0].mxu0
      %3886 = vmatprep.mubr.bf16.mxu0 0
      %3887 = vmatmul.mubr.bf16.gmra.mrb[0].mxu0 %v3683
      %v3888 = vpop.f32.mrb[0].mxu0
      %v3889 = vadd.f32 %v3708, %v3888
      %v3890 = vpop.f32.mrb[0].mxu0
      %v3891 = vpop.f32.mrb[0].mxu0
      %v3892 = vadd.f32 %v3708, %v3891
      %v3893 = vpop.f32.mrb[0].mxu0
      %3894 = vmatprep.mubr.bf16.mxu0 0
      %3895 = vmatmul.mubr.bf16.gmra.mrb[0].mxu0 %v3684
      %v3896 = vpop.f32.mrb[0].mxu0
      %v3897 = vadd.f32 %v3708, %v3896
      %v3898 = vpop.f32.mrb[0].mxu0
      %v3899 = vpop.f32.mrb[0].mxu0
      %v3900 = vadd.f32 %v3708, %v3899
      %v3901 = vpop.f32.mrb[0].mxu0
      %3902 = vmatprep.mubr.bf16.mxu0 0
      %3903 = vmatmul.mubr.bf16.gmra.mrb[0].mxu0 %v3685
      %v3904 = vpop.f32.mrb[0].mxu0
      %v3905 = vadd.f32 %v3708, %v3904
      %v3906 = vpop.f32.mrb[0].mxu0
      %v3907 = vpop.f32.mrb[0].mxu0
      %v3908 = vadd.f32 %v3708, %v3907
      %v3909 = vpop.f32.mrb[0].mxu0
      %3910 = vmatprep.mubr.bf16.mxu0 0
      %3911 = vmatmul.mubr.bf16.gmra.mrb[0].mxu0 %v3686
      %v3912 = vpop.f32.mrb[0].mxu0
      %v3913 = vadd.f32 %v3708, %v3912
      %v3914 = vpop.f32.mrb[0].mxu0
      %v3915 = vpop.f32.mrb[0].mxu0
      %v3916 = vadd.f32 %v3708, %v3915
      %v3917 = vpop.f32.mrb[0].mxu0
      %3918 = vdwg.mxu0
      %v3919 = vmax.f32 %v3793, 0.0
      %v3920 = vmax.f32 %v3796, 0.0
      %v3921 = vmax.f32 %v3801, 0.0
      %v3922 = vmax.f32 %v3804, 0.0
      %v3923 = vmax.f32 %v3809, 0.0
      %v3924 = vmax.f32 %v3812, 0.0
      %v3925 = vmax.f32 %v3817, 0.0
      %v3926 = vmax.f32 %v3820, 0.0
      %v3927 = vmax.f32 %v3825, 0.0
      %v3928 = vmax.f32 %v3828, 0.0
      %v3929 = vmax.f32 %v3833, 0.0
      %v3930 = vmax.f32 %v3836, 0.0
      %v3931 = vmax.f32 %v3841, 0.0
      %v3932 = vmax.f32 %v3844, 0.0
      %v3933 = vmax.f32 %v3849, 0.0
      %v3934 = vmax.f32 %v3852, 0.0
      %v3935 = vmax.f32 %v3857, 0.0
      %v3936 = vmax.f32 %v3860, 0.0
      %v3937 = vmax.f32 %v3865, 0.0
      %v3938 = vmax.f32 %v3868, 0.0
      %v3939 = vmax.f32 %v3873, 0.0
      %v3940 = vmax.f32 %v3876, 0.0
      %v3941 = vmax.f32 %v3881, 0.0
      %v3942 = vmax.f32 %v3884, 0.0
      %v3943 = vmax.f32 %v3889, 0.0
      %v3944 = vmax.f32 %v3892, 0.0
      %v3945 = vmax.f32 %v3897, 0.0
      %v3946 = vmax.f32 %v3900, 0.0
      %v3947 = vmax.f32 %v3905, 0.0
      %v3948 = vmax.f32 %v3908, 0.0
      %v3949 = vmax.f32 %v3913, 0.0
      %v3950 = vmax.f32 %v3916, 0.0
      %v3951 = vpack.c.bf16 %v3920, %v3919
      %v3952 = vpack.c.bf16 %v3922, %v3921
      %v3953 = vpack.c.bf16 %v3924, %v3923
      %v3954 = vpack.c.bf16 %v3926, %v3925
      %v3955 = vpack.c.bf16 %v3928, %v3927
      %v3956 = vpack.c.bf16 %v3930, %v3929
      %v3957 = vpack.c.bf16 %v3932, %v3931
      %v3958 = vpack.c.bf16 %v3934, %v3933
      %v3959 = vpack.c.bf16 %v3936, %v3935
      %v3960 = vpack.c.bf16 %v3938, %v3937
      %v3961 = vpack.c.bf16 %v3940, %v3939
      %v3962 = vpack.c.bf16 %v3942, %v3941
      %v3963 = vpack.c.bf16 %v3944, %v3943
      %v3964 = vpack.c.bf16 %v3946, %v3945
      %v3965 = vpack.c.bf16 %v3948, %v3947
      %v3966 = vpack.c.bf16 %v3950, %v3949
      %v3967 = vld [vmem:[%s11] sm:$0xf]
      %v3968 = vld [vmem:[%s11 + $0x4] sm:$0x3]
      %v3969 = vld [vmem:[%s12] sm:$0x1]
      %v3971 = vlaneseq
      %v3972 = vshrl.u32 %v3971, 7
      %v3973 = vsub.s32 0, %v3972
      %v3974 = vrot.slane %v3969, %v3973
      %v3978 = vunpack.c.l.b16 %v3967
      %v3979 = vunpack.c.l.b16 %v3968
      %v3980 = vpack.c.b16 %v3979, %v3978
      %v3982 = vsel %vm3425, %v3951, 0
      %v3985 = vsel %vm3425, %v3952, 0
      %v3988 = vsel %vm3425, %v3953, 0
      %v3991 = vsel %vm3425, %v3954, 0
      %v3994 = vsel %vm3425, %v3955, 0
      %v3997 = vsel %vm3425, %v3956, 0
      %v4000 = vsel %vm3425, %v3957, 0
      %v4003 = vsel %vm3425, %v3958, 0
      %v4006 = vsel %vm3425, %v3959, 0
      %v4009 = vsel %vm3425, %v3960, 0
      %v4012 = vsel %vm3425, %v3961, 0
      %v4015 = vsel %vm3425, %v3962, 0
      %v4018 = vsel %vm3425, %v3963, 0
      %v4021 = vsel %vm3425, %v3964, 0
      %v4024 = vsel %vm3425, %v3965, 0
      %v4027 = vsel %vm3425, %v3966, 0
      %v4030 = vsel %vm3474, %v3980, 0
      %4032 = vmatprep.subr.bf16.mxu0 0
      %4033 = vmatpush1.bf16.msra.mxu0 %v4030
      %4034 = vmatprep.subr.bf16.mxu0 0
      %4035 = vmatpush1.bf16.msra.mxu0 0
      %4036 = vmatprep.subr.bf16.mxu0 0
      %4037 = vmatpush1.bf16.msra.mxu0 0
      %4038 = vmatprep.subr.bf16.mxu0 0
      %4039 = vmatpush1.bf16.msra.mxu0 0
      %4040 = vmatprep.subr.bf16.mxu0 0
      %4041 = vmatpush1.bf16.msra.mxu0 0
      %4042 = vmatprep.subr.bf16.mxu0 0
      %4043 = vmatpush1.bf16.msra.mxu0 0
      %4044 = vmatprep.subr.bf16.mxu0 0
      %4045 = vmatpush1.bf16.msra.mxu0 0
      %4046 = vmatprep.subr.bf16.mxu0 0
      %4047 = vmatpush1.bf16.msra.mxu0 0
      %4048 = vmatprep.subr.bf16.mxu0 0
      %4049 = vmatpush1.bf16.msra.mxu0 0
      %4050 = vmatprep.subr.bf16.mxu0 0
      %4051 = vmatpush1.bf16.msra.mxu0 0
      %4052 = vmatprep.subr.bf16.mxu0 0
      %4053 = vmatpush1.bf16.msra.mxu0 0
      %4054 = vmatprep.subr.bf16.mxu0 0
      %4055 = vmatpush1.bf16.msra.mxu0 0
      %4056 = vmatprep.subr.bf16.mxu0 0
      %4057 = vmatpush1.bf16.msra.mxu0 0
      %4058 = vmatprep.subr.bf16.mxu0 0
      %4059 = vmatpush1.bf16.msra.mxu0 0
      %4060 = vmatprep.subr.bf16.mxu0 0
      %4061 = vmatpush1.bf16.msra.mxu0 0
      %4062 = vmatprep.subr.bf16.mxu0 0
      %4063 = vmatpush1.bf16.msra.mxu0 0
      %4064 = vmatprep.mubr.bf16.mxu0 0
      %4065 = vmatmul.mubr.bf16.gmra.mrb[0].mxu0 %v3982
      %v4066 = vpop.f32.mrb[0].mxu0
      %v4067 = vadd.f32 %v3974, %v4066
      %v4068 = vpop.f32.mrb[0].mxu0
      %v4069 = vpop.f32.mrb[0].mxu0
      %v4070 = vadd.f32 %v3974, %v4069
      %v4071 = vpop.f32.mrb[0].mxu0
      %4072 = vmatprep.mubr.bf16.mxu0 0
      %4073 = vmatmul.mubr.bf16.gmra.mrb[0].mxu0 %v3985
      %v4074 = vpop.f32.mrb[0].mxu0
      %v4075 = vadd.f32 %v3974, %v4074
      %v4076 = vpop.f32.mrb[0].mxu0
      %v4077 = vpop.f32.mrb[0].mxu0
      %v4078 = vadd.f32 %v3974, %v4077
      %v4079 = vpop.f32.mrb[0].mxu0
      %4080 = vmatprep.mubr.bf16.mxu0 0
      %4081 = vmatmul.mubr.bf16.gmra.mrb[0].mxu0 %v3988
      %v4082 = vpop.f32.mrb[0].mxu0
      %v4083 = vadd.f32 %v3974, %v4082
      %v4084 = vpop.f32.mrb[0].mxu0
      %v4085 = vpop.f32.mrb[0].mxu0
      %v4086 = vadd.f32 %v3974, %v4085
      %v4087 = vpop.f32.mrb[0].mxu0
      %4088 = vmatprep.mubr.bf16.mxu0 0
      %4089 = vmatmul.mubr.bf16.gmra.mrb[0].mxu0 %v3991
      %v4090 = vpop.f32.mrb[0].mxu0
      %v4091 = vadd.f32 %v3974, %v4090
      %v4092 = vpop.f32.mrb[0].mxu0
      %v4093 = vpop.f32.mrb[0].mxu0
      %v4094 = vadd.f32 %v3974, %v4093
      %v4095 = vpop.f32.mrb[0].mxu0
      %4096 = vmatprep.mubr.bf16.mxu0 0
      %4097 = vmatmul.mubr.bf16.gmra.mrb[0].mxu0 %v3994
      %v4098 = vpop.f32.mrb[0].mxu0
      %v4099 = vadd.f32 %v3974, %v4098
      %v4100 = vpop.f32.mrb[0].mxu0
      %v4101 = vpop.f32.mrb[0].mxu0
      %v4102 = vadd.f32 %v3974, %v4101
      %v4103 = vpop.f32.mrb[0].mxu0
      %4104 = vmatprep.mubr.bf16.mxu0 0
      %4105 = vmatmul.mubr.bf16.gmra.mrb[0].mxu0 %v3997
      %v4106 = vpop.f32.mrb[0].mxu0
      %v4107 = vadd.f32 %v3974, %v4106
      %v4108 = vpop.f32.mrb[0].mxu0
      %v4109 = vpop.f32.mrb[0].mxu0
      %v4110 = vadd.f32 %v3974, %v4109
      %v4111 = vpop.f32.mrb[0].mxu0
      %4112 = vmatprep.mubr.bf16.mxu0 0
      %4113 = vmatmul.mubr.bf16.gmra.mrb[0].mxu0 %v4000
      %v4114 = vpop.f32.mrb[0].mxu0
      %v4115 = vadd.f32 %v3974, %v4114
      %v4116 = vpop.f32.mrb[0].mxu0
      %v4117 = vpop.f32.mrb[0].mxu0
      %v4118 = vadd.f32 %v3974, %v4117
      %v4119 = vpop.f32.mrb[0].mxu0
      %4120 = vmatprep.mubr.bf16.mxu0 0
      %4121 = vmatmul.mubr.bf16.gmra.mrb[0].mxu0 %v4003
      %v4122 = vpop.f32.mrb[0].mxu0
      %v4123 = vadd.f32 %v3974, %v4122
      %v4124 = vpop.f32.mrb[0].mxu0
      %v4125 = vpop.f32.mrb[0].mxu0
      %v4126 = vadd.f32 %v3974, %v4125
      %v4127 = vpop.f32.mrb[0].mxu0
      %4128 = vmatprep.mubr.bf16.mxu0 0
      %4129 = vmatmul.mubr.bf16.gmra.mrb[0].mxu0 %v4006
      %v4130 = vpop.f32.mrb[0].mxu0
      %v4131 = vadd.f32 %v3974, %v4130
      %v4132 = vpop.f32.mrb[0].mxu0
      %v4133 = vpop.f32.mrb[0].mxu0
      %v4134 = vadd.f32 %v3974, %v4133
      %v4135 = vpop.f32.mrb[0].mxu0
      %4136 = vmatprep.mubr.bf16.mxu0 0
      %4137 = vmatmul.mubr.bf16.gmra.mrb[0].mxu0 %v4009
      %v4138 = vpop.f32.mrb[0].mxu0
      %v4139 = vadd.f32 %v3974, %v4138
      %v4140 = vpop.f32.mrb[0].mxu0
      %v4141 = vpop.f32.mrb[0].mxu0
      %v4142 = vadd.f32 %v3974, %v4141
      %v4143 = vpop.f32.mrb[0].mxu0
      %4144 = vmatprep.mubr.bf16.mxu0 0
      %4145 = vmatmul.mubr.bf16.gmra.mrb[0].mxu0 %v4012
      %v4146 = vpop.f32.mrb[0].mxu0
      %v4147 = vadd.f32 %v3974, %v4146
      %v4148 = vpop.f32.mrb[0].mxu0
      %v4149 = vpop.f32.mrb[0].mxu0
      %v4150 = vadd.f32 %v3974, %v4149
      %v4151 = vpop.f32.mrb[0].mxu0
      %4152 = vmatprep.mubr.bf16.mxu0 0
      %4153 = vmatmul.mubr.bf16.gmra.mrb[0].mxu0 %v4015
      %v4154 = vpop.f32.mrb[0].mxu0
      %v4155 = vadd.f32 %v3974, %v4154
      %v4156 = vpop.f32.mrb[0].mxu0
      %v4157 = vpop.f32.mrb[0].mxu0
      %v4158 = vadd.f32 %v3974, %v4157
      %v4159 = vpop.f32.mrb[0].mxu0
      %4160 = vmatprep.mubr.bf16.mxu0 0
      %4161 = vmatmul.mubr.bf16.gmra.mrb[0].mxu0 %v4018
      %v4162 = vpop.f32.mrb[0].mxu0
      %v4163 = vadd.f32 %v3974, %v4162
      %v4164 = vpop.f32.mrb[0].mxu0
      %v4165 = vpop.f32.mrb[0].mxu0
      %v4166 = vadd.f32 %v3974, %v4165
      %v4167 = vpop.f32.mrb[0].mxu0
      %4168 = vmatprep.mubr.bf16.mxu0 0
      %4169 = vmatmul.mubr.bf16.gmra.mrb[0].mxu0 %v4021
      %v4170 = vpop.f32.mrb[0].mxu0
      %v4171 = vadd.f32 %v3974, %v4170
      %v4172 = vpop.f32.mrb[0].mxu0
      %v4173 = vpop.f32.mrb[0].mxu0
      %v4174 = vadd.f32 %v3974, %v4173
      %v4175 = vpop.f32.mrb[0].mxu0
      %4176 = vmatprep.mubr.bf16.mxu0 0
      %4177 = vmatmul.mubr.bf16.gmra.mrb[0].mxu0 %v4024
      %v4178 = vpop.f32.mrb[0].mxu0
      %v4179 = vadd.f32 %v3974, %v4178
      %v4180 = vpop.f32.mrb[0].mxu0
      %v4181 = vpop.f32.mrb[0].mxu0
      %v4182 = vadd.f32 %v3974, %v4181
      %v4183 = vpop.f32.mrb[0].mxu0
      %4184 = vmatprep.mubr.bf16.mxu0 0
      %4185 = vmatmul.mubr.bf16.gmra.mrb[0].mxu0 %v4027
      %v4186 = vpop.f32.mrb[0].mxu0
      %v4187 = vadd.f32 %v3974, %v4186
      %v4188 = vpop.f32.mrb[0].mxu0
      %v4189 = vpop.f32.mrb[0].mxu0
      %v4190 = vadd.f32 %v3974, %v4189
      %v4191 = vpop.f32.mrb[0].mxu0
      %4192 = vdwg.mxu0
      %v4193 = vmax.f32 %v4067, 0.0
      %v4194 = vmax.f32 %v4070, 0.0
      %v4195 = vmax.f32 %v4075, 0.0
      %v4196 = vmax.f32 %v4078, 0.0
      %v4197 = vmax.f32 %v4083, 0.0
      %v4198 = vmax.f32 %v4086, 0.0
      %v4199 = vmax.f32 %v4091, 0.0
      %v4200 = vmax.f32 %v4094, 0.0
      %v4201 = vmax.f32 %v4099, 0.0
      %v4202 = vmax.f32 %v4102, 0.0
      %v4203 = vmax.f32 %v4107, 0.0
      %v4204 = vmax.f32 %v4110, 0.0
      %v4205 = vmax.f32 %v4115, 0.0
      %v4206 = vmax.f32 %v4118, 0.0
      %v4207 = vmax.f32 %v4123, 0.0
      %v4208 = vmax.f32 %v4126, 0.0
      %v4209 = vmax.f32 %v4131, 0.0
      %v4210 = vmax.f32 %v4134, 0.0
      %v4211 = vmax.f32 %v4139, 0.0
      %v4212 = vmax.f32 %v4142, 0.0
      %v4213 = vmax.f32 %v4147, 0.0
      %v4214 = vmax.f32 %v4150, 0.0
      %v4215 = vmax.f32 %v4155, 0.0
      %v4216 = vmax.f32 %v4158, 0.0
      %v4217 = vmax.f32 %v4163, 0.0
      %v4218 = vmax.f32 %v4166, 0.0
      %v4219 = vmax.f32 %v4171, 0.0
      %v4220 = vmax.f32 %v4174, 0.0
      %v4221 = vmax.f32 %v4179, 0.0
      %v4222 = vmax.f32 %v4182, 0.0
      %v4223 = vmax.f32 %v4187, 0.0
      %v4224 = vmax.f32 %v4190, 0.0
      %v4225 = vpack.c.bf16 %v4194, %v4193
      %v4226 = vpack.c.bf16 %v4196, %v4195
      %v4227 = vpack.c.bf16 %v4198, %v4197
      %v4228 = vpack.c.bf16 %v4200, %v4199
      %v4229 = vpack.c.bf16 %v4202, %v4201
      %v4230 = vpack.c.bf16 %v4204, %v4203
      %v4231 = vpack.c.bf16 %v4206, %v4205
      %v4232 = vpack.c.bf16 %v4208, %v4207
      %v4233 = vpack.c.bf16 %v4210, %v4209
      %v4234 = vpack.c.bf16 %v4212, %v4211
      %v4235 = vpack.c.bf16 %v4214, %v4213
      %v4236 = vpack.c.bf16 %v4216, %v4215
      %v4237 = vpack.c.bf16 %v4218, %v4217
      %v4238 = vpack.c.bf16 %v4220, %v4219
      %v4239 = vpack.c.bf16 %v4222, %v4221
      %v4240 = vpack.c.bf16 %v4224, %v4223
      %v4241 = vld [vmem:[%s13] sm:$0xf]
      %v4242 = vld [vmem:[%s13 + $0x4] sm:$0xf]
      %v4243 = vld [vmem:[%s13 + $0x8] sm:$0xf]
      %v4244 = vld [vmem:[%s13 + $0xc] sm:$0xf]
      %v4245 = vld [vmem:[%s13 + $0x10] sm:$0xf]
      %v4246 = vld [vmem:[%s13 + $0x14] sm:$0xf]
      %v4247 = vld [vmem:[%s13 + $0x18] sm:$0xf]
      %v4248 = vld [vmem:[%s13 + $0x1c] sm:$0xf]
      %v4249 = vld [vmem:[%s14] sm:$0x1]
      %v4251 = vlaneseq
      %v4252 = vshrl.u32 %v4251, 7
      %v4253 = vsub.s32 0, %v4252
      %v4254 = vrot.slane %v4249, %v4253
      %v4264 = vunpack.c.l.b16 %v4241
      %v4265 = vunpack.c.l.b16 %v4242
      %v4266 = vunpack.c.l.b16 %v4243
      %v4267 = vunpack.c.l.b16 %v4244
      %v4268 = vunpack.c.l.b16 %v4245
      %v4269 = vunpack.c.l.b16 %v4246
      %v4270 = vunpack.c.l.b16 %v4247
      %v4271 = vunpack.c.l.b16 %v4248
      %v4272 = vpack.c.b16 %v4265, %v4264
      %v4273 = vpack.c.b16 %v4267, %v4266
      %v4274 = vpack.c.b16 %v4269, %v4268
      %v4275 = vpack.c.b16 %v4271, %v4270
      %v4281 = vsel %vm3025, %v4225, 0
      %v4284 = vsel %vm3025, %v4226, 0
      %v4287 = vsel %vm3025, %v4227, 0
      %v4290 = vsel %vm3025, %v4228, 0
      %v4293 = vsel %vm3025, %v4229, 0
      %v4296 = vsel %vm3025, %v4230, 0
      %v4299 = vsel %vm3025, %v4231, 0
      %v4302 = vsel %vm3025, %v4232, 0
      %v4305 = vsel %vm3025, %v4233, 0
      %v4308 = vsel %vm3025, %v4234, 0
      %v4311 = vsel %vm3025, %v4235, 0
      %v4314 = vsel %vm3025, %v4236, 0
      %v4317 = vsel %vm3025, %v4237, 0
      %v4320 = vsel %vm3025, %v4238, 0
      %v4323 = vsel %vm3025, %v4239, 0
      %v4326 = vsel %vm3025, %v4240, 0
      %4328 = vmatprep.subr.bf16.mxu0 0
      %4329 = vmatpush1.bf16.msra.mxu0 %v4272
      %4330 = vmatprep.subr.bf16.mxu0 0
      %4331 = vmatpush1.bf16.msra.mxu0 %v4273
      %4332 = vmatprep.subr.bf16.mxu0 0
      %4333 = vmatpush1.bf16.msra.mxu0 %v4274
      %4334 = vmatprep.subr.bf16.mxu0 0
      %4335 = vmatpush1.bf16.msra.mxu0 %v4275
      %4336 = vmatprep.subr.bf16.mxu0 0
      %4337 = vmatpush1.bf16.msra.mxu0 0
      %4338 = vmatprep.subr.bf16.mxu0 0
      %4339 = vmatpush1.bf16.msra.mxu0 0
      %4340 = vmatprep.subr.bf16.mxu0 0
      %4341 = vmatpush1.bf16.msra.mxu0 0
      %4342 = vmatprep.subr.bf16.mxu0 0
      %4343 = vmatpush1.bf16.msra.mxu0 0
      %4344 = vmatprep.subr.bf16.mxu0 0
      %4345 = vmatpush1.bf16.msra.mxu0 0
      %4346 = vmatprep.subr.bf16.mxu0 0
      %4347 = vmatpush1.bf16.msra.mxu0 0
      %4348 = vmatprep.subr.bf16.mxu0 0
      %4349 = vmatpush1.bf16.msra.mxu0 0
      %4350 = vmatprep.subr.bf16.mxu0 0
      %4351 = vmatpush1.bf16.msra.mxu0 0
      %4352 = vmatprep.subr.bf16.mxu0 0
      %4353 = vmatpush1.bf16.msra.mxu0 0
      %4354 = vmatprep.subr.bf16.mxu0 0
      %4355 = vmatpush1.bf16.msra.mxu0 0
      %4356 = vmatprep.subr.bf16.mxu0 0
      %4357 = vmatpush1.bf16.msra.mxu0 0
      %4358 = vmatprep.subr.bf16.mxu0 0
      %4359 = vmatpush1.bf16.msra.mxu0 0
      %4360 = vmatprep.mubr.bf16.mxu0 0
      %4361 = vmatmul.mubr.bf16.gmra.mrb[0].mxu0 %v4281
      %v4362 = vpop.f32.mrb[0].mxu0
      %v4363 = vadd.f32 %v4254, %v4362
      %v4364 = vpop.f32.mrb[0].mxu0
      %v4365 = vpop.f32.mrb[0].mxu0
      %v4366 = vadd.f32 %v4254, %v4365
      %v4367 = vpop.f32.mrb[0].mxu0
      %4368 = vmatprep.mubr.bf16.mxu0 0
      %4369 = vmatmul.mubr.bf16.gmra.mrb[0].mxu0 %v4284
      %v4370 = vpop.f32.mrb[0].mxu0
      %v4371 = vadd.f32 %v4254, %v4370
      %v4372 = vpop.f32.mrb[0].mxu0
      %v4373 = vpop.f32.mrb[0].mxu0
      %v4374 = vadd.f32 %v4254, %v4373
      %v4375 = vpop.f32.mrb[0].mxu0
      %4376 = vmatprep.mubr.bf16.mxu0 0
      %4377 = vmatmul.mubr.bf16.gmra.mrb[0].mxu0 %v4287
      %v4378 = vpop.f32.mrb[0].mxu0
      %v4379 = vadd.f32 %v4254, %v4378
      %v4380 = vpop.f32.mrb[0].mxu0
      %v4381 = vpop.f32.mrb[0].mxu0
      %v4382 = vadd.f32 %v4254, %v4381
      %v4383 = vpop.f32.mrb[0].mxu0
      %4384 = vmatprep.mubr.bf16.mxu0 0
      %4385 = vmatmul.mubr.bf16.gmra.mrb[0].mxu0 %v4290
      %v4386 = vpop.f32.mrb[0].mxu0
      %v4387 = vadd.f32 %v4254, %v4386
      %v4388 = vpop.f32.mrb[0].mxu0
      %v4389 = vpop.f32.mrb[0].mxu0
      %v4390 = vadd.f32 %v4254, %v4389
      %v4391 = vpop.f32.mrb[0].mxu0
      %4392 = vmatprep.mubr.bf16.mxu0 0
      %4393 = vmatmul.mubr.bf16.gmra.mrb[0].mxu0 %v4293
      %v4394 = vpop.f32.mrb[0].mxu0
      %v4395 = vadd.f32 %v4254, %v4394
      %v4396 = vpop.f32.mrb[0].mxu0
      %v4397 = vpop.f32.mrb[0].mxu0
      %v4398 = vadd.f32 %v4254, %v4397
      %v4399 = vpop.f32.mrb[0].mxu0
      %4400 = vmatprep.mubr.bf16.mxu0 0
      %4401 = vmatmul.mubr.bf16.gmra.mrb[0].mxu0 %v4296
      %v4402 = vpop.f32.mrb[0].mxu0
      %v4403 = vadd.f32 %v4254, %v4402
      %v4404 = vpop.f32.mrb[0].mxu0
      %v4405 = vpop.f32.mrb[0].mxu0
      %v4406 = vadd.f32 %v4254, %v4405
      %v4407 = vpop.f32.mrb[0].mxu0
      %4408 = vmatprep.mubr.bf16.mxu0 0
      %4409 = vmatmul.mubr.bf16.gmra.mrb[0].mxu0 %v4299
      %v4410 = vpop.f32.mrb[0].mxu0
      %v4411 = vadd.f32 %v4254, %v4410
      %v4412 = vpop.f32.mrb[0].mxu0
      %v4413 = vpop.f32.mrb[0].mxu0
      %v4414 = vadd.f32 %v4254, %v4413
      %v4415 = vpop.f32.mrb[0].mxu0
      %4416 = vmatprep.mubr.bf16.mxu0 0
      %4417 = vmatmul.mubr.bf16.gmra.mrb[0].mxu0 %v4302
      %v4418 = vpop.f32.mrb[0].mxu0
      %v4419 = vadd.f32 %v4254, %v4418
      %v4420 = vpop.f32.mrb[0].mxu0
      %v4421 = vpop.f32.mrb[0].mxu0
      %v4422 = vadd.f32 %v4254, %v4421
      %v4423 = vpop.f32.mrb[0].mxu0
      %4424 = vmatprep.mubr.bf16.mxu0 0
      %4425 = vmatmul.mubr.bf16.gmra.mrb[0].mxu0 %v4305
      %v4426 = vpop.f32.mrb[0].mxu0
      %v4427 = vadd.f32 %v4254, %v4426
      %v4428 = vpop.f32.mrb[0].mxu0
      %v4429 = vpop.f32.mrb[0].mxu0
      %v4430 = vadd.f32 %v4254, %v4429
      %v4431 = vpop.f32.mrb[0].mxu0
      %4432 = vmatprep.mubr.bf16.mxu0 0
      %4433 = vmatmul.mubr.bf16.gmra.mrb[0].mxu0 %v4308
      %v4434 = vpop.f32.mrb[0].mxu0
      %v4435 = vadd.f32 %v4254, %v4434
      %v4436 = vpop.f32.mrb[0].mxu0
      %v4437 = vpop.f32.mrb[0].mxu0
      %v4438 = vadd.f32 %v4254, %v4437
      %v4439 = vpop.f32.mrb[0].mxu0
      %4440 = vmatprep.mubr.bf16.mxu0 0
      %4441 = vmatmul.mubr.bf16.gmra.mrb[0].mxu0 %v4311
      %v4442 = vpop.f32.mrb[0].mxu0
      %v4443 = vadd.f32 %v4254, %v4442
      %v4444 = vpop.f32.mrb[0].mxu0
      %v4445 = vpop.f32.mrb[0].mxu0
      %v4446 = vadd.f32 %v4254, %v4445
      %v4447 = vpop.f32.mrb[0].mxu0
      %4448 = vmatprep.mubr.bf16.mxu0 0
      %4449 = vmatmul.mubr.bf16.gmra.mrb[0].mxu0 %v4314
      %v4450 = vpop.f32.mrb[0].mxu0
      %v4451 = vadd.f32 %v4254, %v4450
      %v4452 = vpop.f32.mrb[0].mxu0
      %v4453 = vpop.f32.mrb[0].mxu0
      %v4454 = vadd.f32 %v4254, %v4453
      %v4455 = vpop.f32.mrb[0].mxu0
      %4456 = vmatprep.mubr.bf16.mxu0 0
      %4457 = vmatmul.mubr.bf16.gmra.mrb[0].mxu0 %v4317
      %v4458 = vpop.f32.mrb[0].mxu0
      %v4459 = vadd.f32 %v4254, %v4458
      %v4460 = vpop.f32.mrb[0].mxu0
      %v4461 = vpop.f32.mrb[0].mxu0
      %v4462 = vadd.f32 %v4254, %v4461
      %v4463 = vpop.f32.mrb[0].mxu0
      %4464 = vmatprep.mubr.bf16.mxu0 0
      %4465 = vmatmul.mubr.bf16.gmra.mrb[0].mxu0 %v4320
      %v4466 = vpop.f32.mrb[0].mxu0
      %v4467 = vadd.f32 %v4254, %v4466
      %v4468 = vpop.f32.mrb[0].mxu0
      %v4469 = vpop.f32.mrb[0].mxu0
      %v4470 = vadd.f32 %v4254, %v4469
      %v4471 = vpop.f32.mrb[0].mxu0
      %4472 = vmatprep.mubr.bf16.mxu0 0
      %4473 = vmatmul.mubr.bf16.gmra.mrb[0].mxu0 %v4323
      %v4474 = vpop.f32.mrb[0].mxu0
      %v4475 = vadd.f32 %v4254, %v4474
      %v4476 = vpop.f32.mrb[0].mxu0
      %v4477 = vpop.f32.mrb[0].mxu0
      %v4478 = vadd.f32 %v4254, %v4477
      %v4479 = vpop.f32.mrb[0].mxu0
      %4480 = vmatprep.mubr.bf16.mxu0 0
      %4481 = vmatmul.mubr.bf16.gmra.mrb[0].mxu0 %v4326
      %v4482 = vpop.f32.mrb[0].mxu0
      %v4483 = vadd.f32 %v4254, %v4482
      %v4484 = vpop.f32.mrb[0].mxu0
      %v4485 = vpop.f32.mrb[0].mxu0
      %v4486 = vadd.f32 %v4254, %v4485
      %v4487 = vpop.f32.mrb[0].mxu0
      %4488 = vdwg.mxu0
      %v4489 = vmax.f32 %v4363, 0.0
      %v4490 = vmax.f32 %v4366, 0.0
      %v4491 = vmax.f32 %v4371, 0.0
      %v4492 = vmax.f32 %v4374, 0.0
      %v4493 = vmax.f32 %v4379, 0.0
      %v4494 = vmax.f32 %v4382, 0.0
      %v4495 = vmax.f32 %v4387, 0.0
      %v4496 = vmax.f32 %v4390, 0.0
      %v4497 = vmax.f32 %v4395, 0.0
      %v4498 = vmax.f32 %v4398, 0.0
      %v4499 = vmax.f32 %v4403, 0.0
      %v4500 = vmax.f32 %v4406, 0.0
      %v4501 = vmax.f32 %v4411, 0.0
      %v4502 = vmax.f32 %v4414, 0.0
      %v4503 = vmax.f32 %v4419, 0.0
      %v4504 = vmax.f32 %v4422, 0.0
      %v4505 = vmax.f32 %v4427, 0.0
      %v4506 = vmax.f32 %v4430, 0.0
      %v4507 = vmax.f32 %v4435, 0.0
      %v4508 = vmax.f32 %v4438, 0.0
      %v4509 = vmax.f32 %v4443, 0.0
      %v4510 = vmax.f32 %v4446, 0.0
      %v4511 = vmax.f32 %v4451, 0.0
      %v4512 = vmax.f32 %v4454, 0.0
      %v4513 = vmax.f32 %v4459, 0.0
      %v4514 = vmax.f32 %v4462, 0.0
      %v4515 = vmax.f32 %v4467, 0.0
      %v4516 = vmax.f32 %v4470, 0.0
      %v4517 = vmax.f32 %v4475, 0.0
      %v4518 = vmax.f32 %v4478, 0.0
      %v4519 = vmax.f32 %v4483, 0.0
      %v4520 = vmax.f32 %v4486, 0.0
      %v4521 = vpack.c.bf16 %v4490, %v4489
      %v4522 = vpack.c.bf16 %v4492, %v4491
      %v4523 = vpack.c.bf16 %v4494, %v4493
      %v4524 = vpack.c.bf16 %v4496, %v4495
      %v4525 = vpack.c.bf16 %v4498, %v4497
      %v4526 = vpack.c.bf16 %v4500, %v4499
      %v4527 = vpack.c.bf16 %v4502, %v4501
      %v4528 = vpack.c.bf16 %v4504, %v4503
      %v4529 = vpack.c.bf16 %v4506, %v4505
      %v4530 = vpack.c.bf16 %v4508, %v4507
      %v4531 = vpack.c.bf16 %v4510, %v4509
      %v4532 = vpack.c.bf16 %v4512, %v4511
      %v4533 = vpack.c.bf16 %v4514, %v4513
      %v4534 = vpack.c.bf16 %v4516, %v4515
      %v4535 = vpack.c.bf16 %v4518, %v4517
      %v4536 = vpack.c.bf16 %v4520, %v4519
      %v4537 = vld [vmem:[%s15] sm:$0xff]
      %v4538 = vld [vmem:[%s15 + $0x8] sm:$0xff]
      %v4539 = vld [vmem:[%s15 + $0x10] sm:$0xff]
      %v4540 = vld [vmem:[%s15 + $0x18] sm:$0xf]
      %v4541 = vld [vmem:[%s15 + $0x1c] sm:$0xff]
      %v4542 = vld [vmem:[%s15 + $0x24] sm:$0xff]
      %v4543 = vld [vmem:[%s15 + $0x2c] sm:$0xff]
      %v4544 = vld [vmem:[%s15 + $0x34] sm:$0xf]
      %v4545 = vld [vmem:[%s15 + $0x38] sm:$0xff]
      %v4546 = vld [vmem:[%s15 + $0x40] sm:$0xff]
      %v4547 = vld [vmem:[%s15 + $0x48] sm:$0xff]
      %v4548 = vld [vmem:[%s15 + $0x50] sm:$0xf]
      %v4549 = vld [vmem:[%s15 + $0x54] sm:$0xff]
      %v4550 = vld [vmem:[%s15 + $0x5c] sm:$0xff]
      %v4551 = vld [vmem:[%s15 + $0x64] sm:$0xff]
      %v4552 = vld [vmem:[%s15 + $0x6c] sm:$0xf]
      %v4553 = vld [vmem:[%s15 + $0x70] sm:$0xff]
      %v4554 = vld [vmem:[%s15 + $0x78] sm:$0xff]
      %v4555 = vld [vmem:[%s15 + $0x80] sm:$0xff]
      %v4556 = vld [vmem:[%s15 + $0x88] sm:$0xf]
      %v4557 = vld [vmem:[%s15 + $0x8c] sm:$0xff]
      %v4558 = vld [vmem:[%s15 + $0x94] sm:$0xff]
      %v4559 = vld [vmem:[%s15 + $0x9c] sm:$0xff]
      %v4560 = vld [vmem:[%s15 + $0xa4] sm:$0xf]
      %v4561 = vld [vmem:[%s15 + $0xa8] sm:$0xff]
      %v4562 = vld [vmem:[%s15 + $0xb0] sm:$0xff]
      %v4563 = vld [vmem:[%s15 + $0xb8] sm:$0xff]
      %v4564 = vld [vmem:[%s15 + $0xc0] sm:$0xf]
      %v4565 = vld [vmem:[%s15 + $0xc4] sm:$0xff]
      %v4566 = vld [vmem:[%s15 + $0xcc] sm:$0xff]
      %v4567 = vld [vmem:[%s15 + $0xd4] sm:$0xff]
      %v4568 = vld [vmem:[%s15 + $0xdc] sm:$0xf]
      %v4569 = vld [vmem:[%s15 + $0xe0] sm:$0xff]
      %v4570 = vld [vmem:[%s15 + $0xe8] sm:$0xff]
      %v4571 = vld [vmem:[%s15 + $0xf0] sm:$0xff]
      %v4572 = vld [vmem:[%s15 + $0xf8] sm:$0xf]
      %v4573 = vld [vmem:[%s15 + $0xfc] sm:$0xff]
      %v4574 = vld [vmem:[%s15 + $0x104] sm:$0xff]
      %v4575 = vld [vmem:[%s15 + $0x10c] sm:$0xff]
      %v4576 = vld [vmem:[%s15 + $0x114] sm:$0xf]
      %v4577 = vld [vmem:[%s15 + $0x118] sm:$0xff]
      %v4578 = vld [vmem:[%s15 + $0x120] sm:$0xff]
      %v4579 = vld [vmem:[%s15 + $0x128] sm:$0xff]
      %v4580 = vld [vmem:[%s15 + $0x130] sm:$0xf]
      %v4581 = vld [vmem:[%s15 + $0x134] sm:$0xff]
      %v4582 = vld [vmem:[%s15 + $0x13c] sm:$0xff]
      %v4583 = vld [vmem:[%s15 + $0x144] sm:$0xff]
      %v4584 = vld [vmem:[%s15 + $0x14c] sm:$0xf]
      %v4585 = vld [vmem:[%s15 + $0x150] sm:$0xff]
      %v4586 = vld [vmem:[%s15 + $0x158] sm:$0xff]
      %v4587 = vld [vmem:[%s15 + $0x160] sm:$0xff]
      %v4588 = vld [vmem:[%s15 + $0x168] sm:$0xf]
      %v4589 = vld [vmem:[%s15 + $0x16c] sm:$0xff]
      %v4590 = vld [vmem:[%s15 + $0x174] sm:$0xff]
      %v4591 = vld [vmem:[%s15 + $0x17c] sm:$0xff]
      %v4592 = vld [vmem:[%s15 + $0x184] sm:$0xf]
      %v4593 = vld [vmem:[%s15 + $0x188] sm:$0xff]
      %v4594 = vld [vmem:[%s15 + $0x190] sm:$0xff]
      %v4595 = vld [vmem:[%s15 + $0x198] sm:$0xff]
      %v4596 = vld [vmem:[%s15 + $0x1a0] sm:$0xf]
      %v4597 = vld [vmem:[%s15 + $0x1a4] sm:$0xff]
      %v4598 = vld [vmem:[%s15 + $0x1ac] sm:$0xff]
      %v4599 = vld [vmem:[%s15 + $0x1b4] sm:$0xff]
      %v4600 = vld [vmem:[%s15 + $0x1bc] sm:$0xf]
      %v4601 = vld [vmem:[%s16] sm:$0xff]
      %v4603 = vlaneseq
      %v4604 = vshrl.u32 %v4603, 7
      %v4605 = vsub.s32 0, %v4604
      %v4606 = vrot.slane %v4601, %v4605
      %v4607 = vlaneseq
      %v4608 = vshrl.u32 %v4607, 7
      %v4609 = vsub.s32 1, %v4608
      %v4610 = vrot.slane %v4601, %v4609
      %v4611 = vlaneseq
      %v4612 = vshrl.u32 %v4611, 7
      %v4613 = vsub.s32 2, %v4612
      %v4614 = vrot.slane %v4601, %v4613
      %v4615 = vlaneseq
      %v4616 = vshrl.u32 %v4615, 7
      %v4617 = vsub.s32 3, %v4616
      %v4618 = vrot.slane %v4601, %v4617
      %v4619 = vlaneseq
      %v4620 = vshrl.u32 %v4619, 7
      %v4621 = vsub.s32 4, %v4620
      %v4622 = vrot.slane %v4601, %v4621
      %v4623 = vlaneseq
      %v4624 = vshrl.u32 %v4623, 7
      %v4625 = vsub.s32 5, %v4624
      %v4626 = vrot.slane %v4601, %v4625
      %v4627 = vlaneseq
      %v4628 = vshrl.u32 %v4627, 7
      %v4629 = vsub.s32 6, %v4628
      %v4630 = vrot.slane %v4601, %v4629
      %v4702 = vunpack.c.l.b16 %v4537
      %v4703 = vunpack.c.h.b16 %v4537
      %v4704 = vunpack.c.l.b16 %v4538
      %v4705 = vunpack.c.h.b16 %v4538
      %v4706 = vunpack.c.l.b16 %v4539
      %v4707 = vunpack.c.h.b16 %v4539
      %v4708 = vunpack.c.l.b16 %v4540
      %v4709 = vunpack.c.l.b16 %v4541
      %v4710 = vunpack.c.h.b16 %v4541
      %v4711 = vunpack.c.l.b16 %v4542
      %v4712 = vunpack.c.h.b16 %v4542
      %v4713 = vunpack.c.l.b16 %v4543
      %v4714 = vunpack.c.h.b16 %v4543
      %v4715 = vunpack.c.l.b16 %v4544
      %v4716 = vunpack.c.l.b16 %v4545
      %v4717 = vunpack.c.h.b16 %v4545
      %v4718 = vunpack.c.l.b16 %v4546
      %v4719 = vunpack.c.h.b16 %v4546
      %v4720 = vunpack.c.l.b16 %v4547
      %v4721 = vunpack.c.h.b16 %v4547
      %v4722 = vunpack.c.l.b16 %v4548
      %v4723 = vunpack.c.l.b16 %v4549
      %v4724 = vunpack.c.h.b16 %v4549
      %v4725 = vunpack.c.l.b16 %v4550
      %v4726 = vunpack.c.h.b16 %v4550
      %v4727 = vunpack.c.l.b16 %v4551
      %v4728 = vunpack.c.h.b16 %v4551
      %v4729 = vunpack.c.l.b16 %v4552
      %v4730 = vunpack.c.l.b16 %v4553
      %v4731 = vunpack.c.h.b16 %v4553
      %v4732 = vunpack.c.l.b16 %v4554
      %v4733 = vunpack.c.h.b16 %v4554
      %v4734 = vunpack.c.l.b16 %v4555
      %v4735 = vunpack.c.h.b16 %v4555
      %v4736 = vunpack.c.l.b16 %v4556
      %v4737 = vunpack.c.l.b16 %v4557
      %v4738 = vunpack.c.h.b16 %v4557
      %v4739 = vunpack.c.l.b16 %v4558
      %v4740 = vunpack.c.h.b16 %v4558
      %v4741 = vunpack.c.l.b16 %v4559
      %v4742 = vunpack.c.h.b16 %v4559
      %v4743 = vunpack.c.l.b16 %v4560
      %v4744 = vunpack.c.l.b16 %v4561
      %v4745 = vunpack.c.h.b16 %v4561
      %v4746 = vunpack.c.l.b16 %v4562
      %v4747 = vunpack.c.h.b16 %v4562
      %v4748 = vunpack.c.l.b16 %v4563
      %v4749 = vunpack.c.h.b16 %v4563
      %v4750 = vunpack.c.l.b16 %v4564
      %v4751 = vunpack.c.l.b16 %v4565
      %v4752 = vunpack.c.h.b16 %v4565
      %v4753 = vunpack.c.l.b16 %v4566
      %v4754 = vunpack.c.h.b16 %v4566
      %v4755 = vunpack.c.l.b16 %v4567
      %v4756 = vunpack.c.h.b16 %v4567
      %v4757 = vunpack.c.l.b16 %v4568
      %v4758 = vunpack.c.l.b16 %v4569
      %v4759 = vunpack.c.h.b16 %v4569
      %v4760 = vunpack.c.l.b16 %v4570
      %v4761 = vunpack.c.h.b16 %v4570
      %v4762 = vunpack.c.l.b16 %v4571
      %v4763 = vunpack.c.h.b16 %v4571
      %v4764 = vunpack.c.l.b16 %v4572
      %v4765 = vunpack.c.l.b16 %v4573
      %v4766 = vunpack.c.h.b16 %v4573
      %v4767 = vunpack.c.l.b16 %v4574
      %v4768 = vunpack.c.h.b16 %v4574
      %v4769 = vunpack.c.l.b16 %v4575
      %v4770 = vunpack.c.h.b16 %v4575
      %v4771 = vunpack.c.l.b16 %v4576
      %v4772 = vunpack.c.l.b16 %v4577
      %v4773 = vunpack.c.h.b16 %v4577
      %v4774 = vunpack.c.l.b16 %v4578
      %v4775 = vunpack.c.h.b16 %v4578
      %v4776 = vunpack.c.l.b16 %v4579
      %v4777 = vunpack.c.h.b16 %v4579
      %v4778 = vunpack.c.l.b16 %v4580
      %v4779 = vunpack.c.l.b16 %v4581
      %v4780 = vunpack.c.h.b16 %v4581
      %v4781 = vunpack.c.l.b16 %v4582
      %v4782 = vunpack.c.h.b16 %v4582
      %v4783 = vunpack.c.l.b16 %v4583
      %v4784 = vunpack.c.h.b16 %v4583
      %v4785 = vunpack.c.l.b16 %v4584
      %v4786 = vunpack.c.l.b16 %v4585
      %v4787 = vunpack.c.h.b16 %v4585
      %v4788 = vunpack.c.l.b16 %v4586
      %v4789 = vunpack.c.h.b16 %v4586
      %v4790 = vunpack.c.l.b16 %v4587
      %v4791 = vunpack.c.h.b16 %v4587
      %v4792 = vunpack.c.l.b16 %v4588
      %v4793 = vunpack.c.l.b16 %v4589
      %v4794 = vunpack.c.h.b16 %v4589
      %v4795 = vunpack.c.l.b16 %v4590
      %v4796 = vunpack.c.h.b16 %v4590
      %v4797 = vunpack.c.l.b16 %v4591
      %v4798 = vunpack.c.h.b16 %v4591
      %v4799 = vunpack.c.l.b16 %v4592
      %v4800 = vunpack.c.l.b16 %v4593
      %v4801 = vunpack.c.h.b16 %v4593
      %v4802 = vunpack.c.l.b16 %v4594
      %v4803 = vunpack.c.h.b16 %v4594
      %v4804 = vunpack.c.l.b16 %v4595
      %v4805 = vunpack.c.h.b16 %v4595
      %v4806 = vunpack.c.l.b16 %v4596
      %v4807 = vunpack.c.l.b16 %v4597
      %v4808 = vunpack.c.h.b16 %v4597
      %v4809 = vunpack.c.l.b16 %v4598
      %v4810 = vunpack.c.h.b16 %v4598
      %v4811 = vunpack.c.l.b16 %v4599
      %v4812 = vunpack.c.h.b16 %v4599
      %v4813 = vunpack.c.l.b16 %v4600
      %v4814 = vpack.c.b16 %v4709, %v4702
      %v4815 = vpack.c.b16 %v4710, %v4703
      %v4816 = vpack.c.b16 %v4711, %v4704
      %v4817 = vpack.c.b16 %v4712, %v4705
      %v4818 = vpack.c.b16 %v4713, %v4706
      %v4819 = vpack.c.b16 %v4714, %v4707
      %v4820 = vpack.c.b16 %v4715, %v4708
      %v4821 = vpack.c.b16 %v4723, %v4716
      %v4822 = vpack.c.b16 %v4724, %v4717
      %v4823 = vpack.c.b16 %v4725, %v4718
      %v4824 = vpack.c.b16 %v4726, %v4719
      %v4825 = vpack.c.b16 %v4727, %v4720
      %v4826 = vpack.c.b16 %v4728, %v4721
      %v4827 = vpack.c.b16 %v4729, %v4722
      %v4828 = vpack.c.b16 %v4737, %v4730
      %v4829 = vpack.c.b16 %v4738, %v4731
      %v4830 = vpack.c.b16 %v4739, %v4732
      %v4831 = vpack.c.b16 %v4740, %v4733
      %v4832 = vpack.c.b16 %v4741, %v4734
      %v4833 = vpack.c.b16 %v4742, %v4735
      %v4834 = vpack.c.b16 %v4743, %v4736
      %v4835 = vpack.c.b16 %v4751, %v4744
      %v4836 = vpack.c.b16 %v4752, %v4745
      %v4837 = vpack.c.b16 %v4753, %v4746
      %v4838 = vpack.c.b16 %v4754, %v4747
      %v4839 = vpack.c.b16 %v4755, %v4748
      %v4840 = vpack.c.b16 %v4756, %v4749
      %v4841 = vpack.c.b16 %v4757, %v4750
      %v4842 = vpack.c.b16 %v4765, %v4758
      %v4843 = vpack.c.b16 %v4766, %v4759
      %v4844 = vpack.c.b16 %v4767, %v4760
      %v4845 = vpack.c.b16 %v4768, %v4761
      %v4846 = vpack.c.b16 %v4769, %v4762
      %v4847 = vpack.c.b16 %v4770, %v4763
      %v4848 = vpack.c.b16 %v4771, %v4764
      %v4849 = vpack.c.b16 %v4779, %v4772
      %v4850 = vpack.c.b16 %v4780, %v4773
      %v4851 = vpack.c.b16 %v4781, %v4774
      %v4852 = vpack.c.b16 %v4782, %v4775
      %v4853 = vpack.c.b16 %v4783, %v4776
      %v4854 = vpack.c.b16 %v4784, %v4777
      %v4855 = vpack.c.b16 %v4785, %v4778
      %v4856 = vpack.c.b16 %v4793, %v4786
      %v4857 = vpack.c.b16 %v4794, %v4787
      %v4858 = vpack.c.b16 %v4795, %v4788
      %v4859 = vpack.c.b16 %v4796, %v4789
      %v4860 = vpack.c.b16 %v4797, %v4790
      %v4861 = vpack.c.b16 %v4798, %v4791
      %v4862 = vpack.c.b16 %v4799, %v4792
      %v4863 = vpack.c.b16 %v4807, %v4800
      %v4864 = vpack.c.b16 %v4808, %v4801
      %v4865 = vpack.c.b16 %v4809, %v4802
      %v4866 = vpack.c.b16 %v4810, %v4803
      %v4867 = vpack.c.b16 %v4811, %v4804
      %v4868 = vpack.c.b16 %v4812, %v4805
      %v4869 = vpack.c.b16 %v4813, %v4806
      %4926 = vmatprep.subr.bf16.mxu0 %v4815
      %4927 = vmatpush1.bf16.msra.mxu0 %v4814
      %4928 = vmatprep.subr.bf16.mxu0 %v4822
      %4929 = vmatpush1.bf16.msra.mxu0 %v4821
      %4930 = vmatprep.subr.bf16.mxu0 %v4829
      %4931 = vmatpush1.bf16.msra.mxu0 %v4828
      %4932 = vmatprep.subr.bf16.mxu0 %v4836
      %4933 = vmatpush1.bf16.msra.mxu0 %v4835
      %4934 = vmatprep.subr.bf16.mxu0 %v4843
      %4935 = vmatpush1.bf16.msra.mxu0 %v4842
      %4936 = vmatprep.subr.bf16.mxu0 %v4850
      %4937 = vmatpush1.bf16.msra.mxu0 %v4849
      %4938 = vmatprep.subr.bf16.mxu0 %v4857
      %4939 = vmatpush1.bf16.msra.mxu0 %v4856
      %4940 = vmatprep.subr.bf16.mxu0 %v4864
      %4941 = vmatpush1.bf16.msra.mxu0 %v4863
      %4942 = vmatprep.subr.bf16.mxu0 0
      %4943 = vmatpush1.bf16.msra.mxu0 0
      %4944 = vmatprep.subr.bf16.mxu0 0
      %4945 = vmatpush1.bf16.msra.mxu0 0
      %4946 = vmatprep.subr.bf16.mxu0 0
      %4947 = vmatpush1.bf16.msra.mxu0 0
      %4948 = vmatprep.subr.bf16.mxu0 0
      %4949 = vmatpush1.bf16.msra.mxu0 0
      %4950 = vmatprep.subr.bf16.mxu0 0
      %4951 = vmatpush1.bf16.msra.mxu0 0
      %4952 = vmatprep.subr.bf16.mxu0 0
      %4953 = vmatpush1.bf16.msra.mxu0 0
      %4954 = vmatprep.subr.bf16.mxu0 0
      %4955 = vmatpush1.bf16.msra.mxu0 0
      %4956 = vmatprep.subr.bf16.mxu0 0
      %4957 = vmatpush1.bf16.msra.mxu0 0
      %4958 = vmatprep.mubr.bf16.mxu0 0
      %4959 = vmatmul.mubr.bf16.gmra.mrb[0].mxu0 %v4521
      %v4960 = vpop.f32.mrb[0].mxu0
      %v4961 = vadd.f32 %v4606, %v4960
      %v4962 = vpop.f32.mrb[0].mxu0
      %v4963 = vadd.f32 %v4610, %v4962
      %v4964 = vpop.f32.mrb[0].mxu0
      %v4965 = vadd.f32 %v4606, %v4964
      %v4966 = vpop.f32.mrb[0].mxu0
      %v4967 = vadd.f32 %v4610, %v4966
      %4968 = vmatprep.mubr.bf16.mxu0 0
      %4969 = vmatmul.mubr.bf16.gmra.mrb[0].mxu0 %v4522
      %v4970 = vpop.f32.mrb[0].mxu0
      %v4971 = vadd.f32 %v4606, %v4970
      %v4972 = vpop.f32.mrb[0].mxu0
      %v4973 = vadd.f32 %v4610, %v4972
      %v4974 = vpop.f32.mrb[0].mxu0
      %v4975 = vadd.f32 %v4606, %v4974
      %v4976 = vpop.f32.mrb[0].mxu0
      %v4977 = vadd.f32 %v4610, %v4976
      %4978 = vmatprep.mubr.bf16.mxu0 0
      %4979 = vmatmul.mubr.bf16.gmra.mrb[0].mxu0 %v4523
      %v4980 = vpop.f32.mrb[0].mxu0
      %v4981 = vadd.f32 %v4606, %v4980
      %v4982 = vpop.f32.mrb[0].mxu0
      %v4983 = vadd.f32 %v4610, %v4982
      %v4984 = vpop.f32.mrb[0].mxu0
      %v4985 = vadd.f32 %v4606, %v4984
      %v4986 = vpop.f32.mrb[0].mxu0
      %v4987 = vadd.f32 %v4610, %v4986
      %4988 = vmatprep.mubr.bf16.mxu0 0
      %4989 = vmatmul.mubr.bf16.gmra.mrb[0].mxu0 %v4524
      %v4990 = vpop.f32.mrb[0].mxu0
      %v4991 = vadd.f32 %v4606, %v4990
      %v4992 = vpop.f32.mrb[0].mxu0
      %v4993 = vadd.f32 %v4610, %v4992
      %v4994 = vpop.f32.mrb[0].mxu0
      %v4995 = vadd.f32 %v4606, %v4994
      %v4996 = vpop.f32.mrb[0].mxu0
      %v4997 = vadd.f32 %v4610, %v4996
      %4998 = vmatprep.mubr.bf16.mxu0 0
      %4999 = vmatmul.mubr.bf16.gmra.mrb[0].mxu0 %v4525
      %v5000 = vpop.f32.mrb[0].mxu0
      %v5001 = vadd.f32 %v4606, %v5000
      %v5002 = vpop.f32.mrb[0].mxu0
      %v5003 = vadd.f32 %v4610, %v5002
      %v5004 = vpop.f32.mrb[0].mxu0
      %v5005 = vadd.f32 %v4606, %v5004
      %v5006 = vpop.f32.mrb[0].mxu0
      %v5007 = vadd.f32 %v4610, %v5006
      %5008 = vmatprep.mubr.bf16.mxu0 0
      %5009 = vmatmul.mubr.bf16.gmra.mrb[0].mxu0 %v4526
      %v5010 = vpop.f32.mrb[0].mxu0
      %v5011 = vadd.f32 %v4606, %v5010
      %v5012 = vpop.f32.mrb[0].mxu0
      %v5013 = vadd.f32 %v4610, %v5012
      %v5014 = vpop.f32.mrb[0].mxu0
      %v5015 = vadd.f32 %v4606, %v5014
      %v5016 = vpop.f32.mrb[0].mxu0
      %v5017 = vadd.f32 %v4610, %v5016
      %5018 = vmatprep.mubr.bf16.mxu0 0
      %5019 = vmatmul.mubr.bf16.gmra.mrb[0].mxu0 %v4527
      %v5020 = vpop.f32.mrb[0].mxu0
      %v5021 = vadd.f32 %v4606, %v5020
      %v5022 = vpop.f32.mrb[0].mxu0
      %v5023 = vadd.f32 %v4610, %v5022
      %v5024 = vpop.f32.mrb[0].mxu0
      %v5025 = vadd.f32 %v4606, %v5024
      %v5026 = vpop.f32.mrb[0].mxu0
      %v5027 = vadd.f32 %v4610, %v5026
      %5028 = vmatprep.mubr.bf16.mxu0 0
      %5029 = vmatmul.mubr.bf16.gmra.mrb[0].mxu0 %v4528
      %v5030 = vpop.f32.mrb[0].mxu0
      %v5031 = vadd.f32 %v4606, %v5030
      %v5032 = vpop.f32.mrb[0].mxu0
      %v5033 = vadd.f32 %v4610, %v5032
      %v5034 = vpop.f32.mrb[0].mxu0
      %v5035 = vadd.f32 %v4606, %v5034
      %v5036 = vpop.f32.mrb[0].mxu0
      %v5037 = vadd.f32 %v4610, %v5036
      %5038 = vmatprep.mubr.bf16.mxu0 0
      %5039 = vmatmul.mubr.bf16.gmra.mrb[0].mxu0 %v4529
      %v5040 = vpop.f32.mrb[0].mxu0
      %v5041 = vadd.f32 %v4606, %v5040
      %v5042 = vpop.f32.mrb[0].mxu0
      %v5043 = vadd.f32 %v4610, %v5042
      %v5044 = vpop.f32.mrb[0].mxu0
      %v5045 = vadd.f32 %v4606, %v5044
      %v5046 = vpop.f32.mrb[0].mxu0
      %v5047 = vadd.f32 %v4610, %v5046
      %5048 = vmatprep.mubr.bf16.mxu0 0
      %5049 = vmatmul.mubr.bf16.gmra.mrb[0].mxu0 %v4530
      %v5050 = vpop.f32.mrb[0].mxu0
      %v5051 = vadd.f32 %v4606, %v5050
      %v5052 = vpop.f32.mrb[0].mxu0
      %v5053 = vadd.f32 %v4610, %v5052
      %v5054 = vpop.f32.mrb[0].mxu0
      %v5055 = vadd.f32 %v4606, %v5054
      %v5056 = vpop.f32.mrb[0].mxu0
      %v5057 = vadd.f32 %v4610, %v5056
      %5058 = vmatprep.mubr.bf16.mxu0 0
      %5059 = vmatmul.mubr.bf16.gmra.mrb[0].mxu0 %v4531
      %v5060 = vpop.f32.mrb[0].mxu0
      %v5061 = vadd.f32 %v4606, %v5060
      %v5062 = vpop.f32.mrb[0].mxu0
      %v5063 = vadd.f32 %v4610, %v5062
      %v5064 = vpop.f32.mrb[0].mxu0
      %v5065 = vadd.f32 %v4606, %v5064
      %v5066 = vpop.f32.mrb[0].mxu0
      %v5067 = vadd.f32 %v4610, %v5066
      %5068 = vmatprep.mubr.bf16.mxu0 0
      %5069 = vmatmul.mubr.bf16.gmra.mrb[0].mxu0 %v4532
      %v5070 = vpop.f32.mrb[0].mxu0
      %v5071 = vadd.f32 %v4606, %v5070
      %v5072 = vpop.f32.mrb[0].mxu0
      %v5073 = vadd.f32 %v4610, %v5072
      %v5074 = vpop.f32.mrb[0].mxu0
      %v5075 = vadd.f32 %v4606, %v5074
      %v5076 = vpop.f32.mrb[0].mxu0
      %v5077 = vadd.f32 %v4610, %v5076
      %5078 = vmatprep.mubr.bf16.mxu0 0
      %5079 = vmatmul.mubr.bf16.gmra.mrb[0].mxu0 %v4533
      %v5080 = vpop.f32.mrb[0].mxu0
      %v5081 = vadd.f32 %v4606, %v5080
      %v5082 = vpop.f32.mrb[0].mxu0
      %v5083 = vadd.f32 %v4610, %v5082
      %v5084 = vpop.f32.mrb[0].mxu0
      %v5085 = vadd.f32 %v4606, %v5084
      %v5086 = vpop.f32.mrb[0].mxu0
      %v5087 = vadd.f32 %v4610, %v5086
      %5088 = vmatprep.mubr.bf16.mxu0 0
      %5089 = vmatmul.mubr.bf16.gmra.mrb[0].mxu0 %v4534
      %v5090 = vpop.f32.mrb[0].mxu0
      %v5091 = vadd.f32 %v4606, %v5090
      %v5092 = vpop.f32.mrb[0].mxu0
      %v5093 = vadd.f32 %v4610, %v5092
      %v5094 = vpop.f32.mrb[0].mxu0
      %v5095 = vadd.f32 %v4606, %v5094
      %v5096 = vpop.f32.mrb[0].mxu0
      %v5097 = vadd.f32 %v4610, %v5096
      %5098 = vmatprep.mubr.bf16.mxu0 0
      %5099 = vmatmul.mubr.bf16.gmra.mrb[0].mxu0 %v4535
      %v5100 = vpop.f32.mrb[0].mxu0
      %v5101 = vadd.f32 %v4606, %v5100
      %v5102 = vpop.f32.mrb[0].mxu0
      %v5103 = vadd.f32 %v4610, %v5102
      %v5104 = vpop.f32.mrb[0].mxu0
      %v5105 = vadd.f32 %v4606, %v5104
      %v5106 = vpop.f32.mrb[0].mxu0
      %v5107 = vadd.f32 %v4610, %v5106
      %5108 = vmatprep.mubr.bf16.mxu0 0
      %5109 = vmatmul.mubr.bf16.gmra.mrb[0].mxu0 %v4536
      %v5110 = vpop.f32.mrb[0].mxu0
      %v5111 = vadd.f32 %v4606, %v5110
      %v5112 = vpop.f32.mrb[0].mxu0
      %v5113 = vadd.f32 %v4610, %v5112
      %v5114 = vpop.f32.mrb[0].mxu0
      %v5115 = vadd.f32 %v4606, %v5114
      %v5116 = vpop.f32.mrb[0].mxu0
      %v5117 = vadd.f32 %v4610, %v5116
      %5118 = vdwg.mxu0
      %5119 = vmatprep.subr.bf16.mxu0 %v4817
      %5120 = vmatpush1.bf16.msra.mxu0 %v4816
      %5121 = vmatprep.subr.bf16.mxu0 %v4824
      %5122 = vmatpush1.bf16.msra.mxu0 %v4823
      %5123 = vmatprep.subr.bf16.mxu0 %v4831
      %5124 = vmatpush1.bf16.msra.mxu0 %v4830
      %5125 = vmatprep.subr.bf16.mxu0 %v4838
      %5126 = vmatpush1.bf16.msra.mxu0 %v4837
      %5127 = vmatprep.subr.bf16.mxu0 %v4845
      %5128 = vmatpush1.bf16.msra.mxu0 %v4844
      %5129 = vmatprep.subr.bf16.mxu0 %v4852
      %5130 = vmatpush1.bf16.msra.mxu0 %v4851
      %5131 = vmatprep.subr.bf16.mxu0 %v4859
      %5132 = vmatpush1.bf16.msra.mxu0 %v4858
      %5133 = vmatprep.subr.bf16.mxu0 %v4866
      %5134 = vmatpush1.bf16.msra.mxu0 %v4865
      %5135 = vmatprep.subr.bf16.mxu0 0
      %5136 = vmatpush1.bf16.msra.mxu0 0
      %5137 = vmatprep.subr.bf16.mxu0 0
      %5138 = vmatpush1.bf16.msra.mxu0 0
      %5139 = vmatprep.subr.bf16.mxu0 0
      %5140 = vmatpush1.bf16.msra.mxu0 0
      %5141 = vmatprep.subr.bf16.mxu0 0
      %5142 = vmatpush1.bf16.msra.mxu0 0
      %5143 = vmatprep.subr.bf16.mxu0 0
      %5144 = vmatpush1.bf16.msra.mxu0 0
      %5145 = vmatprep.subr.bf16.mxu0 0
      %5146 = vmatpush1.bf16.msra.mxu0 0
      %5147 = vmatprep.subr.bf16.mxu0 0
      %5148 = vmatpush1.bf16.msra.mxu0 0
      %5149 = vmatprep.subr.bf16.mxu0 0
      %5150 = vmatpush1.bf16.msra.mxu0 0
      %5151 = vmatprep.mubr.bf16.mxu0 0
      %5152 = vmatmul.mubr.bf16.gmra.mrb[0].mxu0 %v4521
      %v5153 = vpop.f32.mrb[0].mxu0
      %v5154 = vadd.f32 %v4614, %v5153
      %v5155 = vpop.f32.mrb[0].mxu0
      %v5156 = vadd.f32 %v4618, %v5155
      %v5157 = vpop.f32.mrb[0].mxu0
      %v5158 = vadd.f32 %v4614, %v5157
      %v5159 = vpop.f32.mrb[0].mxu0
      %v5160 = vadd.f32 %v4618, %v5159
      %5161 = vmatprep.mubr.bf16.mxu0 0
      %5162 = vmatmul.mubr.bf16.gmra.mrb[0].mxu0 %v4522
      %v5163 = vpop.f32.mrb[0].mxu0
      %v5164 = vadd.f32 %v4614, %v5163
      %v5165 = vpop.f32.mrb[0].mxu0
      %v5166 = vadd.f32 %v4618, %v5165
      %v5167 = vpop.f32.mrb[0].mxu0
      %v5168 = vadd.f32 %v4614, %v5167
      %v5169 = vpop.f32.mrb[0].mxu0
      %v5170 = vadd.f32 %v4618, %v5169
      %5171 = vmatprep.mubr.bf16.mxu0 0
      %5172 = vmatmul.mubr.bf16.gmra.mrb[0].mxu0 %v4523
      %v5173 = vpop.f32.mrb[0].mxu0
      %v5174 = vadd.f32 %v4614, %v5173
      %v5175 = vpop.f32.mrb[0].mxu0
      %v5176 = vadd.f32 %v4618, %v5175
      %v5177 = vpop.f32.mrb[0].mxu0
      %v5178 = vadd.f32 %v4614, %v5177
      %v5179 = vpop.f32.mrb[0].mxu0
      %v5180 = vadd.f32 %v4618, %v5179
      %5181 = vmatprep.mubr.bf16.mxu0 0
      %5182 = vmatmul.mubr.bf16.gmra.mrb[0].mxu0 %v4524
      %v5183 = vpop.f32.mrb[0].mxu0
      %v5184 = vadd.f32 %v4614, %v5183
      %v5185 = vpop.f32.mrb[0].mxu0
      %v5186 = vadd.f32 %v4618, %v5185
      %v5187 = vpop.f32.mrb[0].mxu0
      %v5188 = vadd.f32 %v4614, %v5187
      %v5189 = vpop.f32.mrb[0].mxu0
      %v5190 = vadd.f32 %v4618, %v5189
      %5191 = vmatprep.mubr.bf16.mxu0 0
      %5192 = vmatmul.mubr.bf16.gmra.mrb[0].mxu0 %v4525
      %v5193 = vpop.f32.mrb[0].mxu0
      %v5194 = vadd.f32 %v4614, %v5193
      %v5195 = vpop.f32.mrb[0].mxu0
      %v5196 = vadd.f32 %v4618, %v5195
      %v5197 = vpop.f32.mrb[0].mxu0
      %v5198 = vadd.f32 %v4614, %v5197
      %v5199 = vpop.f32.mrb[0].mxu0
      %v5200 = vadd.f32 %v4618, %v5199
      %5201 = vmatprep.mubr.bf16.mxu0 0
      %5202 = vmatmul.mubr.bf16.gmra.mrb[0].mxu0 %v4526
      %v5203 = vpop.f32.mrb[0].mxu0
      %v5204 = vadd.f32 %v4614, %v5203
      %v5205 = vpop.f32.mrb[0].mxu0
      %v5206 = vadd.f32 %v4618, %v5205
      %v5207 = vpop.f32.mrb[0].mxu0
      %v5208 = vadd.f32 %v4614, %v5207
      %v5209 = vpop.f32.mrb[0].mxu0
      %v5210 = vadd.f32 %v4618, %v5209
      %5211 = vmatprep.mubr.bf16.mxu0 0
      %5212 = vmatmul.mubr.bf16.gmra.mrb[0].mxu0 %v4527
      %v5213 = vpop.f32.mrb[0].mxu0
      %v5214 = vadd.f32 %v4614, %v5213
      %v5215 = vpop.f32.mrb[0].mxu0
      %v5216 = vadd.f32 %v4618, %v5215
      %v5217 = vpop.f32.mrb[0].mxu0
      %v5218 = vadd.f32 %v4614, %v5217
      %v5219 = vpop.f32.mrb[0].mxu0
      %v5220 = vadd.f32 %v4618, %v5219
      %5221 = vmatprep.mubr.bf16.mxu0 0
      %5222 = vmatmul.mubr.bf16.gmra.mrb[0].mxu0 %v4528
      %v5223 = vpop.f32.mrb[0].mxu0
      %v5224 = vadd.f32 %v4614, %v5223
      %v5225 = vpop.f32.mrb[0].mxu0
      %v5226 = vadd.f32 %v4618, %v5225
      %v5227 = vpop.f32.mrb[0].mxu0
      %v5228 = vadd.f32 %v4614, %v5227
      %v5229 = vpop.f32.mrb[0].mxu0
      %v5230 = vadd.f32 %v4618, %v5229
      %5231 = vmatprep.mubr.bf16.mxu0 0
      %5232 = vmatmul.mubr.bf16.gmra.mrb[0].mxu0 %v4529
      %v5233 = vpop.f32.mrb[0].mxu0
      %v5234 = vadd.f32 %v4614, %v5233
      %v5235 = vpop.f32.mrb[0].mxu0
      %v5236 = vadd.f32 %v4618, %v5235
      %v5237 = vpop.f32.mrb[0].mxu0
      %v5238 = vadd.f32 %v4614, %v5237
      %v5239 = vpop.f32.mrb[0].mxu0
      %v5240 = vadd.f32 %v4618, %v5239
      %5241 = vmatprep.mubr.bf16.mxu0 0
      %5242 = vmatmul.mubr.bf16.gmra.mrb[0].mxu0 %v4530
      %v5243 = vpop.f32.mrb[0].mxu0
      %v5244 = vadd.f32 %v4614, %v5243
      %v5245 = vpop.f32.mrb[0].mxu0
      %v5246 = vadd.f32 %v4618, %v5245
      %v5247 = vpop.f32.mrb[0].mxu0
      %v5248 = vadd.f32 %v4614, %v5247
      %v5249 = vpop.f32.mrb[0].mxu0
      %v5250 = vadd.f32 %v4618, %v5249
      %5251 = vmatprep.mubr.bf16.mxu0 0
      %5252 = vmatmul.mubr.bf16.gmra.mrb[0].mxu0 %v4531
      %v5253 = vpop.f32.mrb[0].mxu0
      %v5254 = vadd.f32 %v4614, %v5253
      %v5255 = vpop.f32.mrb[0].mxu0
      %v5256 = vadd.f32 %v4618, %v5255
      %v5257 = vpop.f32.mrb[0].mxu0
      %v5258 = vadd.f32 %v4614, %v5257
      %v5259 = vpop.f32.mrb[0].mxu0
      %v5260 = vadd.f32 %v4618, %v5259
      %5261 = vmatprep.mubr.bf16.mxu0 0
      %5262 = vmatmul.mubr.bf16.gmra.mrb[0].mxu0 %v4532
      %v5263 = vpop.f32.mrb[0].mxu0
      %v5264 = vadd.f32 %v4614, %v5263
      %v5265 = vpop.f32.mrb[0].mxu0
      %v5266 = vadd.f32 %v4618, %v5265
      %v5267 = vpop.f32.mrb[0].mxu0
      %v5268 = vadd.f32 %v4614, %v5267
      %v5269 = vpop.f32.mrb[0].mxu0
      %v5270 = vadd.f32 %v4618, %v5269
      %5271 = vmatprep.mubr.bf16.mxu0 0
      %5272 = vmatmul.mubr.bf16.gmra.mrb[0].mxu0 %v4533
      %v5273 = vpop.f32.mrb[0].mxu0
      %v5274 = vadd.f32 %v4614, %v5273
      %v5275 = vpop.f32.mrb[0].mxu0
      %v5276 = vadd.f32 %v4618, %v5275
      %v5277 = vpop.f32.mrb[0].mxu0
      %v5278 = vadd.f32 %v4614, %v5277
      %v5279 = vpop.f32.mrb[0].mxu0
      %v5280 = vadd.f32 %v4618, %v5279
      %5281 = vmatprep.mubr.bf16.mxu0 0
      %5282 = vmatmul.mubr.bf16.gmra.mrb[0].mxu0 %v4534
      %v5283 = vpop.f32.mrb[0].mxu0
      %v5284 = vadd.f32 %v4614, %v5283
      %v5285 = vpop.f32.mrb[0].mxu0
      %v5286 = vadd.f32 %v4618, %v5285
      %v5287 = vpop.f32.mrb[0].mxu0
      %v5288 = vadd.f32 %v4614, %v5287
      %v5289 = vpop.f32.mrb[0].mxu0
      %v5290 = vadd.f32 %v4618, %v5289
      %5291 = vmatprep.mubr.bf16.mxu0 0
      %5292 = vmatmul.mubr.bf16.gmra.mrb[0].mxu0 %v4535
      %v5293 = vpop.f32.mrb[0].mxu0
      %v5294 = vadd.f32 %v4614, %v5293
      %v5295 = vpop.f32.mrb[0].mxu0
      %v5296 = vadd.f32 %v4618, %v5295
      %v5297 = vpop.f32.mrb[0].mxu0
      %v5298 = vadd.f32 %v4614, %v5297
      %v5299 = vpop.f32.mrb[0].mxu0
      %v5300 = vadd.f32 %v4618, %v5299
      %5301 = vmatprep.mubr.bf16.mxu0 0
      %5302 = vmatmul.mubr.bf16.gmra.mrb[0].mxu0 %v4536
      %v5303 = vpop.f32.mrb[0].mxu0
      %v5304 = vadd.f32 %v4614, %v5303
      %v5305 = vpop.f32.mrb[0].mxu0
      %v5306 = vadd.f32 %v4618, %v5305
      %v5307 = vpop.f32.mrb[0].mxu0
      %v5308 = vadd.f32 %v4614, %v5307
      %v5309 = vpop.f32.mrb[0].mxu0
      %v5310 = vadd.f32 %v4618, %v5309
      %5311 = vdwg.mxu0
      %5312 = vmatprep.subr.bf16.mxu0 %v4819
      %5313 = vmatpush1.bf16.msra.mxu0 %v4818
      %5314 = vmatprep.subr.bf16.mxu0 %v4826
      %5315 = vmatpush1.bf16.msra.mxu0 %v4825
      %5316 = vmatprep.subr.bf16.mxu0 %v4833
      %5317 = vmatpush1.bf16.msra.mxu0 %v4832
      %5318 = vmatprep.subr.bf16.mxu0 %v4840
      %5319 = vmatpush1.bf16.msra.mxu0 %v4839
      %5320 = vmatprep.subr.bf16.mxu0 %v4847
      %5321 = vmatpush1.bf16.msra.mxu0 %v4846
      %5322 = vmatprep.subr.bf16.mxu0 %v4854
      %5323 = vmatpush1.bf16.msra.mxu0 %v4853
      %5324 = vmatprep.subr.bf16.mxu0 %v4861
      %5325 = vmatpush1.bf16.msra.mxu0 %v4860
      %5326 = vmatprep.subr.bf16.mxu0 %v4868
      %5327 = vmatpush1.bf16.msra.mxu0 %v4867
      %5328 = vmatprep.subr.bf16.mxu0 0
      %5329 = vmatpush1.bf16.msra.mxu0 0
      %5330 = vmatprep.subr.bf16.mxu0 0
      %5331 = vmatpush1.bf16.msra.mxu0 0
      %5332 = vmatprep.subr.bf16.mxu0 0
      %5333 = vmatpush1.bf16.msra.mxu0 0
      %5334 = vmatprep.subr.bf16.mxu0 0
      %5335 = vmatpush1.bf16.msra.mxu0 0
      %5336 = vmatprep.subr.bf16.mxu0 0
      %5337 = vmatpush1.bf16.msra.mxu0 0
      %5338 = vmatprep.subr.bf16.mxu0 0
      %5339 = vmatpush1.bf16.msra.mxu0 0
      %5340 = vmatprep.subr.bf16.mxu0 0
      %5341 = vmatpush1.bf16.msra.mxu0 0
      %5342 = vmatprep.subr.bf16.mxu0 0
      %5343 = vmatpush1.bf16.msra.mxu0 0
      %5344 = vmatprep.mubr.bf16.mxu0 0
      %5345 = vmatmul.mubr.bf16.gmra.mrb[0].mxu0 %v4521
      %v5346 = vpop.f32.mrb[0].mxu0
      %v5347 = vadd.f32 %v4622, %v5346
      %v5348 = vpop.f32.mrb[0].mxu0
      %v5349 = vadd.f32 %v4626, %v5348
      %v5350 = vpop.f32.mrb[0].mxu0
      %v5351 = vadd.f32 %v4622, %v5350
      %v5352 = vpop.f32.mrb[0].mxu0
      %v5353 = vadd.f32 %v4626, %v5352
      %5354 = vmatprep.mubr.bf16.mxu0 0
      %5355 = vmatmul.mubr.bf16.gmra.mrb[0].mxu0 %v4522
      %v5356 = vpop.f32.mrb[0].mxu0
      %v5357 = vadd.f32 %v4622, %v5356
      %v5358 = vpop.f32.mrb[0].mxu0
      %v5359 = vadd.f32 %v4626, %v5358
      %v5360 = vpop.f32.mrb[0].mxu0
      %v5361 = vadd.f32 %v4622, %v5360
      %v5362 = vpop.f32.mrb[0].mxu0
      %v5363 = vadd.f32 %v4626, %v5362
      %5364 = vmatprep.mubr.bf16.mxu0 0
      %5365 = vmatmul.mubr.bf16.gmra.mrb[0].mxu0 %v4523
      %v5366 = vpop.f32.mrb[0].mxu0
      %v5367 = vadd.f32 %v4622, %v5366
      %v5368 = vpop.f32.mrb[0].mxu0
      %v5369 = vadd.f32 %v4626, %v5368
      %v5370 = vpop.f32.mrb[0].mxu0
      %v5371 = vadd.f32 %v4622, %v5370
      %v5372 = vpop.f32.mrb[0].mxu0
      %v5373 = vadd.f32 %v4626, %v5372
      %5374 = vmatprep.mubr.bf16.mxu0 0
      %5375 = vmatmul.mubr.bf16.gmra.mrb[0].mxu0 %v4524
      %v5376 = vpop.f32.mrb[0].mxu0
      %v5377 = vadd.f32 %v4622, %v5376
      %v5378 = vpop.f32.mrb[0].mxu0
      %v5379 = vadd.f32 %v4626, %v5378
      %v5380 = vpop.f32.mrb[0].mxu0
      %v5381 = vadd.f32 %v4622, %v5380
      %v5382 = vpop.f32.mrb[0].mxu0
      %v5383 = vadd.f32 %v4626, %v5382
      %5384 = vmatprep.mubr.bf16.mxu0 0
      %5385 = vmatmul.mubr.bf16.gmra.mrb[0].mxu0 %v4525
      %v5386 = vpop.f32.mrb[0].mxu0
      %v5387 = vadd.f32 %v4622, %v5386
      %v5388 = vpop.f32.mrb[0].mxu0
      %v5389 = vadd.f32 %v4626, %v5388
      %v5390 = vpop.f32.mrb[0].mxu0
      %v5391 = vadd.f32 %v4622, %v5390
      %v5392 = vpop.f32.mrb[0].mxu0
      %v5393 = vadd.f32 %v4626, %v5392
      %5394 = vmatprep.mubr.bf16.mxu0 0
      %5395 = vmatmul.mubr.bf16.gmra.mrb[0].mxu0 %v4526
      %v5396 = vpop.f32.mrb[0].mxu0
      %v5397 = vadd.f32 %v4622, %v5396
      %v5398 = vpop.f32.mrb[0].mxu0
      %v5399 = vadd.f32 %v4626, %v5398
      %v5400 = vpop.f32.mrb[0].mxu0
      %v5401 = vadd.f32 %v4622, %v5400
      %v5402 = vpop.f32.mrb[0].mxu0
      %v5403 = vadd.f32 %v4626, %v5402
      %5404 = vmatprep.mubr.bf16.mxu0 0
      %5405 = vmatmul.mubr.bf16.gmra.mrb[0].mxu0 %v4527
      %v5406 = vpop.f32.mrb[0].mxu0
      %v5407 = vadd.f32 %v4622, %v5406
      %v5408 = vpop.f32.mrb[0].mxu0
      %v5409 = vadd.f32 %v4626, %v5408
      %v5410 = vpop.f32.mrb[0].mxu0
      %v5411 = vadd.f32 %v4622, %v5410
      %v5412 = vpop.f32.mrb[0].mxu0
      %v5413 = vadd.f32 %v4626, %v5412
      %5414 = vmatprep.mubr.bf16.mxu0 0
      %5415 = vmatmul.mubr.bf16.gmra.mrb[0].mxu0 %v4528
      %v5416 = vpop.f32.mrb[0].mxu0
      %v5417 = vadd.f32 %v4622, %v5416
      %v5418 = vpop.f32.mrb[0].mxu0
      %v5419 = vadd.f32 %v4626, %v5418
      %v5420 = vpop.f32.mrb[0].mxu0
      %v5421 = vadd.f32 %v4622, %v5420
      %v5422 = vpop.f32.mrb[0].mxu0
      %v5423 = vadd.f32 %v4626, %v5422
      %5424 = vmatprep.mubr.bf16.mxu0 0
      %5425 = vmatmul.mubr.bf16.gmra.mrb[0].mxu0 %v4529
      %v5426 = vpop.f32.mrb[0].mxu0
      %v5427 = vadd.f32 %v4622, %v5426
      %v5428 = vpop.f32.mrb[0].mxu0
      %v5429 = vadd.f32 %v4626, %v5428
      %v5430 = vpop.f32.mrb[0].mxu0
      %v5431 = vadd.f32 %v4622, %v5430
      %v5432 = vpop.f32.mrb[0].mxu0
      %v5433 = vadd.f32 %v4626, %v5432
      %5434 = vmatprep.mubr.bf16.mxu0 0
      %5435 = vmatmul.mubr.bf16.gmra.mrb[0].mxu0 %v4530
      %v5436 = vpop.f32.mrb[0].mxu0
      %v5437 = vadd.f32 %v4622, %v5436
      %v5438 = vpop.f32.mrb[0].mxu0
      %v5439 = vadd.f32 %v4626, %v5438
      %v5440 = vpop.f32.mrb[0].mxu0
      %v5441 = vadd.f32 %v4622, %v5440
      %v5442 = vpop.f32.mrb[0].mxu0
      %v5443 = vadd.f32 %v4626, %v5442
      %5444 = vmatprep.mubr.bf16.mxu0 0
      %5445 = vmatmul.mubr.bf16.gmra.mrb[0].mxu0 %v4531
      %v5446 = vpop.f32.mrb[0].mxu0
      %v5447 = vadd.f32 %v4622, %v5446
      %v5448 = vpop.f32.mrb[0].mxu0
      %v5449 = vadd.f32 %v4626, %v5448
      %v5450 = vpop.f32.mrb[0].mxu0
      %v5451 = vadd.f32 %v4622, %v5450
      %v5452 = vpop.f32.mrb[0].mxu0
      %v5453 = vadd.f32 %v4626, %v5452
      %5454 = vmatprep.mubr.bf16.mxu0 0
      %5455 = vmatmul.mubr.bf16.gmra.mrb[0].mxu0 %v4532
      %v5456 = vpop.f32.mrb[0].mxu0
      %v5457 = vadd.f32 %v4622, %v5456
      %v5458 = vpop.f32.mrb[0].mxu0
      %v5459 = vadd.f32 %v4626, %v5458
      %v5460 = vpop.f32.mrb[0].mxu0
      %v5461 = vadd.f32 %v4622, %v5460
      %v5462 = vpop.f32.mrb[0].mxu0
      %v5463 = vadd.f32 %v4626, %v5462
      %5464 = vmatprep.mubr.bf16.mxu0 0
      %5465 = vmatmul.mubr.bf16.gmra.mrb[0].mxu0 %v4533
      %v5466 = vpop.f32.mrb[0].mxu0
      %v5467 = vadd.f32 %v4622, %v5466
      %v5468 = vpop.f32.mrb[0].mxu0
      %v5469 = vadd.f32 %v4626, %v5468
      %v5470 = vpop.f32.mrb[0].mxu0
      %v5471 = vadd.f32 %v4622, %v5470
      %v5472 = vpop.f32.mrb[0].mxu0
      %v5473 = vadd.f32 %v4626, %v5472
      %5474 = vmatprep.mubr.bf16.mxu0 0
      %5475 = vmatmul.mubr.bf16.gmra.mrb[0].mxu0 %v4534
      %v5476 = vpop.f32.mrb[0].mxu0
      %v5477 = vadd.f32 %v4622, %v5476
      %v5478 = vpop.f32.mrb[0].mxu0
      %v5479 = vadd.f32 %v4626, %v5478
      %v5480 = vpop.f32.mrb[0].mxu0
      %v5481 = vadd.f32 %v4622, %v5480
      %v5482 = vpop.f32.mrb[0].mxu0
      %v5483 = vadd.f32 %v4626, %v5482
      %5484 = vmatprep.mubr.bf16.mxu0 0
      %5485 = vmatmul.mubr.bf16.gmra.mrb[0].mxu0 %v4535
      %v5486 = vpop.f32.mrb[0].mxu0
      %v5487 = vadd.f32 %v4622, %v5486
      %v5488 = vpop.f32.mrb[0].mxu0
      %v5489 = vadd.f32 %v4626, %v5488
      %v5490 = vpop.f32.mrb[0].mxu0
      %v5491 = vadd.f32 %v4622, %v5490
      %v5492 = vpop.f32.mrb[0].mxu0
      %v5493 = vadd.f32 %v4626, %v5492
      %5494 = vmatprep.mubr.bf16.mxu0 0
      %5495 = vmatmul.mubr.bf16.gmra.mrb[0].mxu0 %v4536
      %v5496 = vpop.f32.mrb[0].mxu0
      %v5497 = vadd.f32 %v4622, %v5496
      %v5498 = vpop.f32.mrb[0].mxu0
      %v5499 = vadd.f32 %v4626, %v5498
      %v5500 = vpop.f32.mrb[0].mxu0
      %v5501 = vadd.f32 %v4622, %v5500
      %v5502 = vpop.f32.mrb[0].mxu0
      %v5503 = vadd.f32 %v4626, %v5502
      %5504 = vdwg.mxu0
      %5505 = vmatprep.subr.bf16.mxu0 0
      %5506 = vmatpush1.bf16.msra.mxu0 %v4820
      %5507 = vmatprep.subr.bf16.mxu0 0
      %5508 = vmatpush1.bf16.msra.mxu0 %v4827
      %5509 = vmatprep.subr.bf16.mxu0 0
      %5510 = vmatpush1.bf16.msra.mxu0 %v4834
      %5511 = vmatprep.subr.bf16.mxu0 0
      %5512 = vmatpush1.bf16.msra.mxu0 %v4841
      %5513 = vmatprep.subr.bf16.mxu0 0
      %5514 = vmatpush1.bf16.msra.mxu0 %v4848
      %5515 = vmatprep.subr.bf16.mxu0 0
      %5516 = vmatpush1.bf16.msra.mxu0 %v4855
      %5517 = vmatprep.subr.bf16.mxu0 0
      %5518 = vmatpush1.bf16.msra.mxu0 %v4862
      %5519 = vmatprep.subr.bf16.mxu0 0
      %5520 = vmatpush1.bf16.msra.mxu0 %v4869
      %5521 = vmatprep.subr.bf16.mxu0 0
      %5522 = vmatpush1.bf16.msra.mxu0 0
      %5523 = vmatprep.subr.bf16.mxu0 0
      %5524 = vmatpush1.bf16.msra.mxu0 0
      %5525 = vmatprep.subr.bf16.mxu0 0
      %5526 = vmatpush1.bf16.msra.mxu0 0
      %5527 = vmatprep.subr.bf16.mxu0 0
      %5528 = vmatpush1.bf16.msra.mxu0 0
      %5529 = vmatprep.subr.bf16.mxu0 0
      %5530 = vmatpush1.bf16.msra.mxu0 0
      %5531 = vmatprep.subr.bf16.mxu0 0
      %5532 = vmatpush1.bf16.msra.mxu0 0
      %5533 = vmatprep.subr.bf16.mxu0 0
      %5534 = vmatpush1.bf16.msra.mxu0 0
      %5535 = vmatprep.subr.bf16.mxu0 0
      %5536 = vmatpush1.bf16.msra.mxu0 0
      %5537 = vmatprep.mubr.bf16.mxu0 0
      %5538 = vmatmul.mubr.bf16.gmra.mrb[0].mxu0 %v4521
      %v5539 = vpop.f32.mrb[0].mxu0
      %v5540 = vadd.f32 %v4630, %v5539
      %v5541 = vpop.f32.mrb[0].mxu0
      %v5542 = vpop.f32.mrb[0].mxu0
      %v5543 = vadd.f32 %v4630, %v5542
      %v5544 = vpop.f32.mrb[0].mxu0
      %5545 = vmatprep.mubr.bf16.mxu0 0
      %5546 = vmatmul.mubr.bf16.gmra.mrb[0].mxu0 %v4522
      %v5547 = vpop.f32.mrb[0].mxu0
      %v5548 = vadd.f32 %v4630, %v5547
      %v5549 = vpop.f32.mrb[0].mxu0
      %v5550 = vpop.f32.mrb[0].mxu0
      %v5551 = vadd.f32 %v4630, %v5550
      %v5552 = vpop.f32.mrb[0].mxu0
      %5553 = vmatprep.mubr.bf16.mxu0 0
      %5554 = vmatmul.mubr.bf16.gmra.mrb[0].mxu0 %v4523
      %v5555 = vpop.f32.mrb[0].mxu0
      %v5556 = vadd.f32 %v4630, %v5555
      %v5557 = vpop.f32.mrb[0].mxu0
      %v5558 = vpop.f32.mrb[0].mxu0
      %v5559 = vadd.f32 %v4630, %v5558
      %v5560 = vpop.f32.mrb[0].mxu0
      %5561 = vmatprep.mubr.bf16.mxu0 0
      %5562 = vmatmul.mubr.bf16.gmra.mrb[0].mxu0 %v4524
      %v5563 = vpop.f32.mrb[0].mxu0
      %v5564 = vadd.f32 %v4630, %v5563
      %v5565 = vpop.f32.mrb[0].mxu0
      %v5566 = vpop.f32.mrb[0].mxu0
      %v5567 = vadd.f32 %v4630, %v5566
      %v5568 = vpop.f32.mrb[0].mxu0
      %5569 = vmatprep.mubr.bf16.mxu0 0
      %5570 = vmatmul.mubr.bf16.gmra.mrb[0].mxu0 %v4525
      %v5571 = vpop.f32.mrb[0].mxu0
      %v5572 = vadd.f32 %v4630, %v5571
      %v5573 = vpop.f32.mrb[0].mxu0
      %v5574 = vpop.f32.mrb[0].mxu0
      %v5575 = vadd.f32 %v4630, %v5574
      %v5576 = vpop.f32.mrb[0].mxu0
      %5577 = vmatprep.mubr.bf16.mxu0 0
      %5578 = vmatmul.mubr.bf16.gmra.mrb[0].mxu0 %v4526
      %v5579 = vpop.f32.mrb[0].mxu0
      %v5580 = vadd.f32 %v4630, %v5579
      %v5581 = vpop.f32.mrb[0].mxu0
      %v5582 = vpop.f32.mrb[0].mxu0
      %v5583 = vadd.f32 %v4630, %v5582
      %v5584 = vpop.f32.mrb[0].mxu0
      %5585 = vmatprep.mubr.bf16.mxu0 0
      %5586 = vmatmul.mubr.bf16.gmra.mrb[0].mxu0 %v4527
      %v5587 = vpop.f32.mrb[0].mxu0
      %v5588 = vadd.f32 %v4630, %v5587
      %v5589 = vpop.f32.mrb[0].mxu0
      %v5590 = vpop.f32.mrb[0].mxu0
      %v5591 = vadd.f32 %v4630, %v5590
      %v5592 = vpop.f32.mrb[0].mxu0
      %5593 = vmatprep.mubr.bf16.mxu0 0
      %5594 = vmatmul.mubr.bf16.gmra.mrb[0].mxu0 %v4528
      %v5595 = vpop.f32.mrb[0].mxu0
      %v5596 = vadd.f32 %v4630, %v5595
      %v5597 = vpop.f32.mrb[0].mxu0
      %v5598 = vpop.f32.mrb[0].mxu0
      %v5599 = vadd.f32 %v4630, %v5598
      %v5600 = vpop.f32.mrb[0].mxu0
      %5601 = vmatprep.mubr.bf16.mxu0 0
      %5602 = vmatmul.mubr.bf16.gmra.mrb[0].mxu0 %v4529
      %v5603 = vpop.f32.mrb[0].mxu0
      %v5604 = vadd.f32 %v4630, %v5603
      %v5605 = vpop.f32.mrb[0].mxu0
      %v5606 = vpop.f32.mrb[0].mxu0
      %v5607 = vadd.f32 %v4630, %v5606
      %v5608 = vpop.f32.mrb[0].mxu0
      %5609 = vmatprep.mubr.bf16.mxu0 0
      %5610 = vmatmul.mubr.bf16.gmra.mrb[0].mxu0 %v4530
      %v5611 = vpop.f32.mrb[0].mxu0
      %v5612 = vadd.f32 %v4630, %v5611
      %v5613 = vpop.f32.mrb[0].mxu0
      %v5614 = vpop.f32.mrb[0].mxu0
      %v5615 = vadd.f32 %v4630, %v5614
      %v5616 = vpop.f32.mrb[0].mxu0
      %5617 = vmatprep.mubr.bf16.mxu0 0
      %5618 = vmatmul.mubr.bf16.gmra.mrb[0].mxu0 %v4531
      %v5619 = vpop.f32.mrb[0].mxu0
      %v5620 = vadd.f32 %v4630, %v5619
      %v5621 = vpop.f32.mrb[0].mxu0
      %v5622 = vpop.f32.mrb[0].mxu0
      %v5623 = vadd.f32 %v4630, %v5622
      %v5624 = vpop.f32.mrb[0].mxu0
      %5625 = vmatprep.mubr.bf16.mxu0 0
      %5626 = vmatmul.mubr.bf16.gmra.mrb[0].mxu0 %v4532
      %v5627 = vpop.f32.mrb[0].mxu0
      %v5628 = vadd.f32 %v4630, %v5627
      %v5629 = vpop.f32.mrb[0].mxu0
      %v5630 = vpop.f32.mrb[0].mxu0
      %v5631 = vadd.f32 %v4630, %v5630
      %v5632 = vpop.f32.mrb[0].mxu0
      %5633 = vmatprep.mubr.bf16.mxu0 0
      %5634 = vmatmul.mubr.bf16.gmra.mrb[0].mxu0 %v4533
      %v5635 = vpop.f32.mrb[0].mxu0
      %v5636 = vadd.f32 %v4630, %v5635
      %v5637 = vpop.f32.mrb[0].mxu0
      %v5638 = vpop.f32.mrb[0].mxu0
      %v5639 = vadd.f32 %v4630, %v5638
      %v5640 = vpop.f32.mrb[0].mxu0
      %5641 = vmatprep.mubr.bf16.mxu0 0
      %5642 = vmatmul.mubr.bf16.gmra.mrb[0].mxu0 %v4534
      %v5643 = vpop.f32.mrb[0].mxu0
      %v5644 = vadd.f32 %v4630, %v5643
      %v5645 = vpop.f32.mrb[0].mxu0
      %v5646 = vpop.f32.mrb[0].mxu0
      %v5647 = vadd.f32 %v4630, %v5646
      %v5648 = vpop.f32.mrb[0].mxu0
      %5649 = vmatprep.mubr.bf16.mxu0 0
      %5650 = vmatmul.mubr.bf16.gmra.mrb[0].mxu0 %v4535
      %v5651 = vpop.f32.mrb[0].mxu0
      %v5652 = vadd.f32 %v4630, %v5651
      %v5653 = vpop.f32.mrb[0].mxu0
      %v5654 = vpop.f32.mrb[0].mxu0
      %v5655 = vadd.f32 %v4630, %v5654
      %v5656 = vpop.f32.mrb[0].mxu0
      %5657 = vmatprep.mubr.bf16.mxu0 0
      %5658 = vmatmul.mubr.bf16.gmra.mrb[0].mxu0 %v4536
      %v5659 = vpop.f32.mrb[0].mxu0
      %v5660 = vadd.f32 %v4630, %v5659
      %v5661 = vpop.f32.mrb[0].mxu0
      %v5662 = vpop.f32.mrb[0].mxu0
      %v5663 = vadd.f32 %v4630, %v5662
      %v5664 = vpop.f32.mrb[0].mxu0
      %5665 = vdwg.mxu0
      %v5666 = vsub.f32 0.0, %v4961
      %v5667 = vsub.f32 0.0, %v4963
      %v5668 = vsub.f32 0.0, %v5154
      %v5669 = vsub.f32 0.0, %v5156
      %v5670 = vsub.f32 0.0, %v5347
      %v5671 = vsub.f32 0.0, %v5349
      %v5672 = vsub.f32 0.0, %v5540
      %v5673 = vsub.f32 0.0, %v4965
      %v5674 = vsub.f32 0.0, %v4967
      %v5675 = vsub.f32 0.0, %v5158
      %v5676 = vsub.f32 0.0, %v5160
      %v5677 = vsub.f32 0.0, %v5351
      %v5678 = vsub.f32 0.0, %v5353
      %v5679 = vsub.f32 0.0, %v5543
      %v5680 = vsub.f32 0.0, %v4971
      %v5681 = vsub.f32 0.0, %v4973
      %v5682 = vsub.f32 0.0, %v5164
      %v5683 = vsub.f32 0.0, %v5166
      %v5684 = vsub.f32 0.0, %v5357
      %v5685 = vsub.f32 0.0, %v5359
      %v5686 = vsub.f32 0.0, %v5548
      %v5687 = vsub.f32 0.0, %v4975
      %v5688 = vsub.f32 0.0, %v4977
      %v5689 = vsub.f32 0.0, %v5168
      %v5690 = vsub.f32 0.0, %v5170
      %v5691 = vsub.f32 0.0, %v5361
      %v5692 = vsub.f32 0.0, %v5363
      %v5693 = vsub.f32 0.0, %v5551
      %v5694 = vsub.f32 0.0, %v4981
      %v5695 = vsub.f32 0.0, %v4983
      %v5696 = vsub.f32 0.0, %v5174
      %v5697 = vsub.f32 0.0, %v5176
      %v5698 = vsub.f32 0.0, %v5367
      %v5699 = vsub.f32 0.0, %v5369
      %v5700 = vsub.f32 0.0, %v5556
      %v5701 = vsub.f32 0.0, %v4985
      %v5702 = vsub.f32 0.0, %v4987
      %v5703 = vsub.f32 0.0, %v5178
      %v5704 = vsub.f32 0.0, %v5180
      %v5705 = vsub.f32 0.0, %v5371
      %v5706 = vsub.f32 0.0, %v5373
      %v5707 = vsub.f32 0.0, %v5559
      %v5708 = vsub.f32 0.0, %v4991
      %v5709 = vsub.f32 0.0, %v4993
      %v5710 = vsub.f32 0.0, %v5184
      %v5711 = vsub.f32 0.0, %v5186
      %v5712 = vsub.f32 0.0, %v5377
      %v5713 = vsub.f32 0.0, %v5379
      %v5714 = vsub.f32 0.0, %v5564
      %v5715 = vsub.f32 0.0, %v4995
      %v5716 = vsub.f32 0.0, %v4997
      %v5717 = vsub.f32 0.0, %v5188
      %v5718 = vsub.f32 0.0, %v5190
      %v5719 = vsub.f32 0.0, %v5381
      %v5720 = vsub.f32 0.0, %v5383
      %v5721 = vsub.f32 0.0, %v5567
      %v5722 = vsub.f32 0.0, %v5001
      %v5723 = vsub.f32 0.0, %v5003
      %v5724 = vsub.f32 0.0, %v5194
      %v5725 = vsub.f32 0.0, %v5196
      %v5726 = vsub.f32 0.0, %v5387
      %v5727 = vsub.f32 0.0, %v5389
      %v5728 = vsub.f32 0.0, %v5572
      %v5729 = vsub.f32 0.0, %v5005
      %v5730 = vsub.f32 0.0, %v5007
      %v5731 = vsub.f32 0.0, %v5198
      %v5732 = vsub.f32 0.0, %v5200
      %v5733 = vsub.f32 0.0, %v5391
      %v5734 = vsub.f32 0.0, %v5393
      %v5735 = vsub.f32 0.0, %v5575
      %v5736 = vsub.f32 0.0, %v5011
      %v5737 = vsub.f32 0.0, %v5013
      %v5738 = vsub.f32 0.0, %v5204
      %v5739 = vsub.f32 0.0, %v5206
      %v5740 = vsub.f32 0.0, %v5397
      %v5741 = vsub.f32 0.0, %v5399
      %v5742 = vsub.f32 0.0, %v5580
      %v5743 = vsub.f32 0.0, %v5015
      %v5744 = vsub.f32 0.0, %v5017
      %v5745 = vsub.f32 0.0, %v5208
      %v5746 = vsub.f32 0.0, %v5210
      %v5747 = vsub.f32 0.0, %v5401
      %v5748 = vsub.f32 0.0, %v5403
      %v5749 = vsub.f32 0.0, %v5583
      %v5750 = vsub.f32 0.0, %v5021
      %v5751 = vsub.f32 0.0, %v5023
      %v5752 = vsub.f32 0.0, %v5214
      %v5753 = vsub.f32 0.0, %v5216
      %v5754 = vsub.f32 0.0, %v5407
      %v5755 = vsub.f32 0.0, %v5409
      %v5756 = vsub.f32 0.0, %v5588
      %v5757 = vsub.f32 0.0, %v5025
      %v5758 = vsub.f32 0.0, %v5027
      %v5759 = vsub.f32 0.0, %v5218
      %v5760 = vsub.f32 0.0, %v5220
      %v5761 = vsub.f32 0.0, %v5411
      %v5762 = vsub.f32 0.0, %v5413
      %v5763 = vsub.f32 0.0, %v5591
      %v5764 = vsub.f32 0.0, %v5031
      %v5765 = vsub.f32 0.0, %v5033
      %v5766 = vsub.f32 0.0, %v5224
      %v5767 = vsub.f32 0.0, %v5226
      %v5768 = vsub.f32 0.0, %v5417
      %v5769 = vsub.f32 0.0, %v5419
      %v5770 = vsub.f32 0.0, %v5596
      %v5771 = vsub.f32 0.0, %v5035
      %v5772 = vsub.f32 0.0, %v5037
      %v5773 = vsub.f32 0.0, %v5228
      %v5774 = vsub.f32 0.0, %v5230
      %v5775 = vsub.f32 0.0, %v5421
      %v5776 = vsub.f32 0.0, %v5423
      %v5777 = vsub.f32 0.0, %v5599
      %v5778 = vsub.f32 0.0, %v5041
      %v5779 = vsub.f32 0.0, %v5043
      %v5780 = vsub.f32 0.0, %v5234
      %v5781 = vsub.f32 0.0, %v5236
      %v5782 = vsub.f32 0.0, %v5427
      %v5783 = vsub.f32 0.0, %v5429
      %v5784 = vsub.f32 0.0, %v5604
      %v5785 = vsub.f32 0.0, %v5045
      %v5786 = vsub.f32 0.0, %v5047
      %v5787 = vsub.f32 0.0, %v5238
      %v5788 = vsub.f32 0.0, %v5240
      %v5789 = vsub.f32 0.0, %v5431
      %v5790 = vsub.f32 0.0, %v5433
      %v5791 = vsub.f32 0.0, %v5607
      %v5792 = vsub.f32 0.0, %v5051
      %v5793 = vsub.f32 0.0, %v5053
      %v5794 = vsub.f32 0.0, %v5244
      %v5795 = vsub.f32 0.0, %v5246
      %v5796 = vsub.f32 0.0, %v5437
      %v5797 = vsub.f32 0.0, %v5439
      %v5798 = vsub.f32 0.0, %v5612
      %v5799 = vsub.f32 0.0, %v5055
      %v5800 = vsub.f32 0.0, %v5057
      %v5801 = vsub.f32 0.0, %v5248
      %v5802 = vsub.f32 0.0, %v5250
      %v5803 = vsub.f32 0.0, %v5441
      %v5804 = vsub.f32 0.0, %v5443
      %v5805 = vsub.f32 0.0, %v5615
      %v5806 = vsub.f32 0.0, %v5061
      %v5807 = vsub.f32 0.0, %v5063
      %v5808 = vsub.f32 0.0, %v5254
      %v5809 = vsub.f32 0.0, %v5256
      %v5810 = vsub.f32 0.0, %v5447
      %v5811 = vsub.f32 0.0, %v5449
      %v5812 = vsub.f32 0.0, %v5620
      %v5813 = vsub.f32 0.0, %v5065
      %v5814 = vsub.f32 0.0, %v5067
      %v5815 = vsub.f32 0.0, %v5258
      %v5816 = vsub.f32 0.0, %v5260
      %v5817 = vsub.f32 0.0, %v5451
      %v5818 = vsub.f32 0.0, %v5453
      %v5819 = vsub.f32 0.0, %v5623
      %v5820 = vsub.f32 0.0, %v5071
      %v5821 = vsub.f32 0.0, %v5073
      %v5822 = vsub.f32 0.0, %v5264
      %v5823 = vsub.f32 0.0, %v5266
      %v5824 = vsub.f32 0.0, %v5457
      %v5825 = vsub.f32 0.0, %v5459
      %v5826 = vsub.f32 0.0, %v5628
      %v5827 = vsub.f32 0.0, %v5075
      %v5828 = vsub.f32 0.0, %v5077
      %v5829 = vsub.f32 0.0, %v5268
      %v5830 = vsub.f32 0.0, %v5270
      %v5831 = vsub.f32 0.0, %v5461
      %v5832 = vsub.f32 0.0, %v5463
      %v5833 = vsub.f32 0.0, %v5631
      %v5834 = vsub.f32 0.0, %v5081
      %v5835 = vsub.f32 0.0, %v5083
      %v5836 = vsub.f32 0.0, %v5274
      %v5837 = vsub.f32 0.0, %v5276
      %v5838 = vsub.f32 0.0, %v5467
      %v5839 = vsub.f32 0.0, %v5469
      %v5840 = vsub.f32 0.0, %v5636
      %v5841 = vsub.f32 0.0, %v5085
      %v5842 = vsub.f32 0.0, %v5087
      %v5843 = vsub.f32 0.0, %v5278
      %v5844 = vsub.f32 0.0, %v5280
      %v5845 = vsub.f32 0.0, %v5471
      %v5846 = vsub.f32 0.0, %v5473
      %v5847 = vsub.f32 0.0, %v5639
      %v5848 = vsub.f32 0.0, %v5091
      %v5849 = vsub.f32 0.0, %v5093
      %v5850 = vsub.f32 0.0, %v5284
      %v5851 = vsub.f32 0.0, %v5286
      %v5852 = vsub.f32 0.0, %v5477
      %v5853 = vsub.f32 0.0, %v5479
      %v5854 = vsub.f32 0.0, %v5644
      %v5855 = vsub.f32 0.0, %v5095
      %v5856 = vsub.f32 0.0, %v5097
      %v5857 = vsub.f32 0.0, %v5288
      %v5858 = vsub.f32 0.0, %v5290
      %v5859 = vsub.f32 0.0, %v5481
      %v5860 = vsub.f32 0.0, %v5483
      %v5861 = vsub.f32 0.0, %v5647
      %v5862 = vsub.f32 0.0, %v5101
      %v5863 = vsub.f32 0.0, %v5103
      %v5864 = vsub.f32 0.0, %v5294
      %v5865 = vsub.f32 0.0, %v5296
      %v5866 = vsub.f32 0.0, %v5487
      %v5867 = vsub.f32 0.0, %v5489
      %v5868 = vsub.f32 0.0, %v5652
      %v5869 = vsub.f32 0.0, %v5105
      %v5870 = vsub.f32 0.0, %v5107
      %v5871 = vsub.f32 0.0, %v5298
      %v5872 = vsub.f32 0.0, %v5300
      %v5873 = vsub.f32 0.0, %v5491
      %v5874 = vsub.f32 0.0, %v5493
      %v5875 = vsub.f32 0.0, %v5655
      %v5876 = vsub.f32 0.0, %v5111
      %v5877 = vsub.f32 0.0, %v5113
      %v5878 = vsub.f32 0.0, %v5304
      %v5879 = vsub.f32 0.0, %v5306
      %v5880 = vsub.f32 0.0, %v5497
      %v5881 = vsub.f32 0.0, %v5499
      %v5882 = vsub.f32 0.0, %v5660
      %v5883 = vsub.f32 0.0, %v5115
      %v5884 = vsub.f32 0.0, %v5117
      %v5885 = vsub.f32 0.0, %v5308
      %v5886 = vsub.f32 0.0, %v5310
      %v5887 = vsub.f32 0.0, %v5501
      %v5888 = vsub.f32 0.0, %v5503
      %v5889 = vsub.f32 0.0, %v5663
      %v5890 = vmul.f32 %v5666, 1.442695
      %v5891 = vpow.pop %v5890
      %v5892 = vmul.f32 %v5667, 1.442695
      %v5893 = vpow.pop %v5892
      %v5894 = vmul.f32 %v5668, 1.442695
      %v5895 = vpow.pop %v5894
      %v5896 = vmul.f32 %v5669, 1.442695
      %v5897 = vpow.pop %v5896
      %v5898 = vmul.f32 %v5670, 1.442695
      %v5899 = vpow.pop %v5898
      %v5900 = vmul.f32 %v5671, 1.442695
      %v5901 = vpow.pop %v5900
      %v5902 = vmul.f32 %v5672, 1.442695
      %v5903 = vpow.pop %v5902
      %v5904 = vmul.f32 %v5673, 1.442695
      %v5905 = vpow.pop %v5904
      %v5906 = vmul.f32 %v5674, 1.442695
      %v5907 = vpow.pop %v5906
      %v5908 = vmul.f32 %v5675, 1.442695
      %v5909 = vpow.pop %v5908
      %v5910 = vmul.f32 %v5676, 1.442695
      %v5911 = vpow.pop %v5910
      %v5912 = vmul.f32 %v5677, 1.442695
      %v5913 = vpow.pop %v5912
      %v5914 = vmul.f32 %v5678, 1.442695
      %v5915 = vpow.pop %v5914
      %v5916 = vmul.f32 %v5679, 1.442695
      %v5917 = vpow.pop %v5916
      %v5918 = vmul.f32 %v5680, 1.442695
      %v5919 = vpow.pop %v5918
      %v5920 = vmul.f32 %v5681, 1.442695
      %v5921 = vpow.pop %v5920
      %v5922 = vmul.f32 %v5682, 1.442695
      %v5923 = vpow.pop %v5922
      %v5924 = vmul.f32 %v5683, 1.442695
      %v5925 = vpow.pop %v5924
      %v5926 = vmul.f32 %v5684, 1.442695
      %v5927 = vpow.pop %v5926
      %v5928 = vmul.f32 %v5685, 1.442695
      %v5929 = vpow.pop %v5928
      %v5930 = vmul.f32 %v5686, 1.442695
      %v5931 = vpow.pop %v5930
      %v5932 = vmul.f32 %v5687, 1.442695
      %v5933 = vpow.pop %v5932
      %v5934 = vmul.f32 %v5688, 1.442695
      %v5935 = vpow.pop %v5934
      %v5936 = vmul.f32 %v5689, 1.442695
      %v5937 = vpow.pop %v5936
      %v5938 = vmul.f32 %v5690, 1.442695
      %v5939 = vpow.pop %v5938
      %v5940 = vmul.f32 %v5691, 1.442695
      %v5941 = vpow.pop %v5940
      %v5942 = vmul.f32 %v5692, 1.442695
      %v5943 = vpow.pop %v5942
      %v5944 = vmul.f32 %v5693, 1.442695
      %v5945 = vpow.pop %v5944
      %v5946 = vmul.f32 %v5694, 1.442695
      %v5947 = vpow.pop %v5946
      %v5948 = vmul.f32 %v5695, 1.442695
      %v5949 = vpow.pop %v5948
      %v5950 = vmul.f32 %v5696, 1.442695
      %v5951 = vpow.pop %v5950
      %v5952 = vmul.f32 %v5697, 1.442695
      %v5953 = vpow.pop %v5952
      %v5954 = vmul.f32 %v5698, 1.442695
      %v5955 = vpow.pop %v5954
      %v5956 = vmul.f32 %v5699, 1.442695
      %v5957 = vpow.pop %v5956
      %v5958 = vmul.f32 %v5700, 1.442695
      %v5959 = vpow.pop %v5958
      %v5960 = vmul.f32 %v5701, 1.442695
      %v5961 = vpow.pop %v5960
      %v5962 = vmul.f32 %v5702, 1.442695
      %v5963 = vpow.pop %v5962
      %v5964 = vmul.f32 %v5703, 1.442695
      %v5965 = vpow.pop %v5964
      %v5966 = vmul.f32 %v5704, 1.442695
      %v5967 = vpow.pop %v5966
      %v5968 = vmul.f32 %v5705, 1.442695
      %v5969 = vpow.pop %v5968
      %v5970 = vmul.f32 %v5706, 1.442695
      %v5971 = vpow.pop %v5970
      %v5972 = vmul.f32 %v5707, 1.442695
      %v5973 = vpow.pop %v5972
      %v5974 = vmul.f32 %v5708, 1.442695
      %v5975 = vpow.pop %v5974
      %v5976 = vmul.f32 %v5709, 1.442695
      %v5977 = vpow.pop %v5976
      %v5978 = vmul.f32 %v5710, 1.442695
      %v5979 = vpow.pop %v5978
      %v5980 = vmul.f32 %v5711, 1.442695
      %v5981 = vpow.pop %v5980
      %v5982 = vmul.f32 %v5712, 1.442695
      %v5983 = vpow.pop %v5982
      %v5984 = vmul.f32 %v5713, 1.442695
      %v5985 = vpow.pop %v5984
      %v5986 = vmul.f32 %v5714, 1.442695
      %v5987 = vpow.pop %v5986
      %v5988 = vmul.f32 %v5715, 1.442695
      %v5989 = vpow.pop %v5988
      %v5990 = vmul.f32 %v5716, 1.442695
      %v5991 = vpow.pop %v5990
      %v5992 = vmul.f32 %v5717, 1.442695
      %v5993 = vpow.pop %v5992
      %v5994 = vmul.f32 %v5718, 1.442695
      %v5995 = vpow.pop %v5994
      %v5996 = vmul.f32 %v5719, 1.442695
      %v5997 = vpow.pop %v5996
      %v5998 = vmul.f32 %v5720, 1.442695
      %v5999 = vpow.pop %v5998
      %v6000 = vmul.f32 %v5721, 1.442695
      %v6001 = vpow.pop %v6000
      %v6002 = vmul.f32 %v5722, 1.442695
      %v6003 = vpow.pop %v6002
      %v6004 = vmul.f32 %v5723, 1.442695
      %v6005 = vpow.pop %v6004
      %v6006 = vmul.f32 %v5724, 1.442695
      %v6007 = vpow.pop %v6006
      %v6008 = vmul.f32 %v5725, 1.442695
      %v6009 = vpow.pop %v6008
      %v6010 = vmul.f32 %v5726, 1.442695
      %v6011 = vpow.pop %v6010
      %v6012 = vmul.f32 %v5727, 1.442695
      %v6013 = vpow.pop %v6012
      %v6014 = vmul.f32 %v5728, 1.442695
      %v6015 = vpow.pop %v6014
      %v6016 = vmul.f32 %v5729, 1.442695
      %v6017 = vpow.pop %v6016
      %v6018 = vmul.f32 %v5730, 1.442695
      %v6019 = vpow.pop %v6018
      %v6020 = vmul.f32 %v5731, 1.442695
      %v6021 = vpow.pop %v6020
      %v6022 = vmul.f32 %v5732, 1.442695
      %v6023 = vpow.pop %v6022
      %v6024 = vmul.f32 %v5733, 1.442695
      %v6025 = vpow.pop %v6024
      %v6026 = vmul.f32 %v5734, 1.442695
      %v6027 = vpow.pop %v6026
      %v6028 = vmul.f32 %v5735, 1.442695
      %v6029 = vpow.pop %v6028
      %v6030 = vmul.f32 %v5736, 1.442695
      %v6031 = vpow.pop %v6030
      %v6032 = vmul.f32 %v5737, 1.442695
      %v6033 = vpow.pop %v6032
      %v6034 = vmul.f32 %v5738, 1.442695
      %v6035 = vpow.pop %v6034
      %v6036 = vmul.f32 %v5739, 1.442695
      %v6037 = vpow.pop %v6036
      %v6038 = vmul.f32 %v5740, 1.442695
      %v6039 = vpow.pop %v6038
      %v6040 = vmul.f32 %v5741, 1.442695
      %v6041 = vpow.pop %v6040
      %v6042 = vmul.f32 %v5742, 1.442695
      %v6043 = vpow.pop %v6042
      %v6044 = vmul.f32 %v5743, 1.442695
      %v6045 = vpow.pop %v6044
      %v6046 = vmul.f32 %v5744, 1.442695
      %v6047 = vpow.pop %v6046
      %v6048 = vmul.f32 %v5745, 1.442695
      %v6049 = vpow.pop %v6048
      %v6050 = vmul.f32 %v5746, 1.442695
      %v6051 = vpow.pop %v6050
      %v6052 = vmul.f32 %v5747, 1.442695
      %v6053 = vpow.pop %v6052
      %v6054 = vmul.f32 %v5748, 1.442695
      %v6055 = vpow.pop %v6054
      %v6056 = vmul.f32 %v5749, 1.442695
      %v6057 = vpow.pop %v6056
      %v6058 = vmul.f32 %v5750, 1.442695
      %v6059 = vpow.pop %v6058
      %v6060 = vmul.f32 %v5751, 1.442695
      %v6061 = vpow.pop %v6060
      %v6062 = vmul.f32 %v5752, 1.442695
      %v6063 = vpow.pop %v6062
      %v6064 = vmul.f32 %v5753, 1.442695
      %v6065 = vpow.pop %v6064
      %v6066 = vmul.f32 %v5754, 1.442695
      %v6067 = vpow.pop %v6066
      %v6068 = vmul.f32 %v5755, 1.442695
      %v6069 = vpow.pop %v6068
      %v6070 = vmul.f32 %v5756, 1.442695
      %v6071 = vpow.pop %v6070
      %v6072 = vmul.f32 %v5757, 1.442695
      %v6073 = vpow.pop %v6072
      %v6074 = vmul.f32 %v5758, 1.442695
      %v6075 = vpow.pop %v6074
      %v6076 = vmul.f32 %v5759, 1.442695
      %v6077 = vpow.pop %v6076
      %v6078 = vmul.f32 %v5760, 1.442695
      %v6079 = vpow.pop %v6078
      %v6080 = vmul.f32 %v5761, 1.442695
      %v6081 = vpow.pop %v6080
      %v6082 = vmul.f32 %v5762, 1.442695
      %v6083 = vpow.pop %v6082
      %v6084 = vmul.f32 %v5763, 1.442695
      %v6085 = vpow.pop %v6084
      %v6086 = vmul.f32 %v5764, 1.442695
      %v6087 = vpow.pop %v6086
      %v6088 = vmul.f32 %v5765, 1.442695
      %v6089 = vpow.pop %v6088
      %v6090 = vmul.f32 %v5766, 1.442695
      %v6091 = vpow.pop %v6090
      %v6092 = vmul.f32 %v5767, 1.442695
      %v6093 = vpow.pop %v6092
      %v6094 = vmul.f32 %v5768, 1.442695
      %v6095 = vpow.pop %v6094
      %v6096 = vmul.f32 %v5769, 1.442695
      %v6097 = vpow.pop %v6096
      %v6098 = vmul.f32 %v5770, 1.442695
      %v6099 = vpow.pop %v6098
      %v6100 = vmul.f32 %v5771, 1.442695
      %v6101 = vpow.pop %v6100
      %v6102 = vmul.f32 %v5772, 1.442695
      %v6103 = vpow.pop %v6102
      %v6104 = vmul.f32 %v5773, 1.442695
      %v6105 = vpow.pop %v6104
      %v6106 = vmul.f32 %v5774, 1.442695
      %v6107 = vpow.pop %v6106
      %v6108 = vmul.f32 %v5775, 1.442695
      %v6109 = vpow.pop %v6108
      %v6110 = vmul.f32 %v5776, 1.442695
      %v6111 = vpow.pop %v6110
      %v6112 = vmul.f32 %v5777, 1.442695
      %v6113 = vpow.pop %v6112
      %v6114 = vmul.f32 %v5778, 1.442695
      %v6115 = vpow.pop %v6114
      %v6116 = vmul.f32 %v5779, 1.442695
      %v6117 = vpow.pop %v6116
      %v6118 = vmul.f32 %v5780, 1.442695
      %v6119 = vpow.pop %v6118
      %v6120 = vmul.f32 %v5781, 1.442695
      %v6121 = vpow.pop %v6120
      %v6122 = vmul.f32 %v5782, 1.442695
      %v6123 = vpow.pop %v6122
      %v6124 = vmul.f32 %v5783, 1.442695
      %v6125 = vpow.pop %v6124
      %v6126 = vmul.f32 %v5784, 1.442695
      %v6127 = vpow.pop %v6126
      %v6128 = vmul.f32 %v5785, 1.442695
      %v6129 = vpow.pop %v6128
      %v6130 = vmul.f32 %v5786, 1.442695
      %v6131 = vpow.pop %v6130
      %v6132 = vmul.f32 %v5787, 1.442695
      %v6133 = vpow.pop %v6132
      %v6134 = vmul.f32 %v5788, 1.442695
      %v6135 = vpow.pop %v6134
      %v6136 = vmul.f32 %v5789, 1.442695
      %v6137 = vpow.pop %v6136
      %v6138 = vmul.f32 %v5790, 1.442695
      %v6139 = vpow.pop %v6138
      %v6140 = vmul.f32 %v5791, 1.442695
      %v6141 = vpow.pop %v6140
      %v6142 = vmul.f32 %v5792, 1.442695
      %v6143 = vpow.pop %v6142
      %v6144 = vmul.f32 %v5793, 1.442695
      %v6145 = vpow.pop %v6144
      %v6146 = vmul.f32 %v5794, 1.442695
      %v6147 = vpow.pop %v6146
      %v6148 = vmul.f32 %v5795, 1.442695
      %v6149 = vpow.pop %v6148
      %v6150 = vmul.f32 %v5796, 1.442695
      %v6151 = vpow.pop %v6150
      %v6152 = vmul.f32 %v5797, 1.442695
      %v6153 = vpow.pop %v6152
      %v6154 = vmul.f32 %v5798, 1.442695
      %v6155 = vpow.pop %v6154
      %v6156 = vmul.f32 %v5799, 1.442695
      %v6157 = vpow.pop %v6156
      %v6158 = vmul.f32 %v5800, 1.442695
      %v6159 = vpow.pop %v6158
      %v6160 = vmul.f32 %v5801, 1.442695
      %v6161 = vpow.pop %v6160
      %v6162 = vmul.f32 %v5802, 1.442695
      %v6163 = vpow.pop %v6162
      %v6164 = vmul.f32 %v5803, 1.442695
      %v6165 = vpow.pop %v6164
      %v6166 = vmul.f32 %v5804, 1.442695
      %v6167 = vpow.pop %v6166
      %v6168 = vmul.f32 %v5805, 1.442695
      %v6169 = vpow.pop %v6168
      %v6170 = vmul.f32 %v5806, 1.442695
      %v6171 = vpow.pop %v6170
      %v6172 = vmul.f32 %v5807, 1.442695
      %v6173 = vpow.pop %v6172
      %v6174 = vmul.f32 %v5808, 1.442695
      %v6175 = vpow.pop %v6174
      %v6176 = vmul.f32 %v5809, 1.442695
      %v6177 = vpow.pop %v6176
      %v6178 = vmul.f32 %v5810, 1.442695
      %v6179 = vpow.pop %v6178
      %v6180 = vmul.f32 %v5811, 1.442695
      %v6181 = vpow.pop %v6180
      %v6182 = vmul.f32 %v5812, 1.442695
      %v6183 = vpow.pop %v6182
      %v6184 = vmul.f32 %v5813, 1.442695
      %v6185 = vpow.pop %v6184
      %v6186 = vmul.f32 %v5814, 1.442695
      %v6187 = vpow.pop %v6186
      %v6188 = vmul.f32 %v5815, 1.442695
      %v6189 = vpow.pop %v6188
      %v6190 = vmul.f32 %v5816, 1.442695
      %v6191 = vpow.pop %v6190
      %v6192 = vmul.f32 %v5817, 1.442695
      %v6193 = vpow.pop %v6192
      %v6194 = vmul.f32 %v5818, 1.442695
      %v6195 = vpow.pop %v6194
      %v6196 = vmul.f32 %v5819, 1.442695
      %v6197 = vpow.pop %v6196
      %v6198 = vmul.f32 %v5820, 1.442695
      %v6199 = vpow.pop %v6198
      %v6200 = vmul.f32 %v5821, 1.442695
      %v6201 = vpow.pop %v6200
      %v6202 = vmul.f32 %v5822, 1.442695
      %v6203 = vpow.pop %v6202
      %v6204 = vmul.f32 %v5823, 1.442695
      %v6205 = vpow.pop %v6204
      %v6206 = vmul.f32 %v5824, 1.442695
      %v6207 = vpow.pop %v6206
      %v6208 = vmul.f32 %v5825, 1.442695
      %v6209 = vpow.pop %v6208
      %v6210 = vmul.f32 %v5826, 1.442695
      %v6211 = vpow.pop %v6210
      %v6212 = vmul.f32 %v5827, 1.442695
      %v6213 = vpow.pop %v6212
      %v6214 = vmul.f32 %v5828, 1.442695
      %v6215 = vpow.pop %v6214
      %v6216 = vmul.f32 %v5829, 1.442695
      %v6217 = vpow.pop %v6216
      %v6218 = vmul.f32 %v5830, 1.442695
      %v6219 = vpow.pop %v6218
      %v6220 = vmul.f32 %v5831, 1.442695
      %v6221 = vpow.pop %v6220
      %v6222 = vmul.f32 %v5832, 1.442695
      %v6223 = vpow.pop %v6222
      %v6224 = vmul.f32 %v5833, 1.442695
      %v6225 = vpow.pop %v6224
      %v6226 = vmul.f32 %v5834, 1.442695
      %v6227 = vpow.pop %v6226
      %v6228 = vmul.f32 %v5835, 1.442695
      %v6229 = vpow.pop %v6228
      %v6230 = vmul.f32 %v5836, 1.442695
      %v6231 = vpow.pop %v6230
      %v6232 = vmul.f32 %v5837, 1.442695
      %v6233 = vpow.pop %v6232
      %v6234 = vmul.f32 %v5838, 1.442695
      %v6235 = vpow.pop %v6234
      %v6236 = vmul.f32 %v5839, 1.442695
      %v6237 = vpow.pop %v6236
      %v6238 = vmul.f32 %v5840, 1.442695
      %v6239 = vpow.pop %v6238
      %v6240 = vmul.f32 %v5841, 1.442695
      %v6241 = vpow.pop %v6240
      %v6242 = vmul.f32 %v5842, 1.442695
      %v6243 = vpow.pop %v6242
      %v6244 = vmul.f32 %v5843, 1.442695
      %v6245 = vpow.pop %v6244
      %v6246 = vmul.f32 %v5844, 1.442695
      %v6247 = vpow.pop %v6246
      %v6248 = vmul.f32 %v5845, 1.442695
      %v6249 = vpow.pop %v6248
      %v6250 = vmul.f32 %v5846, 1.442695
      %v6251 = vpow.pop %v6250
      %v6252 = vmul.f32 %v5847, 1.442695
      %v6253 = vpow.pop %v6252
      %v6254 = vmul.f32 %v5848, 1.442695
      %v6255 = vpow.pop %v6254
      %v6256 = vmul.f32 %v5849, 1.442695
      %v6257 = vpow.pop %v6256
      %v6258 = vmul.f32 %v5850, 1.442695
      %v6259 = vpow.pop %v6258
      %v6260 = vmul.f32 %v5851, 1.442695
      %v6261 = vpow.pop %v6260
      %v6262 = vmul.f32 %v5852, 1.442695
      %v6263 = vpow.pop %v6262
      %v6264 = vmul.f32 %v5853, 1.442695
      %v6265 = vpow.pop %v6264
      %v6266 = vmul.f32 %v5854, 1.442695
      %v6267 = vpow.pop %v6266
      %v6268 = vmul.f32 %v5855, 1.442695
      %v6269 = vpow.pop %v6268
      %v6270 = vmul.f32 %v5856, 1.442695
      %v6271 = vpow.pop %v6270
      %v6272 = vmul.f32 %v5857, 1.442695
      %v6273 = vpow.pop %v6272
      %v6274 = vmul.f32 %v5858, 1.442695
      %v6275 = vpow.pop %v6274
      %v6276 = vmul.f32 %v5859, 1.442695
      %v6277 = vpow.pop %v6276
      %v6278 = vmul.f32 %v5860, 1.442695
      %v6279 = vpow.pop %v6278
      %v6280 = vmul.f32 %v5861, 1.442695
      %v6281 = vpow.pop %v6280
      %v6282 = vmul.f32 %v5862, 1.442695
      %v6283 = vpow.pop %v6282
      %v6284 = vmul.f32 %v5863, 1.442695
      %v6285 = vpow.pop %v6284
      %v6286 = vmul.f32 %v5864, 1.442695
      %v6287 = vpow.pop %v6286
      %v6288 = vmul.f32 %v5865, 1.442695
      %v6289 = vpow.pop %v6288
      %v6290 = vmul.f32 %v5866, 1.442695
      %v6291 = vpow.pop %v6290
      %v6292 = vmul.f32 %v5867, 1.442695
      %v6293 = vpow.pop %v6292
      %v6294 = vmul.f32 %v5868, 1.442695
      %v6295 = vpow.pop %v6294
      %v6296 = vmul.f32 %v5869, 1.442695
      %v6297 = vpow.pop %v6296
      %v6298 = vmul.f32 %v5870, 1.442695
      %v6299 = vpow.pop %v6298
      %v6300 = vmul.f32 %v5871, 1.442695
      %v6301 = vpow.pop %v6300
      %v6302 = vmul.f32 %v5872, 1.442695
      %v6303 = vpow.pop %v6302
      %v6304 = vmul.f32 %v5873, 1.442695
      %v6305 = vpow.pop %v6304
      %v6306 = vmul.f32 %v5874, 1.442695
      %v6307 = vpow.pop %v6306
      %v6308 = vmul.f32 %v5875, 1.442695
      %v6309 = vpow.pop %v6308
      %v6310 = vmul.f32 %v5876, 1.442695
      %v6311 = vpow.pop %v6310
      %v6312 = vmul.f32 %v5877, 1.442695
      %v6313 = vpow.pop %v6312
      %v6314 = vmul.f32 %v5878, 1.442695
      %v6315 = vpow.pop %v6314
      %v6316 = vmul.f32 %v5879, 1.442695
      %v6317 = vpow.pop %v6316
      %v6318 = vmul.f32 %v5880, 1.442695
      %v6319 = vpow.pop %v6318
      %v6320 = vmul.f32 %v5881, 1.442695
      %v6321 = vpow.pop %v6320
      %v6322 = vmul.f32 %v5882, 1.442695
      %v6323 = vpow.pop %v6322
      %v6324 = vmul.f32 %v5883, 1.442695
      %v6325 = vpow.pop %v6324
      %v6326 = vmul.f32 %v5884, 1.442695
      %v6327 = vpow.pop %v6326
      %v6328 = vmul.f32 %v5885, 1.442695
      %v6329 = vpow.pop %v6328
      %v6330 = vmul.f32 %v5886, 1.442695
      %v6331 = vpow.pop %v6330
      %v6332 = vmul.f32 %v5887, 1.442695
      %v6333 = vpow.pop %v6332
      %v6334 = vmul.f32 %v5888, 1.442695
      %v6335 = vpow.pop %v6334
      %v6336 = vmul.f32 %v5889, 1.442695
      %v6337 = vpow.pop %v6336
      %v6338 = vadd.f32 %v5891, 1.0
      %v6339 = vadd.f32 %v5893, 1.0
      %v6340 = vadd.f32 %v5895, 1.0
      %v6341 = vadd.f32 %v5897, 1.0
      %v6342 = vadd.f32 %v5899, 1.0
      %v6343 = vadd.f32 %v5901, 1.0
      %v6344 = vadd.f32 %v5903, 1.0
      %v6345 = vadd.f32 %v5905, 1.0
      %v6346 = vadd.f32 %v5907, 1.0
      %v6347 = vadd.f32 %v5909, 1.0
      %v6348 = vadd.f32 %v5911, 1.0
      %v6349 = vadd.f32 %v5913, 1.0
      %v6350 = vadd.f32 %v5915, 1.0
      %v6351 = vadd.f32 %v5917, 1.0
      %v6352 = vadd.f32 %v5919, 1.0
      %v6353 = vadd.f32 %v5921, 1.0
      %v6354 = vadd.f32 %v5923, 1.0
      %v6355 = vadd.f32 %v5925, 1.0
      %v6356 = vadd.f32 %v5927, 1.0
      %v6357 = vadd.f32 %v5929, 1.0
      %v6358 = vadd.f32 %v5931, 1.0
      %v6359 = vadd.f32 %v5933, 1.0
      %v6360 = vadd.f32 %v5935, 1.0
      %v6361 = vadd.f32 %v5937, 1.0
      %v6362 = vadd.f32 %v5939, 1.0
      %v6363 = vadd.f32 %v5941, 1.0
      %v6364 = vadd.f32 %v5943, 1.0
      %v6365 = vadd.f32 %v5945, 1.0
      %v6366 = vadd.f32 %v5947, 1.0
      %v6367 = vadd.f32 %v5949, 1.0
      %v6368 = vadd.f32 %v5951, 1.0
      %v6369 = vadd.f32 %v5953, 1.0
      %v6370 = vadd.f32 %v5955, 1.0
      %v6371 = vadd.f32 %v5957, 1.0
      %v6372 = vadd.f32 %v5959, 1.0
      %v6373 = vadd.f32 %v5961, 1.0
      %v6374 = vadd.f32 %v5963, 1.0
      %v6375 = vadd.f32 %v5965, 1.0
      %v6376 = vadd.f32 %v5967, 1.0
      %v6377 = vadd.f32 %v5969, 1.0
      %v6378 = vadd.f32 %v5971, 1.0
      %v6379 = vadd.f32 %v5973, 1.0
      %v6380 = vadd.f32 %v5975, 1.0
      %v6381 = vadd.f32 %v5977, 1.0
      %v6382 = vadd.f32 %v5979, 1.0
      %v6383 = vadd.f32 %v5981, 1.0
      %v6384 = vadd.f32 %v5983, 1.0
      %v6385 = vadd.f32 %v5985, 1.0
      %v6386 = vadd.f32 %v5987, 1.0
      %v6387 = vadd.f32 %v5989, 1.0
      %v6388 = vadd.f32 %v5991, 1.0
      %v6389 = vadd.f32 %v5993, 1.0
      %v6390 = vadd.f32 %v5995, 1.0
      %v6391 = vadd.f32 %v5997, 1.0
      %v6392 = vadd.f32 %v5999, 1.0
      %v6393 = vadd.f32 %v6001, 1.0
      %v6394 = vadd.f32 %v6003, 1.0
      %v6395 = vadd.f32 %v6005, 1.0
      %v6396 = vadd.f32 %v6007, 1.0
      %v6397 = vadd.f32 %v6009, 1.0
      %v6398 = vadd.f32 %v6011, 1.0
      %v6399 = vadd.f32 %v6013, 1.0
      %v6400 = vadd.f32 %v6015, 1.0
      %v6401 = vadd.f32 %v6017, 1.0
      %v6402 = vadd.f32 %v6019, 1.0
      %v6403 = vadd.f32 %v6021, 1.0
      %v6404 = vadd.f32 %v6023, 1.0
      %v6405 = vadd.f32 %v6025, 1.0
      %v6406 = vadd.f32 %v6027, 1.0
      %v6407 = vadd.f32 %v6029, 1.0
      %v6408 = vadd.f32 %v6031, 1.0
      %v6409 = vadd.f32 %v6033, 1.0
      %v6410 = vadd.f32 %v6035, 1.0
      %v6411 = vadd.f32 %v6037, 1.0
      %v6412 = vadd.f32 %v6039, 1.0
      %v6413 = vadd.f32 %v6041, 1.0
      %v6414 = vadd.f32 %v6043, 1.0
      %v6415 = vadd.f32 %v6045, 1.0
      %v6416 = vadd.f32 %v6047, 1.0
      %v6417 = vadd.f32 %v6049, 1.0
      %v6418 = vadd.f32 %v6051, 1.0
      %v6419 = vadd.f32 %v6053, 1.0
      %v6420 = vadd.f32 %v6055, 1.0
      %v6421 = vadd.f32 %v6057, 1.0
      %v6422 = vadd.f32 %v6059, 1.0
      %v6423 = vadd.f32 %v6061, 1.0
      %v6424 = vadd.f32 %v6063, 1.0
      %v6425 = vadd.f32 %v6065, 1.0
      %v6426 = vadd.f32 %v6067, 1.0
      %v6427 = vadd.f32 %v6069, 1.0
      %v6428 = vadd.f32 %v6071, 1.0
      %v6429 = vadd.f32 %v6073, 1.0
      %v6430 = vadd.f32 %v6075, 1.0
      %v6431 = vadd.f32 %v6077, 1.0
      %v6432 = vadd.f32 %v6079, 1.0
      %v6433 = vadd.f32 %v6081, 1.0
      %v6434 = vadd.f32 %v6083, 1.0
      %v6435 = vadd.f32 %v6085, 1.0
      %v6436 = vadd.f32 %v6087, 1.0
      %v6437 = vadd.f32 %v6089, 1.0
      %v6438 = vadd.f32 %v6091, 1.0
      %v6439 = vadd.f32 %v6093, 1.0
      %v6440 = vadd.f32 %v6095, 1.0
      %v6441 = vadd.f32 %v6097, 1.0
      %v6442 = vadd.f32 %v6099, 1.0
      %v6443 = vadd.f32 %v6101, 1.0
      %v6444 = vadd.f32 %v6103, 1.0
      %v6445 = vadd.f32 %v6105, 1.0
      %v6446 = vadd.f32 %v6107, 1.0
      %v6447 = vadd.f32 %v6109, 1.0
      %v6448 = vadd.f32 %v6111, 1.0
      %v6449 = vadd.f32 %v6113, 1.0
      %v6450 = vadd.f32 %v6115, 1.0
      %v6451 = vadd.f32 %v6117, 1.0
      %v6452 = vadd.f32 %v6119, 1.0
      %v6453 = vadd.f32 %v6121, 1.0
      %v6454 = vadd.f32 %v6123, 1.0
      %v6455 = vadd.f32 %v6125, 1.0
      %v6456 = vadd.f32 %v6127, 1.0
      %v6457 = vadd.f32 %v6129, 1.0
      %v6458 = vadd.f32 %v6131, 1.0
      %v6459 = vadd.f32 %v6133, 1.0
      %v6460 = vadd.f32 %v6135, 1.0
      %v6461 = vadd.f32 %v6137, 1.0
      %v6462 = vadd.f32 %v6139, 1.0
      %v6463 = vadd.f32 %v6141, 1.0
      %v6464 = vadd.f32 %v6143, 1.0
      %v6465 = vadd.f32 %v6145, 1.0
      %v6466 = vadd.f32 %v6147, 1.0
      %v6467 = vadd.f32 %v6149, 1.0
      %v6468 = vadd.f32 %v6151, 1.0
      %v6469 = vadd.f32 %v6153, 1.0
      %v6470 = vadd.f32 %v6155, 1.0
      %v6471 = vadd.f32 %v6157, 1.0
      %v6472 = vadd.f32 %v6159, 1.0
      %v6473 = vadd.f32 %v6161, 1.0
      %v6474 = vadd.f32 %v6163, 1.0
      %v6475 = vadd.f32 %v6165, 1.0
      %v6476 = vadd.f32 %v6167, 1.0
      %v6477 = vadd.f32 %v6169, 1.0
      %v6478 = vadd.f32 %v6171, 1.0
      %v6479 = vadd.f32 %v6173, 1.0
      %v6480 = vadd.f32 %v6175, 1.0
      %v6481 = vadd.f32 %v6177, 1.0
      %v6482 = vadd.f32 %v6179, 1.0
      %v6483 = vadd.f32 %v6181, 1.0
      %v6484 = vadd.f32 %v6183, 1.0
      %v6485 = vadd.f32 %v6185, 1.0
      %v6486 = vadd.f32 %v6187, 1.0
      %v6487 = vadd.f32 %v6189, 1.0
      %v6488 = vadd.f32 %v6191, 1.0
      %v6489 = vadd.f32 %v6193, 1.0
      %v6490 = vadd.f32 %v6195, 1.0
      %v6491 = vadd.f32 %v6197, 1.0
      %v6492 = vadd.f32 %v6199, 1.0
      %v6493 = vadd.f32 %v6201, 1.0
      %v6494 = vadd.f32 %v6203, 1.0
      %v6495 = vadd.f32 %v6205, 1.0
      %v6496 = vadd.f32 %v6207, 1.0
      %v6497 = vadd.f32 %v6209, 1.0
      %v6498 = vadd.f32 %v6211, 1.0
      %v6499 = vadd.f32 %v6213, 1.0
      %v6500 = vadd.f32 %v6215, 1.0
      %v6501 = vadd.f32 %v6217, 1.0
      %v6502 = vadd.f32 %v6219, 1.0
      %v6503 = vadd.f32 %v6221, 1.0
      %v6504 = vadd.f32 %v6223, 1.0
      %v6505 = vadd.f32 %v6225, 1.0
      %v6506 = vadd.f32 %v6227, 1.0
      %v6507 = vadd.f32 %v6229, 1.0
      %v6508 = vadd.f32 %v6231, 1.0
      %v6509 = vadd.f32 %v6233, 1.0
      %v6510 = vadd.f32 %v6235, 1.0
      %v6511 = vadd.f32 %v6237, 1.0
      %v6512 = vadd.f32 %v6239, 1.0
      %v6513 = vadd.f32 %v6241, 1.0
      %v6514 = vadd.f32 %v6243, 1.0
      %v6515 = vadd.f32 %v6245, 1.0
      %v6516 = vadd.f32 %v6247, 1.0
      %v6517 = vadd.f32 %v6249, 1.0
      %v6518 = vadd.f32 %v6251, 1.0
      %v6519 = vadd.f32 %v6253, 1.0
      %v6520 = vadd.f32 %v6255, 1.0
      %v6521 = vadd.f32 %v6257, 1.0
      %v6522 = vadd.f32 %v6259, 1.0
      %v6523 = vadd.f32 %v6261, 1.0
      %v6524 = vadd.f32 %v6263, 1.0
      %v6525 = vadd.f32 %v6265, 1.0
      %v6526 = vadd.f32 %v6267, 1.0
      %v6527 = vadd.f32 %v6269, 1.0
      %v6528 = vadd.f32 %v6271, 1.0
      %v6529 = vadd.f32 %v6273, 1.0
      %v6530 = vadd.f32 %v6275, 1.0
      %v6531 = vadd.f32 %v6277, 1.0
      %v6532 = vadd.f32 %v6279, 1.0
      %v6533 = vadd.f32 %v6281, 1.0
      %v6534 = vadd.f32 %v6283, 1.0
      %v6535 = vadd.f32 %v6285, 1.0
      %v6536 = vadd.f32 %v6287, 1.0
      %v6537 = vadd.f32 %v6289, 1.0
      %v6538 = vadd.f32 %v6291, 1.0
      %v6539 = vadd.f32 %v6293, 1.0
      %v6540 = vadd.f32 %v6295, 1.0
      %v6541 = vadd.f32 %v6297, 1.0
      %v6542 = vadd.f32 %v6299, 1.0
      %v6543 = vadd.f32 %v6301, 1.0
      %v6544 = vadd.f32 %v6303, 1.0
      %v6545 = vadd.f32 %v6305, 1.0
      %v6546 = vadd.f32 %v6307, 1.0
      %v6547 = vadd.f32 %v6309, 1.0
      %v6548 = vadd.f32 %v6311, 1.0
      %v6549 = vadd.f32 %v6313, 1.0
      %v6550 = vadd.f32 %v6315, 1.0
      %v6551 = vadd.f32 %v6317, 1.0
      %v6552 = vadd.f32 %v6319, 1.0
      %v6553 = vadd.f32 %v6321, 1.0
      %v6554 = vadd.f32 %v6323, 1.0
      %v6555 = vadd.f32 %v6325, 1.0
      %v6556 = vadd.f32 %v6327, 1.0
      %v6557 = vadd.f32 %v6329, 1.0
      %v6558 = vadd.f32 %v6331, 1.0
      %v6559 = vadd.f32 %v6333, 1.0
      %v6560 = vadd.f32 %v6335, 1.0
      %v6561 = vadd.f32 %v6337, 1.0
      %v6562 = vrcp.pop %v6338
      %v6563 = vrcp.pop %v6339
      %v6564 = vrcp.pop %v6340
      %v6565 = vrcp.pop %v6341
      %v6566 = vrcp.pop %v6342
      %v6567 = vrcp.pop %v6343
      %v6568 = vrcp.pop %v6344
      %v6569 = vrcp.pop %v6345
      %v6570 = vrcp.pop %v6346
      %v6571 = vrcp.pop %v6347
      %v6572 = vrcp.pop %v6348
      %v6573 = vrcp.pop %v6349
      %v6574 = vrcp.pop %v6350
      %v6575 = vrcp.pop %v6351
      %v6576 = vrcp.pop %v6352
      %v6577 = vrcp.pop %v6353
      %v6578 = vrcp.pop %v6354
      %v6579 = vrcp.pop %v6355
      %v6580 = vrcp.pop %v6356
      %v6581 = vrcp.pop %v6357
      %v6582 = vrcp.pop %v6358
      %v6583 = vrcp.pop %v6359
      %v6584 = vrcp.pop %v6360
      %v6585 = vrcp.pop %v6361
      %v6586 = vrcp.pop %v6362
      %v6587 = vrcp.pop %v6363
      %v6588 = vrcp.pop %v6364
      %v6589 = vrcp.pop %v6365
      %v6590 = vrcp.pop %v6366
      %v6591 = vrcp.pop %v6367
      %v6592 = vrcp.pop %v6368
      %v6593 = vrcp.pop %v6369
      %v6594 = vrcp.pop %v6370
      %v6595 = vrcp.pop %v6371
      %v6596 = vrcp.pop %v6372
      %v6597 = vrcp.pop %v6373
      %v6598 = vrcp.pop %v6374
      %v6599 = vrcp.pop %v6375
      %v6600 = vrcp.pop %v6376
      %v6601 = vrcp.pop %v6377
      %v6602 = vrcp.pop %v6378
      %v6603 = vrcp.pop %v6379
      %v6604 = vrcp.pop %v6380
      %v6605 = vrcp.pop %v6381
      %v6606 = vrcp.pop %v6382
      %v6607 = vrcp.pop %v6383
      %v6608 = vrcp.pop %v6384
      %v6609 = vrcp.pop %v6385
      %v6610 = vrcp.pop %v6386
      %v6611 = vrcp.pop %v6387
      %v6612 = vrcp.pop %v6388
      %v6613 = vrcp.pop %v6389
      %v6614 = vrcp.pop %v6390
      %v6615 = vrcp.pop %v6391
      %v6616 = vrcp.pop %v6392
      %v6617 = vrcp.pop %v6393
      %v6618 = vrcp.pop %v6394
      %v6619 = vrcp.pop %v6395
      %v6620 = vrcp.pop %v6396
      %v6621 = vrcp.pop %v6397
      %v6622 = vrcp.pop %v6398
      %v6623 = vrcp.pop %v6399
      %v6624 = vrcp.pop %v6400
      %v6625 = vrcp.pop %v6401
      %v6626 = vrcp.pop %v6402
      %v6627 = vrcp.pop %v6403
      %v6628 = vrcp.pop %v6404
      %v6629 = vrcp.pop %v6405
      %v6630 = vrcp.pop %v6406
      %v6631 = vrcp.pop %v6407
      %v6632 = vrcp.pop %v6408
      %v6633 = vrcp.pop %v6409
      %v6634 = vrcp.pop %v6410
      %v6635 = vrcp.pop %v6411
      %v6636 = vrcp.pop %v6412
      %v6637 = vrcp.pop %v6413
      %v6638 = vrcp.pop %v6414
      %v6639 = vrcp.pop %v6415
      %v6640 = vrcp.pop %v6416
      %v6641 = vrcp.pop %v6417
      %v6642 = vrcp.pop %v6418
      %v6643 = vrcp.pop %v6419
      %v6644 = vrcp.pop %v6420
      %v6645 = vrcp.pop %v6421
      %v6646 = vrcp.pop %v6422
      %v6647 = vrcp.pop %v6423
      %v6648 = vrcp.pop %v6424
      %v6649 = vrcp.pop %v6425
      %v6650 = vrcp.pop %v6426
      %v6651 = vrcp.pop %v6427
      %v6652 = vrcp.pop %v6428
      %v6653 = vrcp.pop %v6429
      %v6654 = vrcp.pop %v6430
      %v6655 = vrcp.pop %v6431
      %v6656 = vrcp.pop %v6432
      %v6657 = vrcp.pop %v6433
      %v6658 = vrcp.pop %v6434
      %v6659 = vrcp.pop %v6435
      %v6660 = vrcp.pop %v6436
      %v6661 = vrcp.pop %v6437
      %v6662 = vrcp.pop %v6438
      %v6663 = vrcp.pop %v6439
      %v6664 = vrcp.pop %v6440
      %v6665 = vrcp.pop %v6441
      %v6666 = vrcp.pop %v6442
      %v6667 = vrcp.pop %v6443
      %v6668 = vrcp.pop %v6444
      %v6669 = vrcp.pop %v6445
      %v6670 = vrcp.pop %v6446
      %v6671 = vrcp.pop %v6447
      %v6672 = vrcp.pop %v6448
      %v6673 = vrcp.pop %v6449
      %v6674 = vrcp.pop %v6450
      %v6675 = vrcp.pop %v6451
      %v6676 = vrcp.pop %v6452
      %v6677 = vrcp.pop %v6453
      %v6678 = vrcp.pop %v6454
      %v6679 = vrcp.pop %v6455
      %v6680 = vrcp.pop %v6456
      %v6681 = vrcp.pop %v6457
      %v6682 = vrcp.pop %v6458
      %v6683 = vrcp.pop %v6459
      %v6684 = vrcp.pop %v6460
      %v6685 = vrcp.pop %v6461
      %v6686 = vrcp.pop %v6462
      %v6687 = vrcp.pop %v6463
      %v6688 = vrcp.pop %v6464
      %v6689 = vrcp.pop %v6465
      %v6690 = vrcp.pop %v6466
      %v6691 = vrcp.pop %v6467
      %v6692 = vrcp.pop %v6468
      %v6693 = vrcp.pop %v6469
      %v6694 = vrcp.pop %v6470
      %v6695 = vrcp.pop %v6471
      %v6696 = vrcp.pop %v6472
      %v6697 = vrcp.pop %v6473
      %v6698 = vrcp.pop %v6474
      %v6699 = vrcp.pop %v6475
      %v6700 = vrcp.pop %v6476
      %v6701 = vrcp.pop %v6477
      %v6702 = vrcp.pop %v6478
      %v6703 = vrcp.pop %v6479
      %v6704 = vrcp.pop %v6480
      %v6705 = vrcp.pop %v6481
      %v6706 = vrcp.pop %v6482
      %v6707 = vrcp.pop %v6483
      %v6708 = vrcp.pop %v6484
      %v6709 = vrcp.pop %v6485
      %v6710 = vrcp.pop %v6486
      %v6711 = vrcp.pop %v6487
      %v6712 = vrcp.pop %v6488
      %v6713 = vrcp.pop %v6489
      %v6714 = vrcp.pop %v6490
      %v6715 = vrcp.pop %v6491
      %v6716 = vrcp.pop %v6492
      %v6717 = vrcp.pop %v6493
      %v6718 = vrcp.pop %v6494
      %v6719 = vrcp.pop %v6495
      %v6720 = vrcp.pop %v6496
      %v6721 = vrcp.pop %v6497
      %v6722 = vrcp.pop %v6498
      %v6723 = vrcp.pop %v6499
      %v6724 = vrcp.pop %v6500
      %v6725 = vrcp.pop %v6501
      %v6726 = vrcp.pop %v6502
      %v6727 = vrcp.pop %v6503
      %v6728 = vrcp.pop %v6504
      %v6729 = vrcp.pop %v6505
      %v6730 = vrcp.pop %v6506
      %v6731 = vrcp.pop %v6507
      %v6732 = vrcp.pop %v6508
      %v6733 = vrcp.pop %v6509
      %v6734 = vrcp.pop %v6510
      %v6735 = vrcp.pop %v6511
      %v6736 = vrcp.pop %v6512
      %v6737 = vrcp.pop %v6513
      %v6738 = vrcp.pop %v6514
      %v6739 = vrcp.pop %v6515
      %v6740 = vrcp.pop %v6516
      %v6741 = vrcp.pop %v6517
      %v6742 = vrcp.pop %v6518
      %v6743 = vrcp.pop %v6519
      %v6744 = vrcp.pop %v6520
      %v6745 = vrcp.pop %v6521
      %v6746 = vrcp.pop %v6522
      %v6747 = vrcp.pop %v6523
      %v6748 = vrcp.pop %v6524
      %v6749 = vrcp.pop %v6525
      %v6750 = vrcp.pop %v6526
      %v6751 = vrcp.pop %v6527
      %v6752 = vrcp.pop %v6528
      %v6753 = vrcp.pop %v6529
      %v6754 = vrcp.pop %v6530
      %v6755 = vrcp.pop %v6531
      %v6756 = vrcp.pop %v6532
      %v6757 = vrcp.pop %v6533
      %v6758 = vrcp.pop %v6534
      %v6759 = vrcp.pop %v6535
      %v6760 = vrcp.pop %v6536
      %v6761 = vrcp.pop %v6537
      %v6762 = vrcp.pop %v6538
      %v6763 = vrcp.pop %v6539
      %v6764 = vrcp.pop %v6540
      %v6765 = vrcp.pop %v6541
      %v6766 = vrcp.pop %v6542
      %v6767 = vrcp.pop %v6543
      %v6768 = vrcp.pop %v6544
      %v6769 = vrcp.pop %v6545
      %v6770 = vrcp.pop %v6546
      %v6771 = vrcp.pop %v6547
      %v6772 = vrcp.pop %v6548
      %v6773 = vrcp.pop %v6549
      %v6774 = vrcp.pop %v6550
      %v6775 = vrcp.pop %v6551
      %v6776 = vrcp.pop %v6552
      %v6777 = vrcp.pop %v6553
      %v6778 = vrcp.pop %v6554
      %v6779 = vrcp.pop %v6555
      %v6780 = vrcp.pop %v6556
      %v6781 = vrcp.pop %v6557
      %v6782 = vrcp.pop %v6558
      %v6783 = vrcp.pop %v6559
      %v6784 = vrcp.pop %v6560
      %v6785 = vrcp.pop %v6561
      %6786 = vst [vmem:[%s596] sm:$0xff] %v6562
      %6787 = vst [vmem:[%s596 + $0x8] sm:$0xff] %v6563
      %6788 = vst [vmem:[%s596 + $0x10] sm:$0xff] %v6564
      %6789 = vst [vmem:[%s596 + $0x18] sm:$0xff] %v6565
      %6790 = vst [vmem:[%s596 + $0x20] sm:$0xff] %v6566
      %6791 = vst [vmem:[%s596 + $0x28] sm:$0xff] %v6567
      %6792 = vst [vmem:[%s596 + $0x30] sm:$0xff] %v6568
      %6793 = vst [vmem:[%s596 + $0x38] sm:$0xff] %v6569
      %6794 = vst [vmem:[%s596 + $0x40] sm:$0xff] %v6570
      %6795 = vst [vmem:[%s596 + $0x48] sm:$0xff] %v6571
      %6796 = vst [vmem:[%s596 + $0x50] sm:$0xff] %v6572
      %6797 = vst [vmem:[%s596 + $0x58] sm:$0xff] %v6573
      %6798 = vst [vmem:[%s596 + $0x60] sm:$0xff] %v6574
      %6799 = vst [vmem:[%s596 + $0x68] sm:$0xff] %v6575
      %6800 = vst [vmem:[%s596 + $0x70] sm:$0xff] %v6576
      %6801 = vst [vmem:[%s596 + $0x78] sm:$0xff] %v6577
      %6802 = vst [vmem:[%s596 + $0x80] sm:$0xff] %v6578
      %6803 = vst [vmem:[%s596 + $0x88] sm:$0xff] %v6579
      %6804 = vst [vmem:[%s596 + $0x90] sm:$0xff] %v6580
      %6805 = vst [vmem:[%s596 + $0x98] sm:$0xff] %v6581
      %6806 = vst [vmem:[%s596 + $0xa0] sm:$0xff] %v6582
      %6807 = vst [vmem:[%s596 + $0xa8] sm:$0xff] %v6583
      %6808 = vst [vmem:[%s596 + $0xb0] sm:$0xff] %v6584
      %6809 = vst [vmem:[%s596 + $0xb8] sm:$0xff] %v6585
      %6810 = vst [vmem:[%s596 + $0xc0] sm:$0xff] %v6586
      %6811 = vst [vmem:[%s596 + $0xc8] sm:$0xff] %v6587
      %6812 = vst [vmem:[%s596 + $0xd0] sm:$0xff] %v6588
      %6813 = vst [vmem:[%s596 + $0xd8] sm:$0xff] %v6589
      %6814 = vst [vmem:[%s596 + $0xe0] sm:$0xff] %v6590
      %6815 = vst [vmem:[%s596 + $0xe8] sm:$0xff] %v6591
      %6816 = vst [vmem:[%s596 + $0xf0] sm:$0xff] %v6592
      %6817 = vst [vmem:[%s596 + $0xf8] sm:$0xff] %v6593
      %6818 = vst [vmem:[%s596 + $0x100] sm:$0xff] %v6594
      %6819 = vst [vmem:[%s596 + $0x108] sm:$0xff] %v6595
      %6820 = vst [vmem:[%s596 + $0x110] sm:$0xff] %v6596
      %6821 = vst [vmem:[%s596 + $0x118] sm:$0xff] %v6597
      %6822 = vst [vmem:[%s596 + $0x120] sm:$0xff] %v6598
      %6823 = vst [vmem:[%s596 + $0x128] sm:$0xff] %v6599
      %6824 = vst [vmem:[%s596 + $0x130] sm:$0xff] %v6600
      %6825 = vst [vmem:[%s596 + $0x138] sm:$0xff] %v6601
      %6826 = vst [vmem:[%s596 + $0x140] sm:$0xff] %v6602
      %6827 = vst [vmem:[%s596 + $0x148] sm:$0xff] %v6603
      %6828 = vst [vmem:[%s596 + $0x150] sm:$0xff] %v6604
      %6829 = vst [vmem:[%s596 + $0x158] sm:$0xff] %v6605
      %6830 = vst [vmem:[%s596 + $0x160] sm:$0xff] %v6606
      %6831 = vst [vmem:[%s596 + $0x168] sm:$0xff] %v6607
      %6832 = vst [vmem:[%s596 + $0x170] sm:$0xff] %v6608
      %6833 = vst [vmem:[%s596 + $0x178] sm:$0xff] %v6609
      %6834 = vst [vmem:[%s596 + $0x180] sm:$0xff] %v6610
      %6835 = vst [vmem:[%s596 + $0x188] sm:$0xff] %v6611
      %6836 = vst [vmem:[%s596 + $0x190] sm:$0xff] %v6612
      %6837 = vst [vmem:[%s596 + $0x198] sm:$0xff] %v6613
      %6838 = vst [vmem:[%s596 + $0x1a0] sm:$0xff] %v6614
      %6839 = vst [vmem:[%s596 + $0x1a8] sm:$0xff] %v6615
      %6840 = vst [vmem:[%s596 + $0x1b0] sm:$0xff] %v6616
      %6841 = vst [vmem:[%s596 + $0x1b8] sm:$0xff] %v6617
      %6842 = vst [vmem:[%s596 + $0x1c0] sm:$0xff] %v6618
      %6843 = vst [vmem:[%s596 + $0x1c8] sm:$0xff] %v6619
      %6844 = vst [vmem:[%s596 + $0x1d0] sm:$0xff] %v6620
      %6845 = vst [vmem:[%s596 + $0x1d8] sm:$0xff] %v6621
      %6846 = vst [vmem:[%s596 + $0x1e0] sm:$0xff] %v6622
      %6847 = vst [vmem:[%s596 + $0x1e8] sm:$0xff] %v6623
      %6848 = vst [vmem:[%s596 + $0x1f0] sm:$0xff] %v6624
      %6849 = vst [vmem:[%s596 + $0x1f8] sm:$0xff] %v6625
      %6850 = vst [vmem:[%s596 + $0x200] sm:$0xff] %v6626
      %6851 = vst [vmem:[%s596 + $0x208] sm:$0xff] %v6627
      %6852 = vst [vmem:[%s596 + $0x210] sm:$0xff] %v6628
      %6853 = vst [vmem:[%s596 + $0x218] sm:$0xff] %v6629
      %6854 = vst [vmem:[%s596 + $0x220] sm:$0xff] %v6630
      %6855 = vst [vmem:[%s596 + $0x228] sm:$0xff] %v6631
      %6856 = vst [vmem:[%s596 + $0x230] sm:$0xff] %v6632
      %6857 = vst [vmem:[%s596 + $0x238] sm:$0xff] %v6633
      %6858 = vst [vmem:[%s596 + $0x240] sm:$0xff] %v6634
      %6859 = vst [vmem:[%s596 + $0x248] sm:$0xff] %v6635
      %6860 = vst [vmem:[%s596 + $0x250] sm:$0xff] %v6636
      %6861 = vst [vmem:[%s596 + $0x258] sm:$0xff] %v6637
      %6862 = vst [vmem:[%s596 + $0x260] sm:$0xff] %v6638
      %6863 = vst [vmem:[%s596 + $0x268] sm:$0xff] %v6639
      %6864 = vst [vmem:[%s596 + $0x270] sm:$0xff] %v6640
      %6865 = vst [vmem:[%s596 + $0x278] sm:$0xff] %v6641
      %6866 = vst [vmem:[%s596 + $0x280] sm:$0xff] %v6642
      %6867 = vst [vmem:[%s596 + $0x288] sm:$0xff] %v6643
      %6868 = vst [vmem:[%s596 + $0x290] sm:$0xff] %v6644
      %6869 = vst [vmem:[%s596 + $0x298] sm:$0xff] %v6645
      %6870 = vst [vmem:[%s596 + $0x2a0] sm:$0xff] %v6646
      %6871 = vst [vmem:[%s596 + $0x2a8] sm:$0xff] %v6647
      %6872 = vst [vmem:[%s596 + $0x2b0] sm:$0xff] %v6648
      %6873 = vst [vmem:[%s596 + $0x2b8] sm:$0xff] %v6649
      %6874 = vst [vmem:[%s596 + $0x2c0] sm:$0xff] %v6650
      %6875 = vst [vmem:[%s596 + $0x2c8] sm:$0xff] %v6651
      %6876 = vst [vmem:[%s596 + $0x2d0] sm:$0xff] %v6652
      %6877 = vst [vmem:[%s596 + $0x2d8] sm:$0xff] %v6653
      %6878 = vst [vmem:[%s596 + $0x2e0] sm:$0xff] %v6654
      %6879 = vst [vmem:[%s596 + $0x2e8] sm:$0xff] %v6655
      %6880 = vst [vmem:[%s596 + $0x2f0] sm:$0xff] %v6656
      %6881 = vst [vmem:[%s596 + $0x2f8] sm:$0xff] %v6657
      %6882 = vst [vmem:[%s596 + $0x300] sm:$0xff] %v6658
      %6883 = vst [vmem:[%s596 + $0x308] sm:$0xff] %v6659
      %6884 = vst [vmem:[%s596 + $0x310] sm:$0xff] %v6660
      %6885 = vst [vmem:[%s596 + $0x318] sm:$0xff] %v6661
      %6886 = vst [vmem:[%s596 + $0x320] sm:$0xff] %v6662
      %6887 = vst [vmem:[%s596 + $0x328] sm:$0xff] %v6663
      %6888 = vst [vmem:[%s596 + $0x330] sm:$0xff] %v6664
      %6889 = vst [vmem:[%s596 + $0x338] sm:$0xff] %v6665
      %6890 = vst [vmem:[%s596 + $0x340] sm:$0xff] %v6666
      %6891 = vst [vmem:[%s596 + $0x348] sm:$0xff] %v6667
      %6892 = vst [vmem:[%s596 + $0x350] sm:$0xff] %v6668
      %6893 = vst [vmem:[%s596 + $0x358] sm:$0xff] %v6669
      %6894 = vst [vmem:[%s596 + $0x360] sm:$0xff] %v6670
      %6895 = vst [vmem:[%s596 + $0x368] sm:$0xff] %v6671
      %6896 = vst [vmem:[%s596 + $0x370] sm:$0xff] %v6672
      %6897 = vst [vmem:[%s596 + $0x378] sm:$0xff] %v6673
      %6898 = vst [vmem:[%s596 + $0x380] sm:$0xff] %v6674
      %6899 = vst [vmem:[%s596 + $0x388] sm:$0xff] %v6675
      %6900 = vst [vmem:[%s596 + $0x390] sm:$0xff] %v6676
      %6901 = vst [vmem:[%s596 + $0x398] sm:$0xff] %v6677
      %6902 = vst [vmem:[%s596 + $0x3a0] sm:$0xff] %v6678
      %6903 = vst [vmem:[%s596 + $0x3a8] sm:$0xff] %v6679
      %6904 = vst [vmem:[%s596 + $0x3b0] sm:$0xff] %v6680
      %6905 = vst [vmem:[%s596 + $0x3b8] sm:$0xff] %v6681
      %6906 = vst [vmem:[%s596 + $0x3c0] sm:$0xff] %v6682
      %6907 = vst [vmem:[%s596 + $0x3c8] sm:$0xff] %v6683
      %6908 = vst [vmem:[%s596 + $0x3d0] sm:$0xff] %v6684
      %6909 = vst [vmem:[%s596 + $0x3d8] sm:$0xff] %v6685
      %6910 = vst [vmem:[%s596 + $0x3e0] sm:$0xff] %v6686
      %6911 = vst [vmem:[%s596 + $0x3e8] sm:$0xff] %v6687
      %6912 = vst [vmem:[%s596 + $0x3f0] sm:$0xff] %v6688
      %6913 = vst [vmem:[%s596 + $0x3f8] sm:$0xff] %v6689
      %6914 = vst [vmem:[%s596 + $0x400] sm:$0xff] %v6690
      %6915 = vst [vmem:[%s596 + $0x408] sm:$0xff] %v6691
      %6916 = vst [vmem:[%s596 + $0x410] sm:$0xff] %v6692
      %6917 = vst [vmem:[%s596 + $0x418] sm:$0xff] %v6693
      %6918 = vst [vmem:[%s596 + $0x420] sm:$0xff] %v6694
      %6919 = vst [vmem:[%s596 + $0x428] sm:$0xff] %v6695
      %6920 = vst [vmem:[%s596 + $0x430] sm:$0xff] %v6696
      %6921 = vst [vmem:[%s596 + $0x438] sm:$0xff] %v6697
      %6922 = vst [vmem:[%s596 + $0x440] sm:$0xff] %v6698
      %6923 = vst [vmem:[%s596 + $0x448] sm:$0xff] %v6699
      %6924 = vst [vmem:[%s596 + $0x450] sm:$0xff] %v6700
      %6925 = vst [vmem:[%s596 + $0x458] sm:$0xff] %v6701
      %6926 = vst [vmem:[%s596 + $0x460] sm:$0xff] %v6702
      %6927 = vst [vmem:[%s596 + $0x468] sm:$0xff] %v6703
      %6928 = vst [vmem:[%s596 + $0x470] sm:$0xff] %v6704
      %6929 = vst [vmem:[%s596 + $0x478] sm:$0xff] %v6705
      %6930 = vst [vmem:[%s596 + $0x480] sm:$0xff] %v6706
      %6931 = vst [vmem:[%s596 + $0x488] sm:$0xff] %v6707
      %6932 = vst [vmem:[%s596 + $0x490] sm:$0xff] %v6708
      %6933 = vst [vmem:[%s596 + $0x498] sm:$0xff] %v6709
      %6934 = vst [vmem:[%s596 + $0x4a0] sm:$0xff] %v6710
      %6935 = vst [vmem:[%s596 + $0x4a8] sm:$0xff] %v6711
      %6936 = vst [vmem:[%s596 + $0x4b0] sm:$0xff] %v6712
      %6937 = vst [vmem:[%s596 + $0x4b8] sm:$0xff] %v6713
      %6938 = vst [vmem:[%s596 + $0x4c0] sm:$0xff] %v6714
      %6939 = vst [vmem:[%s596 + $0x4c8] sm:$0xff] %v6715
      %6940 = vst [vmem:[%s596 + $0x4d0] sm:$0xff] %v6716
      %6941 = vst [vmem:[%s596 + $0x4d8] sm:$0xff] %v6717
      %6942 = vst [vmem:[%s596 + $0x4e0] sm:$0xff] %v6718
      %6943 = vst [vmem:[%s596 + $0x4e8] sm:$0xff] %v6719
      %6944 = vst [vmem:[%s596 + $0x4f0] sm:$0xff] %v6720
      %6945 = vst [vmem:[%s596 + $0x4f8] sm:$0xff] %v6721
      %6946 = vst [vmem:[%s596 + $0x500] sm:$0xff] %v6722
      %6947 = vst [vmem:[%s596 + $0x508] sm:$0xff] %v6723
      %6948 = vst [vmem:[%s596 + $0x510] sm:$0xff] %v6724
      %6949 = vst [vmem:[%s596 + $0x518] sm:$0xff] %v6725
      %6950 = vst [vmem:[%s596 + $0x520] sm:$0xff] %v6726
      %6951 = vst [vmem:[%s596 + $0x528] sm:$0xff] %v6727
      %6952 = vst [vmem:[%s596 + $0x530] sm:$0xff] %v6728
      %6953 = vst [vmem:[%s596 + $0x538] sm:$0xff] %v6729
      %6954 = vst [vmem:[%s596 + $0x540] sm:$0xff] %v6730
      %6955 = vst [vmem:[%s596 + $0x548] sm:$0xff] %v6731
      %6956 = vst [vmem:[%s596 + $0x550] sm:$0xff] %v6732
      %6957 = vst [vmem:[%s596 + $0x558] sm:$0xff] %v6733
      %6958 = vst [vmem:[%s596 + $0x560] sm:$0xff] %v6734
      %6959 = vst [vmem:[%s596 + $0x568] sm:$0xff] %v6735
      %6960 = vst [vmem:[%s596 + $0x570] sm:$0xff] %v6736
      %6961 = vst [vmem:[%s596 + $0x578] sm:$0xff] %v6737
      %6962 = vst [vmem:[%s596 + $0x580] sm:$0xff] %v6738
      %6963 = vst [vmem:[%s596 + $0x588] sm:$0xff] %v6739
      %6964 = vst [vmem:[%s596 + $0x590] sm:$0xff] %v6740
      %6965 = vst [vmem:[%s596 + $0x598] sm:$0xff] %v6741
      %6966 = vst [vmem:[%s596 + $0x5a0] sm:$0xff] %v6742
      %6967 = vst [vmem:[%s596 + $0x5a8] sm:$0xff] %v6743
      %6968 = vst [vmem:[%s596 + $0x5b0] sm:$0xff] %v6744
      %6969 = vst [vmem:[%s596 + $0x5b8] sm:$0xff] %v6745
      %6970 = vst [vmem:[%s596 + $0x5c0] sm:$0xff] %v6746
      %6971 = vst [vmem:[%s596 + $0x5c8] sm:$0xff] %v6747
      %6972 = vst [vmem:[%s596 + $0x5d0] sm:$0xff] %v6748
      %6973 = vst [vmem:[%s596 + $0x5d8] sm:$0xff] %v6749
      %6974 = vst [vmem:[%s596 + $0x5e0] sm:$0xff] %v6750
      %6975 = vst [vmem:[%s596 + $0x5e8] sm:$0xff] %v6751
      %6976 = vst [vmem:[%s596 + $0x5f0] sm:$0xff] %v6752
      %6977 = vst [vmem:[%s596 + $0x5f8] sm:$0xff] %v6753
      %6978 = vst [vmem:[%s596 + $0x600] sm:$0xff] %v6754
      %6979 = vst [vmem:[%s596 + $0x608] sm:$0xff] %v6755
      %6980 = vst [vmem:[%s596 + $0x610] sm:$0xff] %v6756
      %6981 = vst [vmem:[%s596 + $0x618] sm:$0xff] %v6757
      %6982 = vst [vmem:[%s596 + $0x620] sm:$0xff] %v6758
      %6983 = vst [vmem:[%s596 + $0x628] sm:$0xff] %v6759
      %6984 = vst [vmem:[%s596 + $0x630] sm:$0xff] %v6760
      %6985 = vst [vmem:[%s596 + $0x638] sm:$0xff] %v6761
      %6986 = vst [vmem:[%s596 + $0x640] sm:$0xff] %v6762
      %6987 = vst [vmem:[%s596 + $0x648] sm:$0xff] %v6763
      %6988 = vst [vmem:[%s596 + $0x650] sm:$0xff] %v6764
      %6989 = vst [vmem:[%s596 + $0x658] sm:$0xff] %v6765
      %6990 = vst [vmem:[%s596 + $0x660] sm:$0xff] %v6766
      %6991 = vst [vmem:[%s596 + $0x668] sm:$0xff] %v6767
      %6992 = vst [vmem:[%s596 + $0x670] sm:$0xff] %v6768
      %6993 = vst [vmem:[%s596 + $0x678] sm:$0xff] %v6769
      %6994 = vst [vmem:[%s596 + $0x680] sm:$0xff] %v6770
      %6995 = vst [vmem:[%s596 + $0x688] sm:$0xff] %v6771
      %6996 = vst [vmem:[%s596 + $0x690] sm:$0xff] %v6772
      %6997 = vst [vmem:[%s596 + $0x698] sm:$0xff] %v6773
      %6998 = vst [vmem:[%s596 + $0x6a0] sm:$0xff] %v6774
      %6999 = vst [vmem:[%s596 + $0x6a8] sm:$0xff] %v6775
      %7000 = vst [vmem:[%s596 + $0x6b0] sm:$0xff] %v6776
      %7001 = vst [vmem:[%s596 + $0x6b8] sm:$0xff] %v6777
      %7002 = vst [vmem:[%s596 + $0x6c0] sm:$0xff] %v6778
      %7003 = vst [vmem:[%s596 + $0x6c8] sm:$0xff] %v6779
      %7004 = vst [vmem:[%s596 + $0x6d0] sm:$0xff] %v6780
      %7005 = vst [vmem:[%s596 + $0x6d8] sm:$0xff] %v6781
      %7006 = vst [vmem:[%s596 + $0x6e0] sm:$0xff] %v6782
      %7007 = vst [vmem:[%s596 + $0x6e8] sm:$0xff] %v6783
      %7008 = vst [vmem:[%s596 + $0x6f0] sm:$0xff] %v6784
      %7009 = vst [vmem:[%s596 + $0x6f8] sm:$0xff] %v6785
      %s7010 = smul.u32 32, %s30
      %p7011 = scmp.lt.s32.totalorder %s7010, 63
      %s7012 = scalar_select %p7011, %s7010, 63
      %s7013 = smul.addr %s7012, 8
      %s7014 = scalar_lea.vmem %s17, %s7013
      %s7015 = smul.u32 32, %s30
      %p7016 = scmp.lt.s32.totalorder %s7015, 63
      %s7017 = scalar_select %p7016, %s7015, 63
      %s7018 = smul.addr %s7017, 7
      %s7019 = smul.addr %s7018, 8
      %s7020 = scalar_lea.vmem %s18, %s7019
      // Predicated region
      $region89: #{encoder_decoder.1} parent=87 // pred_check
        %p7021 = pneg %p410
      $region90: #{encoder_decoder.1} parent=87 // pred_check_branch
        %7023 = sbr.rel (%p7021) target = $region92
      $region91: #{encoder_decoder.1} parent=87 // pred_region
        %s7024 = smul.u32 32, %s30
      $region92: #{encoder_decoder.1} parent=87 // pred_fallthru
        _
      // Predicated region
      $region93: #{encoder_decoder.1} parent=87 // pred_check
        %p7025 = pneg %p436
      $region94: #{encoder_decoder.1} parent=87 // pred_check_branch
        %7027 = sbr.rel (%p7025) target = $region96
      $region95: #{encoder_decoder.1} parent=87 // pred_region
        %s7028 = smul.u32 32, %s30
      $region96: #{encoder_decoder.1} parent=87 // pred_fallthru
        _
    $region88: #{encoder_decoder.1} parent=5 // pred_fallthru
      _
    %p7029 = scmp.le.s32.totalorder 2, %s25
    // Predicated region
    $region97: #{encoder_decoder.1} parent=5 // pred_check
      %p7030 = pneg %p7029
    $region98: #{encoder_decoder.1} parent=5 // pred_check_branch
      %7032 = sbr.rel (%p7030) target = $region100
    $region99: #{encoder_decoder.1} parent=5 // pred_region
      %s7033 = ssub.s32 %s25, 2
      // Predicated region
      $region101: #{encoder_decoder.1} parent=99 // pred_check
        %p7034 = pneg %p416
      $region102: #{encoder_decoder.1} parent=99 // pred_check_branch
        %7036 = sbr.rel (%p7034) target = $region104
      $region103: #{encoder_decoder.1} parent=99 // pred_region
        %s7037 = smul.u32 32, %s31
        %p7038 = scmp.lt.s32.totalorder %s7037, 63
        %s7039 = scalar_select %p7038, %s7037, 63
        %s7040 = smul.addr %s7039, 8
        %s7041 = scalar_lea.vmem %s17, %s7040
      $region104: #{encoder_decoder.1} parent=99 // pred_fallthru
        _
      // Predicated region
      $region105: #{encoder_decoder.1} parent=99 // pred_check
        %p7042 = pneg %p442
      $region106: #{encoder_decoder.1} parent=99 // pred_check_branch
        %7044 = sbr.rel (%p7042) target = $region108
      $region107: #{encoder_decoder.1} parent=99 // pred_region
        %s7045 = smul.u32 32, %s31
        %p7046 = scmp.lt.s32.totalorder %s7045, 63
        %s7047 = scalar_select %p7046, %s7045, 63
        %s7048 = smul.addr %s7047, 7
        %s7049 = smul.addr %s7048, 8
        %s7050 = scalar_lea.vmem %s18, %s7049
      $region108: #{encoder_decoder.1} parent=99 // pred_fallthru
        _
    $region100: #{encoder_decoder.1} parent=5 // pred_fallthru
      _
  $region6: #{encoder_decoder.1} parent=0 // loop_footer
    %s29 = sadd.s32 1, %s25
  $region7: #{encoder_decoder.1} parent=0 // loop_footer_branch
    %24 = sbr.rel target = $region3
  $region8: #{encoder_decoder.1} parent=0 // loop_exit
    _

</llo_original>
